<compile_context>
chip_gen: v7x
topology: tpu7x:2x2x1
jax: 0.10.0
libtpu: 0.0.40
codegen_flags: <defaults>
</compile_context>

<pallas_src>
import functools
import math

import jax
import jax.numpy as jnp
from jax import lax
from jax.experimental import pallas as pl
from jax.experimental.pallas import tpu as pltpu


_CH = 128        # conv2 row chunk (rows per matmul / running-max step)
_C2P = 128       # conv2 output channels padded to a full lane width
_TAPS_PAD = 32   # 27 conv taps zero-padded to 4 groups of 8 (8 * 16 ch = K = 128)


def _round_up(x, m):
    return (x + m - 1) // m * m


def _make_qnetwork2_kernel(NB, C1, R_pad, P_round, CH, offs_grouped, max_action):
    """Build the fused forward kernel for static shapes."""
    n_h1_chunks = R_pad // CH
    n_c2_chunks = P_round // CH
    n_groups = len(offs_grouped)

    def kernel(xcol_ref, mask_ref, w1_ref, s1_ref, t1_ref,
               w2_ref, s2_ref, t2_ref, out_ref, h1_scr):
        s1 = s1_ref[...]                      # (1, C1)   folded BN1 scale
        t1 = t1_ref[...]                      # (1, C1)   folded conv1-bias + BN1 shift
        s2 = s2_ref[...]                      # (1, 128)  folded BN2 scale (lane-padded)
        t2 = t2_ref[...]                      # (1, 128)
        w1 = w1_ref[...]                      # (32, C1)  conv1 taps (zero-padded)

        for b in range(NB):                   # NB batch elements per grid step
            # ---- conv1 (im2col matmul) + BN1 + ReLU -> h1 scratch, chunked ----
            def conv1_body(i, carry):
                r0 = pl.multiple_of(i * CH, CH)
                xc = xcol_ref[b, pl.ds(r0, CH), :]            # (CH, 32) f32
                h = jnp.dot(xc, w1, preferred_element_type=jnp.float32)
                h1_scr[pl.ds(r0, CH), :] = jnp.maximum(h * s1 + t1, 0.0)
                return carry

            lax.fori_loop(0, n_h1_chunks, conv1_body, 0)

            # ---- conv2 (grouped-K MXU) + BN2 + ReLU + mask + running max ------
            def conv2_body(i, qmax):
                c0 = pl.multiple_of(i * CH, CH)
                acc = jnp.zeros((CH, _C2P), jnp.float32)
                for g in range(n_groups):
                    # 8 shifted h1 slices -> one K = 8*C1 = 128 LHS tile
                    pieces = [h1_scr[pl.ds(c0 + off, CH), :]
                              for off in offs_grouped[g]]
                    lhs = jnp.concatenate(pieces, axis=1).astype(jnp.bfloat16)
                    acc = acc + jnp.dot(lhs, w2_ref[g],
                                        preferred_element_type=jnp.float32)
                y = jnp.maximum(acc * s2 + t2, 0.0)           # BN2 + ReLU (f32 VPU)
                # Multiplicative {0,1} mask is exact only because ReLU gives y>=0;
                # switch to jnp.where(mask, y, -inf) if the activation changes.
                y = y * mask_ref[pl.ds(c0, CH), :]            # (CH,1) lane-broadcast
                return jnp.maximum(qmax, jnp.max(y, axis=0, keepdims=True))

            qmax = lax.fori_loop(0, n_c2_chunks, conv2_body,
                                 jnp.zeros((1, _C2P), jnp.float32))

            # AdaptiveMaxPool3d(1) result -> max_action * tanh, one dense row
            out_ref[b:b + 1, :] = max_action * jnp.tanh(qmax)

    return kernel


@functools.partial(jax.jit, static_argnames=("max_action",))
def qnetwork2_forward(x, params, max_action=1.0):
    """x: (N, 1, D, H, W) float32 -> squeezed (N, action_dim) Q-values."""
    N, cin, D, H, W = x.shape
    C1 = params["conv1_w"].shape[-1]
    A = params["conv2_w"].shape[-1]
    assert cin == 1 and C1 == 16 and A <= _C2P and min(D, H, W) >= 5
    eps = 1e-5

    P = D * H * W
    HW = H * W
    max_off = 2 * HW + 2 * W + 2                # largest flat tap offset
    P_round = _round_up(P, _CH)                 # conv2 output rows (chunk multiple)
    R_pad = _round_up(P_round + max_off, _CH)   # h1 rows made available
    X_len = R_pad + max_off                     # zero-padded flat-x length

    NB = min(8, N)                              # batch elements per grid step
    N_pad = _round_up(N, NB)
    G = N_pad // NB

    offs = tuple(kd * HW + kh * W + kw
                 for kd in range(3) for kh in range(3) for kw in range(3))
    offs_padded = offs + (0,) * (_TAPS_PAD - 27)          # dummy taps: zero weights
    offs_grouped = tuple(offs_padded[g * 8:(g + 1) * 8]
                         for g in range(_TAPS_PAD // 8))

    # ---- conv1 im2col slab (pure layout plumbing; conv math stays in-kernel) ----
    xf = x.astype(jnp.float32).reshape(N, P)
    xf = jnp.pad(xf, ((0, N_pad - N), (0, X_len - P)))
    xcol = jnp.stack([xf[:, off:off + R_pad] for off in offs_padded], axis=-1)
    # xcol: (N_pad, R_pad, 32)

    # validity mask for conv2 output rows (two VALID convs shrink each dim by 4)
    vd = jnp.arange(D) < D - 4
    vh = jnp.arange(H) < H - 4
    vw = jnp.arange(W) < W - 4
    mask = (vd[:, None, None] & vh[None, :, None] & vw[None, None, :]).reshape(P)
    mask = jnp.pad(mask, (0, P_round - P)).astype(jnp.float32).reshape(P_round, 1)

    # ---- fold conv bias + eval-mode BatchNorm into per-channel scale/shift ----
    w1 = jnp.pad(params["conv1_w"].reshape(27, C1), ((0, _TAPS_PAD - 27), (0, 0)))
    s1 = params["bn1_gamma"] / jnp.sqrt(params["bn1_var"] + eps)
    t1 = (params["conv1_b"] - params["bn1_mean"]) * s1 + params["bn1_beta"]

    s2 = params["bn2_gamma"] / jnp.sqrt(params["bn2_var"] + eps)
    t2 = (params["conv2_b"] - params["bn2_mean"]) * s2 + params["bn2_beta"]
    w2 = jnp.pad(params["conv2_w"].reshape(27, C1, A),
                 ((0, _TAPS_PAD - 27), (0, 0), (0, _C2P - A)))
    w2g = w2.reshape(_TAPS_PAD // 8, 8 * C1, _C2P).astype(jnp.bfloat16)
    s2 = jnp.pad(s2, (0, _C2P - A))
    t2 = jnp.pad(t2, (0, _C2P - A))

    kernel = _make_qnetwork2_kernel(NB, C1, R_pad, P_round, _CH,
                                    offs_grouped, float(max_action))

    out = pl.pallas_call(
        kernel,
        out_shape=jax.ShapeDtypeStruct((N_pad, _C2P), jnp.float32),
        grid_spec=pltpu.PrefetchScalarGridSpec(
            num_scalar_prefetch=0,
            grid=(G,),
            in_specs=[
                pl.BlockSpec((NB, R_pad, _TAPS_PAD), lambda g: (g, 0, 0)),  # x im2col
                pl.BlockSpec((P_round, 1), lambda g: (0, 0)),               # row mask
                pl.BlockSpec((_TAPS_PAD, C1), lambda g: (0, 0)),            # conv1 taps
                pl.BlockSpec((1, C1), lambda g: (0, 0)),                    # BN1 scale
                pl.BlockSpec((1, C1), lambda g: (0, 0)),                    # BN1 shift
                pl.BlockSpec((_TAPS_PAD // 8, 8 * C1, _C2P),                # conv2 taps
                             lambda g: (0, 0, 0)),
                pl.BlockSpec((1, _C2P), lambda g: (0, 0)),                  # BN2 scale
                pl.BlockSpec((1, _C2P), lambda g: (0, 0)),                  # BN2 shift
            ],
            out_specs=pl.BlockSpec((NB, _C2P), lambda g: (g, 0)),
            scratch_shapes=[pltpu.VMEM((R_pad, C1), jnp.float32)],
        ),
        compiler_params=pltpu.CompilerParams(
            dimension_semantics=("parallel",),
            vmem_limit_bytes=32 * 1024 * 1024,
        ),
    )(xcol, mask, w1, s1.reshape(1, C1), t1.reshape(1, C1),
      w2g, s2.reshape(1, _C2P), t2.reshape(1, _C2P))

    return jnp.squeeze(out[:N, :A])           # lane-dense slab -> (N, A), torch.squeeze


def init_qnetwork2_params(key, action_dim, c1=16):
    """PyTorch-default-style conv init plus non-trivial eval-mode BN statistics."""
    ks = jax.random.split(key, 12)
    u = lambda k, shape, b: jax.random.uniform(k, shape, jnp.float32, -b, b)
    b1 = 1.0 / math.sqrt(1 * 3 * 3 * 3)
    b2 = 1.0 / math.sqrt(c1 * 3 * 3 * 3)
    return {
        "conv1_w": u(ks[0], (3, 3, 3, 1, c1), b1),
        "conv1_b": u(ks[1], (c1,), b1),
        "bn1_gamma": jax.random.uniform(ks[2], (c1,), jnp.float32, 0.5, 1.5),
        "bn1_beta": 0.1 * jax.random.normal(ks[3], (c1,), jnp.float32),
        "bn1_mean": 0.1 * jax.random.normal(ks[4], (c1,), jnp.float32),
        "bn1_var": jax.random.uniform(ks[5], (c1,), jnp.float32, 0.5, 1.5),
        "conv2_w": u(ks[6], (3, 3, 3, c1, action_dim), b2),
        "conv2_b": u(ks[7], (action_dim,), b2),
        "bn2_gamma": jax.random.uniform(ks[8], (action_dim,), jnp.float32, 0.5, 1.5),
        "bn2_beta": 0.1 * jax.random.normal(ks[9], (action_dim,), jnp.float32),
        "bn2_mean": 0.1 * jax.random.normal(ks[10], (action_dim,), jnp.float32),
        "bn2_var": jax.random.uniform(ks[11], (action_dim,), jnp.float32, 0.5, 1.5),
    }


def qnetwork2_reference(x, params, max_action, eps=1e-5):
    """Pure-JAX (lax.conv) reference for correctness checking (eval-mode BN)."""
    def bn(y, prefix):
        sh = (1, -1, 1, 1, 1)
        g, b = params[prefix + "_gamma"], params[prefix + "_beta"]
        m, v = params[prefix + "_mean"], params[prefix + "_var"]
        return (y - m.reshape(sh)) / jnp.sqrt(v.reshape(sh) + eps) * g.reshape(sh) \
            + b.reshape(sh)

    dn = ("NCDHW", "OIDHW", "NCDHW")
    w1 = jnp.transpose(params["conv1_w"], (4, 3, 0, 1, 2))   # (C1, 1, 3, 3, 3)
    w2 = jnp.transpose(params["conv2_w"], (4, 3, 0, 1, 2))   # (A, C1, 3, 3, 3)

    y = lax.conv_general_dilated(x, w1, (1, 1, 1), "VALID", dimension_numbers=dn,
                                 precision=lax.Precision.HIGHEST)
    y = jnp.maximum(bn(y + params["conv1_b"].reshape(1, -1, 1, 1, 1), "bn1"), 0.0)
    y = lax.conv_general_dilated(y, w2, (1, 1, 1), "VALID", dimension_numbers=dn,
                                 precision=lax.Precision.HIGHEST)
    y = jnp.maximum(bn(y + params["conv2_b"].reshape(1, -1, 1, 1, 1), "bn2"), 0.0)
    q = jnp.max(y, axis=(2, 3, 4))                 # AdaptiveMaxPool3d(1)
    return jnp.squeeze(max_action * jnp.tanh(q))


if __name__ == "__main__":
    key = jax.random.PRNGKey(0)
    k_par, k_x = jax.random.split(key)

    action_dim = 4
    max_action = 2.0
    N, D, H, W = 2, 12, 12, 12

    params = init_qnetwork2_params(k_par, action_dim)
    x = jax.random.normal(k_x, (N, 1, D, H, W), jnp.float32)

    q_vals = qnetwork2_forward(x, params, max_action=max_action)
    q_vals = jax.block_until_ready(q_vals)

    q_ref = qnetwork2_reference(x, params, max_action)
    assert q_vals.shape == (N, action_dim), q_vals.shape
    max_err = float(jnp.max(jnp.abs(q_vals - q_ref)))
    # conv2 uses bf16 MXU inputs with f32 accumulation -> small dtype tolerance.
    assert max_err < 2e-2, f"Pallas output mismatch vs reference (max err {max_err})"

    print("KERNEL_OK")
</pallas_src>

<mosaic_0001>
module attributes {stable_mosaic.version = 11 : i64} {
  func.func @kernel(%arg0: i32, %arg1: memref<2x2176x32xf32, #tpu.memory_space<vmem>>, %arg2: memref<1792x1xf32, #tpu.memory_space<vmem>>, %arg3: memref<32x16xf32, #tpu.memory_space<vmem>>, %arg4: memref<1x16xf32, #tpu.memory_space<vmem>>, %arg5: memref<1x16xf32, #tpu.memory_space<vmem>>, %arg6: memref<4x128x128xbf16, #tpu.memory_space<vmem>>, %arg7: memref<1x128xf32, #tpu.memory_space<vmem>>, %arg8: memref<1x128xf32, #tpu.memory_space<vmem>>, %arg9: memref<2x128xf32, #tpu.memory_space<vmem>>, %arg10: memref<2176x16xf32, #tpu.memory_space<vmem>>) attributes {dimension_semantics = [#tpu.dimension_semantics<parallel>], iteration_bounds = array<i64: 1>, scalar_prefetch = 0 : i64, scratch_operands = 1 : i64, tpu.core_type = #tpu.core_type<tc>, window_params = [{transform_indices = @transform_0, window_bounds = array<i64: 2, 2176, 32>}, {pipeline_mode = #tpu.pipeline_mode<synchronous>, transform_indices = @transform_1, window_bounds = array<i64: 1792, 1>}, {pipeline_mode = #tpu.pipeline_mode<synchronous>, transform_indices = @transform_2, window_bounds = array<i64: 32, 16>}, {pipeline_mode = #tpu.pipeline_mode<synchronous>, transform_indices = @transform_3, window_bounds = array<i64: 1, 16>}, {pipeline_mode = #tpu.pipeline_mode<synchronous>, transform_indices = @transform_4, window_bounds = array<i64: 1, 16>}, {pipeline_mode = #tpu.pipeline_mode<synchronous>, transform_indices = @transform_5, window_bounds = array<i64: 4, 128, 128>}, {pipeline_mode = #tpu.pipeline_mode<synchronous>, transform_indices = @transform_6, window_bounds = array<i64: 1, 128>}, {pipeline_mode = #tpu.pipeline_mode<synchronous>, transform_indices = @transform_7, window_bounds = array<i64: 1, 128>}, {transform_indices = @transform_8, window_bounds = array<i64: 2, 128>}]} {
    %c0 = arith.constant 0 : index
    %c0_0 = arith.constant 0 : index
    %0 = vector.load %arg4[%c0, %c0_0] : memref<1x16xf32, #tpu.memory_space<vmem>>, vector<1x16xf32>
    %c0_1 = arith.constant 0 : index
    %c0_2 = arith.constant 0 : index
    %1 = vector.load %arg5[%c0_1, %c0_2] : memref<1x16xf32, #tpu.memory_space<vmem>>, vector<1x16xf32>
    %c0_3 = arith.constant 0 : index
    %c0_4 = arith.constant 0 : index
    %2 = vector.load %arg7[%c0_3, %c0_4] : memref<1x128xf32, #tpu.memory_space<vmem>>, vector<1x128xf32>
    %c0_5 = arith.constant 0 : index
    %c0_6 = arith.constant 0 : index
    %3 = vector.load %arg8[%c0_5, %c0_6] : memref<1x128xf32, #tpu.memory_space<vmem>>, vector<1x128xf32>
    %c0_7 = arith.constant 0 : index
    %c0_8 = arith.constant 0 : index
    %4 = vector.load %arg3[%c0_7, %c0_8] : memref<32x16xf32, #tpu.memory_space<vmem>>, vector<32x16xf32>
    %c0_i32 = arith.constant 0 : i32
    %c17_i32 = arith.constant 17 : i32
    %5 = arith.addi %c0_i32, %c17_i32 : i32
    %c1_i32 = arith.constant 1 : i32
    scf.for %arg11 = %c0_i32 to %5 step %c1_i32  : i32 {
      %c128_i32 = arith.constant 128 : i32
      %21 = arith.muli %arg11, %c128_i32 : i32
      %22 = tpu.assume_multiple %21, 128 : i32
      %c0_27 = arith.constant 0 : index
      %23 = arith.index_cast %22 : i32 to index
      %c0_28 = arith.constant 0 : index
      %24 = vector.load %arg1[%c0_27, %23, %c0_28] : memref<2x2176x32xf32, #tpu.memory_space<vmem>>, vector<1x128x32xf32>
      %25 = vector.shape_cast %24 : vector<1x128x32xf32> to vector<128x32xf32>
      %cst_29 = arith.constant dense<0.000000e+00> : vector<128x16xf32>
      %26 = tpu.matmul %25, %4, %cst_29 {dimension_numbers = #tpu.dot_dimension_numbers<[1], [0], [0], [1], [0, 0, 1, 1], [], []>} : vector<128x32xf32>, vector<32x16xf32>, vector<128x16xf32> -> vector<128x16xf32>
      %27 = vector.broadcast %0 : vector<1x16xf32> to vector<128x16xf32>
      %28 = arith.mulf %26, %27 : vector<128x16xf32>
      %29 = vector.broadcast %1 : vector<1x16xf32> to vector<128x16xf32>
      %30 = arith.addf %28, %29 : vector<128x16xf32>
      %cst_30 = arith.constant 0.000000e+00 : f32
      %31 = vector.broadcast %cst_30 : f32 to vector<128x16xf32>
      %32 = arith.maximumf %30, %31 : vector<128x16xf32>
      %33 = arith.index_cast %22 : i32 to index
      %c0_31 = arith.constant 0 : index
      %34 = vector.load %arg10[%33, %c0_31] : memref<2176x16xf32, #tpu.memory_space<vmem>>, vector<128x16xf32>
      tpu.vector_store %arg10[%33, %c0_31], %32 {strides = array<i32>} : memref<2176x16xf32, #tpu.memory_space<vmem>>, vector<128x16xf32>,
    }
    %c17_i32_9 = arith.constant 17 : i32
    %cst = arith.constant 0.000000e+00 : f32
    %6 = vector.broadcast %cst : f32 to vector<1x128xf32>
    %c0_i32_10 = arith.constant 0 : i32
    %c14_i32 = arith.constant 14 : i32
    %7 = arith.addi %c0_i32_10, %c14_i32 : i32
    %c1_i32_11 = arith.constant 1 : i32
    %8 = scf.for %arg11 = %c0_i32_10 to %7 step %c1_i32_11 iter_args(%arg12 = %6) -> (vector<1x128xf32>)  : i32 {
      %c128_i32 = arith.constant 128 : i32
      %21 = arith.muli %arg11, %c128_i32 : i32
      %22 = tpu.assume_multiple %21, 128 : i32
      %cst_27 = arith.constant 0.000000e+00 : f32
      %23 = vector.broadcast %cst_27 : f32 to vector<128x128xf32>
      %c0_i32_28 = arith.constant 0 : i32
      %24 = arith.addi %22, %c0_i32_28 : i32
      %25 = arith.index_cast %24 : i32 to index
      %c0_29 = arith.constant 0 : index
      %26 = vector.load %arg10[%25, %c0_29] : memref<2176x16xf32, #tpu.memory_space<vmem>>, vector<128x16xf32>
      %c1_i32_30 = arith.constant 1 : i32
      %27 = arith.addi %22, %c1_i32_30 : i32
      %28 = arith.index_cast %27 : i32 to index
      %c0_31 = arith.constant 0 : index
      %29 = vector.load %arg10[%28, %c0_31] : memref<2176x16xf32, #tpu.memory_space<vmem>>, vector<128x16xf32>
      %c2_i32 = arith.constant 2 : i32
      %30 = arith.addi %22, %c2_i32 : i32
      %31 = arith.index_cast %30 : i32 to index
      %c0_32 = arith.constant 0 : index
      %32 = vector.load %arg10[%31, %c0_32] : memref<2176x16xf32, #tpu.memory_space<vmem>>, vector<128x16xf32>
      %c12_i32 = arith.constant 12 : i32
      %33 = arith.addi %22, %c12_i32 : i32
      %34 = arith.index_cast %33 : i32 to index
      %c0_33 = arith.constant 0 : index
      %35 = vector.load %arg10[%34, %c0_33] : memref<2176x16xf32, #tpu.memory_space<vmem>>, vector<128x16xf32>
      %c13_i32 = arith.constant 13 : i32
      %36 = arith.addi %22, %c13_i32 : i32
      %37 = arith.index_cast %36 : i32 to index
      %c0_34 = arith.constant 0 : index
      %38 = vector.load %arg10[%37, %c0_34] : memref<2176x16xf32, #tpu.memory_space<vmem>>, vector<128x16xf32>
      %c14_i32_35 = arith.constant 14 : i32
      %39 = arith.addi %22, %c14_i32_35 : i32
      %40 = arith.index_cast %39 : i32 to index
      %c0_36 = arith.constant 0 : index
      %41 = vector.load %arg10[%40, %c0_36] : memref<2176x16xf32, #tpu.memory_space<vmem>>, vector<128x16xf32>
      %c24_i32 = arith.constant 24 : i32
      %42 = arith.addi %22, %c24_i32 : i32
      %43 = arith.index_cast %42 : i32 to index
      %c0_37 = arith.constant 0 : index
      %44 = vector.load %arg10[%43, %c0_37] : memref<2176x16xf32, #tpu.memory_space<vmem>>, vector<128x16xf32>
      %c25_i32 = arith.constant 25 : i32
      %45 = arith.addi %22, %c25_i32 : i32
      %46 = arith.index_cast %45 : i32 to index
      %c0_38 = arith.constant 0 : index
      %47 = vector.load %arg10[%46, %c0_38] : memref<2176x16xf32, #tpu.memory_space<vmem>>, vector<128x16xf32>
      %48 = tpu.concatenate %26, %29, %32, %35, %38, %41, %44, %47 in 1 : vector<128x16xf32>, vector<128x16xf32>, vector<128x16xf32>, vector<128x16xf32>, vector<128x16xf32>, vector<128x16xf32>, vector<128x16xf32>, vector<128x16xf32> -> vector<128x128xf32>
      %49 = arith.truncf %48 : vector<128x128xf32> to vector<128x128xbf16>
      %c0_39 = arith.constant 0 : index
      %c0_40 = arith.constant 0 : index
      %c0_41 = arith.constant 0 : index
      %50 = vector.load %arg6[%c0_39, %c0_40, %c0_41] : memref<4x128x128xbf16, #tpu.memory_space<vmem>>, vector<1x128x128xbf16>
      %51 = vector.shape_cast %50 : vector<1x128x128xbf16> to vector<128x128xbf16>
      %cst_42 = arith.constant dense<0.000000e+00> : vector<128x128xf32>
      %52 = tpu.matmul %49, %51, %cst_42 {dimension_numbers = #tpu.dot_dimension_numbers<[1], [0], [0], [1], [0, 0, 1, 1], [], []>} : vector<128x128xbf16>, vector<128x128xbf16>, vector<128x128xf32> -> vector<128x128xf32>
      %53 = arith.addf %23, %52 : vector<128x128xf32>
      %c26_i32 = arith.constant 26 : i32
      %54 = arith.addi %22, %c26_i32 : i32
      %55 = arith.index_cast %54 : i32 to index
      %c0_43 = arith.constant 0 : index
      %56 = vector.load %arg10[%55, %c0_43] : memref<2176x16xf32, #tpu.memory_space<vmem>>, vector<128x16xf32>
      %c144_i32 = arith.constant 144 : i32
      %57 = arith.addi %22, %c144_i32 : i32
      %58 = arith.index_cast %57 : i32 to index
      %c0_44 = arith.constant 0 : index
      %59 = vector.load %arg10[%58, %c0_44] : memref<2176x16xf32, #tpu.memory_space<vmem>>, vector<128x16xf32>
      %c145_i32 = arith.constant 145 : i32
      %60 = arith.addi %22, %c145_i32 : i32
      %61 = arith.index_cast %60 : i32 to index
      %c0_45 = arith.constant 0 : index
      %62 = vector.load %arg10[%61, %c0_45] : memref<2176x16xf32, #tpu.memory_space<vmem>>, vector<128x16xf32>
      %c146_i32 = arith.constant 146 : i32
      %63 = arith.addi %22, %c146_i32 : i32
      %64 = arith.index_cast %63 : i32 to index
      %c0_46 = arith.constant 0 : index
      %65 = vector.load %arg10[%64, %c0_46] : memref<2176x16xf32, #tpu.memory_space<vmem>>, vector<128x16xf32>
      %c156_i32 = arith.constant 156 : i32
      %66 = arith.addi %22, %c156_i32 : i32
      %67 = arith.index_cast %66 : i32 to index
      %c0_47 = arith.constant 0 : index
      %68 = vector.load %arg10[%67, %c0_47] : memref<2176x16xf32, #tpu.memory_space<vmem>>, vector<128x16xf32>
      %c157_i32 = arith.constant 157 : i32
      %69 = arith.addi %22, %c157_i32 : i32
      %70 = arith.index_cast %69 : i32 to index
      %c0_48 = arith.constant 0 : index
      %71 = vector.load %arg10[%70, %c0_48] : memref<2176x16xf32, #tpu.memory_space<vmem>>, vector<128x16xf32>
      %c158_i32 = arith.constant 158 : i32
      %72 = arith.addi %22, %c158_i32 : i32
      %73 = arith.index_cast %72 : i32 to index
      %c0_49 = arith.constant 0 : index
      %74 = vector.load %arg10[%73, %c0_49] : memref<2176x16xf32, #tpu.memory_space<vmem>>, vector<128x16xf32>
      %c168_i32 = arith.constant 168 : i32
      %75 = arith.addi %22, %c168_i32 : i32
      %76 = arith.index_cast %75 : i32 to index
      %c0_50 = arith.constant 0 : index
      %77 = vector.load %arg10[%76, %c0_50] : memref<2176x16xf32, #tpu.memory_space<vmem>>, vector<128x16xf32>
      %78 = tpu.concatenate %56, %59, %62, %65, %68, %71, %74, %77 in 1 : vector<128x16xf32>, vector<128x16xf32>, vector<128x16xf32>, vector<128x16xf32>, vector<128x16xf32>, vector<128x16xf32>, vector<128x16xf32>, vector<128x16xf32> -> vector<128x128xf32>
      %79 = arith.truncf %78 : vector<128x128xf32> to vector<128x128xbf16>
      %c1_51 = arith.constant 1 : index
      %c0_52 = arith.constant 0 : index
      %c0_53 = arith.constant 0 : index
      %80 = vector.load %arg6[%c1_51, %c0_52, %c0_53] : memref<4x128x128xbf16, #tpu.memory_space<vmem>>, vector<1x128x128xbf16>
      %81 = vector.shape_cast %80 : vector<1x128x128xbf16> to vector<128x128xbf16>
      %cst_54 = arith.constant dense<0.000000e+00> : vector<128x128xf32>
      %82 = tpu.matmul %79, %81, %cst_54 {dimension_numbers = #tpu.dot_dimension_numbers<[1], [0], [0], [1], [0, 0, 1, 1], [], []>} : vector<128x128xbf16>, vector<128x128xbf16>, vector<128x128xf32> -> vector<128x128xf32>
      %83 = arith.addf %53, %82 : vector<128x128xf32>
      %c169_i32 = arith.constant 169 : i32
      %84 = arith.addi %22, %c169_i32 : i32
      %85 = arith.index_cast %84 : i32 to index
      %c0_55 = arith.constant 0 : index
      %86 = vector.load %arg10[%85, %c0_55] : memref<2176x16xf32, #tpu.memory_space<vmem>>, vector<128x16xf32>
      %c170_i32 = arith.constant 170 : i32
      %87 = arith.addi %22, %c170_i32 : i32
      %88 = arith.index_cast %87 : i32 to index
      %c0_56 = arith.constant 0 : index
      %89 = vector.load %arg10[%88, %c0_56] : memref<2176x16xf32, #tpu.memory_space<vmem>>, vector<128x16xf32>
      %c288_i32 = arith.constant 288 : i32
      %90 = arith.addi %22, %c288_i32 : i32
      %91 = arith.index_cast %90 : i32 to index
      %c0_57 = arith.constant 0 : index
      %92 = vector.load %arg10[%91, %c0_57] : memref<2176x16xf32, #tpu.memory_space<vmem>>, vector<128x16xf32>
      %c289_i32 = arith.constant 289 : i32
      %93 = arith.addi %22, %c289_i32 : i32
      %94 = arith.index_cast %93 : i32 to index
      %c0_58 = arith.constant 0 : index
      %95 = vector.load %arg10[%94, %c0_58] : memref<2176x16xf32, #tpu.memory_space<vmem>>, vector<128x16xf32>
      %c290_i32 = arith.constant 290 : i32
      %96 = arith.addi %22, %c290_i32 : i32
      %97 = arith.index_cast %96 : i32 to index
      %c0_59 = arith.constant 0 : index
      %98 = vector.load %arg10[%97, %c0_59] : memref<2176x16xf32, #tpu.memory_space<vmem>>, vector<128x16xf32>
      %c300_i32 = arith.constant 300 : i32
      %99 = arith.addi %22, %c300_i32 : i32
      %100 = arith.index_cast %99 : i32 to index
      %c0_60 = arith.constant 0 : index
      %101 = vector.load %arg10[%100, %c0_60] : memref<2176x16xf32, #tpu.memory_space<vmem>>, vector<128x16xf32>
      %c301_i32 = arith.constant 301 : i32
      %102 = arith.addi %22, %c301_i32 : i32
      %103 = arith.index_cast %102 : i32 to index
      %c0_61 = arith.constant 0 : index
      %104 = vector.load %arg10[%103, %c0_61] : memref<2176x16xf32, #tpu.memory_space<vmem>>, vector<128x16xf32>
      %c302_i32 = arith.constant 302 : i32
      %105 = arith.addi %22, %c302_i32 : i32
      %106 = arith.index_cast %105 : i32 to index
      %c0_62 = arith.constant 0 : index
      %107 = vector.load %arg10[%106, %c0_62] : memref<2176x16xf32, #tpu.memory_space<vmem>>, vector<128x16xf32>
      %108 = tpu.concatenate %86, %89, %92, %95, %98, %101, %104, %107 in 1 : vector<128x16xf32>, vector<128x16xf32>, vector<128x16xf32>, vector<128x16xf32>, vector<128x16xf32>, vector<128x16xf32>, vector<128x16xf32>, vector<128x16xf32> -> vector<128x128xf32>
      %109 = arith.truncf %108 : vector<128x128xf32> to vector<128x128xbf16>
      %c2 = arith.constant 2 : index
      %c0_63 = arith.constant 0 : index
      %c0_64 = arith.constant 0 : index
      %110 = vector.load %arg6[%c2, %c0_63, %c0_64] : memref<4x128x128xbf16, #tpu.memory_space<vmem>>, vector<1x128x128xbf16>
      %111 = vector.shape_cast %110 : vector<1x128x128xbf16> to vector<128x128xbf16>
      %cst_65 = arith.constant dense<0.000000e+00> : vector<128x128xf32>
      %112 = tpu.matmul %109, %111, %cst_65 {dimension_numbers = #tpu.dot_dimension_numbers<[1], [0], [0], [1], [0, 0, 1, 1], [], []>} : vector<128x128xbf16>, vector<128x128xbf16>, vector<128x128xf32> -> vector<128x128xf32>
      %113 = arith.addf %83, %112 : vector<128x128xf32>
      %c312_i32 = arith.constant 312 : i32
      %114 = arith.addi %22, %c312_i32 : i32
      %115 = arith.index_cast %114 : i32 to index
      %c0_66 = arith.constant 0 : index
      %116 = vector.load %arg10[%115, %c0_66] : memref<2176x16xf32, #tpu.memory_space<vmem>>, vector<128x16xf32>
      %c313_i32 = arith.constant 313 : i32
      %117 = arith.addi %22, %c313_i32 : i32
      %118 = arith.index_cast %117 : i32 to index
      %c0_67 = arith.constant 0 : index
      %119 = vector.load %arg10[%118, %c0_67] : memref<2176x16xf32, #tpu.memory_space<vmem>>, vector<128x16xf32>
      %c314_i32 = arith.constant 314 : i32
      %120 = arith.addi %22, %c314_i32 : i32
      %121 = arith.index_cast %120 : i32 to index
      %c0_68 = arith.constant 0 : index
      %122 = vector.load %arg10[%121, %c0_68] : memref<2176x16xf32, #tpu.memory_space<vmem>>, vector<128x16xf32>
      %c0_i32_69 = arith.constant 0 : i32
      %123 = arith.addi %22, %c0_i32_69 : i32
      %124 = arith.index_cast %123 : i32 to index
      %c0_70 = arith.constant 0 : index
      %125 = vector.load %arg10[%124, %c0_70] : memref<2176x16xf32, #tpu.memory_space<vmem>>, vector<128x16xf32>
      %c0_i32_71 = arith.constant 0 : i32
      %126 = arith.addi %22, %c0_i32_71 : i32
      %127 = arith.index_cast %126 : i32 to index
      %c0_72 = arith.constant 0 : index
      %128 = vector.load %arg10[%127, %c0_72] : memref<2176x16xf32, #tpu.memory_space<vmem>>, vector<128x16xf32>
      %c0_i32_73 = arith.constant 0 : i32
      %129 = arith.addi %22, %c0_i32_73 : i32
      %130 = arith.index_cast %129 : i32 to index
      %c0_74 = arith.constant 0 : index
      %131 = vector.load %arg10[%130, %c0_74] : memref<2176x16xf32, #tpu.memory_space<vmem>>, vector<128x16xf32>
      %c0_i32_75 = arith.constant 0 : i32
      %132 = arith.addi %22, %c0_i32_75 : i32
      %133 = arith.index_cast %132 : i32 to index
      %c0_76 = arith.constant 0 : index
      %134 = vector.load %arg10[%133, %c0_76] : memref<2176x16xf32, #tpu.memory_space<vmem>>, vector<128x16xf32>
      %c0_i32_77 = arith.constant 0 : i32
      %135 = arith.addi %22, %c0_i32_77 : i32
      %136 = arith.index_cast %135 : i32 to index
      %c0_78 = arith.constant 0 : index
      %137 = vector.load %arg10[%136, %c0_78] : memref<2176x16xf32, #tpu.memory_space<vmem>>, vector<128x16xf32>
      %138 = tpu.concatenate %116, %119, %122, %125, %128, %131, %134, %137 in 1 : vector<128x16xf32>, vector<128x16xf32>, vector<128x16xf32>, vector<128x16xf32>, vector<128x16xf32>, vector<128x16xf32>, vector<128x16xf32>, vector<128x16xf32> -> vector<128x128xf32>
      %139 = arith.truncf %138 : vector<128x128xf32> to vector<128x128xbf16>
      %c3 = arith.constant 3 : index
      %c0_79 = arith.constant 0 : index
      %c0_80 = arith.constant 0 : index
      %140 = vector.load %arg6[%c3, %c0_79, %c0_80] : memref<4x128x128xbf16, #tpu.memory_space<vmem>>, vector<1x128x128xbf16>
      %141 = vector.shape_cast %140 : vector<1x128x128xbf16> to vector<128x128xbf16>
      %cst_81 = arith.constant dense<0.000000e+00> : vector<128x128xf32>
      %142 = tpu.matmul %139, %141, %cst_81 {dimension_numbers = #tpu.dot_dimension_numbers<[1], [0], [0], [1], [0, 0, 1, 1], [], []>} : vector<128x128xbf16>, vector<128x128xbf16>, vector<128x128xf32> -> vector<128x128xf32>
      %143 = arith.addf %113, %142 : vector<128x128xf32>
      %144 = vector.broadcast %2 : vector<1x128xf32> to vector<128x128xf32>
      %145 = arith.mulf %143, %144 : vector<128x128xf32>
      %146 = vector.broadcast %3 : vector<1x128xf32> to vector<128x128xf32>
      %147 = arith.addf %145, %146 : vector<128x128xf32>
      %cst_82 = arith.constant 0.000000e+00 : f32
      %148 = vector.broadcast %cst_82 : f32 to vector<128x128xf32>
      %149 = arith.maximumf %147, %148 : vector<128x128xf32>
      %150 = arith.index_cast %22 : i32 to index
      %c0_83 = arith.constant 0 : index
      %151 = vector.load %arg2[%150, %c0_83] : memref<1792x1xf32, #tpu.memory_space<vmem>>, vector<128x1xf32>
      %152 = vector.broadcast %151 : vector<128x1xf32> to vector<128x128xf32>
      %153 = arith.mulf %149, %152 : vector<128x128xf32>
      %cst_84 = arith.constant dense<0xFF800000> : vector<128xf32>
      %154 = vector.multi_reduction <maximumf>, %153, %cst_84 [0] : vector<128x128xf32> to vector<128xf32>
      %155 = vector.shape_cast %154 : vector<128xf32> to vector<1x128xf32>
      %156 = arith.maximumf %arg12, %155 : vector<1x128xf32>
      scf.yield %156 : vector<1x128xf32>
    }
    %c14_i32_12 = arith.constant 14 : i32
    %9 = math.tanh %8 : vector<1x128xf32>
    %cst_13 = arith.constant 2.000000e+00 : f32
    %10 = vector.broadcast %cst_13 : f32 to vector<1x128xf32>
    %11 = arith.mulf %10, %9 : vector<1x128xf32>
    %c0_14 = arith.constant 0 : index
    %c0_15 = arith.constant 0 : index
    %12 = vector.load %arg9[%c0_14, %c0_15] : memref<2x128xf32, #tpu.memory_space<vmem>>, vector<1x128xf32>
    tpu.vector_store %arg9[%c0_14, %c0_15], %11 {strides = array<i32>} : memref<2x128xf32, #tpu.memory_space<vmem>>, vector<1x128xf32>,
    %c0_i32_16 = arith.constant 0 : i32
    %c17_i32_17 = arith.constant 17 : i32
    %13 = arith.addi %c0_i32_16, %c17_i32_17 : i32
    %c1_i32_18 = arith.constant 1 : i32
    scf.for %arg11 = %c0_i32_16 to %13 step %c1_i32_18  : i32 {
      %c128_i32 = arith.constant 128 : i32
      %21 = arith.muli %arg11, %c128_i32 : i32
      %22 = tpu.assume_multiple %21, 128 : i32
      %c1_27 = arith.constant 1 : index
      %23 = arith.index_cast %22 : i32 to index
      %c0_28 = arith.constant 0 : index
      %24 = vector.load %arg1[%c1_27, %23, %c0_28] : memref<2x2176x32xf32, #tpu.memory_space<vmem>>, vector<1x128x32xf32>
      %25 = vector.shape_cast %24 : vector<1x128x32xf32> to vector<128x32xf32>
      %cst_29 = arith.constant dense<0.000000e+00> : vector<128x16xf32>
      %26 = tpu.matmul %25, %4, %cst_29 {dimension_numbers = #tpu.dot_dimension_numbers<[1], [0], [0], [1], [0, 0, 1, 1], [], []>} : vector<128x32xf32>, vector<32x16xf32>, vector<128x16xf32> -> vector<128x16xf32>
      %27 = vector.broadcast %0 : vector<1x16xf32> to vector<128x16xf32>
      %28 = arith.mulf %26, %27 : vector<128x16xf32>
      %29 = vector.broadcast %1 : vector<1x16xf32> to vector<128x16xf32>
      %30 = arith.addf %28, %29 : vector<128x16xf32>
      %cst_30 = arith.constant 0.000000e+00 : f32
      %31 = vector.broadcast %cst_30 : f32 to vector<128x16xf32>
      %32 = arith.maximumf %30, %31 : vector<128x16xf32>
      %33 = arith.index_cast %22 : i32 to index
      %c0_31 = arith.constant 0 : index
      %34 = vector.load %arg10[%33, %c0_31] : memref<2176x16xf32, #tpu.memory_space<vmem>>, vector<128x16xf32>
      tpu.vector_store %arg10[%33, %c0_31], %32 {strides = array<i32>} : memref<2176x16xf32, #tpu.memory_space<vmem>>, vector<128x16xf32>,
    }
    %c17_i32_19 = arith.constant 17 : i32
    %cst_20 = arith.constant 0.000000e+00 : f32
    %14 = vector.broadcast %cst_20 : f32 to vector<1x128xf32>
    %c0_i32_21 = arith.constant 0 : i32
    %c14_i32_22 = arith.constant 14 : i32
    %15 = arith.addi %c0_i32_21, %c14_i32_22 : i32
    %c1_i32_23 = arith.constant 1 : i32
    %16 = scf.for %arg11 = %c0_i32_21 to %15 step %c1_i32_23 iter_args(%arg12 = %14) -> (vector<1x128xf32>)  : i32 {
      %c128_i32 = arith.constant 128 : i32
      %21 = arith.muli %arg11, %c128_i32 : i32
      %22 = tpu.assume_multiple %21, 128 : i32
      %cst_27 = arith.constant 0.000000e+00 : f32
      %23 = vector.broadcast %cst_27 : f32 to vector<128x128xf32>
      %c0_i32_28 = arith.constant 0 : i32
      %24 = arith.addi %22, %c0_i32_28 : i32
      %25 = arith.index_cast %24 : i32 to index
      %c0_29 = arith.constant 0 : index
      %26 = vector.load %arg10[%25, %c0_29] : memref<2176x16xf32, #tpu.memory_space<vmem>>, vector<128x16xf32>
      %c1_i32_30 = arith.constant 1 : i32
      %27 = arith.addi %22, %c1_i32_30 : i32
      %28 = arith.index_cast %27 : i32 to index
      %c0_31 = arith.constant 0 : index
      %29 = vector.load %arg10[%28, %c0_31] : memref<2176x16xf32, #tpu.memory_space<vmem>>, vector<128x16xf32>
      %c2_i32 = arith.constant 2 : i32
      %30 = arith.addi %22, %c2_i32 : i32
      %31 = arith.index_cast %30 : i32 to index
      %c0_32 = arith.constant 0 : index
      %32 = vector.load %arg10[%31, %c0_32] : memref<2176x16xf32, #tpu.memory_space<vmem>>, vector<128x16xf32>
      %c12_i32 = arith.constant 12 : i32
      %33 = arith.addi %22, %c12_i32 : i32
      %34 = arith.index_cast %33 : i32 to index
      %c0_33 = arith.constant 0 : index
      %35 = vector.load %arg10[%34, %c0_33] : memref<2176x16xf32, #tpu.memory_space<vmem>>, vector<128x16xf32>
      %c13_i32 = arith.constant 13 : i32
      %36 = arith.addi %22, %c13_i32 : i32
      %37 = arith.index_cast %36 : i32 to index
      %c0_34 = arith.constant 0 : index
      %38 = vector.load %arg10[%37, %c0_34] : memref<2176x16xf32, #tpu.memory_space<vmem>>, vector<128x16xf32>
      %c14_i32_35 = arith.constant 14 : i32
      %39 = arith.addi %22, %c14_i32_35 : i32
      %40 = arith.index_cast %39 : i32 to index
      %c0_36 = arith.constant 0 : index
      %41 = vector.load %arg10[%40, %c0_36] : memref<2176x16xf32, #tpu.memory_space<vmem>>, vector<128x16xf32>
      %c24_i32 = arith.constant 24 : i32
      %42 = arith.addi %22, %c24_i32 : i32
      %43 = arith.index_cast %42 : i32 to index
      %c0_37 = arith.constant 0 : index
      %44 = vector.load %arg10[%43, %c0_37] : memref<2176x16xf32, #tpu.memory_space<vmem>>, vector<128x16xf32>
      %c25_i32 = arith.constant 25 : i32
      %45 = arith.addi %22, %c25_i32 : i32
      %46 = arith.index_cast %45 : i32 to index
      %c0_38 = arith.constant 0 : index
      %47 = vector.load %arg10[%46, %c0_38] : memref<2176x16xf32, #tpu.memory_space<vmem>>, vector<128x16xf32>
      %48 = tpu.concatenate %26, %29, %32, %35, %38, %41, %44, %47 in 1 : vector<128x16xf32>, vector<128x16xf32>, vector<128x16xf32>, vector<128x16xf32>, vector<128x16xf32>, vector<128x16xf32>, vector<128x16xf32>, vector<128x16xf32> -> vector<128x128xf32>
      %49 = arith.truncf %48 : vector<128x128xf32> to vector<128x128xbf16>
      %c0_39 = arith.constant 0 : index
      %c0_40 = arith.constant 0 : index
      %c0_41 = arith.constant 0 : index
      %50 = vector.load %arg6[%c0_39, %c0_40, %c0_41] : memref<4x128x128xbf16, #tpu.memory_space<vmem>>, vector<1x128x128xbf16>
      %51 = vector.shape_cast %50 : vector<1x128x128xbf16> to vector<128x128xbf16>
      %cst_42 = arith.constant dense<0.000000e+00> : vector<128x128xf32>
      %52 = tpu.matmul %49, %51, %cst_42 {dimension_numbers = #tpu.dot_dimension_numbers<[1], [0], [0], [1], [0, 0, 1, 1], [], []>} : vector<128x128xbf16>, vector<128x128xbf16>, vector<128x128xf32> -> vector<128x128xf32>
      %53 = arith.addf %23, %52 : vector<128x128xf32>
      %c26_i32 = arith.constant 26 : i32
      %54 = arith.addi %22, %c26_i32 : i32
      %55 = arith.index_cast %54 : i32 to index
      %c0_43 = arith.constant 0 : index
      %56 = vector.load %arg10[%55, %c0_43] : memref<2176x16xf32, #tpu.memory_space<vmem>>, vector<128x16xf32>
      %c144_i32 = arith.constant 144 : i32
      %57 = arith.addi %22, %c144_i32 : i32
      %58 = arith.index_cast %57 : i32 to index
      %c0_44 = arith.constant 0 : index
      %59 = vector.load %arg10[%58, %c0_44] : memref<2176x16xf32, #tpu.memory_space<vmem>>, vector<128x16xf32>
      %c145_i32 = arith.constant 145 : i32
      %60 = arith.addi %22, %c145_i32 : i32
      %61 = arith.index_cast %60 : i32 to index
      %c0_45 = arith.constant 0 : index
      %62 = vector.load %arg10[%61, %c0_45] : memref<2176x16xf32, #tpu.memory_space<vmem>>, vector<128x16xf32>
      %c146_i32 = arith.constant 146 : i32
      %63 = arith.addi %22, %c146_i32 : i32
      %64 = arith.index_cast %63 : i32 to index
      %c0_46 = arith.constant 0 : index
      %65 = vector.load %arg10[%64, %c0_46] : memref<2176x16xf32, #tpu.memory_space<vmem>>, vector<128x16xf32>
      %c156_i32 = arith.constant 156 : i32
      %66 = arith.addi %22, %c156_i32 : i32
      %67 = arith.index_cast %66 : i32 to index
      %c0_47 = arith.constant 0 : index
      %68 = vector.load %arg10[%67, %c0_47] : memref<2176x16xf32, #tpu.memory_space<vmem>>, vector<128x16xf32>
      %c157_i32 = arith.constant 157 : i32
      %69 = arith.addi %22, %c157_i32 : i32
      %70 = arith.index_cast %69 : i32 to index
      %c0_48 = arith.constant 0 : index
      %71 = vector.load %arg10[%70, %c0_48] : memref<2176x16xf32, #tpu.memory_space<vmem>>, vector<128x16xf32>
      %c158_i32 = arith.constant 158 : i32
      %72 = arith.addi %22, %c158_i32 : i32
      %73 = arith.index_cast %72 : i32 to index
      %c0_49 = arith.constant 0 : index
      %74 = vector.load %arg10[%73, %c0_49] : memref<2176x16xf32, #tpu.memory_space<vmem>>, vector<128x16xf32>
      %c168_i32 = arith.constant 168 : i32
      %75 = arith.addi %22, %c168_i32 : i32
      %76 = arith.index_cast %75 : i32 to index
      %c0_50 = arith.constant 0 : index
      %77 = vector.load %arg10[%76, %c0_50] : memref<2176x16xf32, #tpu.memory_space<vmem>>, vector<128x16xf32>
      %78 = tpu.concatenate %56, %59, %62, %65, %68, %71, %74, %77 in 1 : vector<128x16xf32>, vector<128x16xf32>, vector<128x16xf32>, vector<128x16xf32>, vector<128x16xf32>, vector<128x16xf32>, vector<128x16xf32>, vector<128x16xf32> -> vector<128x128xf32>
      %79 = arith.truncf %78 : vector<128x128xf32> to vector<128x128xbf16>
      %c1_51 = arith.constant 1 : index
      %c0_52 = arith.constant 0 : index
      %c0_53 = arith.constant 0 : index
      %80 = vector.load %arg6[%c1_51, %c0_52, %c0_53] : memref<4x128x128xbf16, #tpu.memory_space<vmem>>, vector<1x128x128xbf16>
      %81 = vector.shape_cast %80 : vector<1x128x128xbf16> to vector<128x128xbf16>
      %cst_54 = arith.constant dense<0.000000e+00> : vector<128x128xf32>
      %82 = tpu.matmul %79, %81, %cst_54 {dimension_numbers = #tpu.dot_dimension_numbers<[1], [0], [0], [1], [0, 0, 1, 1], [], []>} : vector<128x128xbf16>, vector<128x128xbf16>, vector<128x128xf32> -> vector<128x128xf32>
      %83 = arith.addf %53, %82 : vector<128x128xf32>
      %c169_i32 = arith.constant 169 : i32
      %84 = arith.addi %22, %c169_i32 : i32
      %85 = arith.index_cast %84 : i32 to index
      %c0_55 = arith.constant 0 : index
      %86 = vector.load %arg10[%85, %c0_55] : memref<2176x16xf32, #tpu.memory_space<vmem>>, vector<128x16xf32>
      %c170_i32 = arith.constant 170 : i32
      %87 = arith.addi %22, %c170_i32 : i32
      %88 = arith.index_cast %87 : i32 to index
      %c0_56 = arith.constant 0 : index
      %89 = vector.load %arg10[%88, %c0_56] : memref<2176x16xf32, #tpu.memory_space<vmem>>, vector<128x16xf32>
      %c288_i32 = arith.constant 288 : i32
      %90 = arith.addi %22, %c288_i32 : i32
      %91 = arith.index_cast %90 : i32 to index
      %c0_57 = arith.constant 0 : index
      %92 = vector.load %arg10[%91, %c0_57] : memref<2176x16xf32, #tpu.memory_space<vmem>>, vector<128x16xf32>
      %c289_i32 = arith.constant 289 : i32
      %93 = arith.addi %22, %c289_i32 : i32
      %94 = arith.index_cast %93 : i32 to index
      %c0_58 = arith.constant 0 : index
      %95 = vector.load %arg10[%94, %c0_58] : memref<2176x16xf32, #tpu.memory_space<vmem>>, vector<128x16xf32>
      %c290_i32 = arith.constant 290 : i32
      %96 = arith.addi %22, %c290_i32 : i32
      %97 = arith.index_cast %96 : i32 to index
      %c0_59 = arith.constant 0 : index
      %98 = vector.load %arg10[%97, %c0_59] : memref<2176x16xf32, #tpu.memory_space<vmem>>, vector<128x16xf32>
      %c300_i32 = arith.constant 300 : i32
      %99 = arith.addi %22, %c300_i32 : i32
      %100 = arith.index_cast %99 : i32 to index
      %c0_60 = arith.constant 0 : index
      %101 = vector.load %arg10[%100, %c0_60] : memref<2176x16xf32, #tpu.memory_space<vmem>>, vector<128x16xf32>
      %c301_i32 = arith.constant 301 : i32
      %102 = arith.addi %22, %c301_i32 : i32
      %103 = arith.index_cast %102 : i32 to index
      %c0_61 = arith.constant 0 : index
      %104 = vector.load %arg10[%103, %c0_61] : memref<2176x16xf32, #tpu.memory_space<vmem>>, vector<128x16xf32>
      %c302_i32 = arith.constant 302 : i32
      %105 = arith.addi %22, %c302_i32 : i32
      %106 = arith.index_cast %105 : i32 to index
      %c0_62 = arith.constant 0 : index
      %107 = vector.load %arg10[%106, %c0_62] : memref<2176x16xf32, #tpu.memory_space<vmem>>, vector<128x16xf32>
      %108 = tpu.concatenate %86, %89, %92, %95, %98, %101, %104, %107 in 1 : vector<128x16xf32>, vector<128x16xf32>, vector<128x16xf32>, vector<128x16xf32>, vector<128x16xf32>, vector<128x16xf32>, vector<128x16xf32>, vector<128x16xf32> -> vector<128x128xf32>
      %109 = arith.truncf %108 : vector<128x128xf32> to vector<128x128xbf16>
      %c2 = arith.constant 2 : index
      %c0_63 = arith.constant 0 : index
      %c0_64 = arith.constant 0 : index
      %110 = vector.load %arg6[%c2, %c0_63, %c0_64] : memref<4x128x128xbf16, #tpu.memory_space<vmem>>, vector<1x128x128xbf16>
      %111 = vector.shape_cast %110 : vector<1x128x128xbf16> to vector<128x128xbf16>
      %cst_65 = arith.constant dense<0.000000e+00> : vector<128x128xf32>
      %112 = tpu.matmul %109, %111, %cst_65 {dimension_numbers = #tpu.dot_dimension_numbers<[1], [0], [0], [1], [0, 0, 1, 1], [], []>} : vector<128x128xbf16>, vector<128x128xbf16>, vector<128x128xf32> -> vector<128x128xf32>
      %113 = arith.addf %83, %112 : vector<128x128xf32>
      %c312_i32 = arith.constant 312 : i32
      %114 = arith.addi %22, %c312_i32 : i32
      %115 = arith.index_cast %114 : i32 to index
      %c0_66 = arith.constant 0 : index
      %116 = vector.load %arg10[%115, %c0_66] : memref<2176x16xf32, #tpu.memory_space<vmem>>, vector<128x16xf32>
      %c313_i32 = arith.constant 313 : i32
      %117 = arith.addi %22, %c313_i32 : i32
      %118 = arith.index_cast %117 : i32 to index
      %c0_67 = arith.constant 0 : index
      %119 = vector.load %arg10[%118, %c0_67] : memref<2176x16xf32, #tpu.memory_space<vmem>>, vector<128x16xf32>
      %c314_i32 = arith.constant 314 : i32
      %120 = arith.addi %22, %c314_i32 : i32
      %121 = arith.index_cast %120 : i32 to index
      %c0_68 = arith.constant 0 : index
      %122 = vector.load %arg10[%121, %c0_68] : memref<2176x16xf32, #tpu.memory_space<vmem>>, vector<128x16xf32>
      %c0_i32_69 = arith.constant 0 : i32
      %123 = arith.addi %22, %c0_i32_69 : i32
      %124 = arith.index_cast %123 : i32 to index
      %c0_70 = arith.constant 0 : index
      %125 = vector.load %arg10[%124, %c0_70] : memref<2176x16xf32, #tpu.memory_space<vmem>>, vector<128x16xf32>
      %c0_i32_71 = arith.constant 0 : i32
      %126 = arith.addi %22, %c0_i32_71 : i32
      %127 = arith.index_cast %126 : i32 to index
      %c0_72 = arith.constant 0 : index
      %128 = vector.load %arg10[%127, %c0_72] : memref<2176x16xf32, #tpu.memory_space<vmem>>, vector<128x16xf32>
      %c0_i32_73 = arith.constant 0 : i32
      %129 = arith.addi %22, %c0_i32_73 : i32
      %130 = arith.index_cast %129 : i32 to index
      %c0_74 = arith.constant 0 : index
      %131 = vector.load %arg10[%130, %c0_74] : memref<2176x16xf32, #tpu.memory_space<vmem>>, vector<128x16xf32>
      %c0_i32_75 = arith.constant 0 : i32
      %132 = arith.addi %22, %c0_i32_75 : i32
      %133 = arith.index_cast %132 : i32 to index
      %c0_76 = arith.constant 0 : index
      %134 = vector.load %arg10[%133, %c0_76] : memref<2176x16xf32, #tpu.memory_space<vmem>>, vector<128x16xf32>
      %c0_i32_77 = arith.constant 0 : i32
      %135 = arith.addi %22, %c0_i32_77 : i32
      %136 = arith.index_cast %135 : i32 to index
      %c0_78 = arith.constant 0 : index
      %137 = vector.load %arg10[%136, %c0_78] : memref<2176x16xf32, #tpu.memory_space<vmem>>, vector<128x16xf32>
      %138 = tpu.concatenate %116, %119, %122, %125, %128, %131, %134, %137 in 1 : vector<128x16xf32>, vector<128x16xf32>, vector<128x16xf32>, vector<128x16xf32>, vector<128x16xf32>, vector<128x16xf32>, vector<128x16xf32>, vector<128x16xf32> -> vector<128x128xf32>
      %139 = arith.truncf %138 : vector<128x128xf32> to vector<128x128xbf16>
      %c3 = arith.constant 3 : index
      %c0_79 = arith.constant 0 : index
      %c0_80 = arith.constant 0 : index
      %140 = vector.load %arg6[%c3, %c0_79, %c0_80] : memref<4x128x128xbf16, #tpu.memory_space<vmem>>, vector<1x128x128xbf16>
      %141 = vector.shape_cast %140 : vector<1x128x128xbf16> to vector<128x128xbf16>
      %cst_81 = arith.constant dense<0.000000e+00> : vector<128x128xf32>
      %142 = tpu.matmul %139, %141, %cst_81 {dimension_numbers = #tpu.dot_dimension_numbers<[1], [0], [0], [1], [0, 0, 1, 1], [], []>} : vector<128x128xbf16>, vector<128x128xbf16>, vector<128x128xf32> -> vector<128x128xf32>
      %143 = arith.addf %113, %142 : vector<128x128xf32>
      %144 = vector.broadcast %2 : vector<1x128xf32> to vector<128x128xf32>
      %145 = arith.mulf %143, %144 : vector<128x128xf32>
      %146 = vector.broadcast %3 : vector<1x128xf32> to vector<128x128xf32>
      %147 = arith.addf %145, %146 : vector<128x128xf32>
      %cst_82 = arith.constant 0.000000e+00 : f32
      %148 = vector.broadcast %cst_82 : f32 to vector<128x128xf32>
      %149 = arith.maximumf %147, %148 : vector<128x128xf32>
      %150 = arith.index_cast %22 : i32 to index
      %c0_83 = arith.constant 0 : index
      %151 = vector.load %arg2[%150, %c0_83] : memref<1792x1xf32, #tpu.memory_space<vmem>>, vector<128x1xf32>
      %152 = vector.broadcast %151 : vector<128x1xf32> to vector<128x128xf32>
      %153 = arith.mulf %149, %152 : vector<128x128xf32>
      %cst_84 = arith.constant dense<0xFF800000> : vector<128xf32>
      %154 = vector.multi_reduction <maximumf>, %153, %cst_84 [0] : vector<128x128xf32> to vector<128xf32>
      %155 = vector.shape_cast %154 : vector<128xf32> to vector<1x128xf32>
      %156 = arith.maximumf %arg12, %155 : vector<1x128xf32>
      scf.yield %156 : vector<1x128xf32>
    }
    %c14_i32_24 = arith.constant 14 : i32
    %17 = math.tanh %16 : vector<1x128xf32>
    %cst_25 = arith.constant 2.000000e+00 : f32
    %18 = vector.broadcast %cst_25 : f32 to vector<1x128xf32>
    %19 = arith.mulf %18, %17 : vector<1x128xf32>
    %c1 = arith.constant 1 : index
    %c0_26 = arith.constant 0 : index
    %20 = vector.load %arg9[%c1, %c0_26] : memref<2x128xf32, #tpu.memory_space<vmem>>, vector<1x128xf32>
    tpu.vector_store %arg9[%c1, %c0_26], %19 {strides = array<i32>} : memref<2x128xf32, #tpu.memory_space<vmem>>, vector<1x128xf32>,
    return
  }
  func.func @transform_0(%arg0: i32) -> (i32, i32, i32) {
    %c0_i32 = arith.constant 0 : i32
    %c0_i32_0 = arith.constant 0 : i32
    %c0_i32_1 = arith.constant 0 : i32
    return %arg0, %c0_i32, %c0_i32_0 : i32, i32, i32
  }
  func.func @transform_1(%arg0: i32) -> (i32, i32) {
    %c0_i32 = arith.constant 0 : i32
    %c0_i32_0 = arith.constant 0 : i32
    %c0_i32_1 = arith.constant 0 : i32
    return %c0_i32, %c0_i32_0 : i32, i32
  }
  func.func @transform_2(%arg0: i32) -> (i32, i32) {
    %c0_i32 = arith.constant 0 : i32
    %c0_i32_0 = arith.constant 0 : i32
    %c0_i32_1 = arith.constant 0 : i32
    return %c0_i32, %c0_i32_0 : i32, i32
  }
  func.func @transform_3(%arg0: i32) -> (i32, i32) {
    %c0_i32 = arith.constant 0 : i32
    %c0_i32_0 = arith.constant 0 : i32
    %c0_i32_1 = arith.constant 0 : i32
    return %c0_i32, %c0_i32_0 : i32, i32
  }
  func.func @transform_4(%arg0: i32) -> (i32, i32) {
    %c0_i32 = arith.constant 0 : i32
    %c0_i32_0 = arith.constant 0 : i32
    %c0_i32_1 = arith.constant 0 : i32
    return %c0_i32, %c0_i32_0 : i32, i32
  }
  func.func @transform_5(%arg0: i32) -> (i32, i32, i32) {
    %c0_i32 = arith.constant 0 : i32
    %c0_i32_0 = arith.constant 0 : i32
    %c0_i32_1 = arith.constant 0 : i32
    %c0_i32_2 = arith.constant 0 : i32
    return %c0_i32, %c0_i32_0, %c0_i32_1 : i32, i32, i32
  }
  func.func @transform_6(%arg0: i32) -> (i32, i32) {
    %c0_i32 = arith.constant 0 : i32
    %c0_i32_0 = arith.constant 0 : i32
    %c0_i32_1 = arith.constant 0 : i32
    return %c0_i32, %c0_i32_0 : i32, i32
  }
  func.func @transform_7(%arg0: i32) -> (i32, i32) {
    %c0_i32 = arith.constant 0 : i32
    %c0_i32_0 = arith.constant 0 : i32
    %c0_i32_1 = arith.constant 0 : i32
    return %c0_i32, %c0_i32_0 : i32, i32
  }
  func.func @transform_8(%arg0: i32) -> (i32, i32) {
    %c0_i32 = arith.constant 0 : i32
    %c0_i32_0 = arith.constant 0 : i32
    return %arg0, %c0_i32 : i32, i32
  }
}

</mosaic_0001>

<llo_original>
// kernel: qnetwork2_forward.1
$region0: #{qnetwork2_forward.1}
  #allocation0 [shape = 'u32[]', space=smem, size = 0x4, offset = 0x4, fixed_abs, tag = 'smem constant byte address 0x4 - core index']
  #allocation1 [shape = 'u32[144,128]{1,0:T(1,128)}', space=vmem, size = 0x12000, scoped, tag = 'internal scratch']
  #allocation2 [shape = 'f32[2176,16]{1,0:T(8,128)}', space=vmem, size = 0x110000, scoped, tag = 'scratch operand']
  %s0 = inlined_call_operand.hbm [shape: f32[2,2176,32], index: 0, kind: input, shape index: {}]
  %s1 = inlined_call_operand.vmem [shape: f32[1792,1], index: 1, kind: input, shape index: {}]
  %s2 = inlined_call_operand.vmem [shape: f32[32,16], index: 2, kind: input, shape index: {}]
  %s3 = inlined_call_operand.vmem [shape: f32[1,16], index: 3, kind: input, shape index: {}]
  %s4 = inlined_call_operand.vmem [shape: f32[1,16], index: 4, kind: input, shape index: {}]
  %s5 = inlined_call_operand.vmem [shape: bf16[4,128,128], index: 5, kind: input, shape index: {}]
  %s6 = inlined_call_operand.vmem [shape: f32[1,128], index: 6, kind: input, shape index: {}]
  %s7 = inlined_call_operand.vmem [shape: f32[1,128], index: 7, kind: input, shape index: {}]
  %s8 = inlined_call_operand.hbm [shape: f32[2,128], index: 8, kind: output, shape index: {}]
  %s9 = sld [smem:[#allocation0]]
  $region74: #{qnetwork2_forward.1} parent=0
    _
  %s11 = ssub.s32 1, %s9
  %s12 = scalar_select 0, %s11, %s9
  $region1: #{qnetwork2_forward.1} parent=0
    #allocation3 [shape = 'u8[2228224]{0}', space=vmem, size = 0x220000, scoped, tag = 'input window, operand 0, single buffered']
    #allocation4 [shape = 's32[1]{0}', space=sflag, size = 0x4, scoped, tag = 'scoped memory for qnetwork2_forward.1']
    #allocation5 [shape = 's32[1]{0}', space=sflag, size = 0x4, scoped, tag = 'scoped memory for qnetwork2_forward.1']
    #allocation6 [shape = 'u8[1024]{0}', space=vmem, size = 0x400, scoped, tag = 'output window, operand 0, single buffered']
    %13 = vsyncpa [#allocation4], 0
    %14 = vsyncpa [#allocation5], 0
    // Predicated region
    $region2: #{qnetwork2_forward.1} parent=1 // pred_check
      _
    $region3: #{qnetwork2_forward.1} parent=1 // pred_check_branch
      %16 = sbr.rel (0) target = $region5
    $region4: #{qnetwork2_forward.1} parent=1 // pred_region
      %s18 = ssub.s32 69632, 69632
      %19 = vsyncadd [#allocation4], %s18
      %s20 = sshll.u32 [#allocation3], 4
      %s21 = int_to_ptr.vmem [resolvable:$true] %s20
      %26 = dma.hbm_to_vmem [thread:$0]  %s0, 69632, %s21, [#allocation4], 128, 128, 8
    $region5: #{qnetwork2_forward.1} parent=1 // pred_fallthru
      _
    // Predicated region
    $region6: #{qnetwork2_forward.1} parent=1 // pred_check
      _
    $region7: #{qnetwork2_forward.1} parent=1 // pred_check_branch
      %28 = sbr.rel (0) target = $region9
    $region8: #{qnetwork2_forward.1} parent=1 // pred_region
      _
    $region9: #{qnetwork2_forward.1} parent=1 // pred_fallthru
      _
    // Predicated region
    $region10: #{qnetwork2_forward.1} parent=1 // pred_check
      _
    $region11: #{qnetwork2_forward.1} parent=1 // pred_check_branch
      %30 = sbr.rel (0) target = $region13
    $region12: #{qnetwork2_forward.1} parent=1 // pred_region
      _
    $region13: #{qnetwork2_forward.1} parent=1 // pred_fallthru
      _
    // Predicated region
    $region14: #{qnetwork2_forward.1} parent=1 // pred_check
      _
    $region15: #{qnetwork2_forward.1} parent=1 // pred_check_branch
      %32 = sbr.rel (0) target = $region17
    $region16: #{qnetwork2_forward.1} parent=1 // pred_region
      _
    $region17: #{qnetwork2_forward.1} parent=1 // pred_fallthru
      _
    // Predicated region
    $region18: #{qnetwork2_forward.1} parent=1 // pred_check
      _
    $region19: #{qnetwork2_forward.1} parent=1 // pred_check_branch
      %34 = sbr.rel (0) target = $region21
    $region20: #{qnetwork2_forward.1} parent=1 // pred_region
      _
    $region21: #{qnetwork2_forward.1} parent=1 // pred_fallthru
      _
    // Predicated region
    $region22: #{qnetwork2_forward.1} parent=1 // pred_check
      _
    $region23: #{qnetwork2_forward.1} parent=1 // pred_check_branch
      %36 = sbr.rel (0) target = $region25
    $region24: #{qnetwork2_forward.1} parent=1 // pred_region
      _
    $region25: #{qnetwork2_forward.1} parent=1 // pred_fallthru
      _
    // Predicated region
    $region26: #{qnetwork2_forward.1} parent=1 // pred_check
      _
    $region27: #{qnetwork2_forward.1} parent=1 // pred_check_branch
      %38 = sbr.rel (0) target = $region29
    $region28: #{qnetwork2_forward.1} parent=1 // pred_region
      _
    $region29: #{qnetwork2_forward.1} parent=1 // pred_fallthru
      _
    // Predicated region
    $region30: #{qnetwork2_forward.1} parent=1 // pred_check
      _
    $region31: #{qnetwork2_forward.1} parent=1 // pred_check_branch
      %40 = sbr.rel (0) target = $region33
    $region32: #{qnetwork2_forward.1} parent=1 // pred_region
      _
    $region33: #{qnetwork2_forward.1} parent=1 // pred_fallthru
      _
    // Predicated region
    $region34: #{qnetwork2_forward.1} parent=1 // pred_check
      _
    $region35: #{qnetwork2_forward.1} parent=1 // pred_check_branch
      %42 = sbr.rel (0) target = $region37
    $region36: #{qnetwork2_forward.1} parent=1 // pred_region
      %43 = dma.done [#allocation4], 69632
    $region37: #{qnetwork2_forward.1} parent=1 // pred_fallthru
      _
    %v45 = vld [vmem:[%s3] sm:$0x1]
    %v46 = vld [vmem:[%s4] sm:$0x1]
    %v47 = vld [vmem:[%s6] sm:$0x1]
    %v48 = vld [vmem:[%s7] sm:$0x1]
    %v49 = vld [vmem:[%s2] sm:$0xff]
    %v50 = vld [vmem:[%s2 + $0x8] sm:$0xff]
    %v51 = vld [vmem:[%s2 + $0x10] sm:$0xff]
    %v52 = vld [vmem:[%s2 + $0x18] sm:$0xff]
    loop: start=0, step=1, limit=17
    $region38: #{qnetwork2_forward.1} parent=1 // loop_pre_header
      _
    $region39: #{qnetwork2_forward.1} parent=1 // loop_header
      %s54 = sphi 0, %s58
      %p55 = scmp.ge.s32.totalorder %s54, 17
    $region40: #{qnetwork2_forward.1} parent=1 // loop_header_branch
      %57 = sbr.rel (%p55) target = $region44
    $region41: #{qnetwork2_forward.1} parent=1 // loop_body
      %s59 = smul.u32 %s54, 128
      %s60 = scalar_lea.vmem [#allocation3], %s59
      %v61 = vld [vmem:[%s60] sm:$0xff]
      %v62 = vld [vmem:[%s60 + $0x8] sm:$0xff]
      %v63 = vld [vmem:[%s60 + $0x10] sm:$0xff]
      %v64 = vld [vmem:[%s60 + $0x18] sm:$0xff]
      %v65 = vld [vmem:[%s60 + $0x20] sm:$0xff]
      %v66 = vld [vmem:[%s60 + $0x28] sm:$0xff]
      %v67 = vld [vmem:[%s60 + $0x30] sm:$0xff]
      %v68 = vld [vmem:[%s60 + $0x38] sm:$0xff]
      %v69 = vld [vmem:[%s60 + $0x40] sm:$0xff]
      %v70 = vld [vmem:[%s60 + $0x48] sm:$0xff]
      %v71 = vld [vmem:[%s60 + $0x50] sm:$0xff]
      %v72 = vld [vmem:[%s60 + $0x58] sm:$0xff]
      %v73 = vld [vmem:[%s60 + $0x60] sm:$0xff]
      %v74 = vld [vmem:[%s60 + $0x68] sm:$0xff]
      %v75 = vld [vmem:[%s60 + $0x70] sm:$0xff]
      %v76 = vld [vmem:[%s60 + $0x78] sm:$0xff]
      %vm77 = vcmask 261120
      %v79 = vsel %vm77, %v61, 0
      %v82 = vsel %vm77, %v62, 0
      %v85 = vsel %vm77, %v63, 0
      %v88 = vsel %vm77, %v64, 0
      %v91 = vsel %vm77, %v65, 0
      %v94 = vsel %vm77, %v66, 0
      %v97 = vsel %vm77, %v67, 0
      %v100 = vsel %vm77, %v68, 0
      %v103 = vsel %vm77, %v69, 0
      %v106 = vsel %vm77, %v70, 0
      %v109 = vsel %vm77, %v71, 0
      %v112 = vsel %vm77, %v72, 0
      %v115 = vsel %vm77, %v73, 0
      %v118 = vsel %vm77, %v74, 0
      %v121 = vsel %vm77, %v75, 0
      %v124 = vsel %vm77, %v76, 0
      %126 = vmatprep.subr.mxu0 0.0
      %127 = vmatpush1.msra.mxu0 %v49
      %128 = vmatprep.subr.mxu0 0.0
      %129 = vmatpush1.msra.mxu0 %v50
      %130 = vmatprep.subr.mxu0 0.0
      %131 = vmatpush1.msra.mxu0 %v51
      %132 = vmatprep.subr.mxu0 0.0
      %133 = vmatpush1.msra.mxu0 %v52
      %134 = vmatprep.subr.mxu0 0.0
      %135 = vmatpush1.msra.mxu0 0.0
      %136 = vmatprep.subr.mxu0 0.0
      %137 = vmatpush1.msra.mxu0 0.0
      %138 = vmatprep.subr.mxu0 0.0
      %139 = vmatpush1.msra.mxu0 0.0
      %140 = vmatprep.subr.mxu0 0.0
      %141 = vmatpush1.msra.mxu0 0.0
      %142 = vmatprep.subr.mxu0 0.0
      %143 = vmatpush1.msra.mxu0 0.0
      %144 = vmatprep.subr.mxu0 0.0
      %145 = vmatpush1.msra.mxu0 0.0
      %146 = vmatprep.subr.mxu0 0.0
      %147 = vmatpush1.msra.mxu0 0.0
      %148 = vmatprep.subr.mxu0 0.0
      %149 = vmatpush1.msra.mxu0 0.0
      %150 = vmatprep.subr.mxu0 0.0
      %151 = vmatpush1.msra.mxu0 0.0
      %152 = vmatprep.subr.mxu0 0.0
      %153 = vmatpush1.msra.mxu0 0.0
      %154 = vmatprep.subr.mxu0 0.0
      %155 = vmatpush1.msra.mxu0 0.0
      %156 = vmatprep.subr.mxu0 0.0
      %157 = vmatpush1.msra.mxu0 0.0
      %158 = vmatprep.subr.mxu0 0.0
      %159 = vmatpush1.msra.mxu0 0.0
      %160 = vmatprep.subr.mxu0 0.0
      %161 = vmatpush1.msra.mxu0 0.0
      %162 = vmatprep.subr.mxu0 0.0
      %163 = vmatpush1.msra.mxu0 0.0
      %164 = vmatprep.subr.mxu0 0.0
      %165 = vmatpush1.msra.mxu0 0.0
      %166 = vmatprep.subr.mxu0 0.0
      %167 = vmatpush1.msra.mxu0 0.0
      %168 = vmatprep.subr.mxu0 0.0
      %169 = vmatpush1.msra.mxu0 0.0
      %170 = vmatprep.subr.mxu0 0.0
      %171 = vmatpush1.msra.mxu0 0.0
      %172 = vmatprep.subr.mxu0 0.0
      %173 = vmatpush1.msra.mxu0 0.0
      %174 = vmatprep.subr.mxu0 0.0
      %175 = vmatpush1.msra.mxu0 0.0
      %176 = vmatprep.subr.mxu0 0.0
      %177 = vmatpush1.msra.mxu0 0.0
      %178 = vmatprep.subr.mxu0 0.0
      %179 = vmatpush1.msra.mxu0 0.0
      %180 = vmatprep.subr.mxu0 0.0
      %181 = vmatpush1.msra.mxu0 0.0
      %182 = vmatprep.subr.mxu0 0.0
      %183 = vmatpush1.msra.mxu0 0.0
      %184 = vmatprep.subr.mxu0 0.0
      %185 = vmatpush1.msra.mxu0 0.0
      %186 = vmatprep.subr.mxu0 0.0
      %187 = vmatpush1.msra.mxu0 0.0
      %188 = vmatprep.subr.mxu0 0.0
      %189 = vmatpush1.msra.mxu0 0.0
      %190 = vmatprep.mubr.f32.mxu0 0.0
      %191 = vmatmul.mubr.f32.gmra.mrb[0].mxu0 %v79
      %v192 = vpop.f32.mrb[0].mxu0
      %v193 = vadd.f32 0.0, %v192
      %v194 = vpop.f32.mrb[0].mxu0
      %195 = vmatprep.mubr.f32.mxu0 0.0
      %196 = vmatmul.mubr.f32.gmra.mrb[0].mxu0 %v82
      %v197 = vpop.f32.mrb[0].mxu0
      %v198 = vadd.f32 0.0, %v197
      %v199 = vpop.f32.mrb[0].mxu0
      %200 = vmatprep.mubr.f32.mxu0 0.0
      %201 = vmatmul.mubr.f32.gmra.mrb[0].mxu0 %v85
      %v202 = vpop.f32.mrb[0].mxu0
      %v203 = vadd.f32 0.0, %v202
      %v204 = vpop.f32.mrb[0].mxu0
      %205 = vmatprep.mubr.f32.mxu0 0.0
      %206 = vmatmul.mubr.f32.gmra.mrb[0].mxu0 %v88
      %v207 = vpop.f32.mrb[0].mxu0
      %v208 = vadd.f32 0.0, %v207
      %v209 = vpop.f32.mrb[0].mxu0
      %210 = vmatprep.mubr.f32.mxu0 0.0
      %211 = vmatmul.mubr.f32.gmra.mrb[0].mxu0 %v91
      %v212 = vpop.f32.mrb[0].mxu0
      %v213 = vadd.f32 0.0, %v212
      %v214 = vpop.f32.mrb[0].mxu0
      %215 = vmatprep.mubr.f32.mxu0 0.0
      %216 = vmatmul.mubr.f32.gmra.mrb[0].mxu0 %v94
      %v217 = vpop.f32.mrb[0].mxu0
      %v218 = vadd.f32 0.0, %v217
      %v219 = vpop.f32.mrb[0].mxu0
      %220 = vmatprep.mubr.f32.mxu0 0.0
      %221 = vmatmul.mubr.f32.gmra.mrb[0].mxu0 %v97
      %v222 = vpop.f32.mrb[0].mxu0
      %v223 = vadd.f32 0.0, %v222
      %v224 = vpop.f32.mrb[0].mxu0
      %225 = vmatprep.mubr.f32.mxu0 0.0
      %226 = vmatmul.mubr.f32.gmra.mrb[0].mxu0 %v100
      %v227 = vpop.f32.mrb[0].mxu0
      %v228 = vadd.f32 0.0, %v227
      %v229 = vpop.f32.mrb[0].mxu0
      %230 = vmatprep.mubr.f32.mxu0 0.0
      %231 = vmatmul.mubr.f32.gmra.mrb[0].mxu0 %v103
      %v232 = vpop.f32.mrb[0].mxu0
      %v233 = vadd.f32 0.0, %v232
      %v234 = vpop.f32.mrb[0].mxu0
      %235 = vmatprep.mubr.f32.mxu0 0.0
      %236 = vmatmul.mubr.f32.gmra.mrb[0].mxu0 %v106
      %v237 = vpop.f32.mrb[0].mxu0
      %v238 = vadd.f32 0.0, %v237
      %v239 = vpop.f32.mrb[0].mxu0
      %240 = vmatprep.mubr.f32.mxu0 0.0
      %241 = vmatmul.mubr.f32.gmra.mrb[0].mxu0 %v109
      %v242 = vpop.f32.mrb[0].mxu0
      %v243 = vadd.f32 0.0, %v242
      %v244 = vpop.f32.mrb[0].mxu0
      %245 = vmatprep.mubr.f32.mxu0 0.0
      %246 = vmatmul.mubr.f32.gmra.mrb[0].mxu0 %v112
      %v247 = vpop.f32.mrb[0].mxu0
      %v248 = vadd.f32 0.0, %v247
      %v249 = vpop.f32.mrb[0].mxu0
      %250 = vmatprep.mubr.f32.mxu0 0.0
      %251 = vmatmul.mubr.f32.gmra.mrb[0].mxu0 %v115
      %v252 = vpop.f32.mrb[0].mxu0
      %v253 = vadd.f32 0.0, %v252
      %v254 = vpop.f32.mrb[0].mxu0
      %255 = vmatprep.mubr.f32.mxu0 0.0
      %256 = vmatmul.mubr.f32.gmra.mrb[0].mxu0 %v118
      %v257 = vpop.f32.mrb[0].mxu0
      %v258 = vadd.f32 0.0, %v257
      %v259 = vpop.f32.mrb[0].mxu0
      %260 = vmatprep.mubr.f32.mxu0 0.0
      %261 = vmatmul.mubr.f32.gmra.mrb[0].mxu0 %v121
      %v262 = vpop.f32.mrb[0].mxu0
      %v263 = vadd.f32 0.0, %v262
      %v264 = vpop.f32.mrb[0].mxu0
      %265 = vmatprep.mubr.f32.mxu0 0.0
      %266 = vmatmul.mubr.f32.gmra.mrb[0].mxu0 %v124
      %v267 = vpop.f32.mrb[0].mxu0
      %v268 = vadd.f32 0.0, %v267
      %v269 = vpop.f32.mrb[0].mxu0
      %270 = vdwg.mxu0
      %v272 = vlaneseq
      %v273 = vshrl.u32 %v272, 7
      %v274 = vsub.s32 0, %v273
      %v275 = vrot.slane %v45, %v274
      %v277 = vmul.f32 %v193, %v275
      %v278 = vmul.f32 %v198, %v275
      %v279 = vmul.f32 %v203, %v275
      %v280 = vmul.f32 %v208, %v275
      %v281 = vmul.f32 %v213, %v275
      %v282 = vmul.f32 %v218, %v275
      %v283 = vmul.f32 %v223, %v275
      %v284 = vmul.f32 %v228, %v275
      %v285 = vmul.f32 %v233, %v275
      %v286 = vmul.f32 %v238, %v275
      %v287 = vmul.f32 %v243, %v275
      %v288 = vmul.f32 %v248, %v275
      %v289 = vmul.f32 %v253, %v275
      %v290 = vmul.f32 %v258, %v275
      %v291 = vmul.f32 %v263, %v275
      %v292 = vmul.f32 %v268, %v275
      %v294 = vlaneseq
      %v295 = vshrl.u32 %v294, 7
      %v296 = vsub.s32 0, %v295
      %v297 = vrot.slane %v46, %v296
      %v299 = vadd.f32 %v277, %v297
      %v300 = vadd.f32 %v278, %v297
      %v301 = vadd.f32 %v279, %v297
      %v302 = vadd.f32 %v280, %v297
      %v303 = vadd.f32 %v281, %v297
      %v304 = vadd.f32 %v282, %v297
      %v305 = vadd.f32 %v283, %v297
      %v306 = vadd.f32 %v284, %v297
      %v307 = vadd.f32 %v285, %v297
      %v308 = vadd.f32 %v286, %v297
      %v309 = vadd.f32 %v287, %v297
      %v310 = vadd.f32 %v288, %v297
      %v311 = vadd.f32 %v289, %v297
      %v312 = vadd.f32 %v290, %v297
      %v313 = vadd.f32 %v291, %v297
      %v314 = vadd.f32 %v292, %v297
      %v315 = vmax.f32 %v299, 0.0
      %v316 = vmax.f32 %v300, 0.0
      %v317 = vmax.f32 %v301, 0.0
      %v318 = vmax.f32 %v302, 0.0
      %v319 = vmax.f32 %v303, 0.0
      %v320 = vmax.f32 %v304, 0.0
      %v321 = vmax.f32 %v305, 0.0
      %v322 = vmax.f32 %v306, 0.0
      %v323 = vmax.f32 %v307, 0.0
      %v324 = vmax.f32 %v308, 0.0
      %v325 = vmax.f32 %v309, 0.0
      %v326 = vmax.f32 %v310, 0.0
      %v327 = vmax.f32 %v311, 0.0
      %v328 = vmax.f32 %v312, 0.0
      %v329 = vmax.f32 %v313, 0.0
      %v330 = vmax.f32 %v314, 0.0
      %s331 = scalar_lea.vmem [#allocation2], %s59
      %vm332 = vcmask 130048
      %333 = vst.msk [vmem:[%s331] sm:$0xff] %vm332, %v315
      %334 = vst.msk [vmem:[%s331 + $0x8] sm:$0xff] %vm332, %v316
      %335 = vst.msk [vmem:[%s331 + $0x10] sm:$0xff] %vm332, %v317
      %336 = vst.msk [vmem:[%s331 + $0x18] sm:$0xff] %vm332, %v318
      %337 = vst.msk [vmem:[%s331 + $0x20] sm:$0xff] %vm332, %v319
      %338 = vst.msk [vmem:[%s331 + $0x28] sm:$0xff] %vm332, %v320
      %339 = vst.msk [vmem:[%s331 + $0x30] sm:$0xff] %vm332, %v321
      %340 = vst.msk [vmem:[%s331 + $0x38] sm:$0xff] %vm332, %v322
      %341 = vst.msk [vmem:[%s331 + $0x40] sm:$0xff] %vm332, %v323
      %342 = vst.msk [vmem:[%s331 + $0x48] sm:$0xff] %vm332, %v324
      %343 = vst.msk [vmem:[%s331 + $0x50] sm:$0xff] %vm332, %v325
      %344 = vst.msk [vmem:[%s331 + $0x58] sm:$0xff] %vm332, %v326
      %345 = vst.msk [vmem:[%s331 + $0x60] sm:$0xff] %vm332, %v327
      %346 = vst.msk [vmem:[%s331 + $0x68] sm:$0xff] %vm332, %v328
      %347 = vst.msk [vmem:[%s331 + $0x70] sm:$0xff] %vm332, %v329
      %348 = vst.msk [vmem:[%s331 + $0x78] sm:$0xff] %vm332, %v330
    $region42: #{qnetwork2_forward.1} parent=1 // loop_footer
      %s58 = sadd.s32 1, %s54
    $region43: #{qnetwork2_forward.1} parent=1 // loop_footer_branch
      %53 = sbr.rel target = $region39
    $region44: #{qnetwork2_forward.1} parent=1 // loop_exit
      _
    loop: start=0, step=1, limit=14
    $region45: #{qnetwork2_forward.1} parent=1 // loop_pre_header
      _
    $region46: #{qnetwork2_forward.1} parent=1 // loop_header
      %s350 = sphi 0, %s354
      %p351 = scmp.ge.s32.totalorder %s350, 14
      %v355 = vphi 0.0, %v3930
    $region47: #{qnetwork2_forward.1} parent=1 // loop_header_branch
      %353 = sbr.rel (%p351) target = $region51
    $region48: #{qnetwork2_forward.1} parent=1 // loop_body
      %s356 = smul.u32 %s350, 128
      %s357 = scalar_lea.vmem [#allocation2], %s356
      %v358 = vld [vmem:[%s357] sm:$0xff]
      %v359 = vld [vmem:[%s357 + $0x8] sm:$0xff]
      %v360 = vld [vmem:[%s357 + $0x10] sm:$0xff]
      %v361 = vld [vmem:[%s357 + $0x18] sm:$0xff]
      %v362 = vld [vmem:[%s357 + $0x20] sm:$0xff]
      %v363 = vld [vmem:[%s357 + $0x28] sm:$0xff]
      %v364 = vld [vmem:[%s357 + $0x30] sm:$0xff]
      %v365 = vld [vmem:[%s357 + $0x38] sm:$0xff]
      %v366 = vld [vmem:[%s357 + $0x40] sm:$0xff]
      %v367 = vld [vmem:[%s357 + $0x48] sm:$0xff]
      %v368 = vld [vmem:[%s357 + $0x50] sm:$0xff]
      %v369 = vld [vmem:[%s357 + $0x58] sm:$0xff]
      %v370 = vld [vmem:[%s357 + $0x60] sm:$0xff]
      %v371 = vld [vmem:[%s357 + $0x68] sm:$0xff]
      %v372 = vld [vmem:[%s357 + $0x70] sm:$0xff]
      %v373 = vld [vmem:[%s357 + $0x78] sm:$0xff]
      %s374 = sadd.s32 %s356, 1
      %s375 = scalar_lea.vmem [#allocation2], %s374
      %v376 = vld [vmem:[%s375] sm:$0xff]
      %v377 = vld [vmem:[%s375 + $0x8] sm:$0xff]
      %v378 = vld [vmem:[%s375 + $0x10] sm:$0xff]
      %v379 = vld [vmem:[%s375 + $0x18] sm:$0xff]
      %v380 = vld [vmem:[%s375 + $0x20] sm:$0xff]
      %v381 = vld [vmem:[%s375 + $0x28] sm:$0xff]
      %v382 = vld [vmem:[%s375 + $0x30] sm:$0xff]
      %v383 = vld [vmem:[%s375 + $0x38] sm:$0xff]
      %v384 = vld [vmem:[%s375 + $0x40] sm:$0xff]
      %v385 = vld [vmem:[%s375 + $0x48] sm:$0xff]
      %v386 = vld [vmem:[%s375 + $0x50] sm:$0xff]
      %v387 = vld [vmem:[%s375 + $0x58] sm:$0xff]
      %v388 = vld [vmem:[%s375 + $0x60] sm:$0xff]
      %v389 = vld [vmem:[%s375 + $0x68] sm:$0xff]
      %v390 = vld [vmem:[%s375 + $0x70] sm:$0xff]
      %v391 = vld [vmem:[%s375 + $0x78] sm:$0xff]
      %s392 = sadd.s32 %s356, 2
      %s393 = scalar_lea.vmem [#allocation2], %s392
      %v394 = vld [vmem:[%s393] sm:$0xff]
      %v395 = vld [vmem:[%s393 + $0x8] sm:$0xff]
      %v396 = vld [vmem:[%s393 + $0x10] sm:$0xff]
      %v397 = vld [vmem:[%s393 + $0x18] sm:$0xff]
      %v398 = vld [vmem:[%s393 + $0x20] sm:$0xff]
      %v399 = vld [vmem:[%s393 + $0x28] sm:$0xff]
      %v400 = vld [vmem:[%s393 + $0x30] sm:$0xff]
      %v401 = vld [vmem:[%s393 + $0x38] sm:$0xff]
      %v402 = vld [vmem:[%s393 + $0x40] sm:$0xff]
      %v403 = vld [vmem:[%s393 + $0x48] sm:$0xff]
      %v404 = vld [vmem:[%s393 + $0x50] sm:$0xff]
      %v405 = vld [vmem:[%s393 + $0x58] sm:$0xff]
      %v406 = vld [vmem:[%s393 + $0x60] sm:$0xff]
      %v407 = vld [vmem:[%s393 + $0x68] sm:$0xff]
      %v408 = vld [vmem:[%s393 + $0x70] sm:$0xff]
      %v409 = vld [vmem:[%s393 + $0x78] sm:$0xff]
      %s410 = sadd.s32 %s356, 12
      %s411 = scalar_lea.vmem [#allocation2], %s410
      %v412 = vld [vmem:[%s411] sm:$0xff]
      %v413 = vld [vmem:[%s411 + $0x8] sm:$0xff]
      %v414 = vld [vmem:[%s411 + $0x10] sm:$0xff]
      %v415 = vld [vmem:[%s411 + $0x18] sm:$0xff]
      %v416 = vld [vmem:[%s411 + $0x20] sm:$0xff]
      %v417 = vld [vmem:[%s411 + $0x28] sm:$0xff]
      %v418 = vld [vmem:[%s411 + $0x30] sm:$0xff]
      %v419 = vld [vmem:[%s411 + $0x38] sm:$0xff]
      %v420 = vld [vmem:[%s411 + $0x40] sm:$0xff]
      %v421 = vld [vmem:[%s411 + $0x48] sm:$0xff]
      %v422 = vld [vmem:[%s411 + $0x50] sm:$0xff]
      %v423 = vld [vmem:[%s411 + $0x58] sm:$0xff]
      %v424 = vld [vmem:[%s411 + $0x60] sm:$0xff]
      %v425 = vld [vmem:[%s411 + $0x68] sm:$0xff]
      %v426 = vld [vmem:[%s411 + $0x70] sm:$0xff]
      %v427 = vld [vmem:[%s411 + $0x78] sm:$0xff]
      %s428 = sadd.s32 %s356, 13
      %s429 = scalar_lea.vmem [#allocation2], %s428
      %v430 = vld [vmem:[%s429] sm:$0xff]
      %v431 = vld [vmem:[%s429 + $0x8] sm:$0xff]
      %v432 = vld [vmem:[%s429 + $0x10] sm:$0xff]
      %v433 = vld [vmem:[%s429 + $0x18] sm:$0xff]
      %v434 = vld [vmem:[%s429 + $0x20] sm:$0xff]
      %v435 = vld [vmem:[%s429 + $0x28] sm:$0xff]
      %v436 = vld [vmem:[%s429 + $0x30] sm:$0xff]
      %v437 = vld [vmem:[%s429 + $0x38] sm:$0xff]
      %v438 = vld [vmem:[%s429 + $0x40] sm:$0xff]
      %v439 = vld [vmem:[%s429 + $0x48] sm:$0xff]
      %v440 = vld [vmem:[%s429 + $0x50] sm:$0xff]
      %v441 = vld [vmem:[%s429 + $0x58] sm:$0xff]
      %v442 = vld [vmem:[%s429 + $0x60] sm:$0xff]
      %v443 = vld [vmem:[%s429 + $0x68] sm:$0xff]
      %v444 = vld [vmem:[%s429 + $0x70] sm:$0xff]
      %v445 = vld [vmem:[%s429 + $0x78] sm:$0xff]
      %s446 = sadd.s32 %s356, 14
      %s447 = scalar_lea.vmem [#allocation2], %s446
      %v448 = vld [vmem:[%s447] sm:$0xff]
      %v449 = vld [vmem:[%s447 + $0x8] sm:$0xff]
      %v450 = vld [vmem:[%s447 + $0x10] sm:$0xff]
      %v451 = vld [vmem:[%s447 + $0x18] sm:$0xff]
      %v452 = vld [vmem:[%s447 + $0x20] sm:$0xff]
      %v453 = vld [vmem:[%s447 + $0x28] sm:$0xff]
      %v454 = vld [vmem:[%s447 + $0x30] sm:$0xff]
      %v455 = vld [vmem:[%s447 + $0x38] sm:$0xff]
      %v456 = vld [vmem:[%s447 + $0x40] sm:$0xff]
      %v457 = vld [vmem:[%s447 + $0x48] sm:$0xff]
      %v458 = vld [vmem:[%s447 + $0x50] sm:$0xff]
      %v459 = vld [vmem:[%s447 + $0x58] sm:$0xff]
      %v460 = vld [vmem:[%s447 + $0x60] sm:$0xff]
      %v461 = vld [vmem:[%s447 + $0x68] sm:$0xff]
      %v462 = vld [vmem:[%s447 + $0x70] sm:$0xff]
      %v463 = vld [vmem:[%s447 + $0x78] sm:$0xff]
      %s464 = sadd.s32 %s356, 24
      %s465 = scalar_lea.vmem [#allocation2], %s464
      %v466 = vld [vmem:[%s465] sm:$0xff]
      %v467 = vld [vmem:[%s465 + $0x8] sm:$0xff]
      %v468 = vld [vmem:[%s465 + $0x10] sm:$0xff]
      %v469 = vld [vmem:[%s465 + $0x18] sm:$0xff]
      %v470 = vld [vmem:[%s465 + $0x20] sm:$0xff]
      %v471 = vld [vmem:[%s465 + $0x28] sm:$0xff]
      %v472 = vld [vmem:[%s465 + $0x30] sm:$0xff]
      %v473 = vld [vmem:[%s465 + $0x38] sm:$0xff]
      %v474 = vld [vmem:[%s465 + $0x40] sm:$0xff]
      %v475 = vld [vmem:[%s465 + $0x48] sm:$0xff]
      %v476 = vld [vmem:[%s465 + $0x50] sm:$0xff]
      %v477 = vld [vmem:[%s465 + $0x58] sm:$0xff]
      %v478 = vld [vmem:[%s465 + $0x60] sm:$0xff]
      %v479 = vld [vmem:[%s465 + $0x68] sm:$0xff]
      %v480 = vld [vmem:[%s465 + $0x70] sm:$0xff]
      %v481 = vld [vmem:[%s465 + $0x78] sm:$0xff]
      %s482 = sadd.s32 %s356, 25
      %s483 = scalar_lea.vmem [#allocation2], %s482
      %v484 = vld [vmem:[%s483] sm:$0xff]
      %v485 = vld [vmem:[%s483 + $0x8] sm:$0xff]
      %v486 = vld [vmem:[%s483 + $0x10] sm:$0xff]
      %v487 = vld [vmem:[%s483 + $0x18] sm:$0xff]
      %v488 = vld [vmem:[%s483 + $0x20] sm:$0xff]
      %v489 = vld [vmem:[%s483 + $0x28] sm:$0xff]
      %v490 = vld [vmem:[%s483 + $0x30] sm:$0xff]
      %v491 = vld [vmem:[%s483 + $0x38] sm:$0xff]
      %v492 = vld [vmem:[%s483 + $0x40] sm:$0xff]
      %v493 = vld [vmem:[%s483 + $0x48] sm:$0xff]
      %v494 = vld [vmem:[%s483 + $0x50] sm:$0xff]
      %v495 = vld [vmem:[%s483 + $0x58] sm:$0xff]
      %v496 = vld [vmem:[%s483 + $0x60] sm:$0xff]
      %v497 = vld [vmem:[%s483 + $0x68] sm:$0xff]
      %v498 = vld [vmem:[%s483 + $0x70] sm:$0xff]
      %v499 = vld [vmem:[%s483 + $0x78] sm:$0xff]
      %516 = vrot.lane.b32.xlu0 %v376, 16
      %v517 = vpop.permute.xlu0 %516
      %518 = vrot.lane.b32.xlu0 %v377, 16
      %v519 = vpop.permute.xlu0 %518
      %520 = vrot.lane.b32.xlu0 %v378, 16
      %v521 = vpop.permute.xlu0 %520
      %522 = vrot.lane.b32.xlu0 %v379, 16
      %v523 = vpop.permute.xlu0 %522
      %524 = vrot.lane.b32.xlu0 %v380, 16
      %v525 = vpop.permute.xlu0 %524
      %526 = vrot.lane.b32.xlu0 %v381, 16
      %v527 = vpop.permute.xlu0 %526
      %528 = vrot.lane.b32.xlu0 %v382, 16
      %v529 = vpop.permute.xlu0 %528
      %530 = vrot.lane.b32.xlu0 %v383, 16
      %v531 = vpop.permute.xlu0 %530
      %532 = vrot.lane.b32.xlu0 %v384, 16
      %v533 = vpop.permute.xlu0 %532
      %534 = vrot.lane.b32.xlu0 %v385, 16
      %v535 = vpop.permute.xlu0 %534
      %536 = vrot.lane.b32.xlu0 %v386, 16
      %v537 = vpop.permute.xlu0 %536
      %538 = vrot.lane.b32.xlu0 %v387, 16
      %v539 = vpop.permute.xlu0 %538
      %540 = vrot.lane.b32.xlu0 %v388, 16
      %v541 = vpop.permute.xlu0 %540
      %542 = vrot.lane.b32.xlu0 %v389, 16
      %v543 = vpop.permute.xlu0 %542
      %544 = vrot.lane.b32.xlu0 %v390, 16
      %v545 = vpop.permute.xlu0 %544
      %546 = vrot.lane.b32.xlu0 %v391, 16
      %v547 = vpop.permute.xlu0 %546
      %580 = vrot.lane.b32.xlu0 %v394, 32
      %v581 = vpop.permute.xlu0 %580
      %582 = vrot.lane.b32.xlu0 %v395, 32
      %v583 = vpop.permute.xlu0 %582
      %584 = vrot.lane.b32.xlu0 %v396, 32
      %v585 = vpop.permute.xlu0 %584
      %586 = vrot.lane.b32.xlu0 %v397, 32
      %v587 = vpop.permute.xlu0 %586
      %588 = vrot.lane.b32.xlu0 %v398, 32
      %v589 = vpop.permute.xlu0 %588
      %590 = vrot.lane.b32.xlu0 %v399, 32
      %v591 = vpop.permute.xlu0 %590
      %592 = vrot.lane.b32.xlu0 %v400, 32
      %v593 = vpop.permute.xlu0 %592
      %594 = vrot.lane.b32.xlu0 %v401, 32
      %v595 = vpop.permute.xlu0 %594
      %596 = vrot.lane.b32.xlu0 %v402, 32
      %v597 = vpop.permute.xlu0 %596
      %598 = vrot.lane.b32.xlu0 %v403, 32
      %v599 = vpop.permute.xlu0 %598
      %600 = vrot.lane.b32.xlu0 %v404, 32
      %v601 = vpop.permute.xlu0 %600
      %602 = vrot.lane.b32.xlu0 %v405, 32
      %v603 = vpop.permute.xlu0 %602
      %604 = vrot.lane.b32.xlu0 %v406, 32
      %v605 = vpop.permute.xlu0 %604
      %606 = vrot.lane.b32.xlu0 %v407, 32
      %v607 = vpop.permute.xlu0 %606
      %608 = vrot.lane.b32.xlu0 %v408, 32
      %v609 = vpop.permute.xlu0 %608
      %610 = vrot.lane.b32.xlu0 %v409, 32
      %v611 = vpop.permute.xlu0 %610
      %644 = vrot.lane.b32.xlu0 %v412, 48
      %v645 = vpop.permute.xlu0 %644
      %646 = vrot.lane.b32.xlu0 %v413, 48
      %v647 = vpop.permute.xlu0 %646
      %648 = vrot.lane.b32.xlu0 %v414, 48
      %v649 = vpop.permute.xlu0 %648
      %650 = vrot.lane.b32.xlu0 %v415, 48
      %v651 = vpop.permute.xlu0 %650
      %652 = vrot.lane.b32.xlu0 %v416, 48
      %v653 = vpop.permute.xlu0 %652
      %654 = vrot.lane.b32.xlu0 %v417, 48
      %v655 = vpop.permute.xlu0 %654
      %656 = vrot.lane.b32.xlu0 %v418, 48
      %v657 = vpop.permute.xlu0 %656
      %658 = vrot.lane.b32.xlu0 %v419, 48
      %v659 = vpop.permute.xlu0 %658
      %660 = vrot.lane.b32.xlu0 %v420, 48
      %v661 = vpop.permute.xlu0 %660
      %662 = vrot.lane.b32.xlu0 %v421, 48
      %v663 = vpop.permute.xlu0 %662
      %664 = vrot.lane.b32.xlu0 %v422, 48
      %v665 = vpop.permute.xlu0 %664
      %666 = vrot.lane.b32.xlu0 %v423, 48
      %v667 = vpop.permute.xlu0 %666
      %668 = vrot.lane.b32.xlu0 %v424, 48
      %v669 = vpop.permute.xlu0 %668
      %670 = vrot.lane.b32.xlu0 %v425, 48
      %v671 = vpop.permute.xlu0 %670
      %672 = vrot.lane.b32.xlu0 %v426, 48
      %v673 = vpop.permute.xlu0 %672
      %674 = vrot.lane.b32.xlu0 %v427, 48
      %v675 = vpop.permute.xlu0 %674
      %708 = vrot.lane.b32.xlu0 %v430, 64
      %v709 = vpop.permute.xlu0 %708
      %710 = vrot.lane.b32.xlu0 %v431, 64
      %v711 = vpop.permute.xlu0 %710
      %712 = vrot.lane.b32.xlu0 %v432, 64
      %v713 = vpop.permute.xlu0 %712
      %714 = vrot.lane.b32.xlu0 %v433, 64
      %v715 = vpop.permute.xlu0 %714
      %716 = vrot.lane.b32.xlu0 %v434, 64
      %v717 = vpop.permute.xlu0 %716
      %718 = vrot.lane.b32.xlu0 %v435, 64
      %v719 = vpop.permute.xlu0 %718
      %720 = vrot.lane.b32.xlu0 %v436, 64
      %v721 = vpop.permute.xlu0 %720
      %722 = vrot.lane.b32.xlu0 %v437, 64
      %v723 = vpop.permute.xlu0 %722
      %724 = vrot.lane.b32.xlu0 %v438, 64
      %v725 = vpop.permute.xlu0 %724
      %726 = vrot.lane.b32.xlu0 %v439, 64
      %v727 = vpop.permute.xlu0 %726
      %728 = vrot.lane.b32.xlu0 %v440, 64
      %v729 = vpop.permute.xlu0 %728
      %730 = vrot.lane.b32.xlu0 %v441, 64
      %v731 = vpop.permute.xlu0 %730
      %732 = vrot.lane.b32.xlu0 %v442, 64
      %v733 = vpop.permute.xlu0 %732
      %734 = vrot.lane.b32.xlu0 %v443, 64
      %v735 = vpop.permute.xlu0 %734
      %736 = vrot.lane.b32.xlu0 %v444, 64
      %v737 = vpop.permute.xlu0 %736
      %738 = vrot.lane.b32.xlu0 %v445, 64
      %v739 = vpop.permute.xlu0 %738
      %772 = vrot.lane.b32.xlu0 %v448, 80
      %v773 = vpop.permute.xlu0 %772
      %774 = vrot.lane.b32.xlu0 %v449, 80
      %v775 = vpop.permute.xlu0 %774
      %776 = vrot.lane.b32.xlu0 %v450, 80
      %v777 = vpop.permute.xlu0 %776
      %778 = vrot.lane.b32.xlu0 %v451, 80
      %v779 = vpop.permute.xlu0 %778
      %780 = vrot.lane.b32.xlu0 %v452, 80
      %v781 = vpop.permute.xlu0 %780
      %782 = vrot.lane.b32.xlu0 %v453, 80
      %v783 = vpop.permute.xlu0 %782
      %784 = vrot.lane.b32.xlu0 %v454, 80
      %v785 = vpop.permute.xlu0 %784
      %786 = vrot.lane.b32.xlu0 %v455, 80
      %v787 = vpop.permute.xlu0 %786
      %788 = vrot.lane.b32.xlu0 %v456, 80
      %v789 = vpop.permute.xlu0 %788
      %790 = vrot.lane.b32.xlu0 %v457, 80
      %v791 = vpop.permute.xlu0 %790
      %792 = vrot.lane.b32.xlu0 %v458, 80
      %v793 = vpop.permute.xlu0 %792
      %794 = vrot.lane.b32.xlu0 %v459, 80
      %v795 = vpop.permute.xlu0 %794
      %796 = vrot.lane.b32.xlu0 %v460, 80
      %v797 = vpop.permute.xlu0 %796
      %798 = vrot.lane.b32.xlu0 %v461, 80
      %v799 = vpop.permute.xlu0 %798
      %800 = vrot.lane.b32.xlu0 %v462, 80
      %v801 = vpop.permute.xlu0 %800
      %802 = vrot.lane.b32.xlu0 %v463, 80
      %v803 = vpop.permute.xlu0 %802
      %836 = vrot.lane.b32.xlu0 %v466, 96
      %v837 = vpop.permute.xlu0 %836
      %838 = vrot.lane.b32.xlu0 %v467, 96
      %v839 = vpop.permute.xlu0 %838
      %840 = vrot.lane.b32.xlu0 %v468, 96
      %v841 = vpop.permute.xlu0 %840
      %842 = vrot.lane.b32.xlu0 %v469, 96
      %v843 = vpop.permute.xlu0 %842
      %844 = vrot.lane.b32.xlu0 %v470, 96
      %v845 = vpop.permute.xlu0 %844
      %846 = vrot.lane.b32.xlu0 %v471, 96
      %v847 = vpop.permute.xlu0 %846
      %848 = vrot.lane.b32.xlu0 %v472, 96
      %v849 = vpop.permute.xlu0 %848
      %850 = vrot.lane.b32.xlu0 %v473, 96
      %v851 = vpop.permute.xlu0 %850
      %852 = vrot.lane.b32.xlu0 %v474, 96
      %v853 = vpop.permute.xlu0 %852
      %854 = vrot.lane.b32.xlu0 %v475, 96
      %v855 = vpop.permute.xlu0 %854
      %856 = vrot.lane.b32.xlu0 %v476, 96
      %v857 = vpop.permute.xlu0 %856
      %858 = vrot.lane.b32.xlu0 %v477, 96
      %v859 = vpop.permute.xlu0 %858
      %860 = vrot.lane.b32.xlu0 %v478, 96
      %v861 = vpop.permute.xlu0 %860
      %862 = vrot.lane.b32.xlu0 %v479, 96
      %v863 = vpop.permute.xlu0 %862
      %864 = vrot.lane.b32.xlu0 %v480, 96
      %v865 = vpop.permute.xlu0 %864
      %866 = vrot.lane.b32.xlu0 %v481, 96
      %v867 = vpop.permute.xlu0 %866
      %900 = vrot.lane.b32.xlu0 %v484, 112
      %v901 = vpop.permute.xlu0 %900
      %902 = vrot.lane.b32.xlu0 %v485, 112
      %v903 = vpop.permute.xlu0 %902
      %904 = vrot.lane.b32.xlu0 %v486, 112
      %v905 = vpop.permute.xlu0 %904
      %906 = vrot.lane.b32.xlu0 %v487, 112
      %v907 = vpop.permute.xlu0 %906
      %908 = vrot.lane.b32.xlu0 %v488, 112
      %v909 = vpop.permute.xlu0 %908
      %910 = vrot.lane.b32.xlu0 %v489, 112
      %v911 = vpop.permute.xlu0 %910
      %912 = vrot.lane.b32.xlu0 %v490, 112
      %v913 = vpop.permute.xlu0 %912
      %914 = vrot.lane.b32.xlu0 %v491, 112
      %v915 = vpop.permute.xlu0 %914
      %916 = vrot.lane.b32.xlu0 %v492, 112
      %v917 = vpop.permute.xlu0 %916
      %918 = vrot.lane.b32.xlu0 %v493, 112
      %v919 = vpop.permute.xlu0 %918
      %920 = vrot.lane.b32.xlu0 %v494, 112
      %v921 = vpop.permute.xlu0 %920
      %922 = vrot.lane.b32.xlu0 %v495, 112
      %v923 = vpop.permute.xlu0 %922
      %924 = vrot.lane.b32.xlu0 %v496, 112
      %v925 = vpop.permute.xlu0 %924
      %926 = vrot.lane.b32.xlu0 %v497, 112
      %v927 = vpop.permute.xlu0 %926
      %928 = vrot.lane.b32.xlu0 %v498, 112
      %v929 = vpop.permute.xlu0 %928
      %930 = vrot.lane.b32.xlu0 %v499, 112
      %v931 = vpop.permute.xlu0 %930
      %vm948 = vcmask 130048
      %v949 = vsel %vm948, %v358, %v517
      %v950 = vsel %vm948, %v359, %v519
      %v951 = vsel %vm948, %v360, %v521
      %v952 = vsel %vm948, %v361, %v523
      %v953 = vsel %vm948, %v362, %v525
      %v954 = vsel %vm948, %v363, %v527
      %v955 = vsel %vm948, %v364, %v529
      %v956 = vsel %vm948, %v365, %v531
      %v957 = vsel %vm948, %v366, %v533
      %v958 = vsel %vm948, %v367, %v535
      %v959 = vsel %vm948, %v368, %v537
      %v960 = vsel %vm948, %v369, %v539
      %v961 = vsel %vm948, %v370, %v541
      %v962 = vsel %vm948, %v371, %v543
      %v963 = vsel %vm948, %v372, %v545
      %v964 = vsel %vm948, %v373, %v547
      %vm965 = vcmask 261120
      %v966 = vsel %vm965, %v949, %v581
      %v967 = vsel %vm965, %v950, %v583
      %v968 = vsel %vm965, %v951, %v585
      %v969 = vsel %vm965, %v952, %v587
      %v970 = vsel %vm965, %v953, %v589
      %v971 = vsel %vm965, %v954, %v591
      %v972 = vsel %vm965, %v955, %v593
      %v973 = vsel %vm965, %v956, %v595
      %v974 = vsel %vm965, %v957, %v597
      %v975 = vsel %vm965, %v958, %v599
      %v976 = vsel %vm965, %v959, %v601
      %v977 = vsel %vm965, %v960, %v603
      %v978 = vsel %vm965, %v961, %v605
      %v979 = vsel %vm965, %v962, %v607
      %v980 = vsel %vm965, %v963, %v609
      %v981 = vsel %vm965, %v964, %v611
      %vm982 = vcmask 392192
      %v983 = vsel %vm982, %v966, %v645
      %v984 = vsel %vm982, %v967, %v647
      %v985 = vsel %vm982, %v968, %v649
      %v986 = vsel %vm982, %v969, %v651
      %v987 = vsel %vm982, %v970, %v653
      %v988 = vsel %vm982, %v971, %v655
      %v989 = vsel %vm982, %v972, %v657
      %v990 = vsel %vm982, %v973, %v659
      %v991 = vsel %vm982, %v974, %v661
      %v992 = vsel %vm982, %v975, %v663
      %v993 = vsel %vm982, %v976, %v665
      %v994 = vsel %vm982, %v977, %v667
      %v995 = vsel %vm982, %v978, %v669
      %v996 = vsel %vm982, %v979, %v671
      %v997 = vsel %vm982, %v980, %v673
      %v998 = vsel %vm982, %v981, %v675
      %vm999 = vcmask 523264
      %v1000 = vsel %vm999, %v983, %v709
      %v1001 = vsel %vm999, %v984, %v711
      %v1002 = vsel %vm999, %v985, %v713
      %v1003 = vsel %vm999, %v986, %v715
      %v1004 = vsel %vm999, %v987, %v717
      %v1005 = vsel %vm999, %v988, %v719
      %v1006 = vsel %vm999, %v989, %v721
      %v1007 = vsel %vm999, %v990, %v723
      %v1008 = vsel %vm999, %v991, %v725
      %v1009 = vsel %vm999, %v992, %v727
      %v1010 = vsel %vm999, %v993, %v729
      %v1011 = vsel %vm999, %v994, %v731
      %v1012 = vsel %vm999, %v995, %v733
      %v1013 = vsel %vm999, %v996, %v735
      %v1014 = vsel %vm999, %v997, %v737
      %v1015 = vsel %vm999, %v998, %v739
      %vm1016 = vcmask 654336
      %v1017 = vsel %vm1016, %v1000, %v773
      %v1018 = vsel %vm1016, %v1001, %v775
      %v1019 = vsel %vm1016, %v1002, %v777
      %v1020 = vsel %vm1016, %v1003, %v779
      %v1021 = vsel %vm1016, %v1004, %v781
      %v1022 = vsel %vm1016, %v1005, %v783
      %v1023 = vsel %vm1016, %v1006, %v785
      %v1024 = vsel %vm1016, %v1007, %v787
      %v1025 = vsel %vm1016, %v1008, %v789
      %v1026 = vsel %vm1016, %v1009, %v791
      %v1027 = vsel %vm1016, %v1010, %v793
      %v1028 = vsel %vm1016, %v1011, %v795
      %v1029 = vsel %vm1016, %v1012, %v797
      %v1030 = vsel %vm1016, %v1013, %v799
      %v1031 = vsel %vm1016, %v1014, %v801
      %v1032 = vsel %vm1016, %v1015, %v803
      %vm1033 = vcmask 785408
      %v1034 = vsel %vm1033, %v1017, %v837
      %v1035 = vsel %vm1033, %v1018, %v839
      %v1036 = vsel %vm1033, %v1019, %v841
      %v1037 = vsel %vm1033, %v1020, %v843
      %v1038 = vsel %vm1033, %v1021, %v845
      %v1039 = vsel %vm1033, %v1022, %v847
      %v1040 = vsel %vm1033, %v1023, %v849
      %v1041 = vsel %vm1033, %v1024, %v851
      %v1042 = vsel %vm1033, %v1025, %v853
      %v1043 = vsel %vm1033, %v1026, %v855
      %v1044 = vsel %vm1033, %v1027, %v857
      %v1045 = vsel %vm1033, %v1028, %v859
      %v1046 = vsel %vm1033, %v1029, %v861
      %v1047 = vsel %vm1033, %v1030, %v863
      %v1048 = vsel %vm1033, %v1031, %v865
      %v1049 = vsel %vm1033, %v1032, %v867
      %vm1050 = vcmask 916480
      %v1051 = vsel %vm1050, %v1034, %v901
      %v1052 = vsel %vm1050, %v1035, %v903
      %v1053 = vsel %vm1050, %v1036, %v905
      %v1054 = vsel %vm1050, %v1037, %v907
      %v1055 = vsel %vm1050, %v1038, %v909
      %v1056 = vsel %vm1050, %v1039, %v911
      %v1057 = vsel %vm1050, %v1040, %v913
      %v1058 = vsel %vm1050, %v1041, %v915
      %v1059 = vsel %vm1050, %v1042, %v917
      %v1060 = vsel %vm1050, %v1043, %v919
      %v1061 = vsel %vm1050, %v1044, %v921
      %v1062 = vsel %vm1050, %v1045, %v923
      %v1063 = vsel %vm1050, %v1046, %v925
      %v1064 = vsel %vm1050, %v1047, %v927
      %v1065 = vsel %vm1050, %v1048, %v929
      %v1066 = vsel %vm1050, %v1049, %v931
      %v1067 = vpack.c.bf16 %v1052, %v1051
      %v1068 = vpack.c.bf16 %v1054, %v1053
      %v1069 = vpack.c.bf16 %v1056, %v1055
      %v1070 = vpack.c.bf16 %v1058, %v1057
      %v1071 = vpack.c.bf16 %v1060, %v1059
      %v1072 = vpack.c.bf16 %v1062, %v1061
      %v1073 = vpack.c.bf16 %v1064, %v1063
      %v1074 = vpack.c.bf16 %v1066, %v1065
      %v1075 = vld [vmem:[%s5] sm:$0xf]
      %v1076 = vld [vmem:[%s5 + $0x4] sm:$0xf]
      %v1077 = vld [vmem:[%s5 + $0x8] sm:$0xf]
      %v1078 = vld [vmem:[%s5 + $0xc] sm:$0xf]
      %v1079 = vld [vmem:[%s5 + $0x10] sm:$0xf]
      %v1080 = vld [vmem:[%s5 + $0x14] sm:$0xf]
      %v1081 = vld [vmem:[%s5 + $0x18] sm:$0xf]
      %v1082 = vld [vmem:[%s5 + $0x1c] sm:$0xf]
      %v1083 = vld [vmem:[%s5 + $0x20] sm:$0xf]
      %v1084 = vld [vmem:[%s5 + $0x24] sm:$0xf]
      %v1085 = vld [vmem:[%s5 + $0x28] sm:$0xf]
      %v1086 = vld [vmem:[%s5 + $0x2c] sm:$0xf]
      %v1087 = vld [vmem:[%s5 + $0x30] sm:$0xf]
      %v1088 = vld [vmem:[%s5 + $0x34] sm:$0xf]
      %v1089 = vld [vmem:[%s5 + $0x38] sm:$0xf]
      %v1090 = vld [vmem:[%s5 + $0x3c] sm:$0xf]
      %s1091 = sadd.s32 %s356, 26
      %s1092 = scalar_lea.vmem [#allocation2], %s1091
      %v1093 = vld [vmem:[%s1092] sm:$0xff]
      %v1094 = vld [vmem:[%s1092 + $0x8] sm:$0xff]
      %v1095 = vld [vmem:[%s1092 + $0x10] sm:$0xff]
      %v1096 = vld [vmem:[%s1092 + $0x18] sm:$0xff]
      %v1097 = vld [vmem:[%s1092 + $0x20] sm:$0xff]
      %v1098 = vld [vmem:[%s1092 + $0x28] sm:$0xff]
      %v1099 = vld [vmem:[%s1092 + $0x30] sm:$0xff]
      %v1100 = vld [vmem:[%s1092 + $0x38] sm:$0xff]
      %v1101 = vld [vmem:[%s1092 + $0x40] sm:$0xff]
      %v1102 = vld [vmem:[%s1092 + $0x48] sm:$0xff]
      %v1103 = vld [vmem:[%s1092 + $0x50] sm:$0xff]
      %v1104 = vld [vmem:[%s1092 + $0x58] sm:$0xff]
      %v1105 = vld [vmem:[%s1092 + $0x60] sm:$0xff]
      %v1106 = vld [vmem:[%s1092 + $0x68] sm:$0xff]
      %v1107 = vld [vmem:[%s1092 + $0x70] sm:$0xff]
      %v1108 = vld [vmem:[%s1092 + $0x78] sm:$0xff]
      %s1109 = sadd.s32 %s356, 144
      %s1110 = scalar_lea.vmem [#allocation2], %s1109
      %v1111 = vld [vmem:[%s1110] sm:$0xff]
      %v1112 = vld [vmem:[%s1110 + $0x8] sm:$0xff]
      %v1113 = vld [vmem:[%s1110 + $0x10] sm:$0xff]
      %v1114 = vld [vmem:[%s1110 + $0x18] sm:$0xff]
      %v1115 = vld [vmem:[%s1110 + $0x20] sm:$0xff]
      %v1116 = vld [vmem:[%s1110 + $0x28] sm:$0xff]
      %v1117 = vld [vmem:[%s1110 + $0x30] sm:$0xff]
      %v1118 = vld [vmem:[%s1110 + $0x38] sm:$0xff]
      %v1119 = vld [vmem:[%s1110 + $0x40] sm:$0xff]
      %v1120 = vld [vmem:[%s1110 + $0x48] sm:$0xff]
      %v1121 = vld [vmem:[%s1110 + $0x50] sm:$0xff]
      %v1122 = vld [vmem:[%s1110 + $0x58] sm:$0xff]
      %v1123 = vld [vmem:[%s1110 + $0x60] sm:$0xff]
      %v1124 = vld [vmem:[%s1110 + $0x68] sm:$0xff]
      %v1125 = vld [vmem:[%s1110 + $0x70] sm:$0xff]
      %v1126 = vld [vmem:[%s1110 + $0x78] sm:$0xff]
      %s1127 = sadd.s32 %s356, 145
      %s1128 = scalar_lea.vmem [#allocation2], %s1127
      %v1129 = vld [vmem:[%s1128] sm:$0xff]
      %v1130 = vld [vmem:[%s1128 + $0x8] sm:$0xff]
      %v1131 = vld [vmem:[%s1128 + $0x10] sm:$0xff]
      %v1132 = vld [vmem:[%s1128 + $0x18] sm:$0xff]
      %v1133 = vld [vmem:[%s1128 + $0x20] sm:$0xff]
      %v1134 = vld [vmem:[%s1128 + $0x28] sm:$0xff]
      %v1135 = vld [vmem:[%s1128 + $0x30] sm:$0xff]
      %v1136 = vld [vmem:[%s1128 + $0x38] sm:$0xff]
      %v1137 = vld [vmem:[%s1128 + $0x40] sm:$0xff]
      %v1138 = vld [vmem:[%s1128 + $0x48] sm:$0xff]
      %v1139 = vld [vmem:[%s1128 + $0x50] sm:$0xff]
      %v1140 = vld [vmem:[%s1128 + $0x58] sm:$0xff]
      %v1141 = vld [vmem:[%s1128 + $0x60] sm:$0xff]
      %v1142 = vld [vmem:[%s1128 + $0x68] sm:$0xff]
      %v1143 = vld [vmem:[%s1128 + $0x70] sm:$0xff]
      %v1144 = vld [vmem:[%s1128 + $0x78] sm:$0xff]
      %s1145 = sadd.s32 %s356, 146
      %s1146 = scalar_lea.vmem [#allocation2], %s1145
      %v1147 = vld [vmem:[%s1146] sm:$0xff]
      %v1148 = vld [vmem:[%s1146 + $0x8] sm:$0xff]
      %v1149 = vld [vmem:[%s1146 + $0x10] sm:$0xff]
      %v1150 = vld [vmem:[%s1146 + $0x18] sm:$0xff]
      %v1151 = vld [vmem:[%s1146 + $0x20] sm:$0xff]
      %v1152 = vld [vmem:[%s1146 + $0x28] sm:$0xff]
      %v1153 = vld [vmem:[%s1146 + $0x30] sm:$0xff]
      %v1154 = vld [vmem:[%s1146 + $0x38] sm:$0xff]
      %v1155 = vld [vmem:[%s1146 + $0x40] sm:$0xff]
      %v1156 = vld [vmem:[%s1146 + $0x48] sm:$0xff]
      %v1157 = vld [vmem:[%s1146 + $0x50] sm:$0xff]
      %v1158 = vld [vmem:[%s1146 + $0x58] sm:$0xff]
      %v1159 = vld [vmem:[%s1146 + $0x60] sm:$0xff]
      %v1160 = vld [vmem:[%s1146 + $0x68] sm:$0xff]
      %v1161 = vld [vmem:[%s1146 + $0x70] sm:$0xff]
      %v1162 = vld [vmem:[%s1146 + $0x78] sm:$0xff]
      %s1163 = sadd.s32 %s356, 156
      %s1164 = scalar_lea.vmem [#allocation2], %s1163
      %v1165 = vld [vmem:[%s1164] sm:$0xff]
      %v1166 = vld [vmem:[%s1164 + $0x8] sm:$0xff]
      %v1167 = vld [vmem:[%s1164 + $0x10] sm:$0xff]
      %v1168 = vld [vmem:[%s1164 + $0x18] sm:$0xff]
      %v1169 = vld [vmem:[%s1164 + $0x20] sm:$0xff]
      %v1170 = vld [vmem:[%s1164 + $0x28] sm:$0xff]
      %v1171 = vld [vmem:[%s1164 + $0x30] sm:$0xff]
      %v1172 = vld [vmem:[%s1164 + $0x38] sm:$0xff]
      %v1173 = vld [vmem:[%s1164 + $0x40] sm:$0xff]
      %v1174 = vld [vmem:[%s1164 + $0x48] sm:$0xff]
      %v1175 = vld [vmem:[%s1164 + $0x50] sm:$0xff]
      %v1176 = vld [vmem:[%s1164 + $0x58] sm:$0xff]
      %v1177 = vld [vmem:[%s1164 + $0x60] sm:$0xff]
      %v1178 = vld [vmem:[%s1164 + $0x68] sm:$0xff]
      %v1179 = vld [vmem:[%s1164 + $0x70] sm:$0xff]
      %v1180 = vld [vmem:[%s1164 + $0x78] sm:$0xff]
      %s1181 = sadd.s32 %s356, 157
      %s1182 = scalar_lea.vmem [#allocation2], %s1181
      %v1183 = vld [vmem:[%s1182] sm:$0xff]
      %v1184 = vld [vmem:[%s1182 + $0x8] sm:$0xff]
      %v1185 = vld [vmem:[%s1182 + $0x10] sm:$0xff]
      %v1186 = vld [vmem:[%s1182 + $0x18] sm:$0xff]
      %v1187 = vld [vmem:[%s1182 + $0x20] sm:$0xff]
      %v1188 = vld [vmem:[%s1182 + $0x28] sm:$0xff]
      %v1189 = vld [vmem:[%s1182 + $0x30] sm:$0xff]
      %v1190 = vld [vmem:[%s1182 + $0x38] sm:$0xff]
      %v1191 = vld [vmem:[%s1182 + $0x40] sm:$0xff]
      %v1192 = vld [vmem:[%s1182 + $0x48] sm:$0xff]
      %v1193 = vld [vmem:[%s1182 + $0x50] sm:$0xff]
      %v1194 = vld [vmem:[%s1182 + $0x58] sm:$0xff]
      %v1195 = vld [vmem:[%s1182 + $0x60] sm:$0xff]
      %v1196 = vld [vmem:[%s1182 + $0x68] sm:$0xff]
      %v1197 = vld [vmem:[%s1182 + $0x70] sm:$0xff]
      %v1198 = vld [vmem:[%s1182 + $0x78] sm:$0xff]
      %s1199 = sadd.s32 %s356, 158
      %s1200 = scalar_lea.vmem [#allocation2], %s1199
      %v1201 = vld [vmem:[%s1200] sm:$0xff]
      %v1202 = vld [vmem:[%s1200 + $0x8] sm:$0xff]
      %v1203 = vld [vmem:[%s1200 + $0x10] sm:$0xff]
      %v1204 = vld [vmem:[%s1200 + $0x18] sm:$0xff]
      %v1205 = vld [vmem:[%s1200 + $0x20] sm:$0xff]
      %v1206 = vld [vmem:[%s1200 + $0x28] sm:$0xff]
      %v1207 = vld [vmem:[%s1200 + $0x30] sm:$0xff]
      %v1208 = vld [vmem:[%s1200 + $0x38] sm:$0xff]
      %v1209 = vld [vmem:[%s1200 + $0x40] sm:$0xff]
      %v1210 = vld [vmem:[%s1200 + $0x48] sm:$0xff]
      %v1211 = vld [vmem:[%s1200 + $0x50] sm:$0xff]
      %v1212 = vld [vmem:[%s1200 + $0x58] sm:$0xff]
      %v1213 = vld [vmem:[%s1200 + $0x60] sm:$0xff]
      %v1214 = vld [vmem:[%s1200 + $0x68] sm:$0xff]
      %v1215 = vld [vmem:[%s1200 + $0x70] sm:$0xff]
      %v1216 = vld [vmem:[%s1200 + $0x78] sm:$0xff]
      %s1217 = sadd.s32 %s356, 168
      %s1218 = scalar_lea.vmem [#allocation2], %s1217
      %v1219 = vld [vmem:[%s1218] sm:$0xff]
      %v1220 = vld [vmem:[%s1218 + $0x8] sm:$0xff]
      %v1221 = vld [vmem:[%s1218 + $0x10] sm:$0xff]
      %v1222 = vld [vmem:[%s1218 + $0x18] sm:$0xff]
      %v1223 = vld [vmem:[%s1218 + $0x20] sm:$0xff]
      %v1224 = vld [vmem:[%s1218 + $0x28] sm:$0xff]
      %v1225 = vld [vmem:[%s1218 + $0x30] sm:$0xff]
      %v1226 = vld [vmem:[%s1218 + $0x38] sm:$0xff]
      %v1227 = vld [vmem:[%s1218 + $0x40] sm:$0xff]
      %v1228 = vld [vmem:[%s1218 + $0x48] sm:$0xff]
      %v1229 = vld [vmem:[%s1218 + $0x50] sm:$0xff]
      %v1230 = vld [vmem:[%s1218 + $0x58] sm:$0xff]
      %v1231 = vld [vmem:[%s1218 + $0x60] sm:$0xff]
      %v1232 = vld [vmem:[%s1218 + $0x68] sm:$0xff]
      %v1233 = vld [vmem:[%s1218 + $0x70] sm:$0xff]
      %v1234 = vld [vmem:[%s1218 + $0x78] sm:$0xff]
      %1251 = vrot.lane.b32.xlu0 %v1111, 16
      %v1252 = vpop.permute.xlu0 %1251
      %1253 = vrot.lane.b32.xlu0 %v1112, 16
      %v1254 = vpop.permute.xlu0 %1253
      %1255 = vrot.lane.b32.xlu0 %v1113, 16
      %v1256 = vpop.permute.xlu0 %1255
      %1257 = vrot.lane.b32.xlu0 %v1114, 16
      %v1258 = vpop.permute.xlu0 %1257
      %1259 = vrot.lane.b32.xlu0 %v1115, 16
      %v1260 = vpop.permute.xlu0 %1259
      %1261 = vrot.lane.b32.xlu0 %v1116, 16
      %v1262 = vpop.permute.xlu0 %1261
      %1263 = vrot.lane.b32.xlu0 %v1117, 16
      %v1264 = vpop.permute.xlu0 %1263
      %1265 = vrot.lane.b32.xlu0 %v1118, 16
      %v1266 = vpop.permute.xlu0 %1265
      %1267 = vrot.lane.b32.xlu0 %v1119, 16
      %v1268 = vpop.permute.xlu0 %1267
      %1269 = vrot.lane.b32.xlu0 %v1120, 16
      %v1270 = vpop.permute.xlu0 %1269
      %1271 = vrot.lane.b32.xlu0 %v1121, 16
      %v1272 = vpop.permute.xlu0 %1271
      %1273 = vrot.lane.b32.xlu0 %v1122, 16
      %v1274 = vpop.permute.xlu0 %1273
      %1275 = vrot.lane.b32.xlu0 %v1123, 16
      %v1276 = vpop.permute.xlu0 %1275
      %1277 = vrot.lane.b32.xlu0 %v1124, 16
      %v1278 = vpop.permute.xlu0 %1277
      %1279 = vrot.lane.b32.xlu0 %v1125, 16
      %v1280 = vpop.permute.xlu0 %1279
      %1281 = vrot.lane.b32.xlu0 %v1126, 16
      %v1282 = vpop.permute.xlu0 %1281
      %1315 = vrot.lane.b32.xlu0 %v1129, 32
      %v1316 = vpop.permute.xlu0 %1315
      %1317 = vrot.lane.b32.xlu0 %v1130, 32
      %v1318 = vpop.permute.xlu0 %1317
      %1319 = vrot.lane.b32.xlu0 %v1131, 32
      %v1320 = vpop.permute.xlu0 %1319
      %1321 = vrot.lane.b32.xlu0 %v1132, 32
      %v1322 = vpop.permute.xlu0 %1321
      %1323 = vrot.lane.b32.xlu0 %v1133, 32
      %v1324 = vpop.permute.xlu0 %1323
      %1325 = vrot.lane.b32.xlu0 %v1134, 32
      %v1326 = vpop.permute.xlu0 %1325
      %1327 = vrot.lane.b32.xlu0 %v1135, 32
      %v1328 = vpop.permute.xlu0 %1327
      %1329 = vrot.lane.b32.xlu0 %v1136, 32
      %v1330 = vpop.permute.xlu0 %1329
      %1331 = vrot.lane.b32.xlu0 %v1137, 32
      %v1332 = vpop.permute.xlu0 %1331
      %1333 = vrot.lane.b32.xlu0 %v1138, 32
      %v1334 = vpop.permute.xlu0 %1333
      %1335 = vrot.lane.b32.xlu0 %v1139, 32
      %v1336 = vpop.permute.xlu0 %1335
      %1337 = vrot.lane.b32.xlu0 %v1140, 32
      %v1338 = vpop.permute.xlu0 %1337
      %1339 = vrot.lane.b32.xlu0 %v1141, 32
      %v1340 = vpop.permute.xlu0 %1339
      %1341 = vrot.lane.b32.xlu0 %v1142, 32
      %v1342 = vpop.permute.xlu0 %1341
      %1343 = vrot.lane.b32.xlu0 %v1143, 32
      %v1344 = vpop.permute.xlu0 %1343
      %1345 = vrot.lane.b32.xlu0 %v1144, 32
      %v1346 = vpop.permute.xlu0 %1345
      %1379 = vrot.lane.b32.xlu0 %v1147, 48
      %v1380 = vpop.permute.xlu0 %1379
      %1381 = vrot.lane.b32.xlu0 %v1148, 48
      %v1382 = vpop.permute.xlu0 %1381
      %1383 = vrot.lane.b32.xlu0 %v1149, 48
      %v1384 = vpop.permute.xlu0 %1383
      %1385 = vrot.lane.b32.xlu0 %v1150, 48
      %v1386 = vpop.permute.xlu0 %1385
      %1387 = vrot.lane.b32.xlu0 %v1151, 48
      %v1388 = vpop.permute.xlu0 %1387
      %1389 = vrot.lane.b32.xlu0 %v1152, 48
      %v1390 = vpop.permute.xlu0 %1389
      %1391 = vrot.lane.b32.xlu0 %v1153, 48
      %v1392 = vpop.permute.xlu0 %1391
      %1393 = vrot.lane.b32.xlu0 %v1154, 48
      %v1394 = vpop.permute.xlu0 %1393
      %1395 = vrot.lane.b32.xlu0 %v1155, 48
      %v1396 = vpop.permute.xlu0 %1395
      %1397 = vrot.lane.b32.xlu0 %v1156, 48
      %v1398 = vpop.permute.xlu0 %1397
      %1399 = vrot.lane.b32.xlu0 %v1157, 48
      %v1400 = vpop.permute.xlu0 %1399
      %1401 = vrot.lane.b32.xlu0 %v1158, 48
      %v1402 = vpop.permute.xlu0 %1401
      %1403 = vrot.lane.b32.xlu0 %v1159, 48
      %v1404 = vpop.permute.xlu0 %1403
      %1405 = vrot.lane.b32.xlu0 %v1160, 48
      %v1406 = vpop.permute.xlu0 %1405
      %1407 = vrot.lane.b32.xlu0 %v1161, 48
      %v1408 = vpop.permute.xlu0 %1407
      %1409 = vrot.lane.b32.xlu0 %v1162, 48
      %v1410 = vpop.permute.xlu0 %1409
      %1443 = vrot.lane.b32.xlu0 %v1165, 64
      %v1444 = vpop.permute.xlu0 %1443
      %1445 = vrot.lane.b32.xlu0 %v1166, 64
      %v1446 = vpop.permute.xlu0 %1445
      %1447 = vrot.lane.b32.xlu0 %v1167, 64
      %v1448 = vpop.permute.xlu0 %1447
      %1449 = vrot.lane.b32.xlu0 %v1168, 64
      %v1450 = vpop.permute.xlu0 %1449
      %1451 = vrot.lane.b32.xlu0 %v1169, 64
      %v1452 = vpop.permute.xlu0 %1451
      %1453 = vrot.lane.b32.xlu0 %v1170, 64
      %v1454 = vpop.permute.xlu0 %1453
      %1455 = vrot.lane.b32.xlu0 %v1171, 64
      %v1456 = vpop.permute.xlu0 %1455
      %1457 = vrot.lane.b32.xlu0 %v1172, 64
      %v1458 = vpop.permute.xlu0 %1457
      %1459 = vrot.lane.b32.xlu0 %v1173, 64
      %v1460 = vpop.permute.xlu0 %1459
      %1461 = vrot.lane.b32.xlu0 %v1174, 64
      %v1462 = vpop.permute.xlu0 %1461
      %1463 = vrot.lane.b32.xlu0 %v1175, 64
      %v1464 = vpop.permute.xlu0 %1463
      %1465 = vrot.lane.b32.xlu0 %v1176, 64
      %v1466 = vpop.permute.xlu0 %1465
      %1467 = vrot.lane.b32.xlu0 %v1177, 64
      %v1468 = vpop.permute.xlu0 %1467
      %1469 = vrot.lane.b32.xlu0 %v1178, 64
      %v1470 = vpop.permute.xlu0 %1469
      %1471 = vrot.lane.b32.xlu0 %v1179, 64
      %v1472 = vpop.permute.xlu0 %1471
      %1473 = vrot.lane.b32.xlu0 %v1180, 64
      %v1474 = vpop.permute.xlu0 %1473
      %1507 = vrot.lane.b32.xlu0 %v1183, 80
      %v1508 = vpop.permute.xlu0 %1507
      %1509 = vrot.lane.b32.xlu0 %v1184, 80
      %v1510 = vpop.permute.xlu0 %1509
      %1511 = vrot.lane.b32.xlu0 %v1185, 80
      %v1512 = vpop.permute.xlu0 %1511
      %1513 = vrot.lane.b32.xlu0 %v1186, 80
      %v1514 = vpop.permute.xlu0 %1513
      %1515 = vrot.lane.b32.xlu0 %v1187, 80
      %v1516 = vpop.permute.xlu0 %1515
      %1517 = vrot.lane.b32.xlu0 %v1188, 80
      %v1518 = vpop.permute.xlu0 %1517
      %1519 = vrot.lane.b32.xlu0 %v1189, 80
      %v1520 = vpop.permute.xlu0 %1519
      %1521 = vrot.lane.b32.xlu0 %v1190, 80
      %v1522 = vpop.permute.xlu0 %1521
      %1523 = vrot.lane.b32.xlu0 %v1191, 80
      %v1524 = vpop.permute.xlu0 %1523
      %1525 = vrot.lane.b32.xlu0 %v1192, 80
      %v1526 = vpop.permute.xlu0 %1525
      %1527 = vrot.lane.b32.xlu0 %v1193, 80
      %v1528 = vpop.permute.xlu0 %1527
      %1529 = vrot.lane.b32.xlu0 %v1194, 80
      %v1530 = vpop.permute.xlu0 %1529
      %1531 = vrot.lane.b32.xlu0 %v1195, 80
      %v1532 = vpop.permute.xlu0 %1531
      %1533 = vrot.lane.b32.xlu0 %v1196, 80
      %v1534 = vpop.permute.xlu0 %1533
      %1535 = vrot.lane.b32.xlu0 %v1197, 80
      %v1536 = vpop.permute.xlu0 %1535
      %1537 = vrot.lane.b32.xlu0 %v1198, 80
      %v1538 = vpop.permute.xlu0 %1537
      %1571 = vrot.lane.b32.xlu0 %v1201, 96
      %v1572 = vpop.permute.xlu0 %1571
      %1573 = vrot.lane.b32.xlu0 %v1202, 96
      %v1574 = vpop.permute.xlu0 %1573
      %1575 = vrot.lane.b32.xlu0 %v1203, 96
      %v1576 = vpop.permute.xlu0 %1575
      %1577 = vrot.lane.b32.xlu0 %v1204, 96
      %v1578 = vpop.permute.xlu0 %1577
      %1579 = vrot.lane.b32.xlu0 %v1205, 96
      %v1580 = vpop.permute.xlu0 %1579
      %1581 = vrot.lane.b32.xlu0 %v1206, 96
      %v1582 = vpop.permute.xlu0 %1581
      %1583 = vrot.lane.b32.xlu0 %v1207, 96
      %v1584 = vpop.permute.xlu0 %1583
      %1585 = vrot.lane.b32.xlu0 %v1208, 96
      %v1586 = vpop.permute.xlu0 %1585
      %1587 = vrot.lane.b32.xlu0 %v1209, 96
      %v1588 = vpop.permute.xlu0 %1587
      %1589 = vrot.lane.b32.xlu0 %v1210, 96
      %v1590 = vpop.permute.xlu0 %1589
      %1591 = vrot.lane.b32.xlu0 %v1211, 96
      %v1592 = vpop.permute.xlu0 %1591
      %1593 = vrot.lane.b32.xlu0 %v1212, 96
      %v1594 = vpop.permute.xlu0 %1593
      %1595 = vrot.lane.b32.xlu0 %v1213, 96
      %v1596 = vpop.permute.xlu0 %1595
      %1597 = vrot.lane.b32.xlu0 %v1214, 96
      %v1598 = vpop.permute.xlu0 %1597
      %1599 = vrot.lane.b32.xlu0 %v1215, 96
      %v1600 = vpop.permute.xlu0 %1599
      %1601 = vrot.lane.b32.xlu0 %v1216, 96
      %v1602 = vpop.permute.xlu0 %1601
      %1635 = vrot.lane.b32.xlu0 %v1219, 112
      %v1636 = vpop.permute.xlu0 %1635
      %1637 = vrot.lane.b32.xlu0 %v1220, 112
      %v1638 = vpop.permute.xlu0 %1637
      %1639 = vrot.lane.b32.xlu0 %v1221, 112
      %v1640 = vpop.permute.xlu0 %1639
      %1641 = vrot.lane.b32.xlu0 %v1222, 112
      %v1642 = vpop.permute.xlu0 %1641
      %1643 = vrot.lane.b32.xlu0 %v1223, 112
      %v1644 = vpop.permute.xlu0 %1643
      %1645 = vrot.lane.b32.xlu0 %v1224, 112
      %v1646 = vpop.permute.xlu0 %1645
      %1647 = vrot.lane.b32.xlu0 %v1225, 112
      %v1648 = vpop.permute.xlu0 %1647
      %1649 = vrot.lane.b32.xlu0 %v1226, 112
      %v1650 = vpop.permute.xlu0 %1649
      %1651 = vrot.lane.b32.xlu0 %v1227, 112
      %v1652 = vpop.permute.xlu0 %1651
      %1653 = vrot.lane.b32.xlu0 %v1228, 112
      %v1654 = vpop.permute.xlu0 %1653
      %1655 = vrot.lane.b32.xlu0 %v1229, 112
      %v1656 = vpop.permute.xlu0 %1655
      %1657 = vrot.lane.b32.xlu0 %v1230, 112
      %v1658 = vpop.permute.xlu0 %1657
      %1659 = vrot.lane.b32.xlu0 %v1231, 112
      %v1660 = vpop.permute.xlu0 %1659
      %1661 = vrot.lane.b32.xlu0 %v1232, 112
      %v1662 = vpop.permute.xlu0 %1661
      %1663 = vrot.lane.b32.xlu0 %v1233, 112
      %v1664 = vpop.permute.xlu0 %1663
      %1665 = vrot.lane.b32.xlu0 %v1234, 112
      %v1666 = vpop.permute.xlu0 %1665
      %v1683 = vsel %vm948, %v1093, %v1252
      %v1684 = vsel %vm948, %v1094, %v1254
      %v1685 = vsel %vm948, %v1095, %v1256
      %v1686 = vsel %vm948, %v1096, %v1258
      %v1687 = vsel %vm948, %v1097, %v1260
      %v1688 = vsel %vm948, %v1098, %v1262
      %v1689 = vsel %vm948, %v1099, %v1264
      %v1690 = vsel %vm948, %v1100, %v1266
      %v1691 = vsel %vm948, %v1101, %v1268
      %v1692 = vsel %vm948, %v1102, %v1270
      %v1693 = vsel %vm948, %v1103, %v1272
      %v1694 = vsel %vm948, %v1104, %v1274
      %v1695 = vsel %vm948, %v1105, %v1276
      %v1696 = vsel %vm948, %v1106, %v1278
      %v1697 = vsel %vm948, %v1107, %v1280
      %v1698 = vsel %vm948, %v1108, %v1282
      %v1699 = vsel %vm965, %v1683, %v1316
      %v1700 = vsel %vm965, %v1684, %v1318
      %v1701 = vsel %vm965, %v1685, %v1320
      %v1702 = vsel %vm965, %v1686, %v1322
      %v1703 = vsel %vm965, %v1687, %v1324
      %v1704 = vsel %vm965, %v1688, %v1326
      %v1705 = vsel %vm965, %v1689, %v1328
      %v1706 = vsel %vm965, %v1690, %v1330
      %v1707 = vsel %vm965, %v1691, %v1332
      %v1708 = vsel %vm965, %v1692, %v1334
      %v1709 = vsel %vm965, %v1693, %v1336
      %v1710 = vsel %vm965, %v1694, %v1338
      %v1711 = vsel %vm965, %v1695, %v1340
      %v1712 = vsel %vm965, %v1696, %v1342
      %v1713 = vsel %vm965, %v1697, %v1344
      %v1714 = vsel %vm965, %v1698, %v1346
      %v1715 = vsel %vm982, %v1699, %v1380
      %v1716 = vsel %vm982, %v1700, %v1382
      %v1717 = vsel %vm982, %v1701, %v1384
      %v1718 = vsel %vm982, %v1702, %v1386
      %v1719 = vsel %vm982, %v1703, %v1388
      %v1720 = vsel %vm982, %v1704, %v1390
      %v1721 = vsel %vm982, %v1705, %v1392
      %v1722 = vsel %vm982, %v1706, %v1394
      %v1723 = vsel %vm982, %v1707, %v1396
      %v1724 = vsel %vm982, %v1708, %v1398
      %v1725 = vsel %vm982, %v1709, %v1400
      %v1726 = vsel %vm982, %v1710, %v1402
      %v1727 = vsel %vm982, %v1711, %v1404
      %v1728 = vsel %vm982, %v1712, %v1406
      %v1729 = vsel %vm982, %v1713, %v1408
      %v1730 = vsel %vm982, %v1714, %v1410
      %v1731 = vsel %vm999, %v1715, %v1444
      %v1732 = vsel %vm999, %v1716, %v1446
      %v1733 = vsel %vm999, %v1717, %v1448
      %v1734 = vsel %vm999, %v1718, %v1450
      %v1735 = vsel %vm999, %v1719, %v1452
      %v1736 = vsel %vm999, %v1720, %v1454
      %v1737 = vsel %vm999, %v1721, %v1456
      %v1738 = vsel %vm999, %v1722, %v1458
      %v1739 = vsel %vm999, %v1723, %v1460
      %v1740 = vsel %vm999, %v1724, %v1462
      %v1741 = vsel %vm999, %v1725, %v1464
      %v1742 = vsel %vm999, %v1726, %v1466
      %v1743 = vsel %vm999, %v1727, %v1468
      %v1744 = vsel %vm999, %v1728, %v1470
      %v1745 = vsel %vm999, %v1729, %v1472
      %v1746 = vsel %vm999, %v1730, %v1474
      %v1747 = vsel %vm1016, %v1731, %v1508
      %v1748 = vsel %vm1016, %v1732, %v1510
      %v1749 = vsel %vm1016, %v1733, %v1512
      %v1750 = vsel %vm1016, %v1734, %v1514
      %v1751 = vsel %vm1016, %v1735, %v1516
      %v1752 = vsel %vm1016, %v1736, %v1518
      %v1753 = vsel %vm1016, %v1737, %v1520
      %v1754 = vsel %vm1016, %v1738, %v1522
      %v1755 = vsel %vm1016, %v1739, %v1524
      %v1756 = vsel %vm1016, %v1740, %v1526
      %v1757 = vsel %vm1016, %v1741, %v1528
      %v1758 = vsel %vm1016, %v1742, %v1530
      %v1759 = vsel %vm1016, %v1743, %v1532
      %v1760 = vsel %vm1016, %v1744, %v1534
      %v1761 = vsel %vm1016, %v1745, %v1536
      %v1762 = vsel %vm1016, %v1746, %v1538
      %v1763 = vsel %vm1033, %v1747, %v1572
      %v1764 = vsel %vm1033, %v1748, %v1574
      %v1765 = vsel %vm1033, %v1749, %v1576
      %v1766 = vsel %vm1033, %v1750, %v1578
      %v1767 = vsel %vm1033, %v1751, %v1580
      %v1768 = vsel %vm1033, %v1752, %v1582
      %v1769 = vsel %vm1033, %v1753, %v1584
      %v1770 = vsel %vm1033, %v1754, %v1586
      %v1771 = vsel %vm1033, %v1755, %v1588
      %v1772 = vsel %vm1033, %v1756, %v1590
      %v1773 = vsel %vm1033, %v1757, %v1592
      %v1774 = vsel %vm1033, %v1758, %v1594
      %v1775 = vsel %vm1033, %v1759, %v1596
      %v1776 = vsel %vm1033, %v1760, %v1598
      %v1777 = vsel %vm1033, %v1761, %v1600
      %v1778 = vsel %vm1033, %v1762, %v1602
      %v1779 = vsel %vm1050, %v1763, %v1636
      %v1780 = vsel %vm1050, %v1764, %v1638
      %v1781 = vsel %vm1050, %v1765, %v1640
      %v1782 = vsel %vm1050, %v1766, %v1642
      %v1783 = vsel %vm1050, %v1767, %v1644
      %v1784 = vsel %vm1050, %v1768, %v1646
      %v1785 = vsel %vm1050, %v1769, %v1648
      %v1786 = vsel %vm1050, %v1770, %v1650
      %v1787 = vsel %vm1050, %v1771, %v1652
      %v1788 = vsel %vm1050, %v1772, %v1654
      %v1789 = vsel %vm1050, %v1773, %v1656
      %v1790 = vsel %vm1050, %v1774, %v1658
      %v1791 = vsel %vm1050, %v1775, %v1660
      %v1792 = vsel %vm1050, %v1776, %v1662
      %v1793 = vsel %vm1050, %v1777, %v1664
      %v1794 = vsel %vm1050, %v1778, %v1666
      %v1795 = vpack.c.bf16 %v1780, %v1779
      %v1796 = vpack.c.bf16 %v1782, %v1781
      %v1797 = vpack.c.bf16 %v1784, %v1783
      %v1798 = vpack.c.bf16 %v1786, %v1785
      %v1799 = vpack.c.bf16 %v1788, %v1787
      %v1800 = vpack.c.bf16 %v1790, %v1789
      %v1801 = vpack.c.bf16 %v1792, %v1791
      %v1802 = vpack.c.bf16 %v1794, %v1793
      %s1803 = scalar_lea.vmem %s5, 64
      %v1804 = vld [vmem:[%s1803] sm:$0xf]
      %v1805 = vld [vmem:[%s1803 + $0x4] sm:$0xf]
      %v1806 = vld [vmem:[%s1803 + $0x8] sm:$0xf]
      %v1807 = vld [vmem:[%s1803 + $0xc] sm:$0xf]
      %v1808 = vld [vmem:[%s1803 + $0x10] sm:$0xf]
      %v1809 = vld [vmem:[%s1803 + $0x14] sm:$0xf]
      %v1810 = vld [vmem:[%s1803 + $0x18] sm:$0xf]
      %v1811 = vld [vmem:[%s1803 + $0x1c] sm:$0xf]
      %v1812 = vld [vmem:[%s1803 + $0x20] sm:$0xf]
      %v1813 = vld [vmem:[%s1803 + $0x24] sm:$0xf]
      %v1814 = vld [vmem:[%s1803 + $0x28] sm:$0xf]
      %v1815 = vld [vmem:[%s1803 + $0x2c] sm:$0xf]
      %v1816 = vld [vmem:[%s1803 + $0x30] sm:$0xf]
      %v1817 = vld [vmem:[%s1803 + $0x34] sm:$0xf]
      %v1818 = vld [vmem:[%s1803 + $0x38] sm:$0xf]
      %v1819 = vld [vmem:[%s1803 + $0x3c] sm:$0xf]
      %v1836 = vunpack.c.l.b16 %v1804
      %v1837 = vunpack.c.l.b16 %v1805
      %v1838 = vunpack.c.l.b16 %v1806
      %v1839 = vunpack.c.l.b16 %v1807
      %v1840 = vunpack.c.l.b16 %v1808
      %v1841 = vunpack.c.l.b16 %v1809
      %v1842 = vunpack.c.l.b16 %v1810
      %v1843 = vunpack.c.l.b16 %v1811
      %v1844 = vunpack.c.l.b16 %v1812
      %v1845 = vunpack.c.l.b16 %v1813
      %v1846 = vunpack.c.l.b16 %v1814
      %v1847 = vunpack.c.l.b16 %v1815
      %v1848 = vunpack.c.l.b16 %v1816
      %v1849 = vunpack.c.l.b16 %v1817
      %v1850 = vunpack.c.l.b16 %v1818
      %v1851 = vunpack.c.l.b16 %v1819
      %v1852 = vpack.c.b16 %v1837, %v1836
      %v1853 = vpack.c.b16 %v1839, %v1838
      %v1854 = vpack.c.b16 %v1841, %v1840
      %v1855 = vpack.c.b16 %v1843, %v1842
      %v1856 = vpack.c.b16 %v1845, %v1844
      %v1857 = vpack.c.b16 %v1847, %v1846
      %v1858 = vpack.c.b16 %v1849, %v1848
      %v1859 = vpack.c.b16 %v1851, %v1850
      %1868 = vmatprep.subr.bf16.mxu0 0
      %1869 = vmatpush1.bf16.msra.mxu0 %v1852
      %1870 = vmatprep.subr.bf16.mxu0 0
      %1871 = vmatpush1.bf16.msra.mxu0 %v1853
      %1872 = vmatprep.subr.bf16.mxu0 0
      %1873 = vmatpush1.bf16.msra.mxu0 %v1854
      %1874 = vmatprep.subr.bf16.mxu0 0
      %1875 = vmatpush1.bf16.msra.mxu0 %v1855
      %1876 = vmatprep.subr.bf16.mxu0 0
      %1877 = vmatpush1.bf16.msra.mxu0 %v1856
      %1878 = vmatprep.subr.bf16.mxu0 0
      %1879 = vmatpush1.bf16.msra.mxu0 %v1857
      %1880 = vmatprep.subr.bf16.mxu0 0
      %1881 = vmatpush1.bf16.msra.mxu0 %v1858
      %1882 = vmatprep.subr.bf16.mxu0 0
      %1883 = vmatpush1.bf16.msra.mxu0 %v1859
      %1884 = vmatprep.subr.bf16.mxu0 0
      %1885 = vmatpush1.bf16.msra.mxu0 0
      %1886 = vmatprep.subr.bf16.mxu0 0
      %1887 = vmatpush1.bf16.msra.mxu0 0
      %1888 = vmatprep.subr.bf16.mxu0 0
      %1889 = vmatpush1.bf16.msra.mxu0 0
      %1890 = vmatprep.subr.bf16.mxu0 0
      %1891 = vmatpush1.bf16.msra.mxu0 0
      %1892 = vmatprep.subr.bf16.mxu0 0
      %1893 = vmatpush1.bf16.msra.mxu0 0
      %1894 = vmatprep.subr.bf16.mxu0 0
      %1895 = vmatpush1.bf16.msra.mxu0 0
      %1896 = vmatprep.subr.bf16.mxu0 0
      %1897 = vmatpush1.bf16.msra.mxu0 0
      %1898 = vmatprep.subr.bf16.mxu0 0
      %1899 = vmatpush1.bf16.msra.mxu0 0
      %1900 = vmatprep.mubr.bf16.mxu0 0
      %1901 = vmatmul.mubr.bf16.gmra.mrb[0].mxu0 %v1795
      %v1902 = vpop.f32.mrb[0].mxu0
      %v1903 = vadd.f32 0.0, %v1902
      %v1904 = vpop.f32.mrb[0].mxu0
      %v1905 = vpop.f32.mrb[0].mxu0
      %v1906 = vadd.f32 0.0, %v1905
      %v1907 = vpop.f32.mrb[0].mxu0
      %1908 = vmatprep.mubr.bf16.mxu0 0
      %1909 = vmatmul.mubr.bf16.gmra.mrb[0].mxu0 %v1796
      %v1910 = vpop.f32.mrb[0].mxu0
      %v1911 = vadd.f32 0.0, %v1910
      %v1912 = vpop.f32.mrb[0].mxu0
      %v1913 = vpop.f32.mrb[0].mxu0
      %v1914 = vadd.f32 0.0, %v1913
      %v1915 = vpop.f32.mrb[0].mxu0
      %1916 = vmatprep.mubr.bf16.mxu0 0
      %1917 = vmatmul.mubr.bf16.gmra.mrb[0].mxu0 %v1797
      %v1918 = vpop.f32.mrb[0].mxu0
      %v1919 = vadd.f32 0.0, %v1918
      %v1920 = vpop.f32.mrb[0].mxu0
      %v1921 = vpop.f32.mrb[0].mxu0
      %v1922 = vadd.f32 0.0, %v1921
      %v1923 = vpop.f32.mrb[0].mxu0
      %1924 = vmatprep.mubr.bf16.mxu0 0
      %1925 = vmatmul.mubr.bf16.gmra.mrb[0].mxu0 %v1798
      %v1926 = vpop.f32.mrb[0].mxu0
      %v1927 = vadd.f32 0.0, %v1926
      %v1928 = vpop.f32.mrb[0].mxu0
      %v1929 = vpop.f32.mrb[0].mxu0
      %v1930 = vadd.f32 0.0, %v1929
      %v1931 = vpop.f32.mrb[0].mxu0
      %1932 = vmatprep.mubr.bf16.mxu0 0
      %1933 = vmatmul.mubr.bf16.gmra.mrb[0].mxu0 %v1799
      %v1934 = vpop.f32.mrb[0].mxu0
      %v1935 = vadd.f32 0.0, %v1934
      %v1936 = vpop.f32.mrb[0].mxu0
      %v1937 = vpop.f32.mrb[0].mxu0
      %v1938 = vadd.f32 0.0, %v1937
      %v1939 = vpop.f32.mrb[0].mxu0
      %1940 = vmatprep.mubr.bf16.mxu0 0
      %1941 = vmatmul.mubr.bf16.gmra.mrb[0].mxu0 %v1800
      %v1942 = vpop.f32.mrb[0].mxu0
      %v1943 = vadd.f32 0.0, %v1942
      %v1944 = vpop.f32.mrb[0].mxu0
      %v1945 = vpop.f32.mrb[0].mxu0
      %v1946 = vadd.f32 0.0, %v1945
      %v1947 = vpop.f32.mrb[0].mxu0
      %1948 = vmatprep.mubr.bf16.mxu0 0
      %1949 = vmatmul.mubr.bf16.gmra.mrb[0].mxu0 %v1801
      %v1950 = vpop.f32.mrb[0].mxu0
      %v1951 = vadd.f32 0.0, %v1950
      %v1952 = vpop.f32.mrb[0].mxu0
      %v1953 = vpop.f32.mrb[0].mxu0
      %v1954 = vadd.f32 0.0, %v1953
      %v1955 = vpop.f32.mrb[0].mxu0
      %1956 = vmatprep.mubr.bf16.mxu0 0
      %1957 = vmatmul.mubr.bf16.gmra.mrb[0].mxu0 %v1802
      %v1958 = vpop.f32.mrb[0].mxu0
      %v1959 = vadd.f32 0.0, %v1958
      %v1960 = vpop.f32.mrb[0].mxu0
      %v1961 = vpop.f32.mrb[0].mxu0
      %v1962 = vadd.f32 0.0, %v1961
      %v1963 = vpop.f32.mrb[0].mxu0
      %1964 = vdwg.mxu0
      %v1981 = vunpack.c.l.b16 %v1075
      %v1982 = vunpack.c.l.b16 %v1076
      %v1983 = vunpack.c.l.b16 %v1077
      %v1984 = vunpack.c.l.b16 %v1078
      %v1985 = vunpack.c.l.b16 %v1079
      %v1986 = vunpack.c.l.b16 %v1080
      %v1987 = vunpack.c.l.b16 %v1081
      %v1988 = vunpack.c.l.b16 %v1082
      %v1989 = vunpack.c.l.b16 %v1083
      %v1990 = vunpack.c.l.b16 %v1084
      %v1991 = vunpack.c.l.b16 %v1085
      %v1992 = vunpack.c.l.b16 %v1086
      %v1993 = vunpack.c.l.b16 %v1087
      %v1994 = vunpack.c.l.b16 %v1088
      %v1995 = vunpack.c.l.b16 %v1089
      %v1996 = vunpack.c.l.b16 %v1090
      %v1997 = vpack.c.b16 %v1982, %v1981
      %v1998 = vpack.c.b16 %v1984, %v1983
      %v1999 = vpack.c.b16 %v1986, %v1985
      %v2000 = vpack.c.b16 %v1988, %v1987
      %v2001 = vpack.c.b16 %v1990, %v1989
      %v2002 = vpack.c.b16 %v1992, %v1991
      %v2003 = vpack.c.b16 %v1994, %v1993
      %v2004 = vpack.c.b16 %v1996, %v1995
      %2013 = vmatprep.subr.bf16.mxu0 0
      %2014 = vmatpush1.bf16.msra.mxu0 %v1997
      %2015 = vmatprep.subr.bf16.mxu0 0
      %2016 = vmatpush1.bf16.msra.mxu0 %v1998
      %2017 = vmatprep.subr.bf16.mxu0 0
      %2018 = vmatpush1.bf16.msra.mxu0 %v1999
      %2019 = vmatprep.subr.bf16.mxu0 0
      %2020 = vmatpush1.bf16.msra.mxu0 %v2000
      %2021 = vmatprep.subr.bf16.mxu0 0
      %2022 = vmatpush1.bf16.msra.mxu0 %v2001
      %2023 = vmatprep.subr.bf16.mxu0 0
      %2024 = vmatpush1.bf16.msra.mxu0 %v2002
      %2025 = vmatprep.subr.bf16.mxu0 0
      %2026 = vmatpush1.bf16.msra.mxu0 %v2003
      %2027 = vmatprep.subr.bf16.mxu0 0
      %2028 = vmatpush1.bf16.msra.mxu0 %v2004
      %2029 = vmatprep.subr.bf16.mxu0 0
      %2030 = vmatpush1.bf16.msra.mxu0 0
      %2031 = vmatprep.subr.bf16.mxu0 0
      %2032 = vmatpush1.bf16.msra.mxu0 0
      %2033 = vmatprep.subr.bf16.mxu0 0
      %2034 = vmatpush1.bf16.msra.mxu0 0
      %2035 = vmatprep.subr.bf16.mxu0 0
      %2036 = vmatpush1.bf16.msra.mxu0 0
      %2037 = vmatprep.subr.bf16.mxu0 0
      %2038 = vmatpush1.bf16.msra.mxu0 0
      %2039 = vmatprep.subr.bf16.mxu0 0
      %2040 = vmatpush1.bf16.msra.mxu0 0
      %2041 = vmatprep.subr.bf16.mxu0 0
      %2042 = vmatpush1.bf16.msra.mxu0 0
      %2043 = vmatprep.subr.bf16.mxu0 0
      %2044 = vmatpush1.bf16.msra.mxu0 0
      %2045 = vmatprep.mubr.bf16.mxu0 0
      %2046 = vmatmul.mubr.bf16.gmra.mrb[0].mxu0 %v1067
      %v2047 = vpop.f32.mrb[0].mxu0
      %v2048 = vadd.f32 %v1903, %v2047
      %v2049 = vpop.f32.mrb[0].mxu0
      %v2050 = vpop.f32.mrb[0].mxu0
      %v2051 = vadd.f32 %v1906, %v2050
      %v2052 = vpop.f32.mrb[0].mxu0
      %2053 = vmatprep.mubr.bf16.mxu0 0
      %2054 = vmatmul.mubr.bf16.gmra.mrb[0].mxu0 %v1068
      %v2055 = vpop.f32.mrb[0].mxu0
      %v2056 = vadd.f32 %v1911, %v2055
      %v2057 = vpop.f32.mrb[0].mxu0
      %v2058 = vpop.f32.mrb[0].mxu0
      %v2059 = vadd.f32 %v1914, %v2058
      %v2060 = vpop.f32.mrb[0].mxu0
      %2061 = vmatprep.mubr.bf16.mxu0 0
      %2062 = vmatmul.mubr.bf16.gmra.mrb[0].mxu0 %v1069
      %v2063 = vpop.f32.mrb[0].mxu0
      %v2064 = vadd.f32 %v1919, %v2063
      %v2065 = vpop.f32.mrb[0].mxu0
      %v2066 = vpop.f32.mrb[0].mxu0
      %v2067 = vadd.f32 %v1922, %v2066
      %v2068 = vpop.f32.mrb[0].mxu0
      %2069 = vmatprep.mubr.bf16.mxu0 0
      %2070 = vmatmul.mubr.bf16.gmra.mrb[0].mxu0 %v1070
      %v2071 = vpop.f32.mrb[0].mxu0
      %v2072 = vadd.f32 %v1927, %v2071
      %v2073 = vpop.f32.mrb[0].mxu0
      %v2074 = vpop.f32.mrb[0].mxu0
      %v2075 = vadd.f32 %v1930, %v2074
      %v2076 = vpop.f32.mrb[0].mxu0
      %2077 = vmatprep.mubr.bf16.mxu0 0
      %2078 = vmatmul.mubr.bf16.gmra.mrb[0].mxu0 %v1071
      %v2079 = vpop.f32.mrb[0].mxu0
      %v2080 = vadd.f32 %v1935, %v2079
      %v2081 = vpop.f32.mrb[0].mxu0
      %v2082 = vpop.f32.mrb[0].mxu0
      %v2083 = vadd.f32 %v1938, %v2082
      %v2084 = vpop.f32.mrb[0].mxu0
      %2085 = vmatprep.mubr.bf16.mxu0 0
      %2086 = vmatmul.mubr.bf16.gmra.mrb[0].mxu0 %v1072
      %v2087 = vpop.f32.mrb[0].mxu0
      %v2088 = vadd.f32 %v1943, %v2087
      %v2089 = vpop.f32.mrb[0].mxu0
      %v2090 = vpop.f32.mrb[0].mxu0
      %v2091 = vadd.f32 %v1946, %v2090
      %v2092 = vpop.f32.mrb[0].mxu0
      %2093 = vmatprep.mubr.bf16.mxu0 0
      %2094 = vmatmul.mubr.bf16.gmra.mrb[0].mxu0 %v1073
      %v2095 = vpop.f32.mrb[0].mxu0
      %v2096 = vadd.f32 %v1951, %v2095
      %v2097 = vpop.f32.mrb[0].mxu0
      %v2098 = vpop.f32.mrb[0].mxu0
      %v2099 = vadd.f32 %v1954, %v2098
      %v2100 = vpop.f32.mrb[0].mxu0
      %2101 = vmatprep.mubr.bf16.mxu0 0
      %2102 = vmatmul.mubr.bf16.gmra.mrb[0].mxu0 %v1074
      %v2103 = vpop.f32.mrb[0].mxu0
      %v2104 = vadd.f32 %v1959, %v2103
      %v2105 = vpop.f32.mrb[0].mxu0
      %v2106 = vpop.f32.mrb[0].mxu0
      %v2107 = vadd.f32 %v1962, %v2106
      %v2108 = vpop.f32.mrb[0].mxu0
      %2109 = vdwg.mxu0
      %s2110 = sadd.s32 %s356, 169
      %s2111 = scalar_lea.vmem [#allocation2], %s2110
      %v2112 = vld [vmem:[%s2111] sm:$0xff]
      %v2113 = vld [vmem:[%s2111 + $0x8] sm:$0xff]
      %v2114 = vld [vmem:[%s2111 + $0x10] sm:$0xff]
      %v2115 = vld [vmem:[%s2111 + $0x18] sm:$0xff]
      %v2116 = vld [vmem:[%s2111 + $0x20] sm:$0xff]
      %v2117 = vld [vmem:[%s2111 + $0x28] sm:$0xff]
      %v2118 = vld [vmem:[%s2111 + $0x30] sm:$0xff]
      %v2119 = vld [vmem:[%s2111 + $0x38] sm:$0xff]
      %v2120 = vld [vmem:[%s2111 + $0x40] sm:$0xff]
      %v2121 = vld [vmem:[%s2111 + $0x48] sm:$0xff]
      %v2122 = vld [vmem:[%s2111 + $0x50] sm:$0xff]
      %v2123 = vld [vmem:[%s2111 + $0x58] sm:$0xff]
      %v2124 = vld [vmem:[%s2111 + $0x60] sm:$0xff]
      %v2125 = vld [vmem:[%s2111 + $0x68] sm:$0xff]
      %v2126 = vld [vmem:[%s2111 + $0x70] sm:$0xff]
      %v2127 = vld [vmem:[%s2111 + $0x78] sm:$0xff]
      %s2128 = sadd.s32 %s356, 170
      %s2129 = scalar_lea.vmem [#allocation2], %s2128
      %v2130 = vld [vmem:[%s2129] sm:$0xff]
      %v2131 = vld [vmem:[%s2129 + $0x8] sm:$0xff]
      %v2132 = vld [vmem:[%s2129 + $0x10] sm:$0xff]
      %v2133 = vld [vmem:[%s2129 + $0x18] sm:$0xff]
      %v2134 = vld [vmem:[%s2129 + $0x20] sm:$0xff]
      %v2135 = vld [vmem:[%s2129 + $0x28] sm:$0xff]
      %v2136 = vld [vmem:[%s2129 + $0x30] sm:$0xff]
      %v2137 = vld [vmem:[%s2129 + $0x38] sm:$0xff]
      %v2138 = vld [vmem:[%s2129 + $0x40] sm:$0xff]
      %v2139 = vld [vmem:[%s2129 + $0x48] sm:$0xff]
      %v2140 = vld [vmem:[%s2129 + $0x50] sm:$0xff]
      %v2141 = vld [vmem:[%s2129 + $0x58] sm:$0xff]
      %v2142 = vld [vmem:[%s2129 + $0x60] sm:$0xff]
      %v2143 = vld [vmem:[%s2129 + $0x68] sm:$0xff]
      %v2144 = vld [vmem:[%s2129 + $0x70] sm:$0xff]
      %v2145 = vld [vmem:[%s2129 + $0x78] sm:$0xff]
      %s2146 = sadd.s32 %s356, 288
      %s2147 = scalar_lea.vmem [#allocation2], %s2146
      %v2148 = vld [vmem:[%s2147] sm:$0xff]
      %v2149 = vld [vmem:[%s2147 + $0x8] sm:$0xff]
      %v2150 = vld [vmem:[%s2147 + $0x10] sm:$0xff]
      %v2151 = vld [vmem:[%s2147 + $0x18] sm:$0xff]
      %v2152 = vld [vmem:[%s2147 + $0x20] sm:$0xff]
      %v2153 = vld [vmem:[%s2147 + $0x28] sm:$0xff]
      %v2154 = vld [vmem:[%s2147 + $0x30] sm:$0xff]
      %v2155 = vld [vmem:[%s2147 + $0x38] sm:$0xff]
      %v2156 = vld [vmem:[%s2147 + $0x40] sm:$0xff]
      %v2157 = vld [vmem:[%s2147 + $0x48] sm:$0xff]
      %v2158 = vld [vmem:[%s2147 + $0x50] sm:$0xff]
      %v2159 = vld [vmem:[%s2147 + $0x58] sm:$0xff]
      %v2160 = vld [vmem:[%s2147 + $0x60] sm:$0xff]
      %v2161 = vld [vmem:[%s2147 + $0x68] sm:$0xff]
      %v2162 = vld [vmem:[%s2147 + $0x70] sm:$0xff]
      %v2163 = vld [vmem:[%s2147 + $0x78] sm:$0xff]
      %s2164 = sadd.s32 %s356, 289
      %s2165 = scalar_lea.vmem [#allocation2], %s2164
      %v2166 = vld [vmem:[%s2165] sm:$0xff]
      %v2167 = vld [vmem:[%s2165 + $0x8] sm:$0xff]
      %v2168 = vld [vmem:[%s2165 + $0x10] sm:$0xff]
      %v2169 = vld [vmem:[%s2165 + $0x18] sm:$0xff]
      %v2170 = vld [vmem:[%s2165 + $0x20] sm:$0xff]
      %v2171 = vld [vmem:[%s2165 + $0x28] sm:$0xff]
      %v2172 = vld [vmem:[%s2165 + $0x30] sm:$0xff]
      %v2173 = vld [vmem:[%s2165 + $0x38] sm:$0xff]
      %v2174 = vld [vmem:[%s2165 + $0x40] sm:$0xff]
      %v2175 = vld [vmem:[%s2165 + $0x48] sm:$0xff]
      %v2176 = vld [vmem:[%s2165 + $0x50] sm:$0xff]
      %v2177 = vld [vmem:[%s2165 + $0x58] sm:$0xff]
      %v2178 = vld [vmem:[%s2165 + $0x60] sm:$0xff]
      %v2179 = vld [vmem:[%s2165 + $0x68] sm:$0xff]
      %v2180 = vld [vmem:[%s2165 + $0x70] sm:$0xff]
      %v2181 = vld [vmem:[%s2165 + $0x78] sm:$0xff]
      %s2182 = sadd.s32 %s356, 290
      %s2183 = scalar_lea.vmem [#allocation2], %s2182
      %v2184 = vld [vmem:[%s2183] sm:$0xff]
      %v2185 = vld [vmem:[%s2183 + $0x8] sm:$0xff]
      %v2186 = vld [vmem:[%s2183 + $0x10] sm:$0xff]
      %v2187 = vld [vmem:[%s2183 + $0x18] sm:$0xff]
      %v2188 = vld [vmem:[%s2183 + $0x20] sm:$0xff]
      %v2189 = vld [vmem:[%s2183 + $0x28] sm:$0xff]
      %v2190 = vld [vmem:[%s2183 + $0x30] sm:$0xff]
      %v2191 = vld [vmem:[%s2183 + $0x38] sm:$0xff]
      %v2192 = vld [vmem:[%s2183 + $0x40] sm:$0xff]
      %v2193 = vld [vmem:[%s2183 + $0x48] sm:$0xff]
      %v2194 = vld [vmem:[%s2183 + $0x50] sm:$0xff]
      %v2195 = vld [vmem:[%s2183 + $0x58] sm:$0xff]
      %v2196 = vld [vmem:[%s2183 + $0x60] sm:$0xff]
      %v2197 = vld [vmem:[%s2183 + $0x68] sm:$0xff]
      %v2198 = vld [vmem:[%s2183 + $0x70] sm:$0xff]
      %v2199 = vld [vmem:[%s2183 + $0x78] sm:$0xff]
      %s2200 = sadd.s32 %s356, 300
      %s2201 = scalar_lea.vmem [#allocation2], %s2200
      %v2202 = vld [vmem:[%s2201] sm:$0xff]
      %v2203 = vld [vmem:[%s2201 + $0x8] sm:$0xff]
      %v2204 = vld [vmem:[%s2201 + $0x10] sm:$0xff]
      %v2205 = vld [vmem:[%s2201 + $0x18] sm:$0xff]
      %v2206 = vld [vmem:[%s2201 + $0x20] sm:$0xff]
      %v2207 = vld [vmem:[%s2201 + $0x28] sm:$0xff]
      %v2208 = vld [vmem:[%s2201 + $0x30] sm:$0xff]
      %v2209 = vld [vmem:[%s2201 + $0x38] sm:$0xff]
      %v2210 = vld [vmem:[%s2201 + $0x40] sm:$0xff]
      %v2211 = vld [vmem:[%s2201 + $0x48] sm:$0xff]
      %v2212 = vld [vmem:[%s2201 + $0x50] sm:$0xff]
      %v2213 = vld [vmem:[%s2201 + $0x58] sm:$0xff]
      %v2214 = vld [vmem:[%s2201 + $0x60] sm:$0xff]
      %v2215 = vld [vmem:[%s2201 + $0x68] sm:$0xff]
      %v2216 = vld [vmem:[%s2201 + $0x70] sm:$0xff]
      %v2217 = vld [vmem:[%s2201 + $0x78] sm:$0xff]
      %s2218 = sadd.s32 %s356, 301
      %s2219 = scalar_lea.vmem [#allocation2], %s2218
      %v2220 = vld [vmem:[%s2219] sm:$0xff]
      %v2221 = vld [vmem:[%s2219 + $0x8] sm:$0xff]
      %v2222 = vld [vmem:[%s2219 + $0x10] sm:$0xff]
      %v2223 = vld [vmem:[%s2219 + $0x18] sm:$0xff]
      %v2224 = vld [vmem:[%s2219 + $0x20] sm:$0xff]
      %v2225 = vld [vmem:[%s2219 + $0x28] sm:$0xff]
      %v2226 = vld [vmem:[%s2219 + $0x30] sm:$0xff]
      %v2227 = vld [vmem:[%s2219 + $0x38] sm:$0xff]
      %v2228 = vld [vmem:[%s2219 + $0x40] sm:$0xff]
      %v2229 = vld [vmem:[%s2219 + $0x48] sm:$0xff]
      %v2230 = vld [vmem:[%s2219 + $0x50] sm:$0xff]
      %v2231 = vld [vmem:[%s2219 + $0x58] sm:$0xff]
      %v2232 = vld [vmem:[%s2219 + $0x60] sm:$0xff]
      %v2233 = vld [vmem:[%s2219 + $0x68] sm:$0xff]
      %v2234 = vld [vmem:[%s2219 + $0x70] sm:$0xff]
      %v2235 = vld [vmem:[%s2219 + $0x78] sm:$0xff]
      %s2236 = sadd.s32 %s356, 302
      %s2237 = scalar_lea.vmem [#allocation2], %s2236
      %v2238 = vld [vmem:[%s2237] sm:$0xff]
      %v2239 = vld [vmem:[%s2237 + $0x8] sm:$0xff]
      %v2240 = vld [vmem:[%s2237 + $0x10] sm:$0xff]
      %v2241 = vld [vmem:[%s2237 + $0x18] sm:$0xff]
      %v2242 = vld [vmem:[%s2237 + $0x20] sm:$0xff]
      %v2243 = vld [vmem:[%s2237 + $0x28] sm:$0xff]
      %v2244 = vld [vmem:[%s2237 + $0x30] sm:$0xff]
      %v2245 = vld [vmem:[%s2237 + $0x38] sm:$0xff]
      %v2246 = vld [vmem:[%s2237 + $0x40] sm:$0xff]
      %v2247 = vld [vmem:[%s2237 + $0x48] sm:$0xff]
      %v2248 = vld [vmem:[%s2237 + $0x50] sm:$0xff]
      %v2249 = vld [vmem:[%s2237 + $0x58] sm:$0xff]
      %v2250 = vld [vmem:[%s2237 + $0x60] sm:$0xff]
      %v2251 = vld [vmem:[%s2237 + $0x68] sm:$0xff]
      %v2252 = vld [vmem:[%s2237 + $0x70] sm:$0xff]
      %v2253 = vld [vmem:[%s2237 + $0x78] sm:$0xff]
      %2270 = vrot.lane.b32.xlu0 %v2130, 16
      %v2271 = vpop.permute.xlu0 %2270
      %2272 = vrot.lane.b32.xlu0 %v2131, 16
      %v2273 = vpop.permute.xlu0 %2272
      %2274 = vrot.lane.b32.xlu0 %v2132, 16
      %v2275 = vpop.permute.xlu0 %2274
      %2276 = vrot.lane.b32.xlu0 %v2133, 16
      %v2277 = vpop.permute.xlu0 %2276
      %2278 = vrot.lane.b32.xlu0 %v2134, 16
      %v2279 = vpop.permute.xlu0 %2278
      %2280 = vrot.lane.b32.xlu0 %v2135, 16
      %v2281 = vpop.permute.xlu0 %2280
      %2282 = vrot.lane.b32.xlu0 %v2136, 16
      %v2283 = vpop.permute.xlu0 %2282
      %2284 = vrot.lane.b32.xlu0 %v2137, 16
      %v2285 = vpop.permute.xlu0 %2284
      %2286 = vrot.lane.b32.xlu0 %v2138, 16
      %v2287 = vpop.permute.xlu0 %2286
      %2288 = vrot.lane.b32.xlu0 %v2139, 16
      %v2289 = vpop.permute.xlu0 %2288
      %2290 = vrot.lane.b32.xlu0 %v2140, 16
      %v2291 = vpop.permute.xlu0 %2290
      %2292 = vrot.lane.b32.xlu0 %v2141, 16
      %v2293 = vpop.permute.xlu0 %2292
      %2294 = vrot.lane.b32.xlu0 %v2142, 16
      %v2295 = vpop.permute.xlu0 %2294
      %2296 = vrot.lane.b32.xlu0 %v2143, 16
      %v2297 = vpop.permute.xlu0 %2296
      %2298 = vrot.lane.b32.xlu0 %v2144, 16
      %v2299 = vpop.permute.xlu0 %2298
      %2300 = vrot.lane.b32.xlu0 %v2145, 16
      %v2301 = vpop.permute.xlu0 %2300
      %2334 = vrot.lane.b32.xlu0 %v2148, 32
      %v2335 = vpop.permute.xlu0 %2334
      %2336 = vrot.lane.b32.xlu0 %v2149, 32
      %v2337 = vpop.permute.xlu0 %2336
      %2338 = vrot.lane.b32.xlu0 %v2150, 32
      %v2339 = vpop.permute.xlu0 %2338
      %2340 = vrot.lane.b32.xlu0 %v2151, 32
      %v2341 = vpop.permute.xlu0 %2340
      %2342 = vrot.lane.b32.xlu0 %v2152, 32
      %v2343 = vpop.permute.xlu0 %2342
      %2344 = vrot.lane.b32.xlu0 %v2153, 32
      %v2345 = vpop.permute.xlu0 %2344
      %2346 = vrot.lane.b32.xlu0 %v2154, 32
      %v2347 = vpop.permute.xlu0 %2346
      %2348 = vrot.lane.b32.xlu0 %v2155, 32
      %v2349 = vpop.permute.xlu0 %2348
      %2350 = vrot.lane.b32.xlu0 %v2156, 32
      %v2351 = vpop.permute.xlu0 %2350
      %2352 = vrot.lane.b32.xlu0 %v2157, 32
      %v2353 = vpop.permute.xlu0 %2352
      %2354 = vrot.lane.b32.xlu0 %v2158, 32
      %v2355 = vpop.permute.xlu0 %2354
      %2356 = vrot.lane.b32.xlu0 %v2159, 32
      %v2357 = vpop.permute.xlu0 %2356
      %2358 = vrot.lane.b32.xlu0 %v2160, 32
      %v2359 = vpop.permute.xlu0 %2358
      %2360 = vrot.lane.b32.xlu0 %v2161, 32
      %v2361 = vpop.permute.xlu0 %2360
      %2362 = vrot.lane.b32.xlu0 %v2162, 32
      %v2363 = vpop.permute.xlu0 %2362
      %2364 = vrot.lane.b32.xlu0 %v2163, 32
      %v2365 = vpop.permute.xlu0 %2364
      %2398 = vrot.lane.b32.xlu0 %v2166, 48
      %v2399 = vpop.permute.xlu0 %2398
      %2400 = vrot.lane.b32.xlu0 %v2167, 48
      %v2401 = vpop.permute.xlu0 %2400
      %2402 = vrot.lane.b32.xlu0 %v2168, 48
      %v2403 = vpop.permute.xlu0 %2402
      %2404 = vrot.lane.b32.xlu0 %v2169, 48
      %v2405 = vpop.permute.xlu0 %2404
      %2406 = vrot.lane.b32.xlu0 %v2170, 48
      %v2407 = vpop.permute.xlu0 %2406
      %2408 = vrot.lane.b32.xlu0 %v2171, 48
      %v2409 = vpop.permute.xlu0 %2408
      %2410 = vrot.lane.b32.xlu0 %v2172, 48
      %v2411 = vpop.permute.xlu0 %2410
      %2412 = vrot.lane.b32.xlu0 %v2173, 48
      %v2413 = vpop.permute.xlu0 %2412
      %2414 = vrot.lane.b32.xlu0 %v2174, 48
      %v2415 = vpop.permute.xlu0 %2414
      %2416 = vrot.lane.b32.xlu0 %v2175, 48
      %v2417 = vpop.permute.xlu0 %2416
      %2418 = vrot.lane.b32.xlu0 %v2176, 48
      %v2419 = vpop.permute.xlu0 %2418
      %2420 = vrot.lane.b32.xlu0 %v2177, 48
      %v2421 = vpop.permute.xlu0 %2420
      %2422 = vrot.lane.b32.xlu0 %v2178, 48
      %v2423 = vpop.permute.xlu0 %2422
      %2424 = vrot.lane.b32.xlu0 %v2179, 48
      %v2425 = vpop.permute.xlu0 %2424
      %2426 = vrot.lane.b32.xlu0 %v2180, 48
      %v2427 = vpop.permute.xlu0 %2426
      %2428 = vrot.lane.b32.xlu0 %v2181, 48
      %v2429 = vpop.permute.xlu0 %2428
      %2462 = vrot.lane.b32.xlu0 %v2184, 64
      %v2463 = vpop.permute.xlu0 %2462
      %2464 = vrot.lane.b32.xlu0 %v2185, 64
      %v2465 = vpop.permute.xlu0 %2464
      %2466 = vrot.lane.b32.xlu0 %v2186, 64
      %v2467 = vpop.permute.xlu0 %2466
      %2468 = vrot.lane.b32.xlu0 %v2187, 64
      %v2469 = vpop.permute.xlu0 %2468
      %2470 = vrot.lane.b32.xlu0 %v2188, 64
      %v2471 = vpop.permute.xlu0 %2470
      %2472 = vrot.lane.b32.xlu0 %v2189, 64
      %v2473 = vpop.permute.xlu0 %2472
      %2474 = vrot.lane.b32.xlu0 %v2190, 64
      %v2475 = vpop.permute.xlu0 %2474
      %2476 = vrot.lane.b32.xlu0 %v2191, 64
      %v2477 = vpop.permute.xlu0 %2476
      %2478 = vrot.lane.b32.xlu0 %v2192, 64
      %v2479 = vpop.permute.xlu0 %2478
      %2480 = vrot.lane.b32.xlu0 %v2193, 64
      %v2481 = vpop.permute.xlu0 %2480
      %2482 = vrot.lane.b32.xlu0 %v2194, 64
      %v2483 = vpop.permute.xlu0 %2482
      %2484 = vrot.lane.b32.xlu0 %v2195, 64
      %v2485 = vpop.permute.xlu0 %2484
      %2486 = vrot.lane.b32.xlu0 %v2196, 64
      %v2487 = vpop.permute.xlu0 %2486
      %2488 = vrot.lane.b32.xlu0 %v2197, 64
      %v2489 = vpop.permute.xlu0 %2488
      %2490 = vrot.lane.b32.xlu0 %v2198, 64
      %v2491 = vpop.permute.xlu0 %2490
      %2492 = vrot.lane.b32.xlu0 %v2199, 64
      %v2493 = vpop.permute.xlu0 %2492
      %2526 = vrot.lane.b32.xlu0 %v2202, 80
      %v2527 = vpop.permute.xlu0 %2526
      %2528 = vrot.lane.b32.xlu0 %v2203, 80
      %v2529 = vpop.permute.xlu0 %2528
      %2530 = vrot.lane.b32.xlu0 %v2204, 80
      %v2531 = vpop.permute.xlu0 %2530
      %2532 = vrot.lane.b32.xlu0 %v2205, 80
      %v2533 = vpop.permute.xlu0 %2532
      %2534 = vrot.lane.b32.xlu0 %v2206, 80
      %v2535 = vpop.permute.xlu0 %2534
      %2536 = vrot.lane.b32.xlu0 %v2207, 80
      %v2537 = vpop.permute.xlu0 %2536
      %2538 = vrot.lane.b32.xlu0 %v2208, 80
      %v2539 = vpop.permute.xlu0 %2538
      %2540 = vrot.lane.b32.xlu0 %v2209, 80
      %v2541 = vpop.permute.xlu0 %2540
      %2542 = vrot.lane.b32.xlu0 %v2210, 80
      %v2543 = vpop.permute.xlu0 %2542
      %2544 = vrot.lane.b32.xlu0 %v2211, 80
      %v2545 = vpop.permute.xlu0 %2544
      %2546 = vrot.lane.b32.xlu0 %v2212, 80
      %v2547 = vpop.permute.xlu0 %2546
      %2548 = vrot.lane.b32.xlu0 %v2213, 80
      %v2549 = vpop.permute.xlu0 %2548
      %2550 = vrot.lane.b32.xlu0 %v2214, 80
      %v2551 = vpop.permute.xlu0 %2550
      %2552 = vrot.lane.b32.xlu0 %v2215, 80
      %v2553 = vpop.permute.xlu0 %2552
      %2554 = vrot.lane.b32.xlu0 %v2216, 80
      %v2555 = vpop.permute.xlu0 %2554
      %2556 = vrot.lane.b32.xlu0 %v2217, 80
      %v2557 = vpop.permute.xlu0 %2556
      %2590 = vrot.lane.b32.xlu0 %v2220, 96
      %v2591 = vpop.permute.xlu0 %2590
      %2592 = vrot.lane.b32.xlu0 %v2221, 96
      %v2593 = vpop.permute.xlu0 %2592
      %2594 = vrot.lane.b32.xlu0 %v2222, 96
      %v2595 = vpop.permute.xlu0 %2594
      %2596 = vrot.lane.b32.xlu0 %v2223, 96
      %v2597 = vpop.permute.xlu0 %2596
      %2598 = vrot.lane.b32.xlu0 %v2224, 96
      %v2599 = vpop.permute.xlu0 %2598
      %2600 = vrot.lane.b32.xlu0 %v2225, 96
      %v2601 = vpop.permute.xlu0 %2600
      %2602 = vrot.lane.b32.xlu0 %v2226, 96
      %v2603 = vpop.permute.xlu0 %2602
      %2604 = vrot.lane.b32.xlu0 %v2227, 96
      %v2605 = vpop.permute.xlu0 %2604
      %2606 = vrot.lane.b32.xlu0 %v2228, 96
      %v2607 = vpop.permute.xlu0 %2606
      %2608 = vrot.lane.b32.xlu0 %v2229, 96
      %v2609 = vpop.permute.xlu0 %2608
      %2610 = vrot.lane.b32.xlu0 %v2230, 96
      %v2611 = vpop.permute.xlu0 %2610
      %2612 = vrot.lane.b32.xlu0 %v2231, 96
      %v2613 = vpop.permute.xlu0 %2612
      %2614 = vrot.lane.b32.xlu0 %v2232, 96
      %v2615 = vpop.permute.xlu0 %2614
      %2616 = vrot.lane.b32.xlu0 %v2233, 96
      %v2617 = vpop.permute.xlu0 %2616
      %2618 = vrot.lane.b32.xlu0 %v2234, 96
      %v2619 = vpop.permute.xlu0 %2618
      %2620 = vrot.lane.b32.xlu0 %v2235, 96
      %v2621 = vpop.permute.xlu0 %2620
      %2654 = vrot.lane.b32.xlu0 %v2238, 112
      %v2655 = vpop.permute.xlu0 %2654
      %2656 = vrot.lane.b32.xlu0 %v2239, 112
      %v2657 = vpop.permute.xlu0 %2656
      %2658 = vrot.lane.b32.xlu0 %v2240, 112
      %v2659 = vpop.permute.xlu0 %2658
      %2660 = vrot.lane.b32.xlu0 %v2241, 112
      %v2661 = vpop.permute.xlu0 %2660
      %2662 = vrot.lane.b32.xlu0 %v2242, 112
      %v2663 = vpop.permute.xlu0 %2662
      %2664 = vrot.lane.b32.xlu0 %v2243, 112
      %v2665 = vpop.permute.xlu0 %2664
      %2666 = vrot.lane.b32.xlu0 %v2244, 112
      %v2667 = vpop.permute.xlu0 %2666
      %2668 = vrot.lane.b32.xlu0 %v2245, 112
      %v2669 = vpop.permute.xlu0 %2668
      %2670 = vrot.lane.b32.xlu0 %v2246, 112
      %v2671 = vpop.permute.xlu0 %2670
      %2672 = vrot.lane.b32.xlu0 %v2247, 112
      %v2673 = vpop.permute.xlu0 %2672
      %2674 = vrot.lane.b32.xlu0 %v2248, 112
      %v2675 = vpop.permute.xlu0 %2674
      %2676 = vrot.lane.b32.xlu0 %v2249, 112
      %v2677 = vpop.permute.xlu0 %2676
      %2678 = vrot.lane.b32.xlu0 %v2250, 112
      %v2679 = vpop.permute.xlu0 %2678
      %2680 = vrot.lane.b32.xlu0 %v2251, 112
      %v2681 = vpop.permute.xlu0 %2680
      %2682 = vrot.lane.b32.xlu0 %v2252, 112
      %v2683 = vpop.permute.xlu0 %2682
      %2684 = vrot.lane.b32.xlu0 %v2253, 112
      %v2685 = vpop.permute.xlu0 %2684
      %v2702 = vsel %vm948, %v2112, %v2271
      %v2703 = vsel %vm948, %v2113, %v2273
      %v2704 = vsel %vm948, %v2114, %v2275
      %v2705 = vsel %vm948, %v2115, %v2277
      %v2706 = vsel %vm948, %v2116, %v2279
      %v2707 = vsel %vm948, %v2117, %v2281
      %v2708 = vsel %vm948, %v2118, %v2283
      %v2709 = vsel %vm948, %v2119, %v2285
      %v2710 = vsel %vm948, %v2120, %v2287
      %v2711 = vsel %vm948, %v2121, %v2289
      %v2712 = vsel %vm948, %v2122, %v2291
      %v2713 = vsel %vm948, %v2123, %v2293
      %v2714 = vsel %vm948, %v2124, %v2295
      %v2715 = vsel %vm948, %v2125, %v2297
      %v2716 = vsel %vm948, %v2126, %v2299
      %v2717 = vsel %vm948, %v2127, %v2301
      %v2718 = vsel %vm965, %v2702, %v2335
      %v2719 = vsel %vm965, %v2703, %v2337
      %v2720 = vsel %vm965, %v2704, %v2339
      %v2721 = vsel %vm965, %v2705, %v2341
      %v2722 = vsel %vm965, %v2706, %v2343
      %v2723 = vsel %vm965, %v2707, %v2345
      %v2724 = vsel %vm965, %v2708, %v2347
      %v2725 = vsel %vm965, %v2709, %v2349
      %v2726 = vsel %vm965, %v2710, %v2351
      %v2727 = vsel %vm965, %v2711, %v2353
      %v2728 = vsel %vm965, %v2712, %v2355
      %v2729 = vsel %vm965, %v2713, %v2357
      %v2730 = vsel %vm965, %v2714, %v2359
      %v2731 = vsel %vm965, %v2715, %v2361
      %v2732 = vsel %vm965, %v2716, %v2363
      %v2733 = vsel %vm965, %v2717, %v2365
      %v2734 = vsel %vm982, %v2718, %v2399
      %v2735 = vsel %vm982, %v2719, %v2401
      %v2736 = vsel %vm982, %v2720, %v2403
      %v2737 = vsel %vm982, %v2721, %v2405
      %v2738 = vsel %vm982, %v2722, %v2407
      %v2739 = vsel %vm982, %v2723, %v2409
      %v2740 = vsel %vm982, %v2724, %v2411
      %v2741 = vsel %vm982, %v2725, %v2413
      %v2742 = vsel %vm982, %v2726, %v2415
      %v2743 = vsel %vm982, %v2727, %v2417
      %v2744 = vsel %vm982, %v2728, %v2419
      %v2745 = vsel %vm982, %v2729, %v2421
      %v2746 = vsel %vm982, %v2730, %v2423
      %v2747 = vsel %vm982, %v2731, %v2425
      %v2748 = vsel %vm982, %v2732, %v2427
      %v2749 = vsel %vm982, %v2733, %v2429
      %v2750 = vsel %vm999, %v2734, %v2463
      %v2751 = vsel %vm999, %v2735, %v2465
      %v2752 = vsel %vm999, %v2736, %v2467
      %v2753 = vsel %vm999, %v2737, %v2469
      %v2754 = vsel %vm999, %v2738, %v2471
      %v2755 = vsel %vm999, %v2739, %v2473
      %v2756 = vsel %vm999, %v2740, %v2475
      %v2757 = vsel %vm999, %v2741, %v2477
      %v2758 = vsel %vm999, %v2742, %v2479
      %v2759 = vsel %vm999, %v2743, %v2481
      %v2760 = vsel %vm999, %v2744, %v2483
      %v2761 = vsel %vm999, %v2745, %v2485
      %v2762 = vsel %vm999, %v2746, %v2487
      %v2763 = vsel %vm999, %v2747, %v2489
      %v2764 = vsel %vm999, %v2748, %v2491
      %v2765 = vsel %vm999, %v2749, %v2493
      %v2766 = vsel %vm1016, %v2750, %v2527
      %v2767 = vsel %vm1016, %v2751, %v2529
      %v2768 = vsel %vm1016, %v2752, %v2531
      %v2769 = vsel %vm1016, %v2753, %v2533
      %v2770 = vsel %vm1016, %v2754, %v2535
      %v2771 = vsel %vm1016, %v2755, %v2537
      %v2772 = vsel %vm1016, %v2756, %v2539
      %v2773 = vsel %vm1016, %v2757, %v2541
      %v2774 = vsel %vm1016, %v2758, %v2543
      %v2775 = vsel %vm1016, %v2759, %v2545
      %v2776 = vsel %vm1016, %v2760, %v2547
      %v2777 = vsel %vm1016, %v2761, %v2549
      %v2778 = vsel %vm1016, %v2762, %v2551
      %v2779 = vsel %vm1016, %v2763, %v2553
      %v2780 = vsel %vm1016, %v2764, %v2555
      %v2781 = vsel %vm1016, %v2765, %v2557
      %v2782 = vsel %vm1033, %v2766, %v2591
      %v2783 = vsel %vm1033, %v2767, %v2593
      %v2784 = vsel %vm1033, %v2768, %v2595
      %v2785 = vsel %vm1033, %v2769, %v2597
      %v2786 = vsel %vm1033, %v2770, %v2599
      %v2787 = vsel %vm1033, %v2771, %v2601
      %v2788 = vsel %vm1033, %v2772, %v2603
      %v2789 = vsel %vm1033, %v2773, %v2605
      %v2790 = vsel %vm1033, %v2774, %v2607
      %v2791 = vsel %vm1033, %v2775, %v2609
      %v2792 = vsel %vm1033, %v2776, %v2611
      %v2793 = vsel %vm1033, %v2777, %v2613
      %v2794 = vsel %vm1033, %v2778, %v2615
      %v2795 = vsel %vm1033, %v2779, %v2617
      %v2796 = vsel %vm1033, %v2780, %v2619
      %v2797 = vsel %vm1033, %v2781, %v2621
      %v2798 = vsel %vm1050, %v2782, %v2655
      %v2799 = vsel %vm1050, %v2783, %v2657
      %v2800 = vsel %vm1050, %v2784, %v2659
      %v2801 = vsel %vm1050, %v2785, %v2661
      %v2802 = vsel %vm1050, %v2786, %v2663
      %v2803 = vsel %vm1050, %v2787, %v2665
      %v2804 = vsel %vm1050, %v2788, %v2667
      %v2805 = vsel %vm1050, %v2789, %v2669
      %v2806 = vsel %vm1050, %v2790, %v2671
      %v2807 = vsel %vm1050, %v2791, %v2673
      %v2808 = vsel %vm1050, %v2792, %v2675
      %v2809 = vsel %vm1050, %v2793, %v2677
      %v2810 = vsel %vm1050, %v2794, %v2679
      %v2811 = vsel %vm1050, %v2795, %v2681
      %v2812 = vsel %vm1050, %v2796, %v2683
      %v2813 = vsel %vm1050, %v2797, %v2685
      %v2814 = vpack.c.bf16 %v2799, %v2798
      %v2815 = vpack.c.bf16 %v2801, %v2800
      %v2816 = vpack.c.bf16 %v2803, %v2802
      %v2817 = vpack.c.bf16 %v2805, %v2804
      %v2818 = vpack.c.bf16 %v2807, %v2806
      %v2819 = vpack.c.bf16 %v2809, %v2808
      %v2820 = vpack.c.bf16 %v2811, %v2810
      %v2821 = vpack.c.bf16 %v2813, %v2812
      %s2822 = scalar_lea.vmem %s5, 128
      %v2823 = vld [vmem:[%s2822] sm:$0xf]
      %v2824 = vld [vmem:[%s2822 + $0x4] sm:$0xf]
      %v2825 = vld [vmem:[%s2822 + $0x8] sm:$0xf]
      %v2826 = vld [vmem:[%s2822 + $0xc] sm:$0xf]
      %v2827 = vld [vmem:[%s2822 + $0x10] sm:$0xf]
      %v2828 = vld [vmem:[%s2822 + $0x14] sm:$0xf]
      %v2829 = vld [vmem:[%s2822 + $0x18] sm:$0xf]
      %v2830 = vld [vmem:[%s2822 + $0x1c] sm:$0xf]
      %v2831 = vld [vmem:[%s2822 + $0x20] sm:$0xf]
      %v2832 = vld [vmem:[%s2822 + $0x24] sm:$0xf]
      %v2833 = vld [vmem:[%s2822 + $0x28] sm:$0xf]
      %v2834 = vld [vmem:[%s2822 + $0x2c] sm:$0xf]
      %v2835 = vld [vmem:[%s2822 + $0x30] sm:$0xf]
      %v2836 = vld [vmem:[%s2822 + $0x34] sm:$0xf]
      %v2837 = vld [vmem:[%s2822 + $0x38] sm:$0xf]
      %v2838 = vld [vmem:[%s2822 + $0x3c] sm:$0xf]
      %v2855 = vunpack.c.l.b16 %v2823
      %v2856 = vunpack.c.l.b16 %v2824
      %v2857 = vunpack.c.l.b16 %v2825
      %v2858 = vunpack.c.l.b16 %v2826
      %v2859 = vunpack.c.l.b16 %v2827
      %v2860 = vunpack.c.l.b16 %v2828
      %v2861 = vunpack.c.l.b16 %v2829
      %v2862 = vunpack.c.l.b16 %v2830
      %v2863 = vunpack.c.l.b16 %v2831
      %v2864 = vunpack.c.l.b16 %v2832
      %v2865 = vunpack.c.l.b16 %v2833
      %v2866 = vunpack.c.l.b16 %v2834
      %v2867 = vunpack.c.l.b16 %v2835
      %v2868 = vunpack.c.l.b16 %v2836
      %v2869 = vunpack.c.l.b16 %v2837
      %v2870 = vunpack.c.l.b16 %v2838
      %v2871 = vpack.c.b16 %v2856, %v2855
      %v2872 = vpack.c.b16 %v2858, %v2857
      %v2873 = vpack.c.b16 %v2860, %v2859
      %v2874 = vpack.c.b16 %v2862, %v2861
      %v2875 = vpack.c.b16 %v2864, %v2863
      %v2876 = vpack.c.b16 %v2866, %v2865
      %v2877 = vpack.c.b16 %v2868, %v2867
      %v2878 = vpack.c.b16 %v2870, %v2869
      %2887 = vmatprep.subr.bf16.mxu0 0
      %2888 = vmatpush1.bf16.msra.mxu0 %v2871
      %2889 = vmatprep.subr.bf16.mxu0 0
      %2890 = vmatpush1.bf16.msra.mxu0 %v2872
      %2891 = vmatprep.subr.bf16.mxu0 0
      %2892 = vmatpush1.bf16.msra.mxu0 %v2873
      %2893 = vmatprep.subr.bf16.mxu0 0
      %2894 = vmatpush1.bf16.msra.mxu0 %v2874
      %2895 = vmatprep.subr.bf16.mxu0 0
      %2896 = vmatpush1.bf16.msra.mxu0 %v2875
      %2897 = vmatprep.subr.bf16.mxu0 0
      %2898 = vmatpush1.bf16.msra.mxu0 %v2876
      %2899 = vmatprep.subr.bf16.mxu0 0
      %2900 = vmatpush1.bf16.msra.mxu0 %v2877
      %2901 = vmatprep.subr.bf16.mxu0 0
      %2902 = vmatpush1.bf16.msra.mxu0 %v2878
      %2903 = vmatprep.subr.bf16.mxu0 0
      %2904 = vmatpush1.bf16.msra.mxu0 0
      %2905 = vmatprep.subr.bf16.mxu0 0
      %2906 = vmatpush1.bf16.msra.mxu0 0
      %2907 = vmatprep.subr.bf16.mxu0 0
      %2908 = vmatpush1.bf16.msra.mxu0 0
      %2909 = vmatprep.subr.bf16.mxu0 0
      %2910 = vmatpush1.bf16.msra.mxu0 0
      %2911 = vmatprep.subr.bf16.mxu0 0
      %2912 = vmatpush1.bf16.msra.mxu0 0
      %2913 = vmatprep.subr.bf16.mxu0 0
      %2914 = vmatpush1.bf16.msra.mxu0 0
      %2915 = vmatprep.subr.bf16.mxu0 0
      %2916 = vmatpush1.bf16.msra.mxu0 0
      %2917 = vmatprep.subr.bf16.mxu0 0
      %2918 = vmatpush1.bf16.msra.mxu0 0
      %2919 = vmatprep.mubr.bf16.mxu0 0
      %2920 = vmatmul.mubr.bf16.gmra.mrb[0].mxu0 %v2814
      %v2921 = vpop.f32.mrb[0].mxu0
      %v2922 = vadd.f32 0.0, %v2921
      %v2923 = vpop.f32.mrb[0].mxu0
      %v2924 = vpop.f32.mrb[0].mxu0
      %v2925 = vadd.f32 0.0, %v2924
      %v2926 = vpop.f32.mrb[0].mxu0
      %2927 = vmatprep.mubr.bf16.mxu0 0
      %2928 = vmatmul.mubr.bf16.gmra.mrb[0].mxu0 %v2815
      %v2929 = vpop.f32.mrb[0].mxu0
      %v2930 = vadd.f32 0.0, %v2929
      %v2931 = vpop.f32.mrb[0].mxu0
      %v2932 = vpop.f32.mrb[0].mxu0
      %v2933 = vadd.f32 0.0, %v2932
      %v2934 = vpop.f32.mrb[0].mxu0
      %2935 = vmatprep.mubr.bf16.mxu0 0
      %2936 = vmatmul.mubr.bf16.gmra.mrb[0].mxu0 %v2816
      %v2937 = vpop.f32.mrb[0].mxu0
      %v2938 = vadd.f32 0.0, %v2937
      %v2939 = vpop.f32.mrb[0].mxu0
      %v2940 = vpop.f32.mrb[0].mxu0
      %v2941 = vadd.f32 0.0, %v2940
      %v2942 = vpop.f32.mrb[0].mxu0
      %2943 = vmatprep.mubr.bf16.mxu0 0
      %2944 = vmatmul.mubr.bf16.gmra.mrb[0].mxu0 %v2817
      %v2945 = vpop.f32.mrb[0].mxu0
      %v2946 = vadd.f32 0.0, %v2945
      %v2947 = vpop.f32.mrb[0].mxu0
      %v2948 = vpop.f32.mrb[0].mxu0
      %v2949 = vadd.f32 0.0, %v2948
      %v2950 = vpop.f32.mrb[0].mxu0
      %2951 = vmatprep.mubr.bf16.mxu0 0
      %2952 = vmatmul.mubr.bf16.gmra.mrb[0].mxu0 %v2818
      %v2953 = vpop.f32.mrb[0].mxu0
      %v2954 = vadd.f32 0.0, %v2953
      %v2955 = vpop.f32.mrb[0].mxu0
      %v2956 = vpop.f32.mrb[0].mxu0
      %v2957 = vadd.f32 0.0, %v2956
      %v2958 = vpop.f32.mrb[0].mxu0
      %2959 = vmatprep.mubr.bf16.mxu0 0
      %2960 = vmatmul.mubr.bf16.gmra.mrb[0].mxu0 %v2819
      %v2961 = vpop.f32.mrb[0].mxu0
      %v2962 = vadd.f32 0.0, %v2961
      %v2963 = vpop.f32.mrb[0].mxu0
      %v2964 = vpop.f32.mrb[0].mxu0
      %v2965 = vadd.f32 0.0, %v2964
      %v2966 = vpop.f32.mrb[0].mxu0
      %2967 = vmatprep.mubr.bf16.mxu0 0
      %2968 = vmatmul.mubr.bf16.gmra.mrb[0].mxu0 %v2820
      %v2969 = vpop.f32.mrb[0].mxu0
      %v2970 = vadd.f32 0.0, %v2969
      %v2971 = vpop.f32.mrb[0].mxu0
      %v2972 = vpop.f32.mrb[0].mxu0
      %v2973 = vadd.f32 0.0, %v2972
      %v2974 = vpop.f32.mrb[0].mxu0
      %2975 = vmatprep.mubr.bf16.mxu0 0
      %2976 = vmatmul.mubr.bf16.gmra.mrb[0].mxu0 %v2821
      %v2977 = vpop.f32.mrb[0].mxu0
      %v2978 = vadd.f32 0.0, %v2977
      %v2979 = vpop.f32.mrb[0].mxu0
      %v2980 = vpop.f32.mrb[0].mxu0
      %v2981 = vadd.f32 0.0, %v2980
      %v2982 = vpop.f32.mrb[0].mxu0
      %2983 = vdwg.mxu0
      %v2984 = vadd.f32 %v2048, %v2922
      %v2985 = vadd.f32 %v2051, %v2925
      %v2986 = vadd.f32 %v2056, %v2930
      %v2987 = vadd.f32 %v2059, %v2933
      %v2988 = vadd.f32 %v2064, %v2938
      %v2989 = vadd.f32 %v2067, %v2941
      %v2990 = vadd.f32 %v2072, %v2946
      %v2991 = vadd.f32 %v2075, %v2949
      %v2992 = vadd.f32 %v2080, %v2954
      %v2993 = vadd.f32 %v2083, %v2957
      %v2994 = vadd.f32 %v2088, %v2962
      %v2995 = vadd.f32 %v2091, %v2965
      %v2996 = vadd.f32 %v2096, %v2970
      %v2997 = vadd.f32 %v2099, %v2973
      %v2998 = vadd.f32 %v2104, %v2978
      %v2999 = vadd.f32 %v2107, %v2981
      %s3000 = sadd.s32 %s356, 312
      %s3001 = scalar_lea.vmem [#allocation2], %s3000
      %v3002 = vld [vmem:[%s3001] sm:$0xff]
      %v3003 = vld [vmem:[%s3001 + $0x8] sm:$0xff]
      %v3004 = vld [vmem:[%s3001 + $0x10] sm:$0xff]
      %v3005 = vld [vmem:[%s3001 + $0x18] sm:$0xff]
      %v3006 = vld [vmem:[%s3001 + $0x20] sm:$0xff]
      %v3007 = vld [vmem:[%s3001 + $0x28] sm:$0xff]
      %v3008 = vld [vmem:[%s3001 + $0x30] sm:$0xff]
      %v3009 = vld [vmem:[%s3001 + $0x38] sm:$0xff]
      %v3010 = vld [vmem:[%s3001 + $0x40] sm:$0xff]
      %v3011 = vld [vmem:[%s3001 + $0x48] sm:$0xff]
      %v3012 = vld [vmem:[%s3001 + $0x50] sm:$0xff]
      %v3013 = vld [vmem:[%s3001 + $0x58] sm:$0xff]
      %v3014 = vld [vmem:[%s3001 + $0x60] sm:$0xff]
      %v3015 = vld [vmem:[%s3001 + $0x68] sm:$0xff]
      %v3016 = vld [vmem:[%s3001 + $0x70] sm:$0xff]
      %v3017 = vld [vmem:[%s3001 + $0x78] sm:$0xff]
      %s3018 = sadd.s32 %s356, 313
      %s3019 = scalar_lea.vmem [#allocation2], %s3018
      %v3020 = vld [vmem:[%s3019] sm:$0xff]
      %v3021 = vld [vmem:[%s3019 + $0x8] sm:$0xff]
      %v3022 = vld [vmem:[%s3019 + $0x10] sm:$0xff]
      %v3023 = vld [vmem:[%s3019 + $0x18] sm:$0xff]
      %v3024 = vld [vmem:[%s3019 + $0x20] sm:$0xff]
      %v3025 = vld [vmem:[%s3019 + $0x28] sm:$0xff]
      %v3026 = vld [vmem:[%s3019 + $0x30] sm:$0xff]
      %v3027 = vld [vmem:[%s3019 + $0x38] sm:$0xff]
      %v3028 = vld [vmem:[%s3019 + $0x40] sm:$0xff]
      %v3029 = vld [vmem:[%s3019 + $0x48] sm:$0xff]
      %v3030 = vld [vmem:[%s3019 + $0x50] sm:$0xff]
      %v3031 = vld [vmem:[%s3019 + $0x58] sm:$0xff]
      %v3032 = vld [vmem:[%s3019 + $0x60] sm:$0xff]
      %v3033 = vld [vmem:[%s3019 + $0x68] sm:$0xff]
      %v3034 = vld [vmem:[%s3019 + $0x70] sm:$0xff]
      %v3035 = vld [vmem:[%s3019 + $0x78] sm:$0xff]
      %s3036 = sadd.s32 %s356, 314
      %s3037 = scalar_lea.vmem [#allocation2], %s3036
      %v3038 = vld [vmem:[%s3037] sm:$0xff]
      %v3039 = vld [vmem:[%s3037 + $0x8] sm:$0xff]
      %v3040 = vld [vmem:[%s3037 + $0x10] sm:$0xff]
      %v3041 = vld [vmem:[%s3037 + $0x18] sm:$0xff]
      %v3042 = vld [vmem:[%s3037 + $0x20] sm:$0xff]
      %v3043 = vld [vmem:[%s3037 + $0x28] sm:$0xff]
      %v3044 = vld [vmem:[%s3037 + $0x30] sm:$0xff]
      %v3045 = vld [vmem:[%s3037 + $0x38] sm:$0xff]
      %v3046 = vld [vmem:[%s3037 + $0x40] sm:$0xff]
      %v3047 = vld [vmem:[%s3037 + $0x48] sm:$0xff]
      %v3048 = vld [vmem:[%s3037 + $0x50] sm:$0xff]
      %v3049 = vld [vmem:[%s3037 + $0x58] sm:$0xff]
      %v3050 = vld [vmem:[%s3037 + $0x60] sm:$0xff]
      %v3051 = vld [vmem:[%s3037 + $0x68] sm:$0xff]
      %v3052 = vld [vmem:[%s3037 + $0x70] sm:$0xff]
      %v3053 = vld [vmem:[%s3037 + $0x78] sm:$0xff]
      %3070 = vrot.lane.b32.xlu0 %v3020, 16
      %v3071 = vpop.permute.xlu0 %3070
      %3072 = vrot.lane.b32.xlu0 %v3021, 16
      %v3073 = vpop.permute.xlu0 %3072
      %3074 = vrot.lane.b32.xlu0 %v3022, 16
      %v3075 = vpop.permute.xlu0 %3074
      %3076 = vrot.lane.b32.xlu0 %v3023, 16
      %v3077 = vpop.permute.xlu0 %3076
      %3078 = vrot.lane.b32.xlu0 %v3024, 16
      %v3079 = vpop.permute.xlu0 %3078
      %3080 = vrot.lane.b32.xlu0 %v3025, 16
      %v3081 = vpop.permute.xlu0 %3080
      %3082 = vrot.lane.b32.xlu0 %v3026, 16
      %v3083 = vpop.permute.xlu0 %3082
      %3084 = vrot.lane.b32.xlu0 %v3027, 16
      %v3085 = vpop.permute.xlu0 %3084
      %3086 = vrot.lane.b32.xlu0 %v3028, 16
      %v3087 = vpop.permute.xlu0 %3086
      %3088 = vrot.lane.b32.xlu0 %v3029, 16
      %v3089 = vpop.permute.xlu0 %3088
      %3090 = vrot.lane.b32.xlu0 %v3030, 16
      %v3091 = vpop.permute.xlu0 %3090
      %3092 = vrot.lane.b32.xlu0 %v3031, 16
      %v3093 = vpop.permute.xlu0 %3092
      %3094 = vrot.lane.b32.xlu0 %v3032, 16
      %v3095 = vpop.permute.xlu0 %3094
      %3096 = vrot.lane.b32.xlu0 %v3033, 16
      %v3097 = vpop.permute.xlu0 %3096
      %3098 = vrot.lane.b32.xlu0 %v3034, 16
      %v3099 = vpop.permute.xlu0 %3098
      %3100 = vrot.lane.b32.xlu0 %v3035, 16
      %v3101 = vpop.permute.xlu0 %3100
      %3134 = vrot.lane.b32.xlu0 %v3038, 32
      %v3135 = vpop.permute.xlu0 %3134
      %3136 = vrot.lane.b32.xlu0 %v3039, 32
      %v3137 = vpop.permute.xlu0 %3136
      %3138 = vrot.lane.b32.xlu0 %v3040, 32
      %v3139 = vpop.permute.xlu0 %3138
      %3140 = vrot.lane.b32.xlu0 %v3041, 32
      %v3141 = vpop.permute.xlu0 %3140
      %3142 = vrot.lane.b32.xlu0 %v3042, 32
      %v3143 = vpop.permute.xlu0 %3142
      %3144 = vrot.lane.b32.xlu0 %v3043, 32
      %v3145 = vpop.permute.xlu0 %3144
      %3146 = vrot.lane.b32.xlu0 %v3044, 32
      %v3147 = vpop.permute.xlu0 %3146
      %3148 = vrot.lane.b32.xlu0 %v3045, 32
      %v3149 = vpop.permute.xlu0 %3148
      %3150 = vrot.lane.b32.xlu0 %v3046, 32
      %v3151 = vpop.permute.xlu0 %3150
      %3152 = vrot.lane.b32.xlu0 %v3047, 32
      %v3153 = vpop.permute.xlu0 %3152
      %3154 = vrot.lane.b32.xlu0 %v3048, 32
      %v3155 = vpop.permute.xlu0 %3154
      %3156 = vrot.lane.b32.xlu0 %v3049, 32
      %v3157 = vpop.permute.xlu0 %3156
      %3158 = vrot.lane.b32.xlu0 %v3050, 32
      %v3159 = vpop.permute.xlu0 %3158
      %3160 = vrot.lane.b32.xlu0 %v3051, 32
      %v3161 = vpop.permute.xlu0 %3160
      %3162 = vrot.lane.b32.xlu0 %v3052, 32
      %v3163 = vpop.permute.xlu0 %3162
      %3164 = vrot.lane.b32.xlu0 %v3053, 32
      %v3165 = vpop.permute.xlu0 %3164
      %3198 = vrot.lane.b32.xlu0 %v358, 48
      %v3199 = vpop.permute.xlu0 %3198
      %3200 = vrot.lane.b32.xlu0 %v359, 48
      %v3201 = vpop.permute.xlu0 %3200
      %3202 = vrot.lane.b32.xlu0 %v360, 48
      %v3203 = vpop.permute.xlu0 %3202
      %3204 = vrot.lane.b32.xlu0 %v361, 48
      %v3205 = vpop.permute.xlu0 %3204
      %3206 = vrot.lane.b32.xlu0 %v362, 48
      %v3207 = vpop.permute.xlu0 %3206
      %3208 = vrot.lane.b32.xlu0 %v363, 48
      %v3209 = vpop.permute.xlu0 %3208
      %3210 = vrot.lane.b32.xlu0 %v364, 48
      %v3211 = vpop.permute.xlu0 %3210
      %3212 = vrot.lane.b32.xlu0 %v365, 48
      %v3213 = vpop.permute.xlu0 %3212
      %3214 = vrot.lane.b32.xlu0 %v366, 48
      %v3215 = vpop.permute.xlu0 %3214
      %3216 = vrot.lane.b32.xlu0 %v367, 48
      %v3217 = vpop.permute.xlu0 %3216
      %3218 = vrot.lane.b32.xlu0 %v368, 48
      %v3219 = vpop.permute.xlu0 %3218
      %3220 = vrot.lane.b32.xlu0 %v369, 48
      %v3221 = vpop.permute.xlu0 %3220
      %3222 = vrot.lane.b32.xlu0 %v370, 48
      %v3223 = vpop.permute.xlu0 %3222
      %3224 = vrot.lane.b32.xlu0 %v371, 48
      %v3225 = vpop.permute.xlu0 %3224
      %3226 = vrot.lane.b32.xlu0 %v372, 48
      %v3227 = vpop.permute.xlu0 %3226
      %3228 = vrot.lane.b32.xlu0 %v373, 48
      %v3229 = vpop.permute.xlu0 %3228
      %3246 = vrot.lane.b32.xlu0 %v358, 64
      %v3247 = vpop.permute.xlu0 %3246
      %3248 = vrot.lane.b32.xlu0 %v359, 64
      %v3249 = vpop.permute.xlu0 %3248
      %3250 = vrot.lane.b32.xlu0 %v360, 64
      %v3251 = vpop.permute.xlu0 %3250
      %3252 = vrot.lane.b32.xlu0 %v361, 64
      %v3253 = vpop.permute.xlu0 %3252
      %3254 = vrot.lane.b32.xlu0 %v362, 64
      %v3255 = vpop.permute.xlu0 %3254
      %3256 = vrot.lane.b32.xlu0 %v363, 64
      %v3257 = vpop.permute.xlu0 %3256
      %3258 = vrot.lane.b32.xlu0 %v364, 64
      %v3259 = vpop.permute.xlu0 %3258
      %3260 = vrot.lane.b32.xlu0 %v365, 64
      %v3261 = vpop.permute.xlu0 %3260
      %3262 = vrot.lane.b32.xlu0 %v366, 64
      %v3263 = vpop.permute.xlu0 %3262
      %3264 = vrot.lane.b32.xlu0 %v367, 64
      %v3265 = vpop.permute.xlu0 %3264
      %3266 = vrot.lane.b32.xlu0 %v368, 64
      %v3267 = vpop.permute.xlu0 %3266
      %3268 = vrot.lane.b32.xlu0 %v369, 64
      %v3269 = vpop.permute.xlu0 %3268
      %3270 = vrot.lane.b32.xlu0 %v370, 64
      %v3271 = vpop.permute.xlu0 %3270
      %3272 = vrot.lane.b32.xlu0 %v371, 64
      %v3273 = vpop.permute.xlu0 %3272
      %3274 = vrot.lane.b32.xlu0 %v372, 64
      %v3275 = vpop.permute.xlu0 %3274
      %3276 = vrot.lane.b32.xlu0 %v373, 64
      %v3277 = vpop.permute.xlu0 %3276
      %3294 = vrot.lane.b32.xlu0 %v358, 80
      %v3295 = vpop.permute.xlu0 %3294
      %3296 = vrot.lane.b32.xlu0 %v359, 80
      %v3297 = vpop.permute.xlu0 %3296
      %3298 = vrot.lane.b32.xlu0 %v360, 80
      %v3299 = vpop.permute.xlu0 %3298
      %3300 = vrot.lane.b32.xlu0 %v361, 80
      %v3301 = vpop.permute.xlu0 %3300
      %3302 = vrot.lane.b32.xlu0 %v362, 80
      %v3303 = vpop.permute.xlu0 %3302
      %3304 = vrot.lane.b32.xlu0 %v363, 80
      %v3305 = vpop.permute.xlu0 %3304
      %3306 = vrot.lane.b32.xlu0 %v364, 80
      %v3307 = vpop.permute.xlu0 %3306
      %3308 = vrot.lane.b32.xlu0 %v365, 80
      %v3309 = vpop.permute.xlu0 %3308
      %3310 = vrot.lane.b32.xlu0 %v366, 80
      %v3311 = vpop.permute.xlu0 %3310
      %3312 = vrot.lane.b32.xlu0 %v367, 80
      %v3313 = vpop.permute.xlu0 %3312
      %3314 = vrot.lane.b32.xlu0 %v368, 80
      %v3315 = vpop.permute.xlu0 %3314
      %3316 = vrot.lane.b32.xlu0 %v369, 80
      %v3317 = vpop.permute.xlu0 %3316
      %3318 = vrot.lane.b32.xlu0 %v370, 80
      %v3319 = vpop.permute.xlu0 %3318
      %3320 = vrot.lane.b32.xlu0 %v371, 80
      %v3321 = vpop.permute.xlu0 %3320
      %3322 = vrot.lane.b32.xlu0 %v372, 80
      %v3323 = vpop.permute.xlu0 %3322
      %3324 = vrot.lane.b32.xlu0 %v373, 80
      %v3325 = vpop.permute.xlu0 %3324
      %3342 = vrot.lane.b32.xlu0 %v358, 96
      %v3343 = vpop.permute.xlu0 %3342
      %3344 = vrot.lane.b32.xlu0 %v359, 96
      %v3345 = vpop.permute.xlu0 %3344
      %3346 = vrot.lane.b32.xlu0 %v360, 96
      %v3347 = vpop.permute.xlu0 %3346
      %3348 = vrot.lane.b32.xlu0 %v361, 96
      %v3349 = vpop.permute.xlu0 %3348
      %3350 = vrot.lane.b32.xlu0 %v362, 96
      %v3351 = vpop.permute.xlu0 %3350
      %3352 = vrot.lane.b32.xlu0 %v363, 96
      %v3353 = vpop.permute.xlu0 %3352
      %3354 = vrot.lane.b32.xlu0 %v364, 96
      %v3355 = vpop.permute.xlu0 %3354
      %3356 = vrot.lane.b32.xlu0 %v365, 96
      %v3357 = vpop.permute.xlu0 %3356
      %3358 = vrot.lane.b32.xlu0 %v366, 96
      %v3359 = vpop.permute.xlu0 %3358
      %3360 = vrot.lane.b32.xlu0 %v367, 96
      %v3361 = vpop.permute.xlu0 %3360
      %3362 = vrot.lane.b32.xlu0 %v368, 96
      %v3363 = vpop.permute.xlu0 %3362
      %3364 = vrot.lane.b32.xlu0 %v369, 96
      %v3365 = vpop.permute.xlu0 %3364
      %3366 = vrot.lane.b32.xlu0 %v370, 96
      %v3367 = vpop.permute.xlu0 %3366
      %3368 = vrot.lane.b32.xlu0 %v371, 96
      %v3369 = vpop.permute.xlu0 %3368
      %3370 = vrot.lane.b32.xlu0 %v372, 96
      %v3371 = vpop.permute.xlu0 %3370
      %3372 = vrot.lane.b32.xlu0 %v373, 96
      %v3373 = vpop.permute.xlu0 %3372
      %3390 = vrot.lane.b32.xlu0 %v358, 112
      %v3391 = vpop.permute.xlu0 %3390
      %3392 = vrot.lane.b32.xlu0 %v359, 112
      %v3393 = vpop.permute.xlu0 %3392
      %3394 = vrot.lane.b32.xlu0 %v360, 112
      %v3395 = vpop.permute.xlu0 %3394
      %3396 = vrot.lane.b32.xlu0 %v361, 112
      %v3397 = vpop.permute.xlu0 %3396
      %3398 = vrot.lane.b32.xlu0 %v362, 112
      %v3399 = vpop.permute.xlu0 %3398
      %3400 = vrot.lane.b32.xlu0 %v363, 112
      %v3401 = vpop.permute.xlu0 %3400
      %3402 = vrot.lane.b32.xlu0 %v364, 112
      %v3403 = vpop.permute.xlu0 %3402
      %3404 = vrot.lane.b32.xlu0 %v365, 112
      %v3405 = vpop.permute.xlu0 %3404
      %3406 = vrot.lane.b32.xlu0 %v366, 112
      %v3407 = vpop.permute.xlu0 %3406
      %3408 = vrot.lane.b32.xlu0 %v367, 112
      %v3409 = vpop.permute.xlu0 %3408
      %3410 = vrot.lane.b32.xlu0 %v368, 112
      %v3411 = vpop.permute.xlu0 %3410
      %3412 = vrot.lane.b32.xlu0 %v369, 112
      %v3413 = vpop.permute.xlu0 %3412
      %3414 = vrot.lane.b32.xlu0 %v370, 112
      %v3415 = vpop.permute.xlu0 %3414
      %3416 = vrot.lane.b32.xlu0 %v371, 112
      %v3417 = vpop.permute.xlu0 %3416
      %3418 = vrot.lane.b32.xlu0 %v372, 112
      %v3419 = vpop.permute.xlu0 %3418
      %3420 = vrot.lane.b32.xlu0 %v373, 112
      %v3421 = vpop.permute.xlu0 %3420
      %v3438 = vsel %vm948, %v3002, %v3071
      %v3439 = vsel %vm948, %v3003, %v3073
      %v3440 = vsel %vm948, %v3004, %v3075
      %v3441 = vsel %vm948, %v3005, %v3077
      %v3442 = vsel %vm948, %v3006, %v3079
      %v3443 = vsel %vm948, %v3007, %v3081
      %v3444 = vsel %vm948, %v3008, %v3083
      %v3445 = vsel %vm948, %v3009, %v3085
      %v3446 = vsel %vm948, %v3010, %v3087
      %v3447 = vsel %vm948, %v3011, %v3089
      %v3448 = vsel %vm948, %v3012, %v3091
      %v3449 = vsel %vm948, %v3013, %v3093
      %v3450 = vsel %vm948, %v3014, %v3095
      %v3451 = vsel %vm948, %v3015, %v3097
      %v3452 = vsel %vm948, %v3016, %v3099
      %v3453 = vsel %vm948, %v3017, %v3101
      %v3454 = vsel %vm965, %v3438, %v3135
      %v3455 = vsel %vm965, %v3439, %v3137
      %v3456 = vsel %vm965, %v3440, %v3139
      %v3457 = vsel %vm965, %v3441, %v3141
      %v3458 = vsel %vm965, %v3442, %v3143
      %v3459 = vsel %vm965, %v3443, %v3145
      %v3460 = vsel %vm965, %v3444, %v3147
      %v3461 = vsel %vm965, %v3445, %v3149
      %v3462 = vsel %vm965, %v3446, %v3151
      %v3463 = vsel %vm965, %v3447, %v3153
      %v3464 = vsel %vm965, %v3448, %v3155
      %v3465 = vsel %vm965, %v3449, %v3157
      %v3466 = vsel %vm965, %v3450, %v3159
      %v3467 = vsel %vm965, %v3451, %v3161
      %v3468 = vsel %vm965, %v3452, %v3163
      %v3469 = vsel %vm965, %v3453, %v3165
      %v3470 = vsel %vm982, %v3454, %v3199
      %v3471 = vsel %vm982, %v3455, %v3201
      %v3472 = vsel %vm982, %v3456, %v3203
      %v3473 = vsel %vm982, %v3457, %v3205
      %v3474 = vsel %vm982, %v3458, %v3207
      %v3475 = vsel %vm982, %v3459, %v3209
      %v3476 = vsel %vm982, %v3460, %v3211
      %v3477 = vsel %vm982, %v3461, %v3213
      %v3478 = vsel %vm982, %v3462, %v3215
      %v3479 = vsel %vm982, %v3463, %v3217
      %v3480 = vsel %vm982, %v3464, %v3219
      %v3481 = vsel %vm982, %v3465, %v3221
      %v3482 = vsel %vm982, %v3466, %v3223
      %v3483 = vsel %vm982, %v3467, %v3225
      %v3484 = vsel %vm982, %v3468, %v3227
      %v3485 = vsel %vm982, %v3469, %v3229
      %v3486 = vsel %vm999, %v3470, %v3247
      %v3487 = vsel %vm999, %v3471, %v3249
      %v3488 = vsel %vm999, %v3472, %v3251
      %v3489 = vsel %vm999, %v3473, %v3253
      %v3490 = vsel %vm999, %v3474, %v3255
      %v3491 = vsel %vm999, %v3475, %v3257
      %v3492 = vsel %vm999, %v3476, %v3259
      %v3493 = vsel %vm999, %v3477, %v3261
      %v3494 = vsel %vm999, %v3478, %v3263
      %v3495 = vsel %vm999, %v3479, %v3265
      %v3496 = vsel %vm999, %v3480, %v3267
      %v3497 = vsel %vm999, %v3481, %v3269
      %v3498 = vsel %vm999, %v3482, %v3271
      %v3499 = vsel %vm999, %v3483, %v3273
      %v3500 = vsel %vm999, %v3484, %v3275
      %v3501 = vsel %vm999, %v3485, %v3277
      %v3502 = vsel %vm1016, %v3486, %v3295
      %v3503 = vsel %vm1016, %v3487, %v3297
      %v3504 = vsel %vm1016, %v3488, %v3299
      %v3505 = vsel %vm1016, %v3489, %v3301
      %v3506 = vsel %vm1016, %v3490, %v3303
      %v3507 = vsel %vm1016, %v3491, %v3305
      %v3508 = vsel %vm1016, %v3492, %v3307
      %v3509 = vsel %vm1016, %v3493, %v3309
      %v3510 = vsel %vm1016, %v3494, %v3311
      %v3511 = vsel %vm1016, %v3495, %v3313
      %v3512 = vsel %vm1016, %v3496, %v3315
      %v3513 = vsel %vm1016, %v3497, %v3317
      %v3514 = vsel %vm1016, %v3498, %v3319
      %v3515 = vsel %vm1016, %v3499, %v3321
      %v3516 = vsel %vm1016, %v3500, %v3323
      %v3517 = vsel %vm1016, %v3501, %v3325
      %v3518 = vsel %vm1033, %v3502, %v3343
      %v3519 = vsel %vm1033, %v3503, %v3345
      %v3520 = vsel %vm1033, %v3504, %v3347
      %v3521 = vsel %vm1033, %v3505, %v3349
      %v3522 = vsel %vm1033, %v3506, %v3351
      %v3523 = vsel %vm1033, %v3507, %v3353
      %v3524 = vsel %vm1033, %v3508, %v3355
      %v3525 = vsel %vm1033, %v3509, %v3357
      %v3526 = vsel %vm1033, %v3510, %v3359
      %v3527 = vsel %vm1033, %v3511, %v3361
      %v3528 = vsel %vm1033, %v3512, %v3363
      %v3529 = vsel %vm1033, %v3513, %v3365
      %v3530 = vsel %vm1033, %v3514, %v3367
      %v3531 = vsel %vm1033, %v3515, %v3369
      %v3532 = vsel %vm1033, %v3516, %v3371
      %v3533 = vsel %vm1033, %v3517, %v3373
      %v3534 = vsel %vm1050, %v3518, %v3391
      %v3535 = vsel %vm1050, %v3519, %v3393
      %v3536 = vsel %vm1050, %v3520, %v3395
      %v3537 = vsel %vm1050, %v3521, %v3397
      %v3538 = vsel %vm1050, %v3522, %v3399
      %v3539 = vsel %vm1050, %v3523, %v3401
      %v3540 = vsel %vm1050, %v3524, %v3403
      %v3541 = vsel %vm1050, %v3525, %v3405
      %v3542 = vsel %vm1050, %v3526, %v3407
      %v3543 = vsel %vm1050, %v3527, %v3409
      %v3544 = vsel %vm1050, %v3528, %v3411
      %v3545 = vsel %vm1050, %v3529, %v3413
      %v3546 = vsel %vm1050, %v3530, %v3415
      %v3547 = vsel %vm1050, %v3531, %v3417
      %v3548 = vsel %vm1050, %v3532, %v3419
      %v3549 = vsel %vm1050, %v3533, %v3421
      %v3550 = vpack.c.bf16 %v3535, %v3534
      %v3551 = vpack.c.bf16 %v3537, %v3536
      %v3552 = vpack.c.bf16 %v3539, %v3538
      %v3553 = vpack.c.bf16 %v3541, %v3540
      %v3554 = vpack.c.bf16 %v3543, %v3542
      %v3555 = vpack.c.bf16 %v3545, %v3544
      %v3556 = vpack.c.bf16 %v3547, %v3546
      %v3557 = vpack.c.bf16 %v3549, %v3548
      %s3558 = scalar_lea.vmem %s5, 192
      %v3559 = vld [vmem:[%s3558] sm:$0xf]
      %v3560 = vld [vmem:[%s3558 + $0x4] sm:$0xf]
      %v3561 = vld [vmem:[%s3558 + $0x8] sm:$0xf]
      %v3562 = vld [vmem:[%s3558 + $0xc] sm:$0xf]
      %v3563 = vld [vmem:[%s3558 + $0x10] sm:$0xf]
      %v3564 = vld [vmem:[%s3558 + $0x14] sm:$0xf]
      %v3565 = vld [vmem:[%s3558 + $0x18] sm:$0xf]
      %v3566 = vld [vmem:[%s3558 + $0x1c] sm:$0xf]
      %v3567 = vld [vmem:[%s3558 + $0x20] sm:$0xf]
      %v3568 = vld [vmem:[%s3558 + $0x24] sm:$0xf]
      %v3569 = vld [vmem:[%s3558 + $0x28] sm:$0xf]
      %v3570 = vld [vmem:[%s3558 + $0x2c] sm:$0xf]
      %v3571 = vld [vmem:[%s3558 + $0x30] sm:$0xf]
      %v3572 = vld [vmem:[%s3558 + $0x34] sm:$0xf]
      %v3573 = vld [vmem:[%s3558 + $0x38] sm:$0xf]
      %v3574 = vld [vmem:[%s3558 + $0x3c] sm:$0xf]
      %v3591 = vunpack.c.l.b16 %v3559
      %v3592 = vunpack.c.l.b16 %v3560
      %v3593 = vunpack.c.l.b16 %v3561
      %v3594 = vunpack.c.l.b16 %v3562
      %v3595 = vunpack.c.l.b16 %v3563
      %v3596 = vunpack.c.l.b16 %v3564
      %v3597 = vunpack.c.l.b16 %v3565
      %v3598 = vunpack.c.l.b16 %v3566
      %v3599 = vunpack.c.l.b16 %v3567
      %v3600 = vunpack.c.l.b16 %v3568
      %v3601 = vunpack.c.l.b16 %v3569
      %v3602 = vunpack.c.l.b16 %v3570
      %v3603 = vunpack.c.l.b16 %v3571
      %v3604 = vunpack.c.l.b16 %v3572
      %v3605 = vunpack.c.l.b16 %v3573
      %v3606 = vunpack.c.l.b16 %v3574
      %v3607 = vpack.c.b16 %v3592, %v3591
      %v3608 = vpack.c.b16 %v3594, %v3593
      %v3609 = vpack.c.b16 %v3596, %v3595
      %v3610 = vpack.c.b16 %v3598, %v3597
      %v3611 = vpack.c.b16 %v3600, %v3599
      %v3612 = vpack.c.b16 %v3602, %v3601
      %v3613 = vpack.c.b16 %v3604, %v3603
      %v3614 = vpack.c.b16 %v3606, %v3605
      %3623 = vmatprep.subr.bf16.mxu0 0
      %3624 = vmatpush1.bf16.msra.mxu0 %v3607
      %3625 = vmatprep.subr.bf16.mxu0 0
      %3626 = vmatpush1.bf16.msra.mxu0 %v3608
      %3627 = vmatprep.subr.bf16.mxu0 0
      %3628 = vmatpush1.bf16.msra.mxu0 %v3609
      %3629 = vmatprep.subr.bf16.mxu0 0
      %3630 = vmatpush1.bf16.msra.mxu0 %v3610
      %3631 = vmatprep.subr.bf16.mxu0 0
      %3632 = vmatpush1.bf16.msra.mxu0 %v3611
      %3633 = vmatprep.subr.bf16.mxu0 0
      %3634 = vmatpush1.bf16.msra.mxu0 %v3612
      %3635 = vmatprep.subr.bf16.mxu0 0
      %3636 = vmatpush1.bf16.msra.mxu0 %v3613
      %3637 = vmatprep.subr.bf16.mxu0 0
      %3638 = vmatpush1.bf16.msra.mxu0 %v3614
      %3639 = vmatprep.subr.bf16.mxu0 0
      %3640 = vmatpush1.bf16.msra.mxu0 0
      %3641 = vmatprep.subr.bf16.mxu0 0
      %3642 = vmatpush1.bf16.msra.mxu0 0
      %3643 = vmatprep.subr.bf16.mxu0 0
      %3644 = vmatpush1.bf16.msra.mxu0 0
      %3645 = vmatprep.subr.bf16.mxu0 0
      %3646 = vmatpush1.bf16.msra.mxu0 0
      %3647 = vmatprep.subr.bf16.mxu0 0
      %3648 = vmatpush1.bf16.msra.mxu0 0
      %3649 = vmatprep.subr.bf16.mxu0 0
      %3650 = vmatpush1.bf16.msra.mxu0 0
      %3651 = vmatprep.subr.bf16.mxu0 0
      %3652 = vmatpush1.bf16.msra.mxu0 0
      %3653 = vmatprep.subr.bf16.mxu0 0
      %3654 = vmatpush1.bf16.msra.mxu0 0
      %3655 = vmatprep.mubr.bf16.mxu0 0
      %3656 = vmatmul.mubr.bf16.gmra.mrb[0].mxu0 %v3550
      %v3657 = vpop.f32.mrb[0].mxu0
      %v3658 = vadd.f32 0.0, %v3657
      %v3659 = vpop.f32.mrb[0].mxu0
      %v3660 = vpop.f32.mrb[0].mxu0
      %v3661 = vadd.f32 0.0, %v3660
      %v3662 = vpop.f32.mrb[0].mxu0
      %3663 = vmatprep.mubr.bf16.mxu0 0
      %3664 = vmatmul.mubr.bf16.gmra.mrb[0].mxu0 %v3551
      %v3665 = vpop.f32.mrb[0].mxu0
      %v3666 = vadd.f32 0.0, %v3665
      %v3667 = vpop.f32.mrb[0].mxu0
      %v3668 = vpop.f32.mrb[0].mxu0
      %v3669 = vadd.f32 0.0, %v3668
      %v3670 = vpop.f32.mrb[0].mxu0
      %3671 = vmatprep.mubr.bf16.mxu0 0
      %3672 = vmatmul.mubr.bf16.gmra.mrb[0].mxu0 %v3552
      %v3673 = vpop.f32.mrb[0].mxu0
      %v3674 = vadd.f32 0.0, %v3673
      %v3675 = vpop.f32.mrb[0].mxu0
      %v3676 = vpop.f32.mrb[0].mxu0
      %v3677 = vadd.f32 0.0, %v3676
      %v3678 = vpop.f32.mrb[0].mxu0
      %3679 = vmatprep.mubr.bf16.mxu0 0
      %3680 = vmatmul.mubr.bf16.gmra.mrb[0].mxu0 %v3553
      %v3681 = vpop.f32.mrb[0].mxu0
      %v3682 = vadd.f32 0.0, %v3681
      %v3683 = vpop.f32.mrb[0].mxu0
      %v3684 = vpop.f32.mrb[0].mxu0
      %v3685 = vadd.f32 0.0, %v3684
      %v3686 = vpop.f32.mrb[0].mxu0
      %3687 = vmatprep.mubr.bf16.mxu0 0
      %3688 = vmatmul.mubr.bf16.gmra.mrb[0].mxu0 %v3554
      %v3689 = vpop.f32.mrb[0].mxu0
      %v3690 = vadd.f32 0.0, %v3689
      %v3691 = vpop.f32.mrb[0].mxu0
      %v3692 = vpop.f32.mrb[0].mxu0
      %v3693 = vadd.f32 0.0, %v3692
      %v3694 = vpop.f32.mrb[0].mxu0
      %3695 = vmatprep.mubr.bf16.mxu0 0
      %3696 = vmatmul.mubr.bf16.gmra.mrb[0].mxu0 %v3555
      %v3697 = vpop.f32.mrb[0].mxu0
      %v3698 = vadd.f32 0.0, %v3697
      %v3699 = vpop.f32.mrb[0].mxu0
      %v3700 = vpop.f32.mrb[0].mxu0
      %v3701 = vadd.f32 0.0, %v3700
      %v3702 = vpop.f32.mrb[0].mxu0
      %3703 = vmatprep.mubr.bf16.mxu0 0
      %3704 = vmatmul.mubr.bf16.gmra.mrb[0].mxu0 %v3556
      %v3705 = vpop.f32.mrb[0].mxu0
      %v3706 = vadd.f32 0.0, %v3705
      %v3707 = vpop.f32.mrb[0].mxu0
      %v3708 = vpop.f32.mrb[0].mxu0
      %v3709 = vadd.f32 0.0, %v3708
      %v3710 = vpop.f32.mrb[0].mxu0
      %3711 = vmatprep.mubr.bf16.mxu0 0
      %3712 = vmatmul.mubr.bf16.gmra.mrb[0].mxu0 %v3557
      %v3713 = vpop.f32.mrb[0].mxu0
      %v3714 = vadd.f32 0.0, %v3713
      %v3715 = vpop.f32.mrb[0].mxu0
      %v3716 = vpop.f32.mrb[0].mxu0
      %v3717 = vadd.f32 0.0, %v3716
      %v3718 = vpop.f32.mrb[0].mxu0
      %3719 = vdwg.mxu0
      %v3720 = vadd.f32 %v2984, %v3658
      %v3721 = vadd.f32 %v2985, %v3661
      %v3722 = vadd.f32 %v2986, %v3666
      %v3723 = vadd.f32 %v2987, %v3669
      %v3724 = vadd.f32 %v2988, %v3674
      %v3725 = vadd.f32 %v2989, %v3677
      %v3726 = vadd.f32 %v2990, %v3682
      %v3727 = vadd.f32 %v2991, %v3685
      %v3728 = vadd.f32 %v2992, %v3690
      %v3729 = vadd.f32 %v2993, %v3693
      %v3730 = vadd.f32 %v2994, %v3698
      %v3731 = vadd.f32 %v2995, %v3701
      %v3732 = vadd.f32 %v2996, %v3706
      %v3733 = vadd.f32 %v2997, %v3709
      %v3734 = vadd.f32 %v2998, %v3714
      %v3735 = vadd.f32 %v2999, %v3717
      %v3737 = vlaneseq
      %v3738 = vshrl.u32 %v3737, 7
      %v3739 = vsub.s32 0, %v3738
      %v3740 = vrot.slane %v47, %v3739
      %v3742 = vmul.f32 %v3720, %v3740
      %v3743 = vmul.f32 %v3721, %v3740
      %v3744 = vmul.f32 %v3722, %v3740
      %v3745 = vmul.f32 %v3723, %v3740
      %v3746 = vmul.f32 %v3724, %v3740
      %v3747 = vmul.f32 %v3725, %v3740
      %v3748 = vmul.f32 %v3726, %v3740
      %v3749 = vmul.f32 %v3727, %v3740
      %v3750 = vmul.f32 %v3728, %v3740
      %v3751 = vmul.f32 %v3729, %v3740
      %v3752 = vmul.f32 %v3730, %v3740
      %v3753 = vmul.f32 %v3731, %v3740
      %v3754 = vmul.f32 %v3732, %v3740
      %v3755 = vmul.f32 %v3733, %v3740
      %v3756 = vmul.f32 %v3734, %v3740
      %v3757 = vmul.f32 %v3735, %v3740
      %v3759 = vlaneseq
      %v3760 = vshrl.u32 %v3759, 7
      %v3761 = vsub.s32 0, %v3760
      %v3762 = vrot.slane %v48, %v3761
      %v3764 = vadd.f32 %v3742, %v3762
      %v3765 = vadd.f32 %v3743, %v3762
      %v3766 = vadd.f32 %v3744, %v3762
      %v3767 = vadd.f32 %v3745, %v3762
      %v3768 = vadd.f32 %v3746, %v3762
      %v3769 = vadd.f32 %v3747, %v3762
      %v3770 = vadd.f32 %v3748, %v3762
      %v3771 = vadd.f32 %v3749, %v3762
      %v3772 = vadd.f32 %v3750, %v3762
      %v3773 = vadd.f32 %v3751, %v3762
      %v3774 = vadd.f32 %v3752, %v3762
      %v3775 = vadd.f32 %v3753, %v3762
      %v3776 = vadd.f32 %v3754, %v3762
      %v3777 = vadd.f32 %v3755, %v3762
      %v3778 = vadd.f32 %v3756, %v3762
      %v3779 = vadd.f32 %v3757, %v3762
      %v3780 = vmax.f32 %v3764, 0.0
      %v3781 = vmax.f32 %v3765, 0.0
      %v3782 = vmax.f32 %v3766, 0.0
      %v3783 = vmax.f32 %v3767, 0.0
      %v3784 = vmax.f32 %v3768, 0.0
      %v3785 = vmax.f32 %v3769, 0.0
      %v3786 = vmax.f32 %v3770, 0.0
      %v3787 = vmax.f32 %v3771, 0.0
      %v3788 = vmax.f32 %v3772, 0.0
      %v3789 = vmax.f32 %v3773, 0.0
      %v3790 = vmax.f32 %v3774, 0.0
      %v3791 = vmax.f32 %v3775, 0.0
      %v3792 = vmax.f32 %v3776, 0.0
      %v3793 = vmax.f32 %v3777, 0.0
      %v3794 = vmax.f32 %v3778, 0.0
      %v3795 = vmax.f32 %v3779, 0.0
      %s3796 = scalar_lea.vmem %s1, %s356
      %v3797 = vld [vmem:[%s3796] sm:$0xff]
      %v3798 = vld [vmem:[%s3796 + $0x8] sm:$0xff]
      %v3799 = vld [vmem:[%s3796 + $0x10] sm:$0xff]
      %v3800 = vld [vmem:[%s3796 + $0x18] sm:$0xff]
      %v3801 = vld [vmem:[%s3796 + $0x20] sm:$0xff]
      %v3802 = vld [vmem:[%s3796 + $0x28] sm:$0xff]
      %v3803 = vld [vmem:[%s3796 + $0x30] sm:$0xff]
      %v3804 = vld [vmem:[%s3796 + $0x38] sm:$0xff]
      %v3805 = vld [vmem:[%s3796 + $0x40] sm:$0xff]
      %v3806 = vld [vmem:[%s3796 + $0x48] sm:$0xff]
      %v3807 = vld [vmem:[%s3796 + $0x50] sm:$0xff]
      %v3808 = vld [vmem:[%s3796 + $0x58] sm:$0xff]
      %v3809 = vld [vmem:[%s3796 + $0x60] sm:$0xff]
      %v3810 = vld [vmem:[%s3796 + $0x68] sm:$0xff]
      %v3811 = vld [vmem:[%s3796 + $0x70] sm:$0xff]
      %v3812 = vld [vmem:[%s3796 + $0x78] sm:$0xff]
      %3814 = vset.pattern.permute.xlu0 0
      %3815 = vperm.xlu0 %3814, %v3797
      %v3816 = vpop.permute.xlu0 %3815
      %3819 = vset.pattern.permute.xlu0 0
      %3820 = vperm.xlu0 %3819, %v3798
      %v3821 = vpop.permute.xlu0 %3820
      %3824 = vset.pattern.permute.xlu0 0
      %3825 = vperm.xlu0 %3824, %v3799
      %v3826 = vpop.permute.xlu0 %3825
      %3829 = vset.pattern.permute.xlu0 0
      %3830 = vperm.xlu0 %3829, %v3800
      %v3831 = vpop.permute.xlu0 %3830
      %3834 = vset.pattern.permute.xlu0 0
      %3835 = vperm.xlu0 %3834, %v3801
      %v3836 = vpop.permute.xlu0 %3835
      %3839 = vset.pattern.permute.xlu0 0
      %3840 = vperm.xlu0 %3839, %v3802
      %v3841 = vpop.permute.xlu0 %3840
      %3844 = vset.pattern.permute.xlu0 0
      %3845 = vperm.xlu0 %3844, %v3803
      %v3846 = vpop.permute.xlu0 %3845
      %3849 = vset.pattern.permute.xlu0 0
      %3850 = vperm.xlu0 %3849, %v3804
      %v3851 = vpop.permute.xlu0 %3850
      %3854 = vset.pattern.permute.xlu0 0
      %3855 = vperm.xlu0 %3854, %v3805
      %v3856 = vpop.permute.xlu0 %3855
      %3859 = vset.pattern.permute.xlu0 0
      %3860 = vperm.xlu0 %3859, %v3806
      %v3861 = vpop.permute.xlu0 %3860
      %3864 = vset.pattern.permute.xlu0 0
      %3865 = vperm.xlu0 %3864, %v3807
      %v3866 = vpop.permute.xlu0 %3865
      %3869 = vset.pattern.permute.xlu0 0
      %3870 = vperm.xlu0 %3869, %v3808
      %v3871 = vpop.permute.xlu0 %3870
      %3874 = vset.pattern.permute.xlu0 0
      %3875 = vperm.xlu0 %3874, %v3809
      %v3876 = vpop.permute.xlu0 %3875
      %3879 = vset.pattern.permute.xlu0 0
      %3880 = vperm.xlu0 %3879, %v3810
      %v3881 = vpop.permute.xlu0 %3880
      %3884 = vset.pattern.permute.xlu0 0
      %3885 = vperm.xlu0 %3884, %v3811
      %v3886 = vpop.permute.xlu0 %3885
      %3889 = vset.pattern.permute.xlu0 0
      %3890 = vperm.xlu0 %3889, %v3812
      %v3891 = vpop.permute.xlu0 %3890
      %v3893 = vmul.f32 %v3780, %v3816
      %v3894 = vmul.f32 %v3781, %v3821
      %v3895 = vmul.f32 %v3782, %v3826
      %v3896 = vmul.f32 %v3783, %v3831
      %v3897 = vmul.f32 %v3784, %v3836
      %v3898 = vmul.f32 %v3785, %v3841
      %v3899 = vmul.f32 %v3786, %v3846
      %v3900 = vmul.f32 %v3787, %v3851
      %v3901 = vmul.f32 %v3788, %v3856
      %v3902 = vmul.f32 %v3789, %v3861
      %v3903 = vmul.f32 %v3790, %v3866
      %v3904 = vmul.f32 %v3791, %v3871
      %v3905 = vmul.f32 %v3792, %v3876
      %v3906 = vmul.f32 %v3793, %v3881
      %v3907 = vmul.f32 %v3794, %v3886
      %v3908 = vmul.f32 %v3795, %v3891
      %v3909 = vmax.f32 %v3893, %v3897
      %v3910 = vmax.f32 %v3894, %v3898
      %v3911 = vmax.f32 %v3895, %v3899
      %v3912 = vmax.f32 %v3896, %v3900
      %v3913 = vmax.f32 %v3909, %v3901
      %v3914 = vmax.f32 %v3910, %v3902
      %v3915 = vmax.f32 %v3911, %v3903
      %v3916 = vmax.f32 %v3912, %v3904
      %v3917 = vmax.f32 %v3913, %v3905
      %v3918 = vmax.f32 %v3914, %v3906
      %v3919 = vmax.f32 %v3915, %v3907
      %v3920 = vmax.f32 %v3916, %v3908
      %v3921 = vmax.f32 %v3917, %v3918
      %v3922 = vmax.f32 %v3919, %v3920
      %v3923 = vmax.f32 %v3921, %v3922
      %v3924 = vrot.slane %v3923, 4
      %v3925 = vmax.f32 %v3923, %v3924
      %v3926 = vrot.slane %v3925, 2
      %v3927 = vmax.f32 %v3925, %v3926
      %v3928 = vrot.slane %v3927, 1
      %v3929 = vmax.f32 %v3927, %v3928
      %v3930 = vmax.f32 %v355, %v3929
    $region49: #{qnetwork2_forward.1} parent=1 // loop_footer
      %s354 = sadd.s32 1, %s350
    $region50: #{qnetwork2_forward.1} parent=1 // loop_footer_branch
      %349 = sbr.rel target = $region46
    $region51: #{qnetwork2_forward.1} parent=1 // loop_exit
      _
    %v3931 = vtanh.pop %v355
    %v3932 = vmul.f32 %v3931, 2.0
    %3933 = vst [vmem:[#allocation6] sm:$0x1] %v3932
    loop: start=0, step=1, limit=17
    $region52: #{qnetwork2_forward.1} parent=1 // loop_pre_header
      _
    $region53: #{qnetwork2_forward.1} parent=1 // loop_header
      %s3935 = sphi 0, %s3939
      %p3936 = scmp.ge.s32.totalorder %s3935, 17
    $region54: #{qnetwork2_forward.1} parent=1 // loop_header_branch
      %3938 = sbr.rel (%p3936) target = $region58
    $region55: #{qnetwork2_forward.1} parent=1 // loop_body
      %s3940 = smul.u32 %s3935, 128
      %s3941 = sadd.s32 %s3940, 2176
      %s3942 = scalar_lea.vmem [#allocation3], %s3941
      %v3943 = vld [vmem:[%s3942] sm:$0xff]
      %v3944 = vld [vmem:[%s3942 + $0x8] sm:$0xff]
      %v3945 = vld [vmem:[%s3942 + $0x10] sm:$0xff]
      %v3946 = vld [vmem:[%s3942 + $0x18] sm:$0xff]
      %v3947 = vld [vmem:[%s3942 + $0x20] sm:$0xff]
      %v3948 = vld [vmem:[%s3942 + $0x28] sm:$0xff]
      %v3949 = vld [vmem:[%s3942 + $0x30] sm:$0xff]
      %v3950 = vld [vmem:[%s3942 + $0x38] sm:$0xff]
      %v3951 = vld [vmem:[%s3942 + $0x40] sm:$0xff]
      %v3952 = vld [vmem:[%s3942 + $0x48] sm:$0xff]
      %v3953 = vld [vmem:[%s3942 + $0x50] sm:$0xff]
      %v3954 = vld [vmem:[%s3942 + $0x58] sm:$0xff]
      %v3955 = vld [vmem:[%s3942 + $0x60] sm:$0xff]
      %v3956 = vld [vmem:[%s3942 + $0x68] sm:$0xff]
      %v3957 = vld [vmem:[%s3942 + $0x70] sm:$0xff]
      %v3958 = vld [vmem:[%s3942 + $0x78] sm:$0xff]
      %vm3959 = vcmask 261120
      %v3961 = vsel %vm3959, %v3943, 0
      %v3964 = vsel %vm3959, %v3944, 0
      %v3967 = vsel %vm3959, %v3945, 0
      %v3970 = vsel %vm3959, %v3946, 0
      %v3973 = vsel %vm3959, %v3947, 0
      %v3976 = vsel %vm3959, %v3948, 0
      %v3979 = vsel %vm3959, %v3949, 0
      %v3982 = vsel %vm3959, %v3950, 0
      %v3985 = vsel %vm3959, %v3951, 0
      %v3988 = vsel %vm3959, %v3952, 0
      %v3991 = vsel %vm3959, %v3953, 0
      %v3994 = vsel %vm3959, %v3954, 0
      %v3997 = vsel %vm3959, %v3955, 0
      %v4000 = vsel %vm3959, %v3956, 0
      %v4003 = vsel %vm3959, %v3957, 0
      %v4006 = vsel %vm3959, %v3958, 0
      %4008 = vmatprep.subr.mxu0 0.0
      %4009 = vmatpush1.msra.mxu0 %v49
      %4010 = vmatprep.subr.mxu0 0.0
      %4011 = vmatpush1.msra.mxu0 %v50
      %4012 = vmatprep.subr.mxu0 0.0
      %4013 = vmatpush1.msra.mxu0 %v51
      %4014 = vmatprep.subr.mxu0 0.0
      %4015 = vmatpush1.msra.mxu0 %v52
      %4016 = vmatprep.subr.mxu0 0.0
      %4017 = vmatpush1.msra.mxu0 0.0
      %4018 = vmatprep.subr.mxu0 0.0
      %4019 = vmatpush1.msra.mxu0 0.0
      %4020 = vmatprep.subr.mxu0 0.0
      %4021 = vmatpush1.msra.mxu0 0.0
      %4022 = vmatprep.subr.mxu0 0.0
      %4023 = vmatpush1.msra.mxu0 0.0
      %4024 = vmatprep.subr.mxu0 0.0
      %4025 = vmatpush1.msra.mxu0 0.0
      %4026 = vmatprep.subr.mxu0 0.0
      %4027 = vmatpush1.msra.mxu0 0.0
      %4028 = vmatprep.subr.mxu0 0.0
      %4029 = vmatpush1.msra.mxu0 0.0
      %4030 = vmatprep.subr.mxu0 0.0
      %4031 = vmatpush1.msra.mxu0 0.0
      %4032 = vmatprep.subr.mxu0 0.0
      %4033 = vmatpush1.msra.mxu0 0.0
      %4034 = vmatprep.subr.mxu0 0.0
      %4035 = vmatpush1.msra.mxu0 0.0
      %4036 = vmatprep.subr.mxu0 0.0
      %4037 = vmatpush1.msra.mxu0 0.0
      %4038 = vmatprep.subr.mxu0 0.0
      %4039 = vmatpush1.msra.mxu0 0.0
      %4040 = vmatprep.subr.mxu0 0.0
      %4041 = vmatpush1.msra.mxu0 0.0
      %4042 = vmatprep.subr.mxu0 0.0
      %4043 = vmatpush1.msra.mxu0 0.0
      %4044 = vmatprep.subr.mxu0 0.0
      %4045 = vmatpush1.msra.mxu0 0.0
      %4046 = vmatprep.subr.mxu0 0.0
      %4047 = vmatpush1.msra.mxu0 0.0
      %4048 = vmatprep.subr.mxu0 0.0
      %4049 = vmatpush1.msra.mxu0 0.0
      %4050 = vmatprep.subr.mxu0 0.0
      %4051 = vmatpush1.msra.mxu0 0.0
      %4052 = vmatprep.subr.mxu0 0.0
      %4053 = vmatpush1.msra.mxu0 0.0
      %4054 = vmatprep.subr.mxu0 0.0
      %4055 = vmatpush1.msra.mxu0 0.0
      %4056 = vmatprep.subr.mxu0 0.0
      %4057 = vmatpush1.msra.mxu0 0.0
      %4058 = vmatprep.subr.mxu0 0.0
      %4059 = vmatpush1.msra.mxu0 0.0
      %4060 = vmatprep.subr.mxu0 0.0
      %4061 = vmatpush1.msra.mxu0 0.0
      %4062 = vmatprep.subr.mxu0 0.0
      %4063 = vmatpush1.msra.mxu0 0.0
      %4064 = vmatprep.subr.mxu0 0.0
      %4065 = vmatpush1.msra.mxu0 0.0
      %4066 = vmatprep.subr.mxu0 0.0
      %4067 = vmatpush1.msra.mxu0 0.0
      %4068 = vmatprep.subr.mxu0 0.0
      %4069 = vmatpush1.msra.mxu0 0.0
      %4070 = vmatprep.subr.mxu0 0.0
      %4071 = vmatpush1.msra.mxu0 0.0
      %4072 = vmatprep.mubr.f32.mxu0 0.0
      %4073 = vmatmul.mubr.f32.gmra.mrb[0].mxu0 %v3961
      %v4074 = vpop.f32.mrb[0].mxu0
      %v4075 = vadd.f32 0.0, %v4074
      %v4076 = vpop.f32.mrb[0].mxu0
      %4077 = vmatprep.mubr.f32.mxu0 0.0
      %4078 = vmatmul.mubr.f32.gmra.mrb[0].mxu0 %v3964
      %v4079 = vpop.f32.mrb[0].mxu0
      %v4080 = vadd.f32 0.0, %v4079
      %v4081 = vpop.f32.mrb[0].mxu0
      %4082 = vmatprep.mubr.f32.mxu0 0.0
      %4083 = vmatmul.mubr.f32.gmra.mrb[0].mxu0 %v3967
      %v4084 = vpop.f32.mrb[0].mxu0
      %v4085 = vadd.f32 0.0, %v4084
      %v4086 = vpop.f32.mrb[0].mxu0
      %4087 = vmatprep.mubr.f32.mxu0 0.0
      %4088 = vmatmul.mubr.f32.gmra.mrb[0].mxu0 %v3970
      %v4089 = vpop.f32.mrb[0].mxu0
      %v4090 = vadd.f32 0.0, %v4089
      %v4091 = vpop.f32.mrb[0].mxu0
      %4092 = vmatprep.mubr.f32.mxu0 0.0
      %4093 = vmatmul.mubr.f32.gmra.mrb[0].mxu0 %v3973
      %v4094 = vpop.f32.mrb[0].mxu0
      %v4095 = vadd.f32 0.0, %v4094
      %v4096 = vpop.f32.mrb[0].mxu0
      %4097 = vmatprep.mubr.f32.mxu0 0.0
      %4098 = vmatmul.mubr.f32.gmra.mrb[0].mxu0 %v3976
      %v4099 = vpop.f32.mrb[0].mxu0
      %v4100 = vadd.f32 0.0, %v4099
      %v4101 = vpop.f32.mrb[0].mxu0
      %4102 = vmatprep.mubr.f32.mxu0 0.0
      %4103 = vmatmul.mubr.f32.gmra.mrb[0].mxu0 %v3979
      %v4104 = vpop.f32.mrb[0].mxu0
      %v4105 = vadd.f32 0.0, %v4104
      %v4106 = vpop.f32.mrb[0].mxu0
      %4107 = vmatprep.mubr.f32.mxu0 0.0
      %4108 = vmatmul.mubr.f32.gmra.mrb[0].mxu0 %v3982
      %v4109 = vpop.f32.mrb[0].mxu0
      %v4110 = vadd.f32 0.0, %v4109
      %v4111 = vpop.f32.mrb[0].mxu0
      %4112 = vmatprep.mubr.f32.mxu0 0.0
      %4113 = vmatmul.mubr.f32.gmra.mrb[0].mxu0 %v3985
      %v4114 = vpop.f32.mrb[0].mxu0
      %v4115 = vadd.f32 0.0, %v4114
      %v4116 = vpop.f32.mrb[0].mxu0
      %4117 = vmatprep.mubr.f32.mxu0 0.0
      %4118 = vmatmul.mubr.f32.gmra.mrb[0].mxu0 %v3988
      %v4119 = vpop.f32.mrb[0].mxu0
      %v4120 = vadd.f32 0.0, %v4119
      %v4121 = vpop.f32.mrb[0].mxu0
      %4122 = vmatprep.mubr.f32.mxu0 0.0
      %4123 = vmatmul.mubr.f32.gmra.mrb[0].mxu0 %v3991
      %v4124 = vpop.f32.mrb[0].mxu0
      %v4125 = vadd.f32 0.0, %v4124
      %v4126 = vpop.f32.mrb[0].mxu0
      %4127 = vmatprep.mubr.f32.mxu0 0.0
      %4128 = vmatmul.mubr.f32.gmra.mrb[0].mxu0 %v3994
      %v4129 = vpop.f32.mrb[0].mxu0
      %v4130 = vadd.f32 0.0, %v4129
      %v4131 = vpop.f32.mrb[0].mxu0
      %4132 = vmatprep.mubr.f32.mxu0 0.0
      %4133 = vmatmul.mubr.f32.gmra.mrb[0].mxu0 %v3997
      %v4134 = vpop.f32.mrb[0].mxu0
      %v4135 = vadd.f32 0.0, %v4134
      %v4136 = vpop.f32.mrb[0].mxu0
      %4137 = vmatprep.mubr.f32.mxu0 0.0
      %4138 = vmatmul.mubr.f32.gmra.mrb[0].mxu0 %v4000
      %v4139 = vpop.f32.mrb[0].mxu0
      %v4140 = vadd.f32 0.0, %v4139
      %v4141 = vpop.f32.mrb[0].mxu0
      %4142 = vmatprep.mubr.f32.mxu0 0.0
      %4143 = vmatmul.mubr.f32.gmra.mrb[0].mxu0 %v4003
      %v4144 = vpop.f32.mrb[0].mxu0
      %v4145 = vadd.f32 0.0, %v4144
      %v4146 = vpop.f32.mrb[0].mxu0
      %4147 = vmatprep.mubr.f32.mxu0 0.0
      %4148 = vmatmul.mubr.f32.gmra.mrb[0].mxu0 %v4006
      %v4149 = vpop.f32.mrb[0].mxu0
      %v4150 = vadd.f32 0.0, %v4149
      %v4151 = vpop.f32.mrb[0].mxu0
      %4152 = vdwg.mxu0
      %v4154 = vlaneseq
      %v4155 = vshrl.u32 %v4154, 7
      %v4156 = vsub.s32 0, %v4155
      %v4157 = vrot.slane %v45, %v4156
      %v4159 = vmul.f32 %v4075, %v4157
      %v4160 = vmul.f32 %v4080, %v4157
      %v4161 = vmul.f32 %v4085, %v4157
      %v4162 = vmul.f32 %v4090, %v4157
      %v4163 = vmul.f32 %v4095, %v4157
      %v4164 = vmul.f32 %v4100, %v4157
      %v4165 = vmul.f32 %v4105, %v4157
      %v4166 = vmul.f32 %v4110, %v4157
      %v4167 = vmul.f32 %v4115, %v4157
      %v4168 = vmul.f32 %v4120, %v4157
      %v4169 = vmul.f32 %v4125, %v4157
      %v4170 = vmul.f32 %v4130, %v4157
      %v4171 = vmul.f32 %v4135, %v4157
      %v4172 = vmul.f32 %v4140, %v4157
      %v4173 = vmul.f32 %v4145, %v4157
      %v4174 = vmul.f32 %v4150, %v4157
      %v4176 = vlaneseq
      %v4177 = vshrl.u32 %v4176, 7
      %v4178 = vsub.s32 0, %v4177
      %v4179 = vrot.slane %v46, %v4178
      %v4181 = vadd.f32 %v4159, %v4179
      %v4182 = vadd.f32 %v4160, %v4179
      %v4183 = vadd.f32 %v4161, %v4179
      %v4184 = vadd.f32 %v4162, %v4179
      %v4185 = vadd.f32 %v4163, %v4179
      %v4186 = vadd.f32 %v4164, %v4179
      %v4187 = vadd.f32 %v4165, %v4179
      %v4188 = vadd.f32 %v4166, %v4179
      %v4189 = vadd.f32 %v4167, %v4179
      %v4190 = vadd.f32 %v4168, %v4179
      %v4191 = vadd.f32 %v4169, %v4179
      %v4192 = vadd.f32 %v4170, %v4179
      %v4193 = vadd.f32 %v4171, %v4179
      %v4194 = vadd.f32 %v4172, %v4179
      %v4195 = vadd.f32 %v4173, %v4179
      %v4196 = vadd.f32 %v4174, %v4179
      %v4197 = vmax.f32 %v4181, 0.0
      %v4198 = vmax.f32 %v4182, 0.0
      %v4199 = vmax.f32 %v4183, 0.0
      %v4200 = vmax.f32 %v4184, 0.0
      %v4201 = vmax.f32 %v4185, 0.0
      %v4202 = vmax.f32 %v4186, 0.0
      %v4203 = vmax.f32 %v4187, 0.0
      %v4204 = vmax.f32 %v4188, 0.0
      %v4205 = vmax.f32 %v4189, 0.0
      %v4206 = vmax.f32 %v4190, 0.0
      %v4207 = vmax.f32 %v4191, 0.0
      %v4208 = vmax.f32 %v4192, 0.0
      %v4209 = vmax.f32 %v4193, 0.0
      %v4210 = vmax.f32 %v4194, 0.0
      %v4211 = vmax.f32 %v4195, 0.0
      %v4212 = vmax.f32 %v4196, 0.0
      %s4213 = scalar_lea.vmem [#allocation2], %s3940
      %vm4214 = vcmask 130048
      %4215 = vst.msk [vmem:[%s4213] sm:$0xff] %vm4214, %v4197
      %4216 = vst.msk [vmem:[%s4213 + $0x8] sm:$0xff] %vm4214, %v4198
      %4217 = vst.msk [vmem:[%s4213 + $0x10] sm:$0xff] %vm4214, %v4199
      %4218 = vst.msk [vmem:[%s4213 + $0x18] sm:$0xff] %vm4214, %v4200
      %4219 = vst.msk [vmem:[%s4213 + $0x20] sm:$0xff] %vm4214, %v4201
      %4220 = vst.msk [vmem:[%s4213 + $0x28] sm:$0xff] %vm4214, %v4202
      %4221 = vst.msk [vmem:[%s4213 + $0x30] sm:$0xff] %vm4214, %v4203
      %4222 = vst.msk [vmem:[%s4213 + $0x38] sm:$0xff] %vm4214, %v4204
      %4223 = vst.msk [vmem:[%s4213 + $0x40] sm:$0xff] %vm4214, %v4205
      %4224 = vst.msk [vmem:[%s4213 + $0x48] sm:$0xff] %vm4214, %v4206
      %4225 = vst.msk [vmem:[%s4213 + $0x50] sm:$0xff] %vm4214, %v4207
      %4226 = vst.msk [vmem:[%s4213 + $0x58] sm:$0xff] %vm4214, %v4208
      %4227 = vst.msk [vmem:[%s4213 + $0x60] sm:$0xff] %vm4214, %v4209
      %4228 = vst.msk [vmem:[%s4213 + $0x68] sm:$0xff] %vm4214, %v4210
      %4229 = vst.msk [vmem:[%s4213 + $0x70] sm:$0xff] %vm4214, %v4211
      %4230 = vst.msk [vmem:[%s4213 + $0x78] sm:$0xff] %vm4214, %v4212
    $region56: #{qnetwork2_forward.1} parent=1 // loop_footer
      %s3939 = sadd.s32 1, %s3935
    $region57: #{qnetwork2_forward.1} parent=1 // loop_footer_branch
      %3934 = sbr.rel target = $region53
    $region58: #{qnetwork2_forward.1} parent=1 // loop_exit
      _
    loop: start=0, step=1, limit=14
    $region59: #{qnetwork2_forward.1} parent=1 // loop_pre_header
      _
    $region60: #{qnetwork2_forward.1} parent=1 // loop_header
      %s4232 = sphi 0, %s4236
      %p4233 = scmp.ge.s32.totalorder %s4232, 14
      %v4237 = vphi 0.0, %v7812
    $region61: #{qnetwork2_forward.1} parent=1 // loop_header_branch
      %4235 = sbr.rel (%p4233) target = $region65
    $region62: #{qnetwork2_forward.1} parent=1 // loop_body
      %s4238 = smul.u32 %s4232, 128
      %s4239 = scalar_lea.vmem [#allocation2], %s4238
      %v4240 = vld [vmem:[%s4239] sm:$0xff]
      %v4241 = vld [vmem:[%s4239 + $0x8] sm:$0xff]
      %v4242 = vld [vmem:[%s4239 + $0x10] sm:$0xff]
      %v4243 = vld [vmem:[%s4239 + $0x18] sm:$0xff]
      %v4244 = vld [vmem:[%s4239 + $0x20] sm:$0xff]
      %v4245 = vld [vmem:[%s4239 + $0x28] sm:$0xff]
      %v4246 = vld [vmem:[%s4239 + $0x30] sm:$0xff]
      %v4247 = vld [vmem:[%s4239 + $0x38] sm:$0xff]
      %v4248 = vld [vmem:[%s4239 + $0x40] sm:$0xff]
      %v4249 = vld [vmem:[%s4239 + $0x48] sm:$0xff]
      %v4250 = vld [vmem:[%s4239 + $0x50] sm:$0xff]
      %v4251 = vld [vmem:[%s4239 + $0x58] sm:$0xff]
      %v4252 = vld [vmem:[%s4239 + $0x60] sm:$0xff]
      %v4253 = vld [vmem:[%s4239 + $0x68] sm:$0xff]
      %v4254 = vld [vmem:[%s4239 + $0x70] sm:$0xff]
      %v4255 = vld [vmem:[%s4239 + $0x78] sm:$0xff]
      %s4256 = sadd.s32 %s4238, 1
      %s4257 = scalar_lea.vmem [#allocation2], %s4256
      %v4258 = vld [vmem:[%s4257] sm:$0xff]
      %v4259 = vld [vmem:[%s4257 + $0x8] sm:$0xff]
      %v4260 = vld [vmem:[%s4257 + $0x10] sm:$0xff]
      %v4261 = vld [vmem:[%s4257 + $0x18] sm:$0xff]
      %v4262 = vld [vmem:[%s4257 + $0x20] sm:$0xff]
      %v4263 = vld [vmem:[%s4257 + $0x28] sm:$0xff]
      %v4264 = vld [vmem:[%s4257 + $0x30] sm:$0xff]
      %v4265 = vld [vmem:[%s4257 + $0x38] sm:$0xff]
      %v4266 = vld [vmem:[%s4257 + $0x40] sm:$0xff]
      %v4267 = vld [vmem:[%s4257 + $0x48] sm:$0xff]
      %v4268 = vld [vmem:[%s4257 + $0x50] sm:$0xff]
      %v4269 = vld [vmem:[%s4257 + $0x58] sm:$0xff]
      %v4270 = vld [vmem:[%s4257 + $0x60] sm:$0xff]
      %v4271 = vld [vmem:[%s4257 + $0x68] sm:$0xff]
      %v4272 = vld [vmem:[%s4257 + $0x70] sm:$0xff]
      %v4273 = vld [vmem:[%s4257 + $0x78] sm:$0xff]
      %s4274 = sadd.s32 %s4238, 2
      %s4275 = scalar_lea.vmem [#allocation2], %s4274
      %v4276 = vld [vmem:[%s4275] sm:$0xff]
      %v4277 = vld [vmem:[%s4275 + $0x8] sm:$0xff]
      %v4278 = vld [vmem:[%s4275 + $0x10] sm:$0xff]
      %v4279 = vld [vmem:[%s4275 + $0x18] sm:$0xff]
      %v4280 = vld [vmem:[%s4275 + $0x20] sm:$0xff]
      %v4281 = vld [vmem:[%s4275 + $0x28] sm:$0xff]
      %v4282 = vld [vmem:[%s4275 + $0x30] sm:$0xff]
      %v4283 = vld [vmem:[%s4275 + $0x38] sm:$0xff]
      %v4284 = vld [vmem:[%s4275 + $0x40] sm:$0xff]
      %v4285 = vld [vmem:[%s4275 + $0x48] sm:$0xff]
      %v4286 = vld [vmem:[%s4275 + $0x50] sm:$0xff]
      %v4287 = vld [vmem:[%s4275 + $0x58] sm:$0xff]
      %v4288 = vld [vmem:[%s4275 + $0x60] sm:$0xff]
      %v4289 = vld [vmem:[%s4275 + $0x68] sm:$0xff]
      %v4290 = vld [vmem:[%s4275 + $0x70] sm:$0xff]
      %v4291 = vld [vmem:[%s4275 + $0x78] sm:$0xff]
      %s4292 = sadd.s32 %s4238, 12
      %s4293 = scalar_lea.vmem [#allocation2], %s4292
      %v4294 = vld [vmem:[%s4293] sm:$0xff]
      %v4295 = vld [vmem:[%s4293 + $0x8] sm:$0xff]
      %v4296 = vld [vmem:[%s4293 + $0x10] sm:$0xff]
      %v4297 = vld [vmem:[%s4293 + $0x18] sm:$0xff]
      %v4298 = vld [vmem:[%s4293 + $0x20] sm:$0xff]
      %v4299 = vld [vmem:[%s4293 + $0x28] sm:$0xff]
      %v4300 = vld [vmem:[%s4293 + $0x30] sm:$0xff]
      %v4301 = vld [vmem:[%s4293 + $0x38] sm:$0xff]
      %v4302 = vld [vmem:[%s4293 + $0x40] sm:$0xff]
      %v4303 = vld [vmem:[%s4293 + $0x48] sm:$0xff]
      %v4304 = vld [vmem:[%s4293 + $0x50] sm:$0xff]
      %v4305 = vld [vmem:[%s4293 + $0x58] sm:$0xff]
      %v4306 = vld [vmem:[%s4293 + $0x60] sm:$0xff]
      %v4307 = vld [vmem:[%s4293 + $0x68] sm:$0xff]
      %v4308 = vld [vmem:[%s4293 + $0x70] sm:$0xff]
      %v4309 = vld [vmem:[%s4293 + $0x78] sm:$0xff]
      %s4310 = sadd.s32 %s4238, 13
      %s4311 = scalar_lea.vmem [#allocation2], %s4310
      %v4312 = vld [vmem:[%s4311] sm:$0xff]
      %v4313 = vld [vmem:[%s4311 + $0x8] sm:$0xff]
      %v4314 = vld [vmem:[%s4311 + $0x10] sm:$0xff]
      %v4315 = vld [vmem:[%s4311 + $0x18] sm:$0xff]
      %v4316 = vld [vmem:[%s4311 + $0x20] sm:$0xff]
      %v4317 = vld [vmem:[%s4311 + $0x28] sm:$0xff]
      %v4318 = vld [vmem:[%s4311 + $0x30] sm:$0xff]
      %v4319 = vld [vmem:[%s4311 + $0x38] sm:$0xff]
      %v4320 = vld [vmem:[%s4311 + $0x40] sm:$0xff]
      %v4321 = vld [vmem:[%s4311 + $0x48] sm:$0xff]
      %v4322 = vld [vmem:[%s4311 + $0x50] sm:$0xff]
      %v4323 = vld [vmem:[%s4311 + $0x58] sm:$0xff]
      %v4324 = vld [vmem:[%s4311 + $0x60] sm:$0xff]
      %v4325 = vld [vmem:[%s4311 + $0x68] sm:$0xff]
      %v4326 = vld [vmem:[%s4311 + $0x70] sm:$0xff]
      %v4327 = vld [vmem:[%s4311 + $0x78] sm:$0xff]
      %s4328 = sadd.s32 %s4238, 14
      %s4329 = scalar_lea.vmem [#allocation2], %s4328
      %v4330 = vld [vmem:[%s4329] sm:$0xff]
      %v4331 = vld [vmem:[%s4329 + $0x8] sm:$0xff]
      %v4332 = vld [vmem:[%s4329 + $0x10] sm:$0xff]
      %v4333 = vld [vmem:[%s4329 + $0x18] sm:$0xff]
      %v4334 = vld [vmem:[%s4329 + $0x20] sm:$0xff]
      %v4335 = vld [vmem:[%s4329 + $0x28] sm:$0xff]
      %v4336 = vld [vmem:[%s4329 + $0x30] sm:$0xff]
      %v4337 = vld [vmem:[%s4329 + $0x38] sm:$0xff]
      %v4338 = vld [vmem:[%s4329 + $0x40] sm:$0xff]
      %v4339 = vld [vmem:[%s4329 + $0x48] sm:$0xff]
      %v4340 = vld [vmem:[%s4329 + $0x50] sm:$0xff]
      %v4341 = vld [vmem:[%s4329 + $0x58] sm:$0xff]
      %v4342 = vld [vmem:[%s4329 + $0x60] sm:$0xff]
      %v4343 = vld [vmem:[%s4329 + $0x68] sm:$0xff]
      %v4344 = vld [vmem:[%s4329 + $0x70] sm:$0xff]
      %v4345 = vld [vmem:[%s4329 + $0x78] sm:$0xff]
      %s4346 = sadd.s32 %s4238, 24
      %s4347 = scalar_lea.vmem [#allocation2], %s4346
      %v4348 = vld [vmem:[%s4347] sm:$0xff]
      %v4349 = vld [vmem:[%s4347 + $0x8] sm:$0xff]
      %v4350 = vld [vmem:[%s4347 + $0x10] sm:$0xff]
      %v4351 = vld [vmem:[%s4347 + $0x18] sm:$0xff]
      %v4352 = vld [vmem:[%s4347 + $0x20] sm:$0xff]
      %v4353 = vld [vmem:[%s4347 + $0x28] sm:$0xff]
      %v4354 = vld [vmem:[%s4347 + $0x30] sm:$0xff]
      %v4355 = vld [vmem:[%s4347 + $0x38] sm:$0xff]
      %v4356 = vld [vmem:[%s4347 + $0x40] sm:$0xff]
      %v4357 = vld [vmem:[%s4347 + $0x48] sm:$0xff]
      %v4358 = vld [vmem:[%s4347 + $0x50] sm:$0xff]
      %v4359 = vld [vmem:[%s4347 + $0x58] sm:$0xff]
      %v4360 = vld [vmem:[%s4347 + $0x60] sm:$0xff]
      %v4361 = vld [vmem:[%s4347 + $0x68] sm:$0xff]
      %v4362 = vld [vmem:[%s4347 + $0x70] sm:$0xff]
      %v4363 = vld [vmem:[%s4347 + $0x78] sm:$0xff]
      %s4364 = sadd.s32 %s4238, 25
      %s4365 = scalar_lea.vmem [#allocation2], %s4364
      %v4366 = vld [vmem:[%s4365] sm:$0xff]
      %v4367 = vld [vmem:[%s4365 + $0x8] sm:$0xff]
      %v4368 = vld [vmem:[%s4365 + $0x10] sm:$0xff]
      %v4369 = vld [vmem:[%s4365 + $0x18] sm:$0xff]
      %v4370 = vld [vmem:[%s4365 + $0x20] sm:$0xff]
      %v4371 = vld [vmem:[%s4365 + $0x28] sm:$0xff]
      %v4372 = vld [vmem:[%s4365 + $0x30] sm:$0xff]
      %v4373 = vld [vmem:[%s4365 + $0x38] sm:$0xff]
      %v4374 = vld [vmem:[%s4365 + $0x40] sm:$0xff]
      %v4375 = vld [vmem:[%s4365 + $0x48] sm:$0xff]
      %v4376 = vld [vmem:[%s4365 + $0x50] sm:$0xff]
      %v4377 = vld [vmem:[%s4365 + $0x58] sm:$0xff]
      %v4378 = vld [vmem:[%s4365 + $0x60] sm:$0xff]
      %v4379 = vld [vmem:[%s4365 + $0x68] sm:$0xff]
      %v4380 = vld [vmem:[%s4365 + $0x70] sm:$0xff]
      %v4381 = vld [vmem:[%s4365 + $0x78] sm:$0xff]
      %4398 = vrot.lane.b32.xlu0 %v4258, 16
      %v4399 = vpop.permute.xlu0 %4398
      %4400 = vrot.lane.b32.xlu0 %v4259, 16
      %v4401 = vpop.permute.xlu0 %4400
      %4402 = vrot.lane.b32.xlu0 %v4260, 16
      %v4403 = vpop.permute.xlu0 %4402
      %4404 = vrot.lane.b32.xlu0 %v4261, 16
      %v4405 = vpop.permute.xlu0 %4404
      %4406 = vrot.lane.b32.xlu0 %v4262, 16
      %v4407 = vpop.permute.xlu0 %4406
      %4408 = vrot.lane.b32.xlu0 %v4263, 16
      %v4409 = vpop.permute.xlu0 %4408
      %4410 = vrot.lane.b32.xlu0 %v4264, 16
      %v4411 = vpop.permute.xlu0 %4410
      %4412 = vrot.lane.b32.xlu0 %v4265, 16
      %v4413 = vpop.permute.xlu0 %4412
      %4414 = vrot.lane.b32.xlu0 %v4266, 16
      %v4415 = vpop.permute.xlu0 %4414
      %4416 = vrot.lane.b32.xlu0 %v4267, 16
      %v4417 = vpop.permute.xlu0 %4416
      %4418 = vrot.lane.b32.xlu0 %v4268, 16
      %v4419 = vpop.permute.xlu0 %4418
      %4420 = vrot.lane.b32.xlu0 %v4269, 16
      %v4421 = vpop.permute.xlu0 %4420
      %4422 = vrot.lane.b32.xlu0 %v4270, 16
      %v4423 = vpop.permute.xlu0 %4422
      %4424 = vrot.lane.b32.xlu0 %v4271, 16
      %v4425 = vpop.permute.xlu0 %4424
      %4426 = vrot.lane.b32.xlu0 %v4272, 16
      %v4427 = vpop.permute.xlu0 %4426
      %4428 = vrot.lane.b32.xlu0 %v4273, 16
      %v4429 = vpop.permute.xlu0 %4428
      %4462 = vrot.lane.b32.xlu0 %v4276, 32
      %v4463 = vpop.permute.xlu0 %4462
      %4464 = vrot.lane.b32.xlu0 %v4277, 32
      %v4465 = vpop.permute.xlu0 %4464
      %4466 = vrot.lane.b32.xlu0 %v4278, 32
      %v4467 = vpop.permute.xlu0 %4466
      %4468 = vrot.lane.b32.xlu0 %v4279, 32
      %v4469 = vpop.permute.xlu0 %4468
      %4470 = vrot.lane.b32.xlu0 %v4280, 32
      %v4471 = vpop.permute.xlu0 %4470
      %4472 = vrot.lane.b32.xlu0 %v4281, 32
      %v4473 = vpop.permute.xlu0 %4472
      %4474 = vrot.lane.b32.xlu0 %v4282, 32
      %v4475 = vpop.permute.xlu0 %4474
      %4476 = vrot.lane.b32.xlu0 %v4283, 32
      %v4477 = vpop.permute.xlu0 %4476
      %4478 = vrot.lane.b32.xlu0 %v4284, 32
      %v4479 = vpop.permute.xlu0 %4478
      %4480 = vrot.lane.b32.xlu0 %v4285, 32
      %v4481 = vpop.permute.xlu0 %4480
      %4482 = vrot.lane.b32.xlu0 %v4286, 32
      %v4483 = vpop.permute.xlu0 %4482
      %4484 = vrot.lane.b32.xlu0 %v4287, 32
      %v4485 = vpop.permute.xlu0 %4484
      %4486 = vrot.lane.b32.xlu0 %v4288, 32
      %v4487 = vpop.permute.xlu0 %4486
      %4488 = vrot.lane.b32.xlu0 %v4289, 32
      %v4489 = vpop.permute.xlu0 %4488
      %4490 = vrot.lane.b32.xlu0 %v4290, 32
      %v4491 = vpop.permute.xlu0 %4490
      %4492 = vrot.lane.b32.xlu0 %v4291, 32
      %v4493 = vpop.permute.xlu0 %4492
      %4526 = vrot.lane.b32.xlu0 %v4294, 48
      %v4527 = vpop.permute.xlu0 %4526
      %4528 = vrot.lane.b32.xlu0 %v4295, 48
      %v4529 = vpop.permute.xlu0 %4528
      %4530 = vrot.lane.b32.xlu0 %v4296, 48
      %v4531 = vpop.permute.xlu0 %4530
      %4532 = vrot.lane.b32.xlu0 %v4297, 48
      %v4533 = vpop.permute.xlu0 %4532
      %4534 = vrot.lane.b32.xlu0 %v4298, 48
      %v4535 = vpop.permute.xlu0 %4534
      %4536 = vrot.lane.b32.xlu0 %v4299, 48
      %v4537 = vpop.permute.xlu0 %4536
      %4538 = vrot.lane.b32.xlu0 %v4300, 48
      %v4539 = vpop.permute.xlu0 %4538
      %4540 = vrot.lane.b32.xlu0 %v4301, 48
      %v4541 = vpop.permute.xlu0 %4540
      %4542 = vrot.lane.b32.xlu0 %v4302, 48
      %v4543 = vpop.permute.xlu0 %4542
      %4544 = vrot.lane.b32.xlu0 %v4303, 48
      %v4545 = vpop.permute.xlu0 %4544
      %4546 = vrot.lane.b32.xlu0 %v4304, 48
      %v4547 = vpop.permute.xlu0 %4546
      %4548 = vrot.lane.b32.xlu0 %v4305, 48
      %v4549 = vpop.permute.xlu0 %4548
      %4550 = vrot.lane.b32.xlu0 %v4306, 48
      %v4551 = vpop.permute.xlu0 %4550
      %4552 = vrot.lane.b32.xlu0 %v4307, 48
      %v4553 = vpop.permute.xlu0 %4552
      %4554 = vrot.lane.b32.xlu0 %v4308, 48
      %v4555 = vpop.permute.xlu0 %4554
      %4556 = vrot.lane.b32.xlu0 %v4309, 48
      %v4557 = vpop.permute.xlu0 %4556
      %4590 = vrot.lane.b32.xlu0 %v4312, 64
      %v4591 = vpop.permute.xlu0 %4590
      %4592 = vrot.lane.b32.xlu0 %v4313, 64
      %v4593 = vpop.permute.xlu0 %4592
      %4594 = vrot.lane.b32.xlu0 %v4314, 64
      %v4595 = vpop.permute.xlu0 %4594
      %4596 = vrot.lane.b32.xlu0 %v4315, 64
      %v4597 = vpop.permute.xlu0 %4596
      %4598 = vrot.lane.b32.xlu0 %v4316, 64
      %v4599 = vpop.permute.xlu0 %4598
      %4600 = vrot.lane.b32.xlu0 %v4317, 64
      %v4601 = vpop.permute.xlu0 %4600
      %4602 = vrot.lane.b32.xlu0 %v4318, 64
      %v4603 = vpop.permute.xlu0 %4602
      %4604 = vrot.lane.b32.xlu0 %v4319, 64
      %v4605 = vpop.permute.xlu0 %4604
      %4606 = vrot.lane.b32.xlu0 %v4320, 64
      %v4607 = vpop.permute.xlu0 %4606
      %4608 = vrot.lane.b32.xlu0 %v4321, 64
      %v4609 = vpop.permute.xlu0 %4608
      %4610 = vrot.lane.b32.xlu0 %v4322, 64
      %v4611 = vpop.permute.xlu0 %4610
      %4612 = vrot.lane.b32.xlu0 %v4323, 64
      %v4613 = vpop.permute.xlu0 %4612
      %4614 = vrot.lane.b32.xlu0 %v4324, 64
      %v4615 = vpop.permute.xlu0 %4614
      %4616 = vrot.lane.b32.xlu0 %v4325, 64
      %v4617 = vpop.permute.xlu0 %4616
      %4618 = vrot.lane.b32.xlu0 %v4326, 64
      %v4619 = vpop.permute.xlu0 %4618
      %4620 = vrot.lane.b32.xlu0 %v4327, 64
      %v4621 = vpop.permute.xlu0 %4620
      %4654 = vrot.lane.b32.xlu0 %v4330, 80
      %v4655 = vpop.permute.xlu0 %4654
      %4656 = vrot.lane.b32.xlu0 %v4331, 80
      %v4657 = vpop.permute.xlu0 %4656
      %4658 = vrot.lane.b32.xlu0 %v4332, 80
      %v4659 = vpop.permute.xlu0 %4658
      %4660 = vrot.lane.b32.xlu0 %v4333, 80
      %v4661 = vpop.permute.xlu0 %4660
      %4662 = vrot.lane.b32.xlu0 %v4334, 80
      %v4663 = vpop.permute.xlu0 %4662
      %4664 = vrot.lane.b32.xlu0 %v4335, 80
      %v4665 = vpop.permute.xlu0 %4664
      %4666 = vrot.lane.b32.xlu0 %v4336, 80
      %v4667 = vpop.permute.xlu0 %4666
      %4668 = vrot.lane.b32.xlu0 %v4337, 80
      %v4669 = vpop.permute.xlu0 %4668
      %4670 = vrot.lane.b32.xlu0 %v4338, 80
      %v4671 = vpop.permute.xlu0 %4670
      %4672 = vrot.lane.b32.xlu0 %v4339, 80
      %v4673 = vpop.permute.xlu0 %4672
      %4674 = vrot.lane.b32.xlu0 %v4340, 80
      %v4675 = vpop.permute.xlu0 %4674
      %4676 = vrot.lane.b32.xlu0 %v4341, 80
      %v4677 = vpop.permute.xlu0 %4676
      %4678 = vrot.lane.b32.xlu0 %v4342, 80
      %v4679 = vpop.permute.xlu0 %4678
      %4680 = vrot.lane.b32.xlu0 %v4343, 80
      %v4681 = vpop.permute.xlu0 %4680
      %4682 = vrot.lane.b32.xlu0 %v4344, 80
      %v4683 = vpop.permute.xlu0 %4682
      %4684 = vrot.lane.b32.xlu0 %v4345, 80
      %v4685 = vpop.permute.xlu0 %4684
      %4718 = vrot.lane.b32.xlu0 %v4348, 96
      %v4719 = vpop.permute.xlu0 %4718
      %4720 = vrot.lane.b32.xlu0 %v4349, 96
      %v4721 = vpop.permute.xlu0 %4720
      %4722 = vrot.lane.b32.xlu0 %v4350, 96
      %v4723 = vpop.permute.xlu0 %4722
      %4724 = vrot.lane.b32.xlu0 %v4351, 96
      %v4725 = vpop.permute.xlu0 %4724
      %4726 = vrot.lane.b32.xlu0 %v4352, 96
      %v4727 = vpop.permute.xlu0 %4726
      %4728 = vrot.lane.b32.xlu0 %v4353, 96
      %v4729 = vpop.permute.xlu0 %4728
      %4730 = vrot.lane.b32.xlu0 %v4354, 96
      %v4731 = vpop.permute.xlu0 %4730
      %4732 = vrot.lane.b32.xlu0 %v4355, 96
      %v4733 = vpop.permute.xlu0 %4732
      %4734 = vrot.lane.b32.xlu0 %v4356, 96
      %v4735 = vpop.permute.xlu0 %4734
      %4736 = vrot.lane.b32.xlu0 %v4357, 96
      %v4737 = vpop.permute.xlu0 %4736
      %4738 = vrot.lane.b32.xlu0 %v4358, 96
      %v4739 = vpop.permute.xlu0 %4738
      %4740 = vrot.lane.b32.xlu0 %v4359, 96
      %v4741 = vpop.permute.xlu0 %4740
      %4742 = vrot.lane.b32.xlu0 %v4360, 96
      %v4743 = vpop.permute.xlu0 %4742
      %4744 = vrot.lane.b32.xlu0 %v4361, 96
      %v4745 = vpop.permute.xlu0 %4744
      %4746 = vrot.lane.b32.xlu0 %v4362, 96
      %v4747 = vpop.permute.xlu0 %4746
      %4748 = vrot.lane.b32.xlu0 %v4363, 96
      %v4749 = vpop.permute.xlu0 %4748
      %4782 = vrot.lane.b32.xlu0 %v4366, 112
      %v4783 = vpop.permute.xlu0 %4782
      %4784 = vrot.lane.b32.xlu0 %v4367, 112
      %v4785 = vpop.permute.xlu0 %4784
      %4786 = vrot.lane.b32.xlu0 %v4368, 112
      %v4787 = vpop.permute.xlu0 %4786
      %4788 = vrot.lane.b32.xlu0 %v4369, 112
      %v4789 = vpop.permute.xlu0 %4788
      %4790 = vrot.lane.b32.xlu0 %v4370, 112
      %v4791 = vpop.permute.xlu0 %4790
      %4792 = vrot.lane.b32.xlu0 %v4371, 112
      %v4793 = vpop.permute.xlu0 %4792
      %4794 = vrot.lane.b32.xlu0 %v4372, 112
      %v4795 = vpop.permute.xlu0 %4794
      %4796 = vrot.lane.b32.xlu0 %v4373, 112
      %v4797 = vpop.permute.xlu0 %4796
      %4798 = vrot.lane.b32.xlu0 %v4374, 112
      %v4799 = vpop.permute.xlu0 %4798
      %4800 = vrot.lane.b32.xlu0 %v4375, 112
      %v4801 = vpop.permute.xlu0 %4800
      %4802 = vrot.lane.b32.xlu0 %v4376, 112
      %v4803 = vpop.permute.xlu0 %4802
      %4804 = vrot.lane.b32.xlu0 %v4377, 112
      %v4805 = vpop.permute.xlu0 %4804
      %4806 = vrot.lane.b32.xlu0 %v4378, 112
      %v4807 = vpop.permute.xlu0 %4806
      %4808 = vrot.lane.b32.xlu0 %v4379, 112
      %v4809 = vpop.permute.xlu0 %4808
      %4810 = vrot.lane.b32.xlu0 %v4380, 112
      %v4811 = vpop.permute.xlu0 %4810
      %4812 = vrot.lane.b32.xlu0 %v4381, 112
      %v4813 = vpop.permute.xlu0 %4812
      %vm4830 = vcmask 130048
      %v4831 = vsel %vm4830, %v4240, %v4399
      %v4832 = vsel %vm4830, %v4241, %v4401
      %v4833 = vsel %vm4830, %v4242, %v4403
      %v4834 = vsel %vm4830, %v4243, %v4405
      %v4835 = vsel %vm4830, %v4244, %v4407
      %v4836 = vsel %vm4830, %v4245, %v4409
      %v4837 = vsel %vm4830, %v4246, %v4411
      %v4838 = vsel %vm4830, %v4247, %v4413
      %v4839 = vsel %vm4830, %v4248, %v4415
      %v4840 = vsel %vm4830, %v4249, %v4417
      %v4841 = vsel %vm4830, %v4250, %v4419
      %v4842 = vsel %vm4830, %v4251, %v4421
      %v4843 = vsel %vm4830, %v4252, %v4423
      %v4844 = vsel %vm4830, %v4253, %v4425
      %v4845 = vsel %vm4830, %v4254, %v4427
      %v4846 = vsel %vm4830, %v4255, %v4429
      %vm4847 = vcmask 261120
      %v4848 = vsel %vm4847, %v4831, %v4463
      %v4849 = vsel %vm4847, %v4832, %v4465
      %v4850 = vsel %vm4847, %v4833, %v4467
      %v4851 = vsel %vm4847, %v4834, %v4469
      %v4852 = vsel %vm4847, %v4835, %v4471
      %v4853 = vsel %vm4847, %v4836, %v4473
      %v4854 = vsel %vm4847, %v4837, %v4475
      %v4855 = vsel %vm4847, %v4838, %v4477
      %v4856 = vsel %vm4847, %v4839, %v4479
      %v4857 = vsel %vm4847, %v4840, %v4481
      %v4858 = vsel %vm4847, %v4841, %v4483
      %v4859 = vsel %vm4847, %v4842, %v4485
      %v4860 = vsel %vm4847, %v4843, %v4487
      %v4861 = vsel %vm4847, %v4844, %v4489
      %v4862 = vsel %vm4847, %v4845, %v4491
      %v4863 = vsel %vm4847, %v4846, %v4493
      %vm4864 = vcmask 392192
      %v4865 = vsel %vm4864, %v4848, %v4527
      %v4866 = vsel %vm4864, %v4849, %v4529
      %v4867 = vsel %vm4864, %v4850, %v4531
      %v4868 = vsel %vm4864, %v4851, %v4533
      %v4869 = vsel %vm4864, %v4852, %v4535
      %v4870 = vsel %vm4864, %v4853, %v4537
      %v4871 = vsel %vm4864, %v4854, %v4539
      %v4872 = vsel %vm4864, %v4855, %v4541
      %v4873 = vsel %vm4864, %v4856, %v4543
      %v4874 = vsel %vm4864, %v4857, %v4545
      %v4875 = vsel %vm4864, %v4858, %v4547
      %v4876 = vsel %vm4864, %v4859, %v4549
      %v4877 = vsel %vm4864, %v4860, %v4551
      %v4878 = vsel %vm4864, %v4861, %v4553
      %v4879 = vsel %vm4864, %v4862, %v4555
      %v4880 = vsel %vm4864, %v4863, %v4557
      %vm4881 = vcmask 523264
      %v4882 = vsel %vm4881, %v4865, %v4591
      %v4883 = vsel %vm4881, %v4866, %v4593
      %v4884 = vsel %vm4881, %v4867, %v4595
      %v4885 = vsel %vm4881, %v4868, %v4597
      %v4886 = vsel %vm4881, %v4869, %v4599
      %v4887 = vsel %vm4881, %v4870, %v4601
      %v4888 = vsel %vm4881, %v4871, %v4603
      %v4889 = vsel %vm4881, %v4872, %v4605
      %v4890 = vsel %vm4881, %v4873, %v4607
      %v4891 = vsel %vm4881, %v4874, %v4609
      %v4892 = vsel %vm4881, %v4875, %v4611
      %v4893 = vsel %vm4881, %v4876, %v4613
      %v4894 = vsel %vm4881, %v4877, %v4615
      %v4895 = vsel %vm4881, %v4878, %v4617
      %v4896 = vsel %vm4881, %v4879, %v4619
      %v4897 = vsel %vm4881, %v4880, %v4621
      %vm4898 = vcmask 654336
      %v4899 = vsel %vm4898, %v4882, %v4655
      %v4900 = vsel %vm4898, %v4883, %v4657
      %v4901 = vsel %vm4898, %v4884, %v4659
      %v4902 = vsel %vm4898, %v4885, %v4661
      %v4903 = vsel %vm4898, %v4886, %v4663
      %v4904 = vsel %vm4898, %v4887, %v4665
      %v4905 = vsel %vm4898, %v4888, %v4667
      %v4906 = vsel %vm4898, %v4889, %v4669
      %v4907 = vsel %vm4898, %v4890, %v4671
      %v4908 = vsel %vm4898, %v4891, %v4673
      %v4909 = vsel %vm4898, %v4892, %v4675
      %v4910 = vsel %vm4898, %v4893, %v4677
      %v4911 = vsel %vm4898, %v4894, %v4679
      %v4912 = vsel %vm4898, %v4895, %v4681
      %v4913 = vsel %vm4898, %v4896, %v4683
      %v4914 = vsel %vm4898, %v4897, %v4685
      %vm4915 = vcmask 785408
      %v4916 = vsel %vm4915, %v4899, %v4719
      %v4917 = vsel %vm4915, %v4900, %v4721
      %v4918 = vsel %vm4915, %v4901, %v4723
      %v4919 = vsel %vm4915, %v4902, %v4725
      %v4920 = vsel %vm4915, %v4903, %v4727
      %v4921 = vsel %vm4915, %v4904, %v4729
      %v4922 = vsel %vm4915, %v4905, %v4731
      %v4923 = vsel %vm4915, %v4906, %v4733
      %v4924 = vsel %vm4915, %v4907, %v4735
      %v4925 = vsel %vm4915, %v4908, %v4737
      %v4926 = vsel %vm4915, %v4909, %v4739
      %v4927 = vsel %vm4915, %v4910, %v4741
      %v4928 = vsel %vm4915, %v4911, %v4743
      %v4929 = vsel %vm4915, %v4912, %v4745
      %v4930 = vsel %vm4915, %v4913, %v4747
      %v4931 = vsel %vm4915, %v4914, %v4749
      %vm4932 = vcmask 916480
      %v4933 = vsel %vm4932, %v4916, %v4783
      %v4934 = vsel %vm4932, %v4917, %v4785
      %v4935 = vsel %vm4932, %v4918, %v4787
      %v4936 = vsel %vm4932, %v4919, %v4789
      %v4937 = vsel %vm4932, %v4920, %v4791
      %v4938 = vsel %vm4932, %v4921, %v4793
      %v4939 = vsel %vm4932, %v4922, %v4795
      %v4940 = vsel %vm4932, %v4923, %v4797
      %v4941 = vsel %vm4932, %v4924, %v4799
      %v4942 = vsel %vm4932, %v4925, %v4801
      %v4943 = vsel %vm4932, %v4926, %v4803
      %v4944 = vsel %vm4932, %v4927, %v4805
      %v4945 = vsel %vm4932, %v4928, %v4807
      %v4946 = vsel %vm4932, %v4929, %v4809
      %v4947 = vsel %vm4932, %v4930, %v4811
      %v4948 = vsel %vm4932, %v4931, %v4813
      %v4949 = vpack.c.bf16 %v4934, %v4933
      %v4950 = vpack.c.bf16 %v4936, %v4935
      %v4951 = vpack.c.bf16 %v4938, %v4937
      %v4952 = vpack.c.bf16 %v4940, %v4939
      %v4953 = vpack.c.bf16 %v4942, %v4941
      %v4954 = vpack.c.bf16 %v4944, %v4943
      %v4955 = vpack.c.bf16 %v4946, %v4945
      %v4956 = vpack.c.bf16 %v4948, %v4947
      %v4957 = vld [vmem:[%s5] sm:$0xf]
      %v4958 = vld [vmem:[%s5 + $0x4] sm:$0xf]
      %v4959 = vld [vmem:[%s5 + $0x8] sm:$0xf]
      %v4960 = vld [vmem:[%s5 + $0xc] sm:$0xf]
      %v4961 = vld [vmem:[%s5 + $0x10] sm:$0xf]
      %v4962 = vld [vmem:[%s5 + $0x14] sm:$0xf]
      %v4963 = vld [vmem:[%s5 + $0x18] sm:$0xf]
      %v4964 = vld [vmem:[%s5 + $0x1c] sm:$0xf]
      %v4965 = vld [vmem:[%s5 + $0x20] sm:$0xf]
      %v4966 = vld [vmem:[%s5 + $0x24] sm:$0xf]
      %v4967 = vld [vmem:[%s5 + $0x28] sm:$0xf]
      %v4968 = vld [vmem:[%s5 + $0x2c] sm:$0xf]
      %v4969 = vld [vmem:[%s5 + $0x30] sm:$0xf]
      %v4970 = vld [vmem:[%s5 + $0x34] sm:$0xf]
      %v4971 = vld [vmem:[%s5 + $0x38] sm:$0xf]
      %v4972 = vld [vmem:[%s5 + $0x3c] sm:$0xf]
      %s4973 = sadd.s32 %s4238, 26
      %s4974 = scalar_lea.vmem [#allocation2], %s4973
      %v4975 = vld [vmem:[%s4974] sm:$0xff]
      %v4976 = vld [vmem:[%s4974 + $0x8] sm:$0xff]
      %v4977 = vld [vmem:[%s4974 + $0x10] sm:$0xff]
      %v4978 = vld [vmem:[%s4974 + $0x18] sm:$0xff]
      %v4979 = vld [vmem:[%s4974 + $0x20] sm:$0xff]
      %v4980 = vld [vmem:[%s4974 + $0x28] sm:$0xff]
      %v4981 = vld [vmem:[%s4974 + $0x30] sm:$0xff]
      %v4982 = vld [vmem:[%s4974 + $0x38] sm:$0xff]
      %v4983 = vld [vmem:[%s4974 + $0x40] sm:$0xff]
      %v4984 = vld [vmem:[%s4974 + $0x48] sm:$0xff]
      %v4985 = vld [vmem:[%s4974 + $0x50] sm:$0xff]
      %v4986 = vld [vmem:[%s4974 + $0x58] sm:$0xff]
      %v4987 = vld [vmem:[%s4974 + $0x60] sm:$0xff]
      %v4988 = vld [vmem:[%s4974 + $0x68] sm:$0xff]
      %v4989 = vld [vmem:[%s4974 + $0x70] sm:$0xff]
      %v4990 = vld [vmem:[%s4974 + $0x78] sm:$0xff]
      %s4991 = sadd.s32 %s4238, 144
      %s4992 = scalar_lea.vmem [#allocation2], %s4991
      %v4993 = vld [vmem:[%s4992] sm:$0xff]
      %v4994 = vld [vmem:[%s4992 + $0x8] sm:$0xff]
      %v4995 = vld [vmem:[%s4992 + $0x10] sm:$0xff]
      %v4996 = vld [vmem:[%s4992 + $0x18] sm:$0xff]
      %v4997 = vld [vmem:[%s4992 + $0x20] sm:$0xff]
      %v4998 = vld [vmem:[%s4992 + $0x28] sm:$0xff]
      %v4999 = vld [vmem:[%s4992 + $0x30] sm:$0xff]
      %v5000 = vld [vmem:[%s4992 + $0x38] sm:$0xff]
      %v5001 = vld [vmem:[%s4992 + $0x40] sm:$0xff]
      %v5002 = vld [vmem:[%s4992 + $0x48] sm:$0xff]
      %v5003 = vld [vmem:[%s4992 + $0x50] sm:$0xff]
      %v5004 = vld [vmem:[%s4992 + $0x58] sm:$0xff]
      %v5005 = vld [vmem:[%s4992 + $0x60] sm:$0xff]
      %v5006 = vld [vmem:[%s4992 + $0x68] sm:$0xff]
      %v5007 = vld [vmem:[%s4992 + $0x70] sm:$0xff]
      %v5008 = vld [vmem:[%s4992 + $0x78] sm:$0xff]
      %s5009 = sadd.s32 %s4238, 145
      %s5010 = scalar_lea.vmem [#allocation2], %s5009
      %v5011 = vld [vmem:[%s5010] sm:$0xff]
      %v5012 = vld [vmem:[%s5010 + $0x8] sm:$0xff]
      %v5013 = vld [vmem:[%s5010 + $0x10] sm:$0xff]
      %v5014 = vld [vmem:[%s5010 + $0x18] sm:$0xff]
      %v5015 = vld [vmem:[%s5010 + $0x20] sm:$0xff]
      %v5016 = vld [vmem:[%s5010 + $0x28] sm:$0xff]
      %v5017 = vld [vmem:[%s5010 + $0x30] sm:$0xff]
      %v5018 = vld [vmem:[%s5010 + $0x38] sm:$0xff]
      %v5019 = vld [vmem:[%s5010 + $0x40] sm:$0xff]
      %v5020 = vld [vmem:[%s5010 + $0x48] sm:$0xff]
      %v5021 = vld [vmem:[%s5010 + $0x50] sm:$0xff]
      %v5022 = vld [vmem:[%s5010 + $0x58] sm:$0xff]
      %v5023 = vld [vmem:[%s5010 + $0x60] sm:$0xff]
      %v5024 = vld [vmem:[%s5010 + $0x68] sm:$0xff]
      %v5025 = vld [vmem:[%s5010 + $0x70] sm:$0xff]
      %v5026 = vld [vmem:[%s5010 + $0x78] sm:$0xff]
      %s5027 = sadd.s32 %s4238, 146
      %s5028 = scalar_lea.vmem [#allocation2], %s5027
      %v5029 = vld [vmem:[%s5028] sm:$0xff]
      %v5030 = vld [vmem:[%s5028 + $0x8] sm:$0xff]
      %v5031 = vld [vmem:[%s5028 + $0x10] sm:$0xff]
      %v5032 = vld [vmem:[%s5028 + $0x18] sm:$0xff]
      %v5033 = vld [vmem:[%s5028 + $0x20] sm:$0xff]
      %v5034 = vld [vmem:[%s5028 + $0x28] sm:$0xff]
      %v5035 = vld [vmem:[%s5028 + $0x30] sm:$0xff]
      %v5036 = vld [vmem:[%s5028 + $0x38] sm:$0xff]
      %v5037 = vld [vmem:[%s5028 + $0x40] sm:$0xff]
      %v5038 = vld [vmem:[%s5028 + $0x48] sm:$0xff]
      %v5039 = vld [vmem:[%s5028 + $0x50] sm:$0xff]
      %v5040 = vld [vmem:[%s5028 + $0x58] sm:$0xff]
      %v5041 = vld [vmem:[%s5028 + $0x60] sm:$0xff]
      %v5042 = vld [vmem:[%s5028 + $0x68] sm:$0xff]
      %v5043 = vld [vmem:[%s5028 + $0x70] sm:$0xff]
      %v5044 = vld [vmem:[%s5028 + $0x78] sm:$0xff]
      %s5045 = sadd.s32 %s4238, 156
      %s5046 = scalar_lea.vmem [#allocation2], %s5045
      %v5047 = vld [vmem:[%s5046] sm:$0xff]
      %v5048 = vld [vmem:[%s5046 + $0x8] sm:$0xff]
      %v5049 = vld [vmem:[%s5046 + $0x10] sm:$0xff]
      %v5050 = vld [vmem:[%s5046 + $0x18] sm:$0xff]
      %v5051 = vld [vmem:[%s5046 + $0x20] sm:$0xff]
      %v5052 = vld [vmem:[%s5046 + $0x28] sm:$0xff]
      %v5053 = vld [vmem:[%s5046 + $0x30] sm:$0xff]
      %v5054 = vld [vmem:[%s5046 + $0x38] sm:$0xff]
      %v5055 = vld [vmem:[%s5046 + $0x40] sm:$0xff]
      %v5056 = vld [vmem:[%s5046 + $0x48] sm:$0xff]
      %v5057 = vld [vmem:[%s5046 + $0x50] sm:$0xff]
      %v5058 = vld [vmem:[%s5046 + $0x58] sm:$0xff]
      %v5059 = vld [vmem:[%s5046 + $0x60] sm:$0xff]
      %v5060 = vld [vmem:[%s5046 + $0x68] sm:$0xff]
      %v5061 = vld [vmem:[%s5046 + $0x70] sm:$0xff]
      %v5062 = vld [vmem:[%s5046 + $0x78] sm:$0xff]
      %s5063 = sadd.s32 %s4238, 157
      %s5064 = scalar_lea.vmem [#allocation2], %s5063
      %v5065 = vld [vmem:[%s5064] sm:$0xff]
      %v5066 = vld [vmem:[%s5064 + $0x8] sm:$0xff]
      %v5067 = vld [vmem:[%s5064 + $0x10] sm:$0xff]
      %v5068 = vld [vmem:[%s5064 + $0x18] sm:$0xff]
      %v5069 = vld [vmem:[%s5064 + $0x20] sm:$0xff]
      %v5070 = vld [vmem:[%s5064 + $0x28] sm:$0xff]
      %v5071 = vld [vmem:[%s5064 + $0x30] sm:$0xff]
      %v5072 = vld [vmem:[%s5064 + $0x38] sm:$0xff]
      %v5073 = vld [vmem:[%s5064 + $0x40] sm:$0xff]
      %v5074 = vld [vmem:[%s5064 + $0x48] sm:$0xff]
      %v5075 = vld [vmem:[%s5064 + $0x50] sm:$0xff]
      %v5076 = vld [vmem:[%s5064 + $0x58] sm:$0xff]
      %v5077 = vld [vmem:[%s5064 + $0x60] sm:$0xff]
      %v5078 = vld [vmem:[%s5064 + $0x68] sm:$0xff]
      %v5079 = vld [vmem:[%s5064 + $0x70] sm:$0xff]
      %v5080 = vld [vmem:[%s5064 + $0x78] sm:$0xff]
      %s5081 = sadd.s32 %s4238, 158
      %s5082 = scalar_lea.vmem [#allocation2], %s5081
      %v5083 = vld [vmem:[%s5082] sm:$0xff]
      %v5084 = vld [vmem:[%s5082 + $0x8] sm:$0xff]
      %v5085 = vld [vmem:[%s5082 + $0x10] sm:$0xff]
      %v5086 = vld [vmem:[%s5082 + $0x18] sm:$0xff]
      %v5087 = vld [vmem:[%s5082 + $0x20] sm:$0xff]
      %v5088 = vld [vmem:[%s5082 + $0x28] sm:$0xff]
      %v5089 = vld [vmem:[%s5082 + $0x30] sm:$0xff]
      %v5090 = vld [vmem:[%s5082 + $0x38] sm:$0xff]
      %v5091 = vld [vmem:[%s5082 + $0x40] sm:$0xff]
      %v5092 = vld [vmem:[%s5082 + $0x48] sm:$0xff]
      %v5093 = vld [vmem:[%s5082 + $0x50] sm:$0xff]
      %v5094 = vld [vmem:[%s5082 + $0x58] sm:$0xff]
      %v5095 = vld [vmem:[%s5082 + $0x60] sm:$0xff]
      %v5096 = vld [vmem:[%s5082 + $0x68] sm:$0xff]
      %v5097 = vld [vmem:[%s5082 + $0x70] sm:$0xff]
      %v5098 = vld [vmem:[%s5082 + $0x78] sm:$0xff]
      %s5099 = sadd.s32 %s4238, 168
      %s5100 = scalar_lea.vmem [#allocation2], %s5099
      %v5101 = vld [vmem:[%s5100] sm:$0xff]
      %v5102 = vld [vmem:[%s5100 + $0x8] sm:$0xff]
      %v5103 = vld [vmem:[%s5100 + $0x10] sm:$0xff]
      %v5104 = vld [vmem:[%s5100 + $0x18] sm:$0xff]
      %v5105 = vld [vmem:[%s5100 + $0x20] sm:$0xff]
      %v5106 = vld [vmem:[%s5100 + $0x28] sm:$0xff]
      %v5107 = vld [vmem:[%s5100 + $0x30] sm:$0xff]
      %v5108 = vld [vmem:[%s5100 + $0x38] sm:$0xff]
      %v5109 = vld [vmem:[%s5100 + $0x40] sm:$0xff]
      %v5110 = vld [vmem:[%s5100 + $0x48] sm:$0xff]
      %v5111 = vld [vmem:[%s5100 + $0x50] sm:$0xff]
      %v5112 = vld [vmem:[%s5100 + $0x58] sm:$0xff]
      %v5113 = vld [vmem:[%s5100 + $0x60] sm:$0xff]
      %v5114 = vld [vmem:[%s5100 + $0x68] sm:$0xff]
      %v5115 = vld [vmem:[%s5100 + $0x70] sm:$0xff]
      %v5116 = vld [vmem:[%s5100 + $0x78] sm:$0xff]
      %5133 = vrot.lane.b32.xlu0 %v4993, 16
      %v5134 = vpop.permute.xlu0 %5133
      %5135 = vrot.lane.b32.xlu0 %v4994, 16
      %v5136 = vpop.permute.xlu0 %5135
      %5137 = vrot.lane.b32.xlu0 %v4995, 16
      %v5138 = vpop.permute.xlu0 %5137
      %5139 = vrot.lane.b32.xlu0 %v4996, 16
      %v5140 = vpop.permute.xlu0 %5139
      %5141 = vrot.lane.b32.xlu0 %v4997, 16
      %v5142 = vpop.permute.xlu0 %5141
      %5143 = vrot.lane.b32.xlu0 %v4998, 16
      %v5144 = vpop.permute.xlu0 %5143
      %5145 = vrot.lane.b32.xlu0 %v4999, 16
      %v5146 = vpop.permute.xlu0 %5145
      %5147 = vrot.lane.b32.xlu0 %v5000, 16
      %v5148 = vpop.permute.xlu0 %5147
      %5149 = vrot.lane.b32.xlu0 %v5001, 16
      %v5150 = vpop.permute.xlu0 %5149
      %5151 = vrot.lane.b32.xlu0 %v5002, 16
      %v5152 = vpop.permute.xlu0 %5151
      %5153 = vrot.lane.b32.xlu0 %v5003, 16
      %v5154 = vpop.permute.xlu0 %5153
      %5155 = vrot.lane.b32.xlu0 %v5004, 16
      %v5156 = vpop.permute.xlu0 %5155
      %5157 = vrot.lane.b32.xlu0 %v5005, 16
      %v5158 = vpop.permute.xlu0 %5157
      %5159 = vrot.lane.b32.xlu0 %v5006, 16
      %v5160 = vpop.permute.xlu0 %5159
      %5161 = vrot.lane.b32.xlu0 %v5007, 16
      %v5162 = vpop.permute.xlu0 %5161
      %5163 = vrot.lane.b32.xlu0 %v5008, 16
      %v5164 = vpop.permute.xlu0 %5163
      %5197 = vrot.lane.b32.xlu0 %v5011, 32
      %v5198 = vpop.permute.xlu0 %5197
      %5199 = vrot.lane.b32.xlu0 %v5012, 32
      %v5200 = vpop.permute.xlu0 %5199
      %5201 = vrot.lane.b32.xlu0 %v5013, 32
      %v5202 = vpop.permute.xlu0 %5201
      %5203 = vrot.lane.b32.xlu0 %v5014, 32
      %v5204 = vpop.permute.xlu0 %5203
      %5205 = vrot.lane.b32.xlu0 %v5015, 32
      %v5206 = vpop.permute.xlu0 %5205
      %5207 = vrot.lane.b32.xlu0 %v5016, 32
      %v5208 = vpop.permute.xlu0 %5207
      %5209 = vrot.lane.b32.xlu0 %v5017, 32
      %v5210 = vpop.permute.xlu0 %5209
      %5211 = vrot.lane.b32.xlu0 %v5018, 32
      %v5212 = vpop.permute.xlu0 %5211
      %5213 = vrot.lane.b32.xlu0 %v5019, 32
      %v5214 = vpop.permute.xlu0 %5213
      %5215 = vrot.lane.b32.xlu0 %v5020, 32
      %v5216 = vpop.permute.xlu0 %5215
      %5217 = vrot.lane.b32.xlu0 %v5021, 32
      %v5218 = vpop.permute.xlu0 %5217
      %5219 = vrot.lane.b32.xlu0 %v5022, 32
      %v5220 = vpop.permute.xlu0 %5219
      %5221 = vrot.lane.b32.xlu0 %v5023, 32
      %v5222 = vpop.permute.xlu0 %5221
      %5223 = vrot.lane.b32.xlu0 %v5024, 32
      %v5224 = vpop.permute.xlu0 %5223
      %5225 = vrot.lane.b32.xlu0 %v5025, 32
      %v5226 = vpop.permute.xlu0 %5225
      %5227 = vrot.lane.b32.xlu0 %v5026, 32
      %v5228 = vpop.permute.xlu0 %5227
      %5261 = vrot.lane.b32.xlu0 %v5029, 48
      %v5262 = vpop.permute.xlu0 %5261
      %5263 = vrot.lane.b32.xlu0 %v5030, 48
      %v5264 = vpop.permute.xlu0 %5263
      %5265 = vrot.lane.b32.xlu0 %v5031, 48
      %v5266 = vpop.permute.xlu0 %5265
      %5267 = vrot.lane.b32.xlu0 %v5032, 48
      %v5268 = vpop.permute.xlu0 %5267
      %5269 = vrot.lane.b32.xlu0 %v5033, 48
      %v5270 = vpop.permute.xlu0 %5269
      %5271 = vrot.lane.b32.xlu0 %v5034, 48
      %v5272 = vpop.permute.xlu0 %5271
      %5273 = vrot.lane.b32.xlu0 %v5035, 48
      %v5274 = vpop.permute.xlu0 %5273
      %5275 = vrot.lane.b32.xlu0 %v5036, 48
      %v5276 = vpop.permute.xlu0 %5275
      %5277 = vrot.lane.b32.xlu0 %v5037, 48
      %v5278 = vpop.permute.xlu0 %5277
      %5279 = vrot.lane.b32.xlu0 %v5038, 48
      %v5280 = vpop.permute.xlu0 %5279
      %5281 = vrot.lane.b32.xlu0 %v5039, 48
      %v5282 = vpop.permute.xlu0 %5281
      %5283 = vrot.lane.b32.xlu0 %v5040, 48
      %v5284 = vpop.permute.xlu0 %5283
      %5285 = vrot.lane.b32.xlu0 %v5041, 48
      %v5286 = vpop.permute.xlu0 %5285
      %5287 = vrot.lane.b32.xlu0 %v5042, 48
      %v5288 = vpop.permute.xlu0 %5287
      %5289 = vrot.lane.b32.xlu0 %v5043, 48
      %v5290 = vpop.permute.xlu0 %5289
      %5291 = vrot.lane.b32.xlu0 %v5044, 48
      %v5292 = vpop.permute.xlu0 %5291
      %5325 = vrot.lane.b32.xlu0 %v5047, 64
      %v5326 = vpop.permute.xlu0 %5325
      %5327 = vrot.lane.b32.xlu0 %v5048, 64
      %v5328 = vpop.permute.xlu0 %5327
      %5329 = vrot.lane.b32.xlu0 %v5049, 64
      %v5330 = vpop.permute.xlu0 %5329
      %5331 = vrot.lane.b32.xlu0 %v5050, 64
      %v5332 = vpop.permute.xlu0 %5331
      %5333 = vrot.lane.b32.xlu0 %v5051, 64
      %v5334 = vpop.permute.xlu0 %5333
      %5335 = vrot.lane.b32.xlu0 %v5052, 64
      %v5336 = vpop.permute.xlu0 %5335
      %5337 = vrot.lane.b32.xlu0 %v5053, 64
      %v5338 = vpop.permute.xlu0 %5337
      %5339 = vrot.lane.b32.xlu0 %v5054, 64
      %v5340 = vpop.permute.xlu0 %5339
      %5341 = vrot.lane.b32.xlu0 %v5055, 64
      %v5342 = vpop.permute.xlu0 %5341
      %5343 = vrot.lane.b32.xlu0 %v5056, 64
      %v5344 = vpop.permute.xlu0 %5343
      %5345 = vrot.lane.b32.xlu0 %v5057, 64
      %v5346 = vpop.permute.xlu0 %5345
      %5347 = vrot.lane.b32.xlu0 %v5058, 64
      %v5348 = vpop.permute.xlu0 %5347
      %5349 = vrot.lane.b32.xlu0 %v5059, 64
      %v5350 = vpop.permute.xlu0 %5349
      %5351 = vrot.lane.b32.xlu0 %v5060, 64
      %v5352 = vpop.permute.xlu0 %5351
      %5353 = vrot.lane.b32.xlu0 %v5061, 64
      %v5354 = vpop.permute.xlu0 %5353
      %5355 = vrot.lane.b32.xlu0 %v5062, 64
      %v5356 = vpop.permute.xlu0 %5355
      %5389 = vrot.lane.b32.xlu0 %v5065, 80
      %v5390 = vpop.permute.xlu0 %5389
      %5391 = vrot.lane.b32.xlu0 %v5066, 80
      %v5392 = vpop.permute.xlu0 %5391
      %5393 = vrot.lane.b32.xlu0 %v5067, 80
      %v5394 = vpop.permute.xlu0 %5393
      %5395 = vrot.lane.b32.xlu0 %v5068, 80
      %v5396 = vpop.permute.xlu0 %5395
      %5397 = vrot.lane.b32.xlu0 %v5069, 80
      %v5398 = vpop.permute.xlu0 %5397
      %5399 = vrot.lane.b32.xlu0 %v5070, 80
      %v5400 = vpop.permute.xlu0 %5399
      %5401 = vrot.lane.b32.xlu0 %v5071, 80
      %v5402 = vpop.permute.xlu0 %5401
      %5403 = vrot.lane.b32.xlu0 %v5072, 80
      %v5404 = vpop.permute.xlu0 %5403
      %5405 = vrot.lane.b32.xlu0 %v5073, 80
      %v5406 = vpop.permute.xlu0 %5405
      %5407 = vrot.lane.b32.xlu0 %v5074, 80
      %v5408 = vpop.permute.xlu0 %5407
      %5409 = vrot.lane.b32.xlu0 %v5075, 80
      %v5410 = vpop.permute.xlu0 %5409
      %5411 = vrot.lane.b32.xlu0 %v5076, 80
      %v5412 = vpop.permute.xlu0 %5411
      %5413 = vrot.lane.b32.xlu0 %v5077, 80
      %v5414 = vpop.permute.xlu0 %5413
      %5415 = vrot.lane.b32.xlu0 %v5078, 80
      %v5416 = vpop.permute.xlu0 %5415
      %5417 = vrot.lane.b32.xlu0 %v5079, 80
      %v5418 = vpop.permute.xlu0 %5417
      %5419 = vrot.lane.b32.xlu0 %v5080, 80
      %v5420 = vpop.permute.xlu0 %5419
      %5453 = vrot.lane.b32.xlu0 %v5083, 96
      %v5454 = vpop.permute.xlu0 %5453
      %5455 = vrot.lane.b32.xlu0 %v5084, 96
      %v5456 = vpop.permute.xlu0 %5455
      %5457 = vrot.lane.b32.xlu0 %v5085, 96
      %v5458 = vpop.permute.xlu0 %5457
      %5459 = vrot.lane.b32.xlu0 %v5086, 96
      %v5460 = vpop.permute.xlu0 %5459
      %5461 = vrot.lane.b32.xlu0 %v5087, 96
      %v5462 = vpop.permute.xlu0 %5461
      %5463 = vrot.lane.b32.xlu0 %v5088, 96
      %v5464 = vpop.permute.xlu0 %5463
      %5465 = vrot.lane.b32.xlu0 %v5089, 96
      %v5466 = vpop.permute.xlu0 %5465
      %5467 = vrot.lane.b32.xlu0 %v5090, 96
      %v5468 = vpop.permute.xlu0 %5467
      %5469 = vrot.lane.b32.xlu0 %v5091, 96
      %v5470 = vpop.permute.xlu0 %5469
      %5471 = vrot.lane.b32.xlu0 %v5092, 96
      %v5472 = vpop.permute.xlu0 %5471
      %5473 = vrot.lane.b32.xlu0 %v5093, 96
      %v5474 = vpop.permute.xlu0 %5473
      %5475 = vrot.lane.b32.xlu0 %v5094, 96
      %v5476 = vpop.permute.xlu0 %5475
      %5477 = vrot.lane.b32.xlu0 %v5095, 96
      %v5478 = vpop.permute.xlu0 %5477
      %5479 = vrot.lane.b32.xlu0 %v5096, 96
      %v5480 = vpop.permute.xlu0 %5479
      %5481 = vrot.lane.b32.xlu0 %v5097, 96
      %v5482 = vpop.permute.xlu0 %5481
      %5483 = vrot.lane.b32.xlu0 %v5098, 96
      %v5484 = vpop.permute.xlu0 %5483
      %5517 = vrot.lane.b32.xlu0 %v5101, 112
      %v5518 = vpop.permute.xlu0 %5517
      %5519 = vrot.lane.b32.xlu0 %v5102, 112
      %v5520 = vpop.permute.xlu0 %5519
      %5521 = vrot.lane.b32.xlu0 %v5103, 112
      %v5522 = vpop.permute.xlu0 %5521
      %5523 = vrot.lane.b32.xlu0 %v5104, 112
      %v5524 = vpop.permute.xlu0 %5523
      %5525 = vrot.lane.b32.xlu0 %v5105, 112
      %v5526 = vpop.permute.xlu0 %5525
      %5527 = vrot.lane.b32.xlu0 %v5106, 112
      %v5528 = vpop.permute.xlu0 %5527
      %5529 = vrot.lane.b32.xlu0 %v5107, 112
      %v5530 = vpop.permute.xlu0 %5529
      %5531 = vrot.lane.b32.xlu0 %v5108, 112
      %v5532 = vpop.permute.xlu0 %5531
      %5533 = vrot.lane.b32.xlu0 %v5109, 112
      %v5534 = vpop.permute.xlu0 %5533
      %5535 = vrot.lane.b32.xlu0 %v5110, 112
      %v5536 = vpop.permute.xlu0 %5535
      %5537 = vrot.lane.b32.xlu0 %v5111, 112
      %v5538 = vpop.permute.xlu0 %5537
      %5539 = vrot.lane.b32.xlu0 %v5112, 112
      %v5540 = vpop.permute.xlu0 %5539
      %5541 = vrot.lane.b32.xlu0 %v5113, 112
      %v5542 = vpop.permute.xlu0 %5541
      %5543 = vrot.lane.b32.xlu0 %v5114, 112
      %v5544 = vpop.permute.xlu0 %5543
      %5545 = vrot.lane.b32.xlu0 %v5115, 112
      %v5546 = vpop.permute.xlu0 %5545
      %5547 = vrot.lane.b32.xlu0 %v5116, 112
      %v5548 = vpop.permute.xlu0 %5547
      %v5565 = vsel %vm4830, %v4975, %v5134
      %v5566 = vsel %vm4830, %v4976, %v5136
      %v5567 = vsel %vm4830, %v4977, %v5138
      %v5568 = vsel %vm4830, %v4978, %v5140
      %v5569 = vsel %vm4830, %v4979, %v5142
      %v5570 = vsel %vm4830, %v4980, %v5144
      %v5571 = vsel %vm4830, %v4981, %v5146
      %v5572 = vsel %vm4830, %v4982, %v5148
      %v5573 = vsel %vm4830, %v4983, %v5150
      %v5574 = vsel %vm4830, %v4984, %v5152
      %v5575 = vsel %vm4830, %v4985, %v5154
      %v5576 = vsel %vm4830, %v4986, %v5156
      %v5577 = vsel %vm4830, %v4987, %v5158
      %v5578 = vsel %vm4830, %v4988, %v5160
      %v5579 = vsel %vm4830, %v4989, %v5162
      %v5580 = vsel %vm4830, %v4990, %v5164
      %v5581 = vsel %vm4847, %v5565, %v5198
      %v5582 = vsel %vm4847, %v5566, %v5200
      %v5583 = vsel %vm4847, %v5567, %v5202
      %v5584 = vsel %vm4847, %v5568, %v5204
      %v5585 = vsel %vm4847, %v5569, %v5206
      %v5586 = vsel %vm4847, %v5570, %v5208
      %v5587 = vsel %vm4847, %v5571, %v5210
      %v5588 = vsel %vm4847, %v5572, %v5212
      %v5589 = vsel %vm4847, %v5573, %v5214
      %v5590 = vsel %vm4847, %v5574, %v5216
      %v5591 = vsel %vm4847, %v5575, %v5218
      %v5592 = vsel %vm4847, %v5576, %v5220
      %v5593 = vsel %vm4847, %v5577, %v5222
      %v5594 = vsel %vm4847, %v5578, %v5224
      %v5595 = vsel %vm4847, %v5579, %v5226
      %v5596 = vsel %vm4847, %v5580, %v5228
      %v5597 = vsel %vm4864, %v5581, %v5262
      %v5598 = vsel %vm4864, %v5582, %v5264
      %v5599 = vsel %vm4864, %v5583, %v5266
      %v5600 = vsel %vm4864, %v5584, %v5268
      %v5601 = vsel %vm4864, %v5585, %v5270
      %v5602 = vsel %vm4864, %v5586, %v5272
      %v5603 = vsel %vm4864, %v5587, %v5274
      %v5604 = vsel %vm4864, %v5588, %v5276
      %v5605 = vsel %vm4864, %v5589, %v5278
      %v5606 = vsel %vm4864, %v5590, %v5280
      %v5607 = vsel %vm4864, %v5591, %v5282
      %v5608 = vsel %vm4864, %v5592, %v5284
      %v5609 = vsel %vm4864, %v5593, %v5286
      %v5610 = vsel %vm4864, %v5594, %v5288
      %v5611 = vsel %vm4864, %v5595, %v5290
      %v5612 = vsel %vm4864, %v5596, %v5292
      %v5613 = vsel %vm4881, %v5597, %v5326
      %v5614 = vsel %vm4881, %v5598, %v5328
      %v5615 = vsel %vm4881, %v5599, %v5330
      %v5616 = vsel %vm4881, %v5600, %v5332
      %v5617 = vsel %vm4881, %v5601, %v5334
      %v5618 = vsel %vm4881, %v5602, %v5336
      %v5619 = vsel %vm4881, %v5603, %v5338
      %v5620 = vsel %vm4881, %v5604, %v5340
      %v5621 = vsel %vm4881, %v5605, %v5342
      %v5622 = vsel %vm4881, %v5606, %v5344
      %v5623 = vsel %vm4881, %v5607, %v5346
      %v5624 = vsel %vm4881, %v5608, %v5348
      %v5625 = vsel %vm4881, %v5609, %v5350
      %v5626 = vsel %vm4881, %v5610, %v5352
      %v5627 = vsel %vm4881, %v5611, %v5354
      %v5628 = vsel %vm4881, %v5612, %v5356
      %v5629 = vsel %vm4898, %v5613, %v5390
      %v5630 = vsel %vm4898, %v5614, %v5392
      %v5631 = vsel %vm4898, %v5615, %v5394
      %v5632 = vsel %vm4898, %v5616, %v5396
      %v5633 = vsel %vm4898, %v5617, %v5398
      %v5634 = vsel %vm4898, %v5618, %v5400
      %v5635 = vsel %vm4898, %v5619, %v5402
      %v5636 = vsel %vm4898, %v5620, %v5404
      %v5637 = vsel %vm4898, %v5621, %v5406
      %v5638 = vsel %vm4898, %v5622, %v5408
      %v5639 = vsel %vm4898, %v5623, %v5410
      %v5640 = vsel %vm4898, %v5624, %v5412
      %v5641 = vsel %vm4898, %v5625, %v5414
      %v5642 = vsel %vm4898, %v5626, %v5416
      %v5643 = vsel %vm4898, %v5627, %v5418
      %v5644 = vsel %vm4898, %v5628, %v5420
      %v5645 = vsel %vm4915, %v5629, %v5454
      %v5646 = vsel %vm4915, %v5630, %v5456
      %v5647 = vsel %vm4915, %v5631, %v5458
      %v5648 = vsel %vm4915, %v5632, %v5460
      %v5649 = vsel %vm4915, %v5633, %v5462
      %v5650 = vsel %vm4915, %v5634, %v5464
      %v5651 = vsel %vm4915, %v5635, %v5466
      %v5652 = vsel %vm4915, %v5636, %v5468
      %v5653 = vsel %vm4915, %v5637, %v5470
      %v5654 = vsel %vm4915, %v5638, %v5472
      %v5655 = vsel %vm4915, %v5639, %v5474
      %v5656 = vsel %vm4915, %v5640, %v5476
      %v5657 = vsel %vm4915, %v5641, %v5478
      %v5658 = vsel %vm4915, %v5642, %v5480
      %v5659 = vsel %vm4915, %v5643, %v5482
      %v5660 = vsel %vm4915, %v5644, %v5484
      %v5661 = vsel %vm4932, %v5645, %v5518
      %v5662 = vsel %vm4932, %v5646, %v5520
      %v5663 = vsel %vm4932, %v5647, %v5522
      %v5664 = vsel %vm4932, %v5648, %v5524
      %v5665 = vsel %vm4932, %v5649, %v5526
      %v5666 = vsel %vm4932, %v5650, %v5528
      %v5667 = vsel %vm4932, %v5651, %v5530
      %v5668 = vsel %vm4932, %v5652, %v5532
      %v5669 = vsel %vm4932, %v5653, %v5534
      %v5670 = vsel %vm4932, %v5654, %v5536
      %v5671 = vsel %vm4932, %v5655, %v5538
      %v5672 = vsel %vm4932, %v5656, %v5540
      %v5673 = vsel %vm4932, %v5657, %v5542
      %v5674 = vsel %vm4932, %v5658, %v5544
      %v5675 = vsel %vm4932, %v5659, %v5546
      %v5676 = vsel %vm4932, %v5660, %v5548
      %v5677 = vpack.c.bf16 %v5662, %v5661
      %v5678 = vpack.c.bf16 %v5664, %v5663
      %v5679 = vpack.c.bf16 %v5666, %v5665
      %v5680 = vpack.c.bf16 %v5668, %v5667
      %v5681 = vpack.c.bf16 %v5670, %v5669
      %v5682 = vpack.c.bf16 %v5672, %v5671
      %v5683 = vpack.c.bf16 %v5674, %v5673
      %v5684 = vpack.c.bf16 %v5676, %v5675
      %s5685 = scalar_lea.vmem %s5, 64
      %v5686 = vld [vmem:[%s5685] sm:$0xf]
      %v5687 = vld [vmem:[%s5685 + $0x4] sm:$0xf]
      %v5688 = vld [vmem:[%s5685 + $0x8] sm:$0xf]
      %v5689 = vld [vmem:[%s5685 + $0xc] sm:$0xf]
      %v5690 = vld [vmem:[%s5685 + $0x10] sm:$0xf]
      %v5691 = vld [vmem:[%s5685 + $0x14] sm:$0xf]
      %v5692 = vld [vmem:[%s5685 + $0x18] sm:$0xf]
      %v5693 = vld [vmem:[%s5685 + $0x1c] sm:$0xf]
      %v5694 = vld [vmem:[%s5685 + $0x20] sm:$0xf]
      %v5695 = vld [vmem:[%s5685 + $0x24] sm:$0xf]
      %v5696 = vld [vmem:[%s5685 + $0x28] sm:$0xf]
      %v5697 = vld [vmem:[%s5685 + $0x2c] sm:$0xf]
      %v5698 = vld [vmem:[%s5685 + $0x30] sm:$0xf]
      %v5699 = vld [vmem:[%s5685 + $0x34] sm:$0xf]
      %v5700 = vld [vmem:[%s5685 + $0x38] sm:$0xf]
      %v5701 = vld [vmem:[%s5685 + $0x3c] sm:$0xf]
      %v5718 = vunpack.c.l.b16 %v5686
      %v5719 = vunpack.c.l.b16 %v5687
      %v5720 = vunpack.c.l.b16 %v5688
      %v5721 = vunpack.c.l.b16 %v5689
      %v5722 = vunpack.c.l.b16 %v5690
      %v5723 = vunpack.c.l.b16 %v5691
      %v5724 = vunpack.c.l.b16 %v5692
      %v5725 = vunpack.c.l.b16 %v5693
      %v5726 = vunpack.c.l.b16 %v5694
      %v5727 = vunpack.c.l.b16 %v5695
      %v5728 = vunpack.c.l.b16 %v5696
      %v5729 = vunpack.c.l.b16 %v5697
      %v5730 = vunpack.c.l.b16 %v5698
      %v5731 = vunpack.c.l.b16 %v5699
      %v5732 = vunpack.c.l.b16 %v5700
      %v5733 = vunpack.c.l.b16 %v5701
      %v5734 = vpack.c.b16 %v5719, %v5718
      %v5735 = vpack.c.b16 %v5721, %v5720
      %v5736 = vpack.c.b16 %v5723, %v5722
      %v5737 = vpack.c.b16 %v5725, %v5724
      %v5738 = vpack.c.b16 %v5727, %v5726
      %v5739 = vpack.c.b16 %v5729, %v5728
      %v5740 = vpack.c.b16 %v5731, %v5730
      %v5741 = vpack.c.b16 %v5733, %v5732
      %5750 = vmatprep.subr.bf16.mxu0 0
      %5751 = vmatpush1.bf16.msra.mxu0 %v5734
      %5752 = vmatprep.subr.bf16.mxu0 0
      %5753 = vmatpush1.bf16.msra.mxu0 %v5735
      %5754 = vmatprep.subr.bf16.mxu0 0
      %5755 = vmatpush1.bf16.msra.mxu0 %v5736
      %5756 = vmatprep.subr.bf16.mxu0 0
      %5757 = vmatpush1.bf16.msra.mxu0 %v5737
      %5758 = vmatprep.subr.bf16.mxu0 0
      %5759 = vmatpush1.bf16.msra.mxu0 %v5738
      %5760 = vmatprep.subr.bf16.mxu0 0
      %5761 = vmatpush1.bf16.msra.mxu0 %v5739
      %5762 = vmatprep.subr.bf16.mxu0 0
      %5763 = vmatpush1.bf16.msra.mxu0 %v5740
      %5764 = vmatprep.subr.bf16.mxu0 0
      %5765 = vmatpush1.bf16.msra.mxu0 %v5741
      %5766 = vmatprep.subr.bf16.mxu0 0
      %5767 = vmatpush1.bf16.msra.mxu0 0
      %5768 = vmatprep.subr.bf16.mxu0 0
      %5769 = vmatpush1.bf16.msra.mxu0 0
      %5770 = vmatprep.subr.bf16.mxu0 0
      %5771 = vmatpush1.bf16.msra.mxu0 0
      %5772 = vmatprep.subr.bf16.mxu0 0
      %5773 = vmatpush1.bf16.msra.mxu0 0
      %5774 = vmatprep.subr.bf16.mxu0 0
      %5775 = vmatpush1.bf16.msra.mxu0 0
      %5776 = vmatprep.subr.bf16.mxu0 0
      %5777 = vmatpush1.bf16.msra.mxu0 0
      %5778 = vmatprep.subr.bf16.mxu0 0
      %5779 = vmatpush1.bf16.msra.mxu0 0
      %5780 = vmatprep.subr.bf16.mxu0 0
      %5781 = vmatpush1.bf16.msra.mxu0 0
      %5782 = vmatprep.mubr.bf16.mxu0 0
      %5783 = vmatmul.mubr.bf16.gmra.mrb[0].mxu0 %v5677
      %v5784 = vpop.f32.mrb[0].mxu0
      %v5785 = vadd.f32 0.0, %v5784
      %v5786 = vpop.f32.mrb[0].mxu0
      %v5787 = vpop.f32.mrb[0].mxu0
      %v5788 = vadd.f32 0.0, %v5787
      %v5789 = vpop.f32.mrb[0].mxu0
      %5790 = vmatprep.mubr.bf16.mxu0 0
      %5791 = vmatmul.mubr.bf16.gmra.mrb[0].mxu0 %v5678
      %v5792 = vpop.f32.mrb[0].mxu0
      %v5793 = vadd.f32 0.0, %v5792
      %v5794 = vpop.f32.mrb[0].mxu0
      %v5795 = vpop.f32.mrb[0].mxu0
      %v5796 = vadd.f32 0.0, %v5795
      %v5797 = vpop.f32.mrb[0].mxu0
      %5798 = vmatprep.mubr.bf16.mxu0 0
      %5799 = vmatmul.mubr.bf16.gmra.mrb[0].mxu0 %v5679
      %v5800 = vpop.f32.mrb[0].mxu0
      %v5801 = vadd.f32 0.0, %v5800
      %v5802 = vpop.f32.mrb[0].mxu0
      %v5803 = vpop.f32.mrb[0].mxu0
      %v5804 = vadd.f32 0.0, %v5803
      %v5805 = vpop.f32.mrb[0].mxu0
      %5806 = vmatprep.mubr.bf16.mxu0 0
      %5807 = vmatmul.mubr.bf16.gmra.mrb[0].mxu0 %v5680
      %v5808 = vpop.f32.mrb[0].mxu0
      %v5809 = vadd.f32 0.0, %v5808
      %v5810 = vpop.f32.mrb[0].mxu0
      %v5811 = vpop.f32.mrb[0].mxu0
      %v5812 = vadd.f32 0.0, %v5811
      %v5813 = vpop.f32.mrb[0].mxu0
      %5814 = vmatprep.mubr.bf16.mxu0 0
      %5815 = vmatmul.mubr.bf16.gmra.mrb[0].mxu0 %v5681
      %v5816 = vpop.f32.mrb[0].mxu0
      %v5817 = vadd.f32 0.0, %v5816
      %v5818 = vpop.f32.mrb[0].mxu0
      %v5819 = vpop.f32.mrb[0].mxu0
      %v5820 = vadd.f32 0.0, %v5819
      %v5821 = vpop.f32.mrb[0].mxu0
      %5822 = vmatprep.mubr.bf16.mxu0 0
      %5823 = vmatmul.mubr.bf16.gmra.mrb[0].mxu0 %v5682
      %v5824 = vpop.f32.mrb[0].mxu0
      %v5825 = vadd.f32 0.0, %v5824
      %v5826 = vpop.f32.mrb[0].mxu0
      %v5827 = vpop.f32.mrb[0].mxu0
      %v5828 = vadd.f32 0.0, %v5827
      %v5829 = vpop.f32.mrb[0].mxu0
      %5830 = vmatprep.mubr.bf16.mxu0 0
      %5831 = vmatmul.mubr.bf16.gmra.mrb[0].mxu0 %v5683
      %v5832 = vpop.f32.mrb[0].mxu0
      %v5833 = vadd.f32 0.0, %v5832
      %v5834 = vpop.f32.mrb[0].mxu0
      %v5835 = vpop.f32.mrb[0].mxu0
      %v5836 = vadd.f32 0.0, %v5835
      %v5837 = vpop.f32.mrb[0].mxu0
      %5838 = vmatprep.mubr.bf16.mxu0 0
      %5839 = vmatmul.mubr.bf16.gmra.mrb[0].mxu0 %v5684
      %v5840 = vpop.f32.mrb[0].mxu0
      %v5841 = vadd.f32 0.0, %v5840
      %v5842 = vpop.f32.mrb[0].mxu0
      %v5843 = vpop.f32.mrb[0].mxu0
      %v5844 = vadd.f32 0.0, %v5843
      %v5845 = vpop.f32.mrb[0].mxu0
      %5846 = vdwg.mxu0
      %v5863 = vunpack.c.l.b16 %v4957
      %v5864 = vunpack.c.l.b16 %v4958
      %v5865 = vunpack.c.l.b16 %v4959
      %v5866 = vunpack.c.l.b16 %v4960
      %v5867 = vunpack.c.l.b16 %v4961
      %v5868 = vunpack.c.l.b16 %v4962
      %v5869 = vunpack.c.l.b16 %v4963
      %v5870 = vunpack.c.l.b16 %v4964
      %v5871 = vunpack.c.l.b16 %v4965
      %v5872 = vunpack.c.l.b16 %v4966
      %v5873 = vunpack.c.l.b16 %v4967
      %v5874 = vunpack.c.l.b16 %v4968
      %v5875 = vunpack.c.l.b16 %v4969
      %v5876 = vunpack.c.l.b16 %v4970
      %v5877 = vunpack.c.l.b16 %v4971
      %v5878 = vunpack.c.l.b16 %v4972
      %v5879 = vpack.c.b16 %v5864, %v5863
      %v5880 = vpack.c.b16 %v5866, %v5865
      %v5881 = vpack.c.b16 %v5868, %v5867
      %v5882 = vpack.c.b16 %v5870, %v5869
      %v5883 = vpack.c.b16 %v5872, %v5871
      %v5884 = vpack.c.b16 %v5874, %v5873
      %v5885 = vpack.c.b16 %v5876, %v5875
      %v5886 = vpack.c.b16 %v5878, %v5877
      %5895 = vmatprep.subr.bf16.mxu0 0
      %5896 = vmatpush1.bf16.msra.mxu0 %v5879
      %5897 = vmatprep.subr.bf16.mxu0 0
      %5898 = vmatpush1.bf16.msra.mxu0 %v5880
      %5899 = vmatprep.subr.bf16.mxu0 0
      %5900 = vmatpush1.bf16.msra.mxu0 %v5881
      %5901 = vmatprep.subr.bf16.mxu0 0
      %5902 = vmatpush1.bf16.msra.mxu0 %v5882
      %5903 = vmatprep.subr.bf16.mxu0 0
      %5904 = vmatpush1.bf16.msra.mxu0 %v5883
      %5905 = vmatprep.subr.bf16.mxu0 0
      %5906 = vmatpush1.bf16.msra.mxu0 %v5884
      %5907 = vmatprep.subr.bf16.mxu0 0
      %5908 = vmatpush1.bf16.msra.mxu0 %v5885
      %5909 = vmatprep.subr.bf16.mxu0 0
      %5910 = vmatpush1.bf16.msra.mxu0 %v5886
      %5911 = vmatprep.subr.bf16.mxu0 0
      %5912 = vmatpush1.bf16.msra.mxu0 0
      %5913 = vmatprep.subr.bf16.mxu0 0
      %5914 = vmatpush1.bf16.msra.mxu0 0
      %5915 = vmatprep.subr.bf16.mxu0 0
      %5916 = vmatpush1.bf16.msra.mxu0 0
      %5917 = vmatprep.subr.bf16.mxu0 0
      %5918 = vmatpush1.bf16.msra.mxu0 0
      %5919 = vmatprep.subr.bf16.mxu0 0
      %5920 = vmatpush1.bf16.msra.mxu0 0
      %5921 = vmatprep.subr.bf16.mxu0 0
      %5922 = vmatpush1.bf16.msra.mxu0 0
      %5923 = vmatprep.subr.bf16.mxu0 0
      %5924 = vmatpush1.bf16.msra.mxu0 0
      %5925 = vmatprep.subr.bf16.mxu0 0
      %5926 = vmatpush1.bf16.msra.mxu0 0
      %5927 = vmatprep.mubr.bf16.mxu0 0
      %5928 = vmatmul.mubr.bf16.gmra.mrb[0].mxu0 %v4949
      %v5929 = vpop.f32.mrb[0].mxu0
      %v5930 = vadd.f32 %v5785, %v5929
      %v5931 = vpop.f32.mrb[0].mxu0
      %v5932 = vpop.f32.mrb[0].mxu0
      %v5933 = vadd.f32 %v5788, %v5932
      %v5934 = vpop.f32.mrb[0].mxu0
      %5935 = vmatprep.mubr.bf16.mxu0 0
      %5936 = vmatmul.mubr.bf16.gmra.mrb[0].mxu0 %v4950
      %v5937 = vpop.f32.mrb[0].mxu0
      %v5938 = vadd.f32 %v5793, %v5937
      %v5939 = vpop.f32.mrb[0].mxu0
      %v5940 = vpop.f32.mrb[0].mxu0
      %v5941 = vadd.f32 %v5796, %v5940
      %v5942 = vpop.f32.mrb[0].mxu0
      %5943 = vmatprep.mubr.bf16.mxu0 0
      %5944 = vmatmul.mubr.bf16.gmra.mrb[0].mxu0 %v4951
      %v5945 = vpop.f32.mrb[0].mxu0
      %v5946 = vadd.f32 %v5801, %v5945
      %v5947 = vpop.f32.mrb[0].mxu0
      %v5948 = vpop.f32.mrb[0].mxu0
      %v5949 = vadd.f32 %v5804, %v5948
      %v5950 = vpop.f32.mrb[0].mxu0
      %5951 = vmatprep.mubr.bf16.mxu0 0
      %5952 = vmatmul.mubr.bf16.gmra.mrb[0].mxu0 %v4952
      %v5953 = vpop.f32.mrb[0].mxu0
      %v5954 = vadd.f32 %v5809, %v5953
      %v5955 = vpop.f32.mrb[0].mxu0
      %v5956 = vpop.f32.mrb[0].mxu0
      %v5957 = vadd.f32 %v5812, %v5956
      %v5958 = vpop.f32.mrb[0].mxu0
      %5959 = vmatprep.mubr.bf16.mxu0 0
      %5960 = vmatmul.mubr.bf16.gmra.mrb[0].mxu0 %v4953
      %v5961 = vpop.f32.mrb[0].mxu0
      %v5962 = vadd.f32 %v5817, %v5961
      %v5963 = vpop.f32.mrb[0].mxu0
      %v5964 = vpop.f32.mrb[0].mxu0
      %v5965 = vadd.f32 %v5820, %v5964
      %v5966 = vpop.f32.mrb[0].mxu0
      %5967 = vmatprep.mubr.bf16.mxu0 0
      %5968 = vmatmul.mubr.bf16.gmra.mrb[0].mxu0 %v4954
      %v5969 = vpop.f32.mrb[0].mxu0
      %v5970 = vadd.f32 %v5825, %v5969
      %v5971 = vpop.f32.mrb[0].mxu0
      %v5972 = vpop.f32.mrb[0].mxu0
      %v5973 = vadd.f32 %v5828, %v5972
      %v5974 = vpop.f32.mrb[0].mxu0
      %5975 = vmatprep.mubr.bf16.mxu0 0
      %5976 = vmatmul.mubr.bf16.gmra.mrb[0].mxu0 %v4955
      %v5977 = vpop.f32.mrb[0].mxu0
      %v5978 = vadd.f32 %v5833, %v5977
      %v5979 = vpop.f32.mrb[0].mxu0
      %v5980 = vpop.f32.mrb[0].mxu0
      %v5981 = vadd.f32 %v5836, %v5980
      %v5982 = vpop.f32.mrb[0].mxu0
      %5983 = vmatprep.mubr.bf16.mxu0 0
      %5984 = vmatmul.mubr.bf16.gmra.mrb[0].mxu0 %v4956
      %v5985 = vpop.f32.mrb[0].mxu0
      %v5986 = vadd.f32 %v5841, %v5985
      %v5987 = vpop.f32.mrb[0].mxu0
      %v5988 = vpop.f32.mrb[0].mxu0
      %v5989 = vadd.f32 %v5844, %v5988
      %v5990 = vpop.f32.mrb[0].mxu0
      %5991 = vdwg.mxu0
      %s5992 = sadd.s32 %s4238, 169
      %s5993 = scalar_lea.vmem [#allocation2], %s5992
      %v5994 = vld [vmem:[%s5993] sm:$0xff]
      %v5995 = vld [vmem:[%s5993 + $0x8] sm:$0xff]
      %v5996 = vld [vmem:[%s5993 + $0x10] sm:$0xff]
      %v5997 = vld [vmem:[%s5993 + $0x18] sm:$0xff]
      %v5998 = vld [vmem:[%s5993 + $0x20] sm:$0xff]
      %v5999 = vld [vmem:[%s5993 + $0x28] sm:$0xff]
      %v6000 = vld [vmem:[%s5993 + $0x30] sm:$0xff]
      %v6001 = vld [vmem:[%s5993 + $0x38] sm:$0xff]
      %v6002 = vld [vmem:[%s5993 + $0x40] sm:$0xff]
      %v6003 = vld [vmem:[%s5993 + $0x48] sm:$0xff]
      %v6004 = vld [vmem:[%s5993 + $0x50] sm:$0xff]
      %v6005 = vld [vmem:[%s5993 + $0x58] sm:$0xff]
      %v6006 = vld [vmem:[%s5993 + $0x60] sm:$0xff]
      %v6007 = vld [vmem:[%s5993 + $0x68] sm:$0xff]
      %v6008 = vld [vmem:[%s5993 + $0x70] sm:$0xff]
      %v6009 = vld [vmem:[%s5993 + $0x78] sm:$0xff]
      %s6010 = sadd.s32 %s4238, 170
      %s6011 = scalar_lea.vmem [#allocation2], %s6010
      %v6012 = vld [vmem:[%s6011] sm:$0xff]
      %v6013 = vld [vmem:[%s6011 + $0x8] sm:$0xff]
      %v6014 = vld [vmem:[%s6011 + $0x10] sm:$0xff]
      %v6015 = vld [vmem:[%s6011 + $0x18] sm:$0xff]
      %v6016 = vld [vmem:[%s6011 + $0x20] sm:$0xff]
      %v6017 = vld [vmem:[%s6011 + $0x28] sm:$0xff]
      %v6018 = vld [vmem:[%s6011 + $0x30] sm:$0xff]
      %v6019 = vld [vmem:[%s6011 + $0x38] sm:$0xff]
      %v6020 = vld [vmem:[%s6011 + $0x40] sm:$0xff]
      %v6021 = vld [vmem:[%s6011 + $0x48] sm:$0xff]
      %v6022 = vld [vmem:[%s6011 + $0x50] sm:$0xff]
      %v6023 = vld [vmem:[%s6011 + $0x58] sm:$0xff]
      %v6024 = vld [vmem:[%s6011 + $0x60] sm:$0xff]
      %v6025 = vld [vmem:[%s6011 + $0x68] sm:$0xff]
      %v6026 = vld [vmem:[%s6011 + $0x70] sm:$0xff]
      %v6027 = vld [vmem:[%s6011 + $0x78] sm:$0xff]
      %s6028 = sadd.s32 %s4238, 288
      %s6029 = scalar_lea.vmem [#allocation2], %s6028
      %v6030 = vld [vmem:[%s6029] sm:$0xff]
      %v6031 = vld [vmem:[%s6029 + $0x8] sm:$0xff]
      %v6032 = vld [vmem:[%s6029 + $0x10] sm:$0xff]
      %v6033 = vld [vmem:[%s6029 + $0x18] sm:$0xff]
      %v6034 = vld [vmem:[%s6029 + $0x20] sm:$0xff]
      %v6035 = vld [vmem:[%s6029 + $0x28] sm:$0xff]
      %v6036 = vld [vmem:[%s6029 + $0x30] sm:$0xff]
      %v6037 = vld [vmem:[%s6029 + $0x38] sm:$0xff]
      %v6038 = vld [vmem:[%s6029 + $0x40] sm:$0xff]
      %v6039 = vld [vmem:[%s6029 + $0x48] sm:$0xff]
      %v6040 = vld [vmem:[%s6029 + $0x50] sm:$0xff]
      %v6041 = vld [vmem:[%s6029 + $0x58] sm:$0xff]
      %v6042 = vld [vmem:[%s6029 + $0x60] sm:$0xff]
      %v6043 = vld [vmem:[%s6029 + $0x68] sm:$0xff]
      %v6044 = vld [vmem:[%s6029 + $0x70] sm:$0xff]
      %v6045 = vld [vmem:[%s6029 + $0x78] sm:$0xff]
      %s6046 = sadd.s32 %s4238, 289
      %s6047 = scalar_lea.vmem [#allocation2], %s6046
      %v6048 = vld [vmem:[%s6047] sm:$0xff]
      %v6049 = vld [vmem:[%s6047 + $0x8] sm:$0xff]
      %v6050 = vld [vmem:[%s6047 + $0x10] sm:$0xff]
      %v6051 = vld [vmem:[%s6047 + $0x18] sm:$0xff]
      %v6052 = vld [vmem:[%s6047 + $0x20] sm:$0xff]
      %v6053 = vld [vmem:[%s6047 + $0x28] sm:$0xff]
      %v6054 = vld [vmem:[%s6047 + $0x30] sm:$0xff]
      %v6055 = vld [vmem:[%s6047 + $0x38] sm:$0xff]
      %v6056 = vld [vmem:[%s6047 + $0x40] sm:$0xff]
      %v6057 = vld [vmem:[%s6047 + $0x48] sm:$0xff]
      %v6058 = vld [vmem:[%s6047 + $0x50] sm:$0xff]
      %v6059 = vld [vmem:[%s6047 + $0x58] sm:$0xff]
      %v6060 = vld [vmem:[%s6047 + $0x60] sm:$0xff]
      %v6061 = vld [vmem:[%s6047 + $0x68] sm:$0xff]
      %v6062 = vld [vmem:[%s6047 + $0x70] sm:$0xff]
      %v6063 = vld [vmem:[%s6047 + $0x78] sm:$0xff]
      %s6064 = sadd.s32 %s4238, 290
      %s6065 = scalar_lea.vmem [#allocation2], %s6064
      %v6066 = vld [vmem:[%s6065] sm:$0xff]
      %v6067 = vld [vmem:[%s6065 + $0x8] sm:$0xff]
      %v6068 = vld [vmem:[%s6065 + $0x10] sm:$0xff]
      %v6069 = vld [vmem:[%s6065 + $0x18] sm:$0xff]
      %v6070 = vld [vmem:[%s6065 + $0x20] sm:$0xff]
      %v6071 = vld [vmem:[%s6065 + $0x28] sm:$0xff]
      %v6072 = vld [vmem:[%s6065 + $0x30] sm:$0xff]
      %v6073 = vld [vmem:[%s6065 + $0x38] sm:$0xff]
      %v6074 = vld [vmem:[%s6065 + $0x40] sm:$0xff]
      %v6075 = vld [vmem:[%s6065 + $0x48] sm:$0xff]
      %v6076 = vld [vmem:[%s6065 + $0x50] sm:$0xff]
      %v6077 = vld [vmem:[%s6065 + $0x58] sm:$0xff]
      %v6078 = vld [vmem:[%s6065 + $0x60] sm:$0xff]
      %v6079 = vld [vmem:[%s6065 + $0x68] sm:$0xff]
      %v6080 = vld [vmem:[%s6065 + $0x70] sm:$0xff]
      %v6081 = vld [vmem:[%s6065 + $0x78] sm:$0xff]
      %s6082 = sadd.s32 %s4238, 300
      %s6083 = scalar_lea.vmem [#allocation2], %s6082
      %v6084 = vld [vmem:[%s6083] sm:$0xff]
      %v6085 = vld [vmem:[%s6083 + $0x8] sm:$0xff]
      %v6086 = vld [vmem:[%s6083 + $0x10] sm:$0xff]
      %v6087 = vld [vmem:[%s6083 + $0x18] sm:$0xff]
      %v6088 = vld [vmem:[%s6083 + $0x20] sm:$0xff]
      %v6089 = vld [vmem:[%s6083 + $0x28] sm:$0xff]
      %v6090 = vld [vmem:[%s6083 + $0x30] sm:$0xff]
      %v6091 = vld [vmem:[%s6083 + $0x38] sm:$0xff]
      %v6092 = vld [vmem:[%s6083 + $0x40] sm:$0xff]
      %v6093 = vld [vmem:[%s6083 + $0x48] sm:$0xff]
      %v6094 = vld [vmem:[%s6083 + $0x50] sm:$0xff]
      %v6095 = vld [vmem:[%s6083 + $0x58] sm:$0xff]
      %v6096 = vld [vmem:[%s6083 + $0x60] sm:$0xff]
      %v6097 = vld [vmem:[%s6083 + $0x68] sm:$0xff]
      %v6098 = vld [vmem:[%s6083 + $0x70] sm:$0xff]
      %v6099 = vld [vmem:[%s6083 + $0x78] sm:$0xff]
      %s6100 = sadd.s32 %s4238, 301
      %s6101 = scalar_lea.vmem [#allocation2], %s6100
      %v6102 = vld [vmem:[%s6101] sm:$0xff]
      %v6103 = vld [vmem:[%s6101 + $0x8] sm:$0xff]
      %v6104 = vld [vmem:[%s6101 + $0x10] sm:$0xff]
      %v6105 = vld [vmem:[%s6101 + $0x18] sm:$0xff]
      %v6106 = vld [vmem:[%s6101 + $0x20] sm:$0xff]
      %v6107 = vld [vmem:[%s6101 + $0x28] sm:$0xff]
      %v6108 = vld [vmem:[%s6101 + $0x30] sm:$0xff]
      %v6109 = vld [vmem:[%s6101 + $0x38] sm:$0xff]
      %v6110 = vld [vmem:[%s6101 + $0x40] sm:$0xff]
      %v6111 = vld [vmem:[%s6101 + $0x48] sm:$0xff]
      %v6112 = vld [vmem:[%s6101 + $0x50] sm:$0xff]
      %v6113 = vld [vmem:[%s6101 + $0x58] sm:$0xff]
      %v6114 = vld [vmem:[%s6101 + $0x60] sm:$0xff]
      %v6115 = vld [vmem:[%s6101 + $0x68] sm:$0xff]
      %v6116 = vld [vmem:[%s6101 + $0x70] sm:$0xff]
      %v6117 = vld [vmem:[%s6101 + $0x78] sm:$0xff]
      %s6118 = sadd.s32 %s4238, 302
      %s6119 = scalar_lea.vmem [#allocation2], %s6118
      %v6120 = vld [vmem:[%s6119] sm:$0xff]
      %v6121 = vld [vmem:[%s6119 + $0x8] sm:$0xff]
      %v6122 = vld [vmem:[%s6119 + $0x10] sm:$0xff]
      %v6123 = vld [vmem:[%s6119 + $0x18] sm:$0xff]
      %v6124 = vld [vmem:[%s6119 + $0x20] sm:$0xff]
      %v6125 = vld [vmem:[%s6119 + $0x28] sm:$0xff]
      %v6126 = vld [vmem:[%s6119 + $0x30] sm:$0xff]
      %v6127 = vld [vmem:[%s6119 + $0x38] sm:$0xff]
      %v6128 = vld [vmem:[%s6119 + $0x40] sm:$0xff]
      %v6129 = vld [vmem:[%s6119 + $0x48] sm:$0xff]
      %v6130 = vld [vmem:[%s6119 + $0x50] sm:$0xff]
      %v6131 = vld [vmem:[%s6119 + $0x58] sm:$0xff]
      %v6132 = vld [vmem:[%s6119 + $0x60] sm:$0xff]
      %v6133 = vld [vmem:[%s6119 + $0x68] sm:$0xff]
      %v6134 = vld [vmem:[%s6119 + $0x70] sm:$0xff]
      %v6135 = vld [vmem:[%s6119 + $0x78] sm:$0xff]
      %6152 = vrot.lane.b32.xlu0 %v6012, 16
      %v6153 = vpop.permute.xlu0 %6152
      %6154 = vrot.lane.b32.xlu0 %v6013, 16
      %v6155 = vpop.permute.xlu0 %6154
      %6156 = vrot.lane.b32.xlu0 %v6014, 16
      %v6157 = vpop.permute.xlu0 %6156
      %6158 = vrot.lane.b32.xlu0 %v6015, 16
      %v6159 = vpop.permute.xlu0 %6158
      %6160 = vrot.lane.b32.xlu0 %v6016, 16
      %v6161 = vpop.permute.xlu0 %6160
      %6162 = vrot.lane.b32.xlu0 %v6017, 16
      %v6163 = vpop.permute.xlu0 %6162
      %6164 = vrot.lane.b32.xlu0 %v6018, 16
      %v6165 = vpop.permute.xlu0 %6164
      %6166 = vrot.lane.b32.xlu0 %v6019, 16
      %v6167 = vpop.permute.xlu0 %6166
      %6168 = vrot.lane.b32.xlu0 %v6020, 16
      %v6169 = vpop.permute.xlu0 %6168
      %6170 = vrot.lane.b32.xlu0 %v6021, 16
      %v6171 = vpop.permute.xlu0 %6170
      %6172 = vrot.lane.b32.xlu0 %v6022, 16
      %v6173 = vpop.permute.xlu0 %6172
      %6174 = vrot.lane.b32.xlu0 %v6023, 16
      %v6175 = vpop.permute.xlu0 %6174
      %6176 = vrot.lane.b32.xlu0 %v6024, 16
      %v6177 = vpop.permute.xlu0 %6176
      %6178 = vrot.lane.b32.xlu0 %v6025, 16
      %v6179 = vpop.permute.xlu0 %6178
      %6180 = vrot.lane.b32.xlu0 %v6026, 16
      %v6181 = vpop.permute.xlu0 %6180
      %6182 = vrot.lane.b32.xlu0 %v6027, 16
      %v6183 = vpop.permute.xlu0 %6182
      %6216 = vrot.lane.b32.xlu0 %v6030, 32
      %v6217 = vpop.permute.xlu0 %6216
      %6218 = vrot.lane.b32.xlu0 %v6031, 32
      %v6219 = vpop.permute.xlu0 %6218
      %6220 = vrot.lane.b32.xlu0 %v6032, 32
      %v6221 = vpop.permute.xlu0 %6220
      %6222 = vrot.lane.b32.xlu0 %v6033, 32
      %v6223 = vpop.permute.xlu0 %6222
      %6224 = vrot.lane.b32.xlu0 %v6034, 32
      %v6225 = vpop.permute.xlu0 %6224
      %6226 = vrot.lane.b32.xlu0 %v6035, 32
      %v6227 = vpop.permute.xlu0 %6226
      %6228 = vrot.lane.b32.xlu0 %v6036, 32
      %v6229 = vpop.permute.xlu0 %6228
      %6230 = vrot.lane.b32.xlu0 %v6037, 32
      %v6231 = vpop.permute.xlu0 %6230
      %6232 = vrot.lane.b32.xlu0 %v6038, 32
      %v6233 = vpop.permute.xlu0 %6232
      %6234 = vrot.lane.b32.xlu0 %v6039, 32
      %v6235 = vpop.permute.xlu0 %6234
      %6236 = vrot.lane.b32.xlu0 %v6040, 32
      %v6237 = vpop.permute.xlu0 %6236
      %6238 = vrot.lane.b32.xlu0 %v6041, 32
      %v6239 = vpop.permute.xlu0 %6238
      %6240 = vrot.lane.b32.xlu0 %v6042, 32
      %v6241 = vpop.permute.xlu0 %6240
      %6242 = vrot.lane.b32.xlu0 %v6043, 32
      %v6243 = vpop.permute.xlu0 %6242
      %6244 = vrot.lane.b32.xlu0 %v6044, 32
      %v6245 = vpop.permute.xlu0 %6244
      %6246 = vrot.lane.b32.xlu0 %v6045, 32
      %v6247 = vpop.permute.xlu0 %6246
      %6280 = vrot.lane.b32.xlu0 %v6048, 48
      %v6281 = vpop.permute.xlu0 %6280
      %6282 = vrot.lane.b32.xlu0 %v6049, 48
      %v6283 = vpop.permute.xlu0 %6282
      %6284 = vrot.lane.b32.xlu0 %v6050, 48
      %v6285 = vpop.permute.xlu0 %6284
      %6286 = vrot.lane.b32.xlu0 %v6051, 48
      %v6287 = vpop.permute.xlu0 %6286
      %6288 = vrot.lane.b32.xlu0 %v6052, 48
      %v6289 = vpop.permute.xlu0 %6288
      %6290 = vrot.lane.b32.xlu0 %v6053, 48
      %v6291 = vpop.permute.xlu0 %6290
      %6292 = vrot.lane.b32.xlu0 %v6054, 48
      %v6293 = vpop.permute.xlu0 %6292
      %6294 = vrot.lane.b32.xlu0 %v6055, 48
      %v6295 = vpop.permute.xlu0 %6294
      %6296 = vrot.lane.b32.xlu0 %v6056, 48
      %v6297 = vpop.permute.xlu0 %6296
      %6298 = vrot.lane.b32.xlu0 %v6057, 48
      %v6299 = vpop.permute.xlu0 %6298
      %6300 = vrot.lane.b32.xlu0 %v6058, 48
      %v6301 = vpop.permute.xlu0 %6300
      %6302 = vrot.lane.b32.xlu0 %v6059, 48
      %v6303 = vpop.permute.xlu0 %6302
      %6304 = vrot.lane.b32.xlu0 %v6060, 48
      %v6305 = vpop.permute.xlu0 %6304
      %6306 = vrot.lane.b32.xlu0 %v6061, 48
      %v6307 = vpop.permute.xlu0 %6306
      %6308 = vrot.lane.b32.xlu0 %v6062, 48
      %v6309 = vpop.permute.xlu0 %6308
      %6310 = vrot.lane.b32.xlu0 %v6063, 48
      %v6311 = vpop.permute.xlu0 %6310
      %6344 = vrot.lane.b32.xlu0 %v6066, 64
      %v6345 = vpop.permute.xlu0 %6344
      %6346 = vrot.lane.b32.xlu0 %v6067, 64
      %v6347 = vpop.permute.xlu0 %6346
      %6348 = vrot.lane.b32.xlu0 %v6068, 64
      %v6349 = vpop.permute.xlu0 %6348
      %6350 = vrot.lane.b32.xlu0 %v6069, 64
      %v6351 = vpop.permute.xlu0 %6350
      %6352 = vrot.lane.b32.xlu0 %v6070, 64
      %v6353 = vpop.permute.xlu0 %6352
      %6354 = vrot.lane.b32.xlu0 %v6071, 64
      %v6355 = vpop.permute.xlu0 %6354
      %6356 = vrot.lane.b32.xlu0 %v6072, 64
      %v6357 = vpop.permute.xlu0 %6356
      %6358 = vrot.lane.b32.xlu0 %v6073, 64
      %v6359 = vpop.permute.xlu0 %6358
      %6360 = vrot.lane.b32.xlu0 %v6074, 64
      %v6361 = vpop.permute.xlu0 %6360
      %6362 = vrot.lane.b32.xlu0 %v6075, 64
      %v6363 = vpop.permute.xlu0 %6362
      %6364 = vrot.lane.b32.xlu0 %v6076, 64
      %v6365 = vpop.permute.xlu0 %6364
      %6366 = vrot.lane.b32.xlu0 %v6077, 64
      %v6367 = vpop.permute.xlu0 %6366
      %6368 = vrot.lane.b32.xlu0 %v6078, 64
      %v6369 = vpop.permute.xlu0 %6368
      %6370 = vrot.lane.b32.xlu0 %v6079, 64
      %v6371 = vpop.permute.xlu0 %6370
      %6372 = vrot.lane.b32.xlu0 %v6080, 64
      %v6373 = vpop.permute.xlu0 %6372
      %6374 = vrot.lane.b32.xlu0 %v6081, 64
      %v6375 = vpop.permute.xlu0 %6374
      %6408 = vrot.lane.b32.xlu0 %v6084, 80
      %v6409 = vpop.permute.xlu0 %6408
      %6410 = vrot.lane.b32.xlu0 %v6085, 80
      %v6411 = vpop.permute.xlu0 %6410
      %6412 = vrot.lane.b32.xlu0 %v6086, 80
      %v6413 = vpop.permute.xlu0 %6412
      %6414 = vrot.lane.b32.xlu0 %v6087, 80
      %v6415 = vpop.permute.xlu0 %6414
      %6416 = vrot.lane.b32.xlu0 %v6088, 80
      %v6417 = vpop.permute.xlu0 %6416
      %6418 = vrot.lane.b32.xlu0 %v6089, 80
      %v6419 = vpop.permute.xlu0 %6418
      %6420 = vrot.lane.b32.xlu0 %v6090, 80
      %v6421 = vpop.permute.xlu0 %6420
      %6422 = vrot.lane.b32.xlu0 %v6091, 80
      %v6423 = vpop.permute.xlu0 %6422
      %6424 = vrot.lane.b32.xlu0 %v6092, 80
      %v6425 = vpop.permute.xlu0 %6424
      %6426 = vrot.lane.b32.xlu0 %v6093, 80
      %v6427 = vpop.permute.xlu0 %6426
      %6428 = vrot.lane.b32.xlu0 %v6094, 80
      %v6429 = vpop.permute.xlu0 %6428
      %6430 = vrot.lane.b32.xlu0 %v6095, 80
      %v6431 = vpop.permute.xlu0 %6430
      %6432 = vrot.lane.b32.xlu0 %v6096, 80
      %v6433 = vpop.permute.xlu0 %6432
      %6434 = vrot.lane.b32.xlu0 %v6097, 80
      %v6435 = vpop.permute.xlu0 %6434
      %6436 = vrot.lane.b32.xlu0 %v6098, 80
      %v6437 = vpop.permute.xlu0 %6436
      %6438 = vrot.lane.b32.xlu0 %v6099, 80
      %v6439 = vpop.permute.xlu0 %6438
      %6472 = vrot.lane.b32.xlu0 %v6102, 96
      %v6473 = vpop.permute.xlu0 %6472
      %6474 = vrot.lane.b32.xlu0 %v6103, 96
      %v6475 = vpop.permute.xlu0 %6474
      %6476 = vrot.lane.b32.xlu0 %v6104, 96
      %v6477 = vpop.permute.xlu0 %6476
      %6478 = vrot.lane.b32.xlu0 %v6105, 96
      %v6479 = vpop.permute.xlu0 %6478
      %6480 = vrot.lane.b32.xlu0 %v6106, 96
      %v6481 = vpop.permute.xlu0 %6480
      %6482 = vrot.lane.b32.xlu0 %v6107, 96
      %v6483 = vpop.permute.xlu0 %6482
      %6484 = vrot.lane.b32.xlu0 %v6108, 96
      %v6485 = vpop.permute.xlu0 %6484
      %6486 = vrot.lane.b32.xlu0 %v6109, 96
      %v6487 = vpop.permute.xlu0 %6486
      %6488 = vrot.lane.b32.xlu0 %v6110, 96
      %v6489 = vpop.permute.xlu0 %6488
      %6490 = vrot.lane.b32.xlu0 %v6111, 96
      %v6491 = vpop.permute.xlu0 %6490
      %6492 = vrot.lane.b32.xlu0 %v6112, 96
      %v6493 = vpop.permute.xlu0 %6492
      %6494 = vrot.lane.b32.xlu0 %v6113, 96
      %v6495 = vpop.permute.xlu0 %6494
      %6496 = vrot.lane.b32.xlu0 %v6114, 96
      %v6497 = vpop.permute.xlu0 %6496
      %6498 = vrot.lane.b32.xlu0 %v6115, 96
      %v6499 = vpop.permute.xlu0 %6498
      %6500 = vrot.lane.b32.xlu0 %v6116, 96
      %v6501 = vpop.permute.xlu0 %6500
      %6502 = vrot.lane.b32.xlu0 %v6117, 96
      %v6503 = vpop.permute.xlu0 %6502
      %6536 = vrot.lane.b32.xlu0 %v6120, 112
      %v6537 = vpop.permute.xlu0 %6536
      %6538 = vrot.lane.b32.xlu0 %v6121, 112
      %v6539 = vpop.permute.xlu0 %6538
      %6540 = vrot.lane.b32.xlu0 %v6122, 112
      %v6541 = vpop.permute.xlu0 %6540
      %6542 = vrot.lane.b32.xlu0 %v6123, 112
      %v6543 = vpop.permute.xlu0 %6542
      %6544 = vrot.lane.b32.xlu0 %v6124, 112
      %v6545 = vpop.permute.xlu0 %6544
      %6546 = vrot.lane.b32.xlu0 %v6125, 112
      %v6547 = vpop.permute.xlu0 %6546
      %6548 = vrot.lane.b32.xlu0 %v6126, 112
      %v6549 = vpop.permute.xlu0 %6548
      %6550 = vrot.lane.b32.xlu0 %v6127, 112
      %v6551 = vpop.permute.xlu0 %6550
      %6552 = vrot.lane.b32.xlu0 %v6128, 112
      %v6553 = vpop.permute.xlu0 %6552
      %6554 = vrot.lane.b32.xlu0 %v6129, 112
      %v6555 = vpop.permute.xlu0 %6554
      %6556 = vrot.lane.b32.xlu0 %v6130, 112
      %v6557 = vpop.permute.xlu0 %6556
      %6558 = vrot.lane.b32.xlu0 %v6131, 112
      %v6559 = vpop.permute.xlu0 %6558
      %6560 = vrot.lane.b32.xlu0 %v6132, 112
      %v6561 = vpop.permute.xlu0 %6560
      %6562 = vrot.lane.b32.xlu0 %v6133, 112
      %v6563 = vpop.permute.xlu0 %6562
      %6564 = vrot.lane.b32.xlu0 %v6134, 112
      %v6565 = vpop.permute.xlu0 %6564
      %6566 = vrot.lane.b32.xlu0 %v6135, 112
      %v6567 = vpop.permute.xlu0 %6566
      %v6584 = vsel %vm4830, %v5994, %v6153
      %v6585 = vsel %vm4830, %v5995, %v6155
      %v6586 = vsel %vm4830, %v5996, %v6157
      %v6587 = vsel %vm4830, %v5997, %v6159
      %v6588 = vsel %vm4830, %v5998, %v6161
      %v6589 = vsel %vm4830, %v5999, %v6163
      %v6590 = vsel %vm4830, %v6000, %v6165
      %v6591 = vsel %vm4830, %v6001, %v6167
      %v6592 = vsel %vm4830, %v6002, %v6169
      %v6593 = vsel %vm4830, %v6003, %v6171
      %v6594 = vsel %vm4830, %v6004, %v6173
      %v6595 = vsel %vm4830, %v6005, %v6175
      %v6596 = vsel %vm4830, %v6006, %v6177
      %v6597 = vsel %vm4830, %v6007, %v6179
      %v6598 = vsel %vm4830, %v6008, %v6181
      %v6599 = vsel %vm4830, %v6009, %v6183
      %v6600 = vsel %vm4847, %v6584, %v6217
      %v6601 = vsel %vm4847, %v6585, %v6219
      %v6602 = vsel %vm4847, %v6586, %v6221
      %v6603 = vsel %vm4847, %v6587, %v6223
      %v6604 = vsel %vm4847, %v6588, %v6225
      %v6605 = vsel %vm4847, %v6589, %v6227
      %v6606 = vsel %vm4847, %v6590, %v6229
      %v6607 = vsel %vm4847, %v6591, %v6231
      %v6608 = vsel %vm4847, %v6592, %v6233
      %v6609 = vsel %vm4847, %v6593, %v6235
      %v6610 = vsel %vm4847, %v6594, %v6237
      %v6611 = vsel %vm4847, %v6595, %v6239
      %v6612 = vsel %vm4847, %v6596, %v6241
      %v6613 = vsel %vm4847, %v6597, %v6243
      %v6614 = vsel %vm4847, %v6598, %v6245
      %v6615 = vsel %vm4847, %v6599, %v6247
      %v6616 = vsel %vm4864, %v6600, %v6281
      %v6617 = vsel %vm4864, %v6601, %v6283
      %v6618 = vsel %vm4864, %v6602, %v6285
      %v6619 = vsel %vm4864, %v6603, %v6287
      %v6620 = vsel %vm4864, %v6604, %v6289
      %v6621 = vsel %vm4864, %v6605, %v6291
      %v6622 = vsel %vm4864, %v6606, %v6293
      %v6623 = vsel %vm4864, %v6607, %v6295
      %v6624 = vsel %vm4864, %v6608, %v6297
      %v6625 = vsel %vm4864, %v6609, %v6299
      %v6626 = vsel %vm4864, %v6610, %v6301
      %v6627 = vsel %vm4864, %v6611, %v6303
      %v6628 = vsel %vm4864, %v6612, %v6305
      %v6629 = vsel %vm4864, %v6613, %v6307
      %v6630 = vsel %vm4864, %v6614, %v6309
      %v6631 = vsel %vm4864, %v6615, %v6311
      %v6632 = vsel %vm4881, %v6616, %v6345
      %v6633 = vsel %vm4881, %v6617, %v6347
      %v6634 = vsel %vm4881, %v6618, %v6349
      %v6635 = vsel %vm4881, %v6619, %v6351
      %v6636 = vsel %vm4881, %v6620, %v6353
      %v6637 = vsel %vm4881, %v6621, %v6355
      %v6638 = vsel %vm4881, %v6622, %v6357
      %v6639 = vsel %vm4881, %v6623, %v6359
      %v6640 = vsel %vm4881, %v6624, %v6361
      %v6641 = vsel %vm4881, %v6625, %v6363
      %v6642 = vsel %vm4881, %v6626, %v6365
      %v6643 = vsel %vm4881, %v6627, %v6367
      %v6644 = vsel %vm4881, %v6628, %v6369
      %v6645 = vsel %vm4881, %v6629, %v6371
      %v6646 = vsel %vm4881, %v6630, %v6373
      %v6647 = vsel %vm4881, %v6631, %v6375
      %v6648 = vsel %vm4898, %v6632, %v6409
      %v6649 = vsel %vm4898, %v6633, %v6411
      %v6650 = vsel %vm4898, %v6634, %v6413
      %v6651 = vsel %vm4898, %v6635, %v6415
      %v6652 = vsel %vm4898, %v6636, %v6417
      %v6653 = vsel %vm4898, %v6637, %v6419
      %v6654 = vsel %vm4898, %v6638, %v6421
      %v6655 = vsel %vm4898, %v6639, %v6423
      %v6656 = vsel %vm4898, %v6640, %v6425
      %v6657 = vsel %vm4898, %v6641, %v6427
      %v6658 = vsel %vm4898, %v6642, %v6429
      %v6659 = vsel %vm4898, %v6643, %v6431
      %v6660 = vsel %vm4898, %v6644, %v6433
      %v6661 = vsel %vm4898, %v6645, %v6435
      %v6662 = vsel %vm4898, %v6646, %v6437
      %v6663 = vsel %vm4898, %v6647, %v6439
      %v6664 = vsel %vm4915, %v6648, %v6473
      %v6665 = vsel %vm4915, %v6649, %v6475
      %v6666 = vsel %vm4915, %v6650, %v6477
      %v6667 = vsel %vm4915, %v6651, %v6479
      %v6668 = vsel %vm4915, %v6652, %v6481
      %v6669 = vsel %vm4915, %v6653, %v6483
      %v6670 = vsel %vm4915, %v6654, %v6485
      %v6671 = vsel %vm4915, %v6655, %v6487
      %v6672 = vsel %vm4915, %v6656, %v6489
      %v6673 = vsel %vm4915, %v6657, %v6491
      %v6674 = vsel %vm4915, %v6658, %v6493
      %v6675 = vsel %vm4915, %v6659, %v6495
      %v6676 = vsel %vm4915, %v6660, %v6497
      %v6677 = vsel %vm4915, %v6661, %v6499
      %v6678 = vsel %vm4915, %v6662, %v6501
      %v6679 = vsel %vm4915, %v6663, %v6503
      %v6680 = vsel %vm4932, %v6664, %v6537
      %v6681 = vsel %vm4932, %v6665, %v6539
      %v6682 = vsel %vm4932, %v6666, %v6541
      %v6683 = vsel %vm4932, %v6667, %v6543
      %v6684 = vsel %vm4932, %v6668, %v6545
      %v6685 = vsel %vm4932, %v6669, %v6547
      %v6686 = vsel %vm4932, %v6670, %v6549
      %v6687 = vsel %vm4932, %v6671, %v6551
      %v6688 = vsel %vm4932, %v6672, %v6553
      %v6689 = vsel %vm4932, %v6673, %v6555
      %v6690 = vsel %vm4932, %v6674, %v6557
      %v6691 = vsel %vm4932, %v6675, %v6559
      %v6692 = vsel %vm4932, %v6676, %v6561
      %v6693 = vsel %vm4932, %v6677, %v6563
      %v6694 = vsel %vm4932, %v6678, %v6565
      %v6695 = vsel %vm4932, %v6679, %v6567
      %v6696 = vpack.c.bf16 %v6681, %v6680
      %v6697 = vpack.c.bf16 %v6683, %v6682
      %v6698 = vpack.c.bf16 %v6685, %v6684
      %v6699 = vpack.c.bf16 %v6687, %v6686
      %v6700 = vpack.c.bf16 %v6689, %v6688
      %v6701 = vpack.c.bf16 %v6691, %v6690
      %v6702 = vpack.c.bf16 %v6693, %v6692
      %v6703 = vpack.c.bf16 %v6695, %v6694
      %s6704 = scalar_lea.vmem %s5, 128
      %v6705 = vld [vmem:[%s6704] sm:$0xf]
      %v6706 = vld [vmem:[%s6704 + $0x4] sm:$0xf]
      %v6707 = vld [vmem:[%s6704 + $0x8] sm:$0xf]
      %v6708 = vld [vmem:[%s6704 + $0xc] sm:$0xf]
      %v6709 = vld [vmem:[%s6704 + $0x10] sm:$0xf]
      %v6710 = vld [vmem:[%s6704 + $0x14] sm:$0xf]
      %v6711 = vld [vmem:[%s6704 + $0x18] sm:$0xf]
      %v6712 = vld [vmem:[%s6704 + $0x1c] sm:$0xf]
      %v6713 = vld [vmem:[%s6704 + $0x20] sm:$0xf]
      %v6714 = vld [vmem:[%s6704 + $0x24] sm:$0xf]
      %v6715 = vld [vmem:[%s6704 + $0x28] sm:$0xf]
      %v6716 = vld [vmem:[%s6704 + $0x2c] sm:$0xf]
      %v6717 = vld [vmem:[%s6704 + $0x30] sm:$0xf]
      %v6718 = vld [vmem:[%s6704 + $0x34] sm:$0xf]
      %v6719 = vld [vmem:[%s6704 + $0x38] sm:$0xf]
      %v6720 = vld [vmem:[%s6704 + $0x3c] sm:$0xf]
      %v6737 = vunpack.c.l.b16 %v6705
      %v6738 = vunpack.c.l.b16 %v6706
      %v6739 = vunpack.c.l.b16 %v6707
      %v6740 = vunpack.c.l.b16 %v6708
      %v6741 = vunpack.c.l.b16 %v6709
      %v6742 = vunpack.c.l.b16 %v6710
      %v6743 = vunpack.c.l.b16 %v6711
      %v6744 = vunpack.c.l.b16 %v6712
      %v6745 = vunpack.c.l.b16 %v6713
      %v6746 = vunpack.c.l.b16 %v6714
      %v6747 = vunpack.c.l.b16 %v6715
      %v6748 = vunpack.c.l.b16 %v6716
      %v6749 = vunpack.c.l.b16 %v6717
      %v6750 = vunpack.c.l.b16 %v6718
      %v6751 = vunpack.c.l.b16 %v6719
      %v6752 = vunpack.c.l.b16 %v6720
      %v6753 = vpack.c.b16 %v6738, %v6737
      %v6754 = vpack.c.b16 %v6740, %v6739
      %v6755 = vpack.c.b16 %v6742, %v6741
      %v6756 = vpack.c.b16 %v6744, %v6743
      %v6757 = vpack.c.b16 %v6746, %v6745
      %v6758 = vpack.c.b16 %v6748, %v6747
      %v6759 = vpack.c.b16 %v6750, %v6749
      %v6760 = vpack.c.b16 %v6752, %v6751
      %6769 = vmatprep.subr.bf16.mxu0 0
      %6770 = vmatpush1.bf16.msra.mxu0 %v6753
      %6771 = vmatprep.subr.bf16.mxu0 0
      %6772 = vmatpush1.bf16.msra.mxu0 %v6754
      %6773 = vmatprep.subr.bf16.mxu0 0
      %6774 = vmatpush1.bf16.msra.mxu0 %v6755
      %6775 = vmatprep.subr.bf16.mxu0 0
      %6776 = vmatpush1.bf16.msra.mxu0 %v6756
      %6777 = vmatprep.subr.bf16.mxu0 0
      %6778 = vmatpush1.bf16.msra.mxu0 %v6757
      %6779 = vmatprep.subr.bf16.mxu0 0
      %6780 = vmatpush1.bf16.msra.mxu0 %v6758
      %6781 = vmatprep.subr.bf16.mxu0 0
      %6782 = vmatpush1.bf16.msra.mxu0 %v6759
      %6783 = vmatprep.subr.bf16.mxu0 0
      %6784 = vmatpush1.bf16.msra.mxu0 %v6760
      %6785 = vmatprep.subr.bf16.mxu0 0
      %6786 = vmatpush1.bf16.msra.mxu0 0
      %6787 = vmatprep.subr.bf16.mxu0 0
      %6788 = vmatpush1.bf16.msra.mxu0 0
      %6789 = vmatprep.subr.bf16.mxu0 0
      %6790 = vmatpush1.bf16.msra.mxu0 0
      %6791 = vmatprep.subr.bf16.mxu0 0
      %6792 = vmatpush1.bf16.msra.mxu0 0
      %6793 = vmatprep.subr.bf16.mxu0 0
      %6794 = vmatpush1.bf16.msra.mxu0 0
      %6795 = vmatprep.subr.bf16.mxu0 0
      %6796 = vmatpush1.bf16.msra.mxu0 0
      %6797 = vmatprep.subr.bf16.mxu0 0
      %6798 = vmatpush1.bf16.msra.mxu0 0
      %6799 = vmatprep.subr.bf16.mxu0 0
      %6800 = vmatpush1.bf16.msra.mxu0 0
      %6801 = vmatprep.mubr.bf16.mxu0 0
      %6802 = vmatmul.mubr.bf16.gmra.mrb[0].mxu0 %v6696
      %v6803 = vpop.f32.mrb[0].mxu0
      %v6804 = vadd.f32 0.0, %v6803
      %v6805 = vpop.f32.mrb[0].mxu0
      %v6806 = vpop.f32.mrb[0].mxu0
      %v6807 = vadd.f32 0.0, %v6806
      %v6808 = vpop.f32.mrb[0].mxu0
      %6809 = vmatprep.mubr.bf16.mxu0 0
      %6810 = vmatmul.mubr.bf16.gmra.mrb[0].mxu0 %v6697
      %v6811 = vpop.f32.mrb[0].mxu0
      %v6812 = vadd.f32 0.0, %v6811
      %v6813 = vpop.f32.mrb[0].mxu0
      %v6814 = vpop.f32.mrb[0].mxu0
      %v6815 = vadd.f32 0.0, %v6814
      %v6816 = vpop.f32.mrb[0].mxu0
      %6817 = vmatprep.mubr.bf16.mxu0 0
      %6818 = vmatmul.mubr.bf16.gmra.mrb[0].mxu0 %v6698
      %v6819 = vpop.f32.mrb[0].mxu0
      %v6820 = vadd.f32 0.0, %v6819
      %v6821 = vpop.f32.mrb[0].mxu0
      %v6822 = vpop.f32.mrb[0].mxu0
      %v6823 = vadd.f32 0.0, %v6822
      %v6824 = vpop.f32.mrb[0].mxu0
      %6825 = vmatprep.mubr.bf16.mxu0 0
      %6826 = vmatmul.mubr.bf16.gmra.mrb[0].mxu0 %v6699
      %v6827 = vpop.f32.mrb[0].mxu0
      %v6828 = vadd.f32 0.0, %v6827
      %v6829 = vpop.f32.mrb[0].mxu0
      %v6830 = vpop.f32.mrb[0].mxu0
      %v6831 = vadd.f32 0.0, %v6830
      %v6832 = vpop.f32.mrb[0].mxu0
      %6833 = vmatprep.mubr.bf16.mxu0 0
      %6834 = vmatmul.mubr.bf16.gmra.mrb[0].mxu0 %v6700
      %v6835 = vpop.f32.mrb[0].mxu0
      %v6836 = vadd.f32 0.0, %v6835
      %v6837 = vpop.f32.mrb[0].mxu0
      %v6838 = vpop.f32.mrb[0].mxu0
      %v6839 = vadd.f32 0.0, %v6838
      %v6840 = vpop.f32.mrb[0].mxu0
      %6841 = vmatprep.mubr.bf16.mxu0 0
      %6842 = vmatmul.mubr.bf16.gmra.mrb[0].mxu0 %v6701
      %v6843 = vpop.f32.mrb[0].mxu0
      %v6844 = vadd.f32 0.0, %v6843
      %v6845 = vpop.f32.mrb[0].mxu0
      %v6846 = vpop.f32.mrb[0].mxu0
      %v6847 = vadd.f32 0.0, %v6846
      %v6848 = vpop.f32.mrb[0].mxu0
      %6849 = vmatprep.mubr.bf16.mxu0 0
      %6850 = vmatmul.mubr.bf16.gmra.mrb[0].mxu0 %v6702
      %v6851 = vpop.f32.mrb[0].mxu0
      %v6852 = vadd.f32 0.0, %v6851
      %v6853 = vpop.f32.mrb[0].mxu0
      %v6854 = vpop.f32.mrb[0].mxu0
      %v6855 = vadd.f32 0.0, %v6854
      %v6856 = vpop.f32.mrb[0].mxu0
      %6857 = vmatprep.mubr.bf16.mxu0 0
      %6858 = vmatmul.mubr.bf16.gmra.mrb[0].mxu0 %v6703
      %v6859 = vpop.f32.mrb[0].mxu0
      %v6860 = vadd.f32 0.0, %v6859
      %v6861 = vpop.f32.mrb[0].mxu0
      %v6862 = vpop.f32.mrb[0].mxu0
      %v6863 = vadd.f32 0.0, %v6862
      %v6864 = vpop.f32.mrb[0].mxu0
      %6865 = vdwg.mxu0
      %v6866 = vadd.f32 %v5930, %v6804
      %v6867 = vadd.f32 %v5933, %v6807
      %v6868 = vadd.f32 %v5938, %v6812
      %v6869 = vadd.f32 %v5941, %v6815
      %v6870 = vadd.f32 %v5946, %v6820
      %v6871 = vadd.f32 %v5949, %v6823
      %v6872 = vadd.f32 %v5954, %v6828
      %v6873 = vadd.f32 %v5957, %v6831
      %v6874 = vadd.f32 %v5962, %v6836
      %v6875 = vadd.f32 %v5965, %v6839
      %v6876 = vadd.f32 %v5970, %v6844
      %v6877 = vadd.f32 %v5973, %v6847
      %v6878 = vadd.f32 %v5978, %v6852
      %v6879 = vadd.f32 %v5981, %v6855
      %v6880 = vadd.f32 %v5986, %v6860
      %v6881 = vadd.f32 %v5989, %v6863
      %s6882 = sadd.s32 %s4238, 312
      %s6883 = scalar_lea.vmem [#allocation2], %s6882
      %v6884 = vld [vmem:[%s6883] sm:$0xff]
      %v6885 = vld [vmem:[%s6883 + $0x8] sm:$0xff]
      %v6886 = vld [vmem:[%s6883 + $0x10] sm:$0xff]
      %v6887 = vld [vmem:[%s6883 + $0x18] sm:$0xff]
      %v6888 = vld [vmem:[%s6883 + $0x20] sm:$0xff]
      %v6889 = vld [vmem:[%s6883 + $0x28] sm:$0xff]
      %v6890 = vld [vmem:[%s6883 + $0x30] sm:$0xff]
      %v6891 = vld [vmem:[%s6883 + $0x38] sm:$0xff]
      %v6892 = vld [vmem:[%s6883 + $0x40] sm:$0xff]
      %v6893 = vld [vmem:[%s6883 + $0x48] sm:$0xff]
      %v6894 = vld [vmem:[%s6883 + $0x50] sm:$0xff]
      %v6895 = vld [vmem:[%s6883 + $0x58] sm:$0xff]
      %v6896 = vld [vmem:[%s6883 + $0x60] sm:$0xff]
      %v6897 = vld [vmem:[%s6883 + $0x68] sm:$0xff]
      %v6898 = vld [vmem:[%s6883 + $0x70] sm:$0xff]
      %v6899 = vld [vmem:[%s6883 + $0x78] sm:$0xff]
      %s6900 = sadd.s32 %s4238, 313
      %s6901 = scalar_lea.vmem [#allocation2], %s6900
      %v6902 = vld [vmem:[%s6901] sm:$0xff]
      %v6903 = vld [vmem:[%s6901 + $0x8] sm:$0xff]
      %v6904 = vld [vmem:[%s6901 + $0x10] sm:$0xff]
      %v6905 = vld [vmem:[%s6901 + $0x18] sm:$0xff]
      %v6906 = vld [vmem:[%s6901 + $0x20] sm:$0xff]
      %v6907 = vld [vmem:[%s6901 + $0x28] sm:$0xff]
      %v6908 = vld [vmem:[%s6901 + $0x30] sm:$0xff]
      %v6909 = vld [vmem:[%s6901 + $0x38] sm:$0xff]
      %v6910 = vld [vmem:[%s6901 + $0x40] sm:$0xff]
      %v6911 = vld [vmem:[%s6901 + $0x48] sm:$0xff]
      %v6912 = vld [vmem:[%s6901 + $0x50] sm:$0xff]
      %v6913 = vld [vmem:[%s6901 + $0x58] sm:$0xff]
      %v6914 = vld [vmem:[%s6901 + $0x60] sm:$0xff]
      %v6915 = vld [vmem:[%s6901 + $0x68] sm:$0xff]
      %v6916 = vld [vmem:[%s6901 + $0x70] sm:$0xff]
      %v6917 = vld [vmem:[%s6901 + $0x78] sm:$0xff]
      %s6918 = sadd.s32 %s4238, 314
      %s6919 = scalar_lea.vmem [#allocation2], %s6918
      %v6920 = vld [vmem:[%s6919] sm:$0xff]
      %v6921 = vld [vmem:[%s6919 + $0x8] sm:$0xff]
      %v6922 = vld [vmem:[%s6919 + $0x10] sm:$0xff]
      %v6923 = vld [vmem:[%s6919 + $0x18] sm:$0xff]
      %v6924 = vld [vmem:[%s6919 + $0x20] sm:$0xff]
      %v6925 = vld [vmem:[%s6919 + $0x28] sm:$0xff]
      %v6926 = vld [vmem:[%s6919 + $0x30] sm:$0xff]
      %v6927 = vld [vmem:[%s6919 + $0x38] sm:$0xff]
      %v6928 = vld [vmem:[%s6919 + $0x40] sm:$0xff]
      %v6929 = vld [vmem:[%s6919 + $0x48] sm:$0xff]
      %v6930 = vld [vmem:[%s6919 + $0x50] sm:$0xff]
      %v6931 = vld [vmem:[%s6919 + $0x58] sm:$0xff]
      %v6932 = vld [vmem:[%s6919 + $0x60] sm:$0xff]
      %v6933 = vld [vmem:[%s6919 + $0x68] sm:$0xff]
      %v6934 = vld [vmem:[%s6919 + $0x70] sm:$0xff]
      %v6935 = vld [vmem:[%s6919 + $0x78] sm:$0xff]
      %6952 = vrot.lane.b32.xlu0 %v6902, 16
      %v6953 = vpop.permute.xlu0 %6952
      %6954 = vrot.lane.b32.xlu0 %v6903, 16
      %v6955 = vpop.permute.xlu0 %6954
      %6956 = vrot.lane.b32.xlu0 %v6904, 16
      %v6957 = vpop.permute.xlu0 %6956
      %6958 = vrot.lane.b32.xlu0 %v6905, 16
      %v6959 = vpop.permute.xlu0 %6958
      %6960 = vrot.lane.b32.xlu0 %v6906, 16
      %v6961 = vpop.permute.xlu0 %6960
      %6962 = vrot.lane.b32.xlu0 %v6907, 16
      %v6963 = vpop.permute.xlu0 %6962
      %6964 = vrot.lane.b32.xlu0 %v6908, 16
      %v6965 = vpop.permute.xlu0 %6964
      %6966 = vrot.lane.b32.xlu0 %v6909, 16
      %v6967 = vpop.permute.xlu0 %6966
      %6968 = vrot.lane.b32.xlu0 %v6910, 16
      %v6969 = vpop.permute.xlu0 %6968
      %6970 = vrot.lane.b32.xlu0 %v6911, 16
      %v6971 = vpop.permute.xlu0 %6970
      %6972 = vrot.lane.b32.xlu0 %v6912, 16
      %v6973 = vpop.permute.xlu0 %6972
      %6974 = vrot.lane.b32.xlu0 %v6913, 16
      %v6975 = vpop.permute.xlu0 %6974
      %6976 = vrot.lane.b32.xlu0 %v6914, 16
      %v6977 = vpop.permute.xlu0 %6976
      %6978 = vrot.lane.b32.xlu0 %v6915, 16
      %v6979 = vpop.permute.xlu0 %6978
      %6980 = vrot.lane.b32.xlu0 %v6916, 16
      %v6981 = vpop.permute.xlu0 %6980
      %6982 = vrot.lane.b32.xlu0 %v6917, 16
      %v6983 = vpop.permute.xlu0 %6982
      %7016 = vrot.lane.b32.xlu0 %v6920, 32
      %v7017 = vpop.permute.xlu0 %7016
      %7018 = vrot.lane.b32.xlu0 %v6921, 32
      %v7019 = vpop.permute.xlu0 %7018
      %7020 = vrot.lane.b32.xlu0 %v6922, 32
      %v7021 = vpop.permute.xlu0 %7020
      %7022 = vrot.lane.b32.xlu0 %v6923, 32
      %v7023 = vpop.permute.xlu0 %7022
      %7024 = vrot.lane.b32.xlu0 %v6924, 32
      %v7025 = vpop.permute.xlu0 %7024
      %7026 = vrot.lane.b32.xlu0 %v6925, 32
      %v7027 = vpop.permute.xlu0 %7026
      %7028 = vrot.lane.b32.xlu0 %v6926, 32
      %v7029 = vpop.permute.xlu0 %7028
      %7030 = vrot.lane.b32.xlu0 %v6927, 32
      %v7031 = vpop.permute.xlu0 %7030
      %7032 = vrot.lane.b32.xlu0 %v6928, 32
      %v7033 = vpop.permute.xlu0 %7032
      %7034 = vrot.lane.b32.xlu0 %v6929, 32
      %v7035 = vpop.permute.xlu0 %7034
      %7036 = vrot.lane.b32.xlu0 %v6930, 32
      %v7037 = vpop.permute.xlu0 %7036
      %7038 = vrot.lane.b32.xlu0 %v6931, 32
      %v7039 = vpop.permute.xlu0 %7038
      %7040 = vrot.lane.b32.xlu0 %v6932, 32
      %v7041 = vpop.permute.xlu0 %7040
      %7042 = vrot.lane.b32.xlu0 %v6933, 32
      %v7043 = vpop.permute.xlu0 %7042
      %7044 = vrot.lane.b32.xlu0 %v6934, 32
      %v7045 = vpop.permute.xlu0 %7044
      %7046 = vrot.lane.b32.xlu0 %v6935, 32
      %v7047 = vpop.permute.xlu0 %7046
      %7080 = vrot.lane.b32.xlu0 %v4240, 48
      %v7081 = vpop.permute.xlu0 %7080
      %7082 = vrot.lane.b32.xlu0 %v4241, 48
      %v7083 = vpop.permute.xlu0 %7082
      %7084 = vrot.lane.b32.xlu0 %v4242, 48
      %v7085 = vpop.permute.xlu0 %7084
      %7086 = vrot.lane.b32.xlu0 %v4243, 48
      %v7087 = vpop.permute.xlu0 %7086
      %7088 = vrot.lane.b32.xlu0 %v4244, 48
      %v7089 = vpop.permute.xlu0 %7088
      %7090 = vrot.lane.b32.xlu0 %v4245, 48
      %v7091 = vpop.permute.xlu0 %7090
      %7092 = vrot.lane.b32.xlu0 %v4246, 48
      %v7093 = vpop.permute.xlu0 %7092
      %7094 = vrot.lane.b32.xlu0 %v4247, 48
      %v7095 = vpop.permute.xlu0 %7094
      %7096 = vrot.lane.b32.xlu0 %v4248, 48
      %v7097 = vpop.permute.xlu0 %7096
      %7098 = vrot.lane.b32.xlu0 %v4249, 48
      %v7099 = vpop.permute.xlu0 %7098
      %7100 = vrot.lane.b32.xlu0 %v4250, 48
      %v7101 = vpop.permute.xlu0 %7100
      %7102 = vrot.lane.b32.xlu0 %v4251, 48
      %v7103 = vpop.permute.xlu0 %7102
      %7104 = vrot.lane.b32.xlu0 %v4252, 48
      %v7105 = vpop.permute.xlu0 %7104
      %7106 = vrot.lane.b32.xlu0 %v4253, 48
      %v7107 = vpop.permute.xlu0 %7106
      %7108 = vrot.lane.b32.xlu0 %v4254, 48
      %v7109 = vpop.permute.xlu0 %7108
      %7110 = vrot.lane.b32.xlu0 %v4255, 48
      %v7111 = vpop.permute.xlu0 %7110
      %7128 = vrot.lane.b32.xlu0 %v4240, 64
      %v7129 = vpop.permute.xlu0 %7128
      %7130 = vrot.lane.b32.xlu0 %v4241, 64
      %v7131 = vpop.permute.xlu0 %7130
      %7132 = vrot.lane.b32.xlu0 %v4242, 64
      %v7133 = vpop.permute.xlu0 %7132
      %7134 = vrot.lane.b32.xlu0 %v4243, 64
      %v7135 = vpop.permute.xlu0 %7134
      %7136 = vrot.lane.b32.xlu0 %v4244, 64
      %v7137 = vpop.permute.xlu0 %7136
      %7138 = vrot.lane.b32.xlu0 %v4245, 64
      %v7139 = vpop.permute.xlu0 %7138
      %7140 = vrot.lane.b32.xlu0 %v4246, 64
      %v7141 = vpop.permute.xlu0 %7140
      %7142 = vrot.lane.b32.xlu0 %v4247, 64
      %v7143 = vpop.permute.xlu0 %7142
      %7144 = vrot.lane.b32.xlu0 %v4248, 64
      %v7145 = vpop.permute.xlu0 %7144
      %7146 = vrot.lane.b32.xlu0 %v4249, 64
      %v7147 = vpop.permute.xlu0 %7146
      %7148 = vrot.lane.b32.xlu0 %v4250, 64
      %v7149 = vpop.permute.xlu0 %7148
      %7150 = vrot.lane.b32.xlu0 %v4251, 64
      %v7151 = vpop.permute.xlu0 %7150
      %7152 = vrot.lane.b32.xlu0 %v4252, 64
      %v7153 = vpop.permute.xlu0 %7152
      %7154 = vrot.lane.b32.xlu0 %v4253, 64
      %v7155 = vpop.permute.xlu0 %7154
      %7156 = vrot.lane.b32.xlu0 %v4254, 64
      %v7157 = vpop.permute.xlu0 %7156
      %7158 = vrot.lane.b32.xlu0 %v4255, 64
      %v7159 = vpop.permute.xlu0 %7158
      %7176 = vrot.lane.b32.xlu0 %v4240, 80
      %v7177 = vpop.permute.xlu0 %7176
      %7178 = vrot.lane.b32.xlu0 %v4241, 80
      %v7179 = vpop.permute.xlu0 %7178
      %7180 = vrot.lane.b32.xlu0 %v4242, 80
      %v7181 = vpop.permute.xlu0 %7180
      %7182 = vrot.lane.b32.xlu0 %v4243, 80
      %v7183 = vpop.permute.xlu0 %7182
      %7184 = vrot.lane.b32.xlu0 %v4244, 80
      %v7185 = vpop.permute.xlu0 %7184
      %7186 = vrot.lane.b32.xlu0 %v4245, 80
      %v7187 = vpop.permute.xlu0 %7186
      %7188 = vrot.lane.b32.xlu0 %v4246, 80
      %v7189 = vpop.permute.xlu0 %7188
      %7190 = vrot.lane.b32.xlu0 %v4247, 80
      %v7191 = vpop.permute.xlu0 %7190
      %7192 = vrot.lane.b32.xlu0 %v4248, 80
      %v7193 = vpop.permute.xlu0 %7192
      %7194 = vrot.lane.b32.xlu0 %v4249, 80
      %v7195 = vpop.permute.xlu0 %7194
      %7196 = vrot.lane.b32.xlu0 %v4250, 80
      %v7197 = vpop.permute.xlu0 %7196
      %7198 = vrot.lane.b32.xlu0 %v4251, 80
      %v7199 = vpop.permute.xlu0 %7198
      %7200 = vrot.lane.b32.xlu0 %v4252, 80
      %v7201 = vpop.permute.xlu0 %7200
      %7202 = vrot.lane.b32.xlu0 %v4253, 80
      %v7203 = vpop.permute.xlu0 %7202
      %7204 = vrot.lane.b32.xlu0 %v4254, 80
      %v7205 = vpop.permute.xlu0 %7204
      %7206 = vrot.lane.b32.xlu0 %v4255, 80
      %v7207 = vpop.permute.xlu0 %7206
      %7224 = vrot.lane.b32.xlu0 %v4240, 96
      %v7225 = vpop.permute.xlu0 %7224
      %7226 = vrot.lane.b32.xlu0 %v4241, 96
      %v7227 = vpop.permute.xlu0 %7226
      %7228 = vrot.lane.b32.xlu0 %v4242, 96
      %v7229 = vpop.permute.xlu0 %7228
      %7230 = vrot.lane.b32.xlu0 %v4243, 96
      %v7231 = vpop.permute.xlu0 %7230
      %7232 = vrot.lane.b32.xlu0 %v4244, 96
      %v7233 = vpop.permute.xlu0 %7232
      %7234 = vrot.lane.b32.xlu0 %v4245, 96
      %v7235 = vpop.permute.xlu0 %7234
      %7236 = vrot.lane.b32.xlu0 %v4246, 96
      %v7237 = vpop.permute.xlu0 %7236
      %7238 = vrot.lane.b32.xlu0 %v4247, 96
      %v7239 = vpop.permute.xlu0 %7238
      %7240 = vrot.lane.b32.xlu0 %v4248, 96
      %v7241 = vpop.permute.xlu0 %7240
      %7242 = vrot.lane.b32.xlu0 %v4249, 96
      %v7243 = vpop.permute.xlu0 %7242
      %7244 = vrot.lane.b32.xlu0 %v4250, 96
      %v7245 = vpop.permute.xlu0 %7244
      %7246 = vrot.lane.b32.xlu0 %v4251, 96
      %v7247 = vpop.permute.xlu0 %7246
      %7248 = vrot.lane.b32.xlu0 %v4252, 96
      %v7249 = vpop.permute.xlu0 %7248
      %7250 = vrot.lane.b32.xlu0 %v4253, 96
      %v7251 = vpop.permute.xlu0 %7250
      %7252 = vrot.lane.b32.xlu0 %v4254, 96
      %v7253 = vpop.permute.xlu0 %7252
      %7254 = vrot.lane.b32.xlu0 %v4255, 96
      %v7255 = vpop.permute.xlu0 %7254
      %7272 = vrot.lane.b32.xlu0 %v4240, 112
      %v7273 = vpop.permute.xlu0 %7272
      %7274 = vrot.lane.b32.xlu0 %v4241, 112
      %v7275 = vpop.permute.xlu0 %7274
      %7276 = vrot.lane.b32.xlu0 %v4242, 112
      %v7277 = vpop.permute.xlu0 %7276
      %7278 = vrot.lane.b32.xlu0 %v4243, 112
      %v7279 = vpop.permute.xlu0 %7278
      %7280 = vrot.lane.b32.xlu0 %v4244, 112
      %v7281 = vpop.permute.xlu0 %7280
      %7282 = vrot.lane.b32.xlu0 %v4245, 112
      %v7283 = vpop.permute.xlu0 %7282
      %7284 = vrot.lane.b32.xlu0 %v4246, 112
      %v7285 = vpop.permute.xlu0 %7284
      %7286 = vrot.lane.b32.xlu0 %v4247, 112
      %v7287 = vpop.permute.xlu0 %7286
      %7288 = vrot.lane.b32.xlu0 %v4248, 112
      %v7289 = vpop.permute.xlu0 %7288
      %7290 = vrot.lane.b32.xlu0 %v4249, 112
      %v7291 = vpop.permute.xlu0 %7290
      %7292 = vrot.lane.b32.xlu0 %v4250, 112
      %v7293 = vpop.permute.xlu0 %7292
      %7294 = vrot.lane.b32.xlu0 %v4251, 112
      %v7295 = vpop.permute.xlu0 %7294
      %7296 = vrot.lane.b32.xlu0 %v4252, 112
      %v7297 = vpop.permute.xlu0 %7296
      %7298 = vrot.lane.b32.xlu0 %v4253, 112
      %v7299 = vpop.permute.xlu0 %7298
      %7300 = vrot.lane.b32.xlu0 %v4254, 112
      %v7301 = vpop.permute.xlu0 %7300
      %7302 = vrot.lane.b32.xlu0 %v4255, 112
      %v7303 = vpop.permute.xlu0 %7302
      %v7320 = vsel %vm4830, %v6884, %v6953
      %v7321 = vsel %vm4830, %v6885, %v6955
      %v7322 = vsel %vm4830, %v6886, %v6957
      %v7323 = vsel %vm4830, %v6887, %v6959
      %v7324 = vsel %vm4830, %v6888, %v6961
      %v7325 = vsel %vm4830, %v6889, %v6963
      %v7326 = vsel %vm4830, %v6890, %v6965
      %v7327 = vsel %vm4830, %v6891, %v6967
      %v7328 = vsel %vm4830, %v6892, %v6969
      %v7329 = vsel %vm4830, %v6893, %v6971
      %v7330 = vsel %vm4830, %v6894, %v6973
      %v7331 = vsel %vm4830, %v6895, %v6975
      %v7332 = vsel %vm4830, %v6896, %v6977
      %v7333 = vsel %vm4830, %v6897, %v6979
      %v7334 = vsel %vm4830, %v6898, %v6981
      %v7335 = vsel %vm4830, %v6899, %v6983
      %v7336 = vsel %vm4847, %v7320, %v7017
      %v7337 = vsel %vm4847, %v7321, %v7019
      %v7338 = vsel %vm4847, %v7322, %v7021
      %v7339 = vsel %vm4847, %v7323, %v7023
      %v7340 = vsel %vm4847, %v7324, %v7025
      %v7341 = vsel %vm4847, %v7325, %v7027
      %v7342 = vsel %vm4847, %v7326, %v7029
      %v7343 = vsel %vm4847, %v7327, %v7031
      %v7344 = vsel %vm4847, %v7328, %v7033
      %v7345 = vsel %vm4847, %v7329, %v7035
      %v7346 = vsel %vm4847, %v7330, %v7037
      %v7347 = vsel %vm4847, %v7331, %v7039
      %v7348 = vsel %vm4847, %v7332, %v7041
      %v7349 = vsel %vm4847, %v7333, %v7043
      %v7350 = vsel %vm4847, %v7334, %v7045
      %v7351 = vsel %vm4847, %v7335, %v7047
      %v7352 = vsel %vm4864, %v7336, %v7081
      %v7353 = vsel %vm4864, %v7337, %v7083
      %v7354 = vsel %vm4864, %v7338, %v7085
      %v7355 = vsel %vm4864, %v7339, %v7087
      %v7356 = vsel %vm4864, %v7340, %v7089
      %v7357 = vsel %vm4864, %v7341, %v7091
      %v7358 = vsel %vm4864, %v7342, %v7093
      %v7359 = vsel %vm4864, %v7343, %v7095
      %v7360 = vsel %vm4864, %v7344, %v7097
      %v7361 = vsel %vm4864, %v7345, %v7099
      %v7362 = vsel %vm4864, %v7346, %v7101
      %v7363 = vsel %vm4864, %v7347, %v7103
      %v7364 = vsel %vm4864, %v7348, %v7105
      %v7365 = vsel %vm4864, %v7349, %v7107
      %v7366 = vsel %vm4864, %v7350, %v7109
      %v7367 = vsel %vm4864, %v7351, %v7111
      %v7368 = vsel %vm4881, %v7352, %v7129
      %v7369 = vsel %vm4881, %v7353, %v7131
      %v7370 = vsel %vm4881, %v7354, %v7133
      %v7371 = vsel %vm4881, %v7355, %v7135
      %v7372 = vsel %vm4881, %v7356, %v7137
      %v7373 = vsel %vm4881, %v7357, %v7139
      %v7374 = vsel %vm4881, %v7358, %v7141
      %v7375 = vsel %vm4881, %v7359, %v7143
      %v7376 = vsel %vm4881, %v7360, %v7145
      %v7377 = vsel %vm4881, %v7361, %v7147
      %v7378 = vsel %vm4881, %v7362, %v7149
      %v7379 = vsel %vm4881, %v7363, %v7151
      %v7380 = vsel %vm4881, %v7364, %v7153
      %v7381 = vsel %vm4881, %v7365, %v7155
      %v7382 = vsel %vm4881, %v7366, %v7157
      %v7383 = vsel %vm4881, %v7367, %v7159
      %v7384 = vsel %vm4898, %v7368, %v7177
      %v7385 = vsel %vm4898, %v7369, %v7179
      %v7386 = vsel %vm4898, %v7370, %v7181
      %v7387 = vsel %vm4898, %v7371, %v7183
      %v7388 = vsel %vm4898, %v7372, %v7185
      %v7389 = vsel %vm4898, %v7373, %v7187
      %v7390 = vsel %vm4898, %v7374, %v7189
      %v7391 = vsel %vm4898, %v7375, %v7191
      %v7392 = vsel %vm4898, %v7376, %v7193
      %v7393 = vsel %vm4898, %v7377, %v7195
      %v7394 = vsel %vm4898, %v7378, %v7197
      %v7395 = vsel %vm4898, %v7379, %v7199
      %v7396 = vsel %vm4898, %v7380, %v7201
      %v7397 = vsel %vm4898, %v7381, %v7203
      %v7398 = vsel %vm4898, %v7382, %v7205
      %v7399 = vsel %vm4898, %v7383, %v7207
      %v7400 = vsel %vm4915, %v7384, %v7225
      %v7401 = vsel %vm4915, %v7385, %v7227
      %v7402 = vsel %vm4915, %v7386, %v7229
      %v7403 = vsel %vm4915, %v7387, %v7231
      %v7404 = vsel %vm4915, %v7388, %v7233
      %v7405 = vsel %vm4915, %v7389, %v7235
      %v7406 = vsel %vm4915, %v7390, %v7237
      %v7407 = vsel %vm4915, %v7391, %v7239
      %v7408 = vsel %vm4915, %v7392, %v7241
      %v7409 = vsel %vm4915, %v7393, %v7243
      %v7410 = vsel %vm4915, %v7394, %v7245
      %v7411 = vsel %vm4915, %v7395, %v7247
      %v7412 = vsel %vm4915, %v7396, %v7249
      %v7413 = vsel %vm4915, %v7397, %v7251
      %v7414 = vsel %vm4915, %v7398, %v7253
      %v7415 = vsel %vm4915, %v7399, %v7255
      %v7416 = vsel %vm4932, %v7400, %v7273
      %v7417 = vsel %vm4932, %v7401, %v7275
      %v7418 = vsel %vm4932, %v7402, %v7277
      %v7419 = vsel %vm4932, %v7403, %v7279
      %v7420 = vsel %vm4932, %v7404, %v7281
      %v7421 = vsel %vm4932, %v7405, %v7283
      %v7422 = vsel %vm4932, %v7406, %v7285
      %v7423 = vsel %vm4932, %v7407, %v7287
      %v7424 = vsel %vm4932, %v7408, %v7289
      %v7425 = vsel %vm4932, %v7409, %v7291
      %v7426 = vsel %vm4932, %v7410, %v7293
      %v7427 = vsel %vm4932, %v7411, %v7295
      %v7428 = vsel %vm4932, %v7412, %v7297
      %v7429 = vsel %vm4932, %v7413, %v7299
      %v7430 = vsel %vm4932, %v7414, %v7301
      %v7431 = vsel %vm4932, %v7415, %v7303
      %v7432 = vpack.c.bf16 %v7417, %v7416
      %v7433 = vpack.c.bf16 %v7419, %v7418
      %v7434 = vpack.c.bf16 %v7421, %v7420
      %v7435 = vpack.c.bf16 %v7423, %v7422
      %v7436 = vpack.c.bf16 %v7425, %v7424
      %v7437 = vpack.c.bf16 %v7427, %v7426
      %v7438 = vpack.c.bf16 %v7429, %v7428
      %v7439 = vpack.c.bf16 %v7431, %v7430
      %s7440 = scalar_lea.vmem %s5, 192
      %v7441 = vld [vmem:[%s7440] sm:$0xf]
      %v7442 = vld [vmem:[%s7440 + $0x4] sm:$0xf]
      %v7443 = vld [vmem:[%s7440 + $0x8] sm:$0xf]
      %v7444 = vld [vmem:[%s7440 + $0xc] sm:$0xf]
      %v7445 = vld [vmem:[%s7440 + $0x10] sm:$0xf]
      %v7446 = vld [vmem:[%s7440 + $0x14] sm:$0xf]
      %v7447 = vld [vmem:[%s7440 + $0x18] sm:$0xf]
      %v7448 = vld [vmem:[%s7440 + $0x1c] sm:$0xf]
      %v7449 = vld [vmem:[%s7440 + $0x20] sm:$0xf]
      %v7450 = vld [vmem:[%s7440 + $0x24] sm:$0xf]
      %v7451 = vld [vmem:[%s7440 + $0x28] sm:$0xf]
      %v7452 = vld [vmem:[%s7440 + $0x2c] sm:$0xf]
      %v7453 = vld [vmem:[%s7440 + $0x30] sm:$0xf]
      %v7454 = vld [vmem:[%s7440 + $0x34] sm:$0xf]
      %v7455 = vld [vmem:[%s7440 + $0x38] sm:$0xf]
      %v7456 = vld [vmem:[%s7440 + $0x3c] sm:$0xf]
      %v7473 = vunpack.c.l.b16 %v7441
      %v7474 = vunpack.c.l.b16 %v7442
      %v7475 = vunpack.c.l.b16 %v7443
      %v7476 = vunpack.c.l.b16 %v7444
      %v7477 = vunpack.c.l.b16 %v7445
      %v7478 = vunpack.c.l.b16 %v7446
      %v7479 = vunpack.c.l.b16 %v7447
      %v7480 = vunpack.c.l.b16 %v7448
      %v7481 = vunpack.c.l.b16 %v7449
      %v7482 = vunpack.c.l.b16 %v7450
      %v7483 = vunpack.c.l.b16 %v7451
      %v7484 = vunpack.c.l.b16 %v7452
      %v7485 = vunpack.c.l.b16 %v7453
      %v7486 = vunpack.c.l.b16 %v7454
      %v7487 = vunpack.c.l.b16 %v7455
      %v7488 = vunpack.c.l.b16 %v7456
      %v7489 = vpack.c.b16 %v7474, %v7473
      %v7490 = vpack.c.b16 %v7476, %v7475
      %v7491 = vpack.c.b16 %v7478, %v7477
      %v7492 = vpack.c.b16 %v7480, %v7479
      %v7493 = vpack.c.b16 %v7482, %v7481
      %v7494 = vpack.c.b16 %v7484, %v7483
      %v7495 = vpack.c.b16 %v7486, %v7485
      %v7496 = vpack.c.b16 %v7488, %v7487
      %7505 = vmatprep.subr.bf16.mxu0 0
      %7506 = vmatpush1.bf16.msra.mxu0 %v7489
      %7507 = vmatprep.subr.bf16.mxu0 0
      %7508 = vmatpush1.bf16.msra.mxu0 %v7490
      %7509 = vmatprep.subr.bf16.mxu0 0
      %7510 = vmatpush1.bf16.msra.mxu0 %v7491
      %7511 = vmatprep.subr.bf16.mxu0 0
      %7512 = vmatpush1.bf16.msra.mxu0 %v7492
      %7513 = vmatprep.subr.bf16.mxu0 0
      %7514 = vmatpush1.bf16.msra.mxu0 %v7493
      %7515 = vmatprep.subr.bf16.mxu0 0
      %7516 = vmatpush1.bf16.msra.mxu0 %v7494
      %7517 = vmatprep.subr.bf16.mxu0 0
      %7518 = vmatpush1.bf16.msra.mxu0 %v7495
      %7519 = vmatprep.subr.bf16.mxu0 0
      %7520 = vmatpush1.bf16.msra.mxu0 %v7496
      %7521 = vmatprep.subr.bf16.mxu0 0
      %7522 = vmatpush1.bf16.msra.mxu0 0
      %7523 = vmatprep.subr.bf16.mxu0 0
      %7524 = vmatpush1.bf16.msra.mxu0 0
      %7525 = vmatprep.subr.bf16.mxu0 0
      %7526 = vmatpush1.bf16.msra.mxu0 0
      %7527 = vmatprep.subr.bf16.mxu0 0
      %7528 = vmatpush1.bf16.msra.mxu0 0
      %7529 = vmatprep.subr.bf16.mxu0 0
      %7530 = vmatpush1.bf16.msra.mxu0 0
      %7531 = vmatprep.subr.bf16.mxu0 0
      %7532 = vmatpush1.bf16.msra.mxu0 0
      %7533 = vmatprep.subr.bf16.mxu0 0
      %7534 = vmatpush1.bf16.msra.mxu0 0
      %7535 = vmatprep.subr.bf16.mxu0 0
      %7536 = vmatpush1.bf16.msra.mxu0 0
      %7537 = vmatprep.mubr.bf16.mxu0 0
      %7538 = vmatmul.mubr.bf16.gmra.mrb[0].mxu0 %v7432
      %v7539 = vpop.f32.mrb[0].mxu0
      %v7540 = vadd.f32 0.0, %v7539
      %v7541 = vpop.f32.mrb[0].mxu0
      %v7542 = vpop.f32.mrb[0].mxu0
      %v7543 = vadd.f32 0.0, %v7542
      %v7544 = vpop.f32.mrb[0].mxu0
      %7545 = vmatprep.mubr.bf16.mxu0 0
      %7546 = vmatmul.mubr.bf16.gmra.mrb[0].mxu0 %v7433
      %v7547 = vpop.f32.mrb[0].mxu0
      %v7548 = vadd.f32 0.0, %v7547
      %v7549 = vpop.f32.mrb[0].mxu0
      %v7550 = vpop.f32.mrb[0].mxu0
      %v7551 = vadd.f32 0.0, %v7550
      %v7552 = vpop.f32.mrb[0].mxu0
      %7553 = vmatprep.mubr.bf16.mxu0 0
      %7554 = vmatmul.mubr.bf16.gmra.mrb[0].mxu0 %v7434
      %v7555 = vpop.f32.mrb[0].mxu0
      %v7556 = vadd.f32 0.0, %v7555
      %v7557 = vpop.f32.mrb[0].mxu0
      %v7558 = vpop.f32.mrb[0].mxu0
      %v7559 = vadd.f32 0.0, %v7558
      %v7560 = vpop.f32.mrb[0].mxu0
      %7561 = vmatprep.mubr.bf16.mxu0 0
      %7562 = vmatmul.mubr.bf16.gmra.mrb[0].mxu0 %v7435
      %v7563 = vpop.f32.mrb[0].mxu0
      %v7564 = vadd.f32 0.0, %v7563
      %v7565 = vpop.f32.mrb[0].mxu0
      %v7566 = vpop.f32.mrb[0].mxu0
      %v7567 = vadd.f32 0.0, %v7566
      %v7568 = vpop.f32.mrb[0].mxu0
      %7569 = vmatprep.mubr.bf16.mxu0 0
      %7570 = vmatmul.mubr.bf16.gmra.mrb[0].mxu0 %v7436
      %v7571 = vpop.f32.mrb[0].mxu0
      %v7572 = vadd.f32 0.0, %v7571
      %v7573 = vpop.f32.mrb[0].mxu0
      %v7574 = vpop.f32.mrb[0].mxu0
      %v7575 = vadd.f32 0.0, %v7574
      %v7576 = vpop.f32.mrb[0].mxu0
      %7577 = vmatprep.mubr.bf16.mxu0 0
      %7578 = vmatmul.mubr.bf16.gmra.mrb[0].mxu0 %v7437
      %v7579 = vpop.f32.mrb[0].mxu0
      %v7580 = vadd.f32 0.0, %v7579
      %v7581 = vpop.f32.mrb[0].mxu0
      %v7582 = vpop.f32.mrb[0].mxu0
      %v7583 = vadd.f32 0.0, %v7582
      %v7584 = vpop.f32.mrb[0].mxu0
      %7585 = vmatprep.mubr.bf16.mxu0 0
      %7586 = vmatmul.mubr.bf16.gmra.mrb[0].mxu0 %v7438
      %v7587 = vpop.f32.mrb[0].mxu0
      %v7588 = vadd.f32 0.0, %v7587
      %v7589 = vpop.f32.mrb[0].mxu0
      %v7590 = vpop.f32.mrb[0].mxu0
      %v7591 = vadd.f32 0.0, %v7590
      %v7592 = vpop.f32.mrb[0].mxu0
      %7593 = vmatprep.mubr.bf16.mxu0 0
      %7594 = vmatmul.mubr.bf16.gmra.mrb[0].mxu0 %v7439
      %v7595 = vpop.f32.mrb[0].mxu0
      %v7596 = vadd.f32 0.0, %v7595
      %v7597 = vpop.f32.mrb[0].mxu0
      %v7598 = vpop.f32.mrb[0].mxu0
      %v7599 = vadd.f32 0.0, %v7598
      %v7600 = vpop.f32.mrb[0].mxu0
      %7601 = vdwg.mxu0
      %v7602 = vadd.f32 %v6866, %v7540
      %v7603 = vadd.f32 %v6867, %v7543
      %v7604 = vadd.f32 %v6868, %v7548
      %v7605 = vadd.f32 %v6869, %v7551
      %v7606 = vadd.f32 %v6870, %v7556
      %v7607 = vadd.f32 %v6871, %v7559
      %v7608 = vadd.f32 %v6872, %v7564
      %v7609 = vadd.f32 %v6873, %v7567
      %v7610 = vadd.f32 %v6874, %v7572
      %v7611 = vadd.f32 %v6875, %v7575
      %v7612 = vadd.f32 %v6876, %v7580
      %v7613 = vadd.f32 %v6877, %v7583
      %v7614 = vadd.f32 %v6878, %v7588
      %v7615 = vadd.f32 %v6879, %v7591
      %v7616 = vadd.f32 %v6880, %v7596
      %v7617 = vadd.f32 %v6881, %v7599
      %v7619 = vlaneseq
      %v7620 = vshrl.u32 %v7619, 7
      %v7621 = vsub.s32 0, %v7620
      %v7622 = vrot.slane %v47, %v7621
      %v7624 = vmul.f32 %v7602, %v7622
      %v7625 = vmul.f32 %v7603, %v7622
      %v7626 = vmul.f32 %v7604, %v7622
      %v7627 = vmul.f32 %v7605, %v7622
      %v7628 = vmul.f32 %v7606, %v7622
      %v7629 = vmul.f32 %v7607, %v7622
      %v7630 = vmul.f32 %v7608, %v7622
      %v7631 = vmul.f32 %v7609, %v7622
      %v7632 = vmul.f32 %v7610, %v7622
      %v7633 = vmul.f32 %v7611, %v7622
      %v7634 = vmul.f32 %v7612, %v7622
      %v7635 = vmul.f32 %v7613, %v7622
      %v7636 = vmul.f32 %v7614, %v7622
      %v7637 = vmul.f32 %v7615, %v7622
      %v7638 = vmul.f32 %v7616, %v7622
      %v7639 = vmul.f32 %v7617, %v7622
      %v7641 = vlaneseq
      %v7642 = vshrl.u32 %v7641, 7
      %v7643 = vsub.s32 0, %v7642
      %v7644 = vrot.slane %v48, %v7643
      %v7646 = vadd.f32 %v7624, %v7644
      %v7647 = vadd.f32 %v7625, %v7644
      %v7648 = vadd.f32 %v7626, %v7644
      %v7649 = vadd.f32 %v7627, %v7644
      %v7650 = vadd.f32 %v7628, %v7644
      %v7651 = vadd.f32 %v7629, %v7644
      %v7652 = vadd.f32 %v7630, %v7644
      %v7653 = vadd.f32 %v7631, %v7644
      %v7654 = vadd.f32 %v7632, %v7644
      %v7655 = vadd.f32 %v7633, %v7644
      %v7656 = vadd.f32 %v7634, %v7644
      %v7657 = vadd.f32 %v7635, %v7644
      %v7658 = vadd.f32 %v7636, %v7644
      %v7659 = vadd.f32 %v7637, %v7644
      %v7660 = vadd.f32 %v7638, %v7644
      %v7661 = vadd.f32 %v7639, %v7644
      %v7662 = vmax.f32 %v7646, 0.0
      %v7663 = vmax.f32 %v7647, 0.0
      %v7664 = vmax.f32 %v7648, 0.0
      %v7665 = vmax.f32 %v7649, 0.0
      %v7666 = vmax.f32 %v7650, 0.0
      %v7667 = vmax.f32 %v7651, 0.0
      %v7668 = vmax.f32 %v7652, 0.0
      %v7669 = vmax.f32 %v7653, 0.0
      %v7670 = vmax.f32 %v7654, 0.0
      %v7671 = vmax.f32 %v7655, 0.0
      %v7672 = vmax.f32 %v7656, 0.0
      %v7673 = vmax.f32 %v7657, 0.0
      %v7674 = vmax.f32 %v7658, 0.0
      %v7675 = vmax.f32 %v7659, 0.0
      %v7676 = vmax.f32 %v7660, 0.0
      %v7677 = vmax.f32 %v7661, 0.0
      %s7678 = scalar_lea.vmem %s1, %s4238
      %v7679 = vld [vmem:[%s7678] sm:$0xff]
      %v7680 = vld [vmem:[%s7678 + $0x8] sm:$0xff]
      %v7681 = vld [vmem:[%s7678 + $0x10] sm:$0xff]
      %v7682 = vld [vmem:[%s7678 + $0x18] sm:$0xff]
      %v7683 = vld [vmem:[%s7678 + $0x20] sm:$0xff]
      %v7684 = vld [vmem:[%s7678 + $0x28] sm:$0xff]
      %v7685 = vld [vmem:[%s7678 + $0x30] sm:$0xff]
      %v7686 = vld [vmem:[%s7678 + $0x38] sm:$0xff]
      %v7687 = vld [vmem:[%s7678 + $0x40] sm:$0xff]
      %v7688 = vld [vmem:[%s7678 + $0x48] sm:$0xff]
      %v7689 = vld [vmem:[%s7678 + $0x50] sm:$0xff]
      %v7690 = vld [vmem:[%s7678 + $0x58] sm:$0xff]
      %v7691 = vld [vmem:[%s7678 + $0x60] sm:$0xff]
      %v7692 = vld [vmem:[%s7678 + $0x68] sm:$0xff]
      %v7693 = vld [vmem:[%s7678 + $0x70] sm:$0xff]
      %v7694 = vld [vmem:[%s7678 + $0x78] sm:$0xff]
      %7696 = vset.pattern.permute.xlu0 0
      %7697 = vperm.xlu0 %7696, %v7679
      %v7698 = vpop.permute.xlu0 %7697
      %7701 = vset.pattern.permute.xlu0 0
      %7702 = vperm.xlu0 %7701, %v7680
      %v7703 = vpop.permute.xlu0 %7702
      %7706 = vset.pattern.permute.xlu0 0
      %7707 = vperm.xlu0 %7706, %v7681
      %v7708 = vpop.permute.xlu0 %7707
      %7711 = vset.pattern.permute.xlu0 0
      %7712 = vperm.xlu0 %7711, %v7682
      %v7713 = vpop.permute.xlu0 %7712
      %7716 = vset.pattern.permute.xlu0 0
      %7717 = vperm.xlu0 %7716, %v7683
      %v7718 = vpop.permute.xlu0 %7717
      %7721 = vset.pattern.permute.xlu0 0
      %7722 = vperm.xlu0 %7721, %v7684
      %v7723 = vpop.permute.xlu0 %7722
      %7726 = vset.pattern.permute.xlu0 0
      %7727 = vperm.xlu0 %7726, %v7685
      %v7728 = vpop.permute.xlu0 %7727
      %7731 = vset.pattern.permute.xlu0 0
      %7732 = vperm.xlu0 %7731, %v7686
      %v7733 = vpop.permute.xlu0 %7732
      %7736 = vset.pattern.permute.xlu0 0
      %7737 = vperm.xlu0 %7736, %v7687
      %v7738 = vpop.permute.xlu0 %7737
      %7741 = vset.pattern.permute.xlu0 0
      %7742 = vperm.xlu0 %7741, %v7688
      %v7743 = vpop.permute.xlu0 %7742
      %7746 = vset.pattern.permute.xlu0 0
      %7747 = vperm.xlu0 %7746, %v7689
      %v7748 = vpop.permute.xlu0 %7747
      %7751 = vset.pattern.permute.xlu0 0
      %7752 = vperm.xlu0 %7751, %v7690
      %v7753 = vpop.permute.xlu0 %7752
      %7756 = vset.pattern.permute.xlu0 0
      %7757 = vperm.xlu0 %7756, %v7691
      %v7758 = vpop.permute.xlu0 %7757
      %7761 = vset.pattern.permute.xlu0 0
      %7762 = vperm.xlu0 %7761, %v7692
      %v7763 = vpop.permute.xlu0 %7762
      %7766 = vset.pattern.permute.xlu0 0
      %7767 = vperm.xlu0 %7766, %v7693
      %v7768 = vpop.permute.xlu0 %7767
      %7771 = vset.pattern.permute.xlu0 0
      %7772 = vperm.xlu0 %7771, %v7694
      %v7773 = vpop.permute.xlu0 %7772
      %v7775 = vmul.f32 %v7662, %v7698
      %v7776 = vmul.f32 %v7663, %v7703
      %v7777 = vmul.f32 %v7664, %v7708
      %v7778 = vmul.f32 %v7665, %v7713
      %v7779 = vmul.f32 %v7666, %v7718
      %v7780 = vmul.f32 %v7667, %v7723
      %v7781 = vmul.f32 %v7668, %v7728
      %v7782 = vmul.f32 %v7669, %v7733
      %v7783 = vmul.f32 %v7670, %v7738
      %v7784 = vmul.f32 %v7671, %v7743
      %v7785 = vmul.f32 %v7672, %v7748
      %v7786 = vmul.f32 %v7673, %v7753
      %v7787 = vmul.f32 %v7674, %v7758
      %v7788 = vmul.f32 %v7675, %v7763
      %v7789 = vmul.f32 %v7676, %v7768
      %v7790 = vmul.f32 %v7677, %v7773
      %v7791 = vmax.f32 %v7775, %v7779
      %v7792 = vmax.f32 %v7776, %v7780
      %v7793 = vmax.f32 %v7777, %v7781
      %v7794 = vmax.f32 %v7778, %v7782
      %v7795 = vmax.f32 %v7791, %v7783
      %v7796 = vmax.f32 %v7792, %v7784
      %v7797 = vmax.f32 %v7793, %v7785
      %v7798 = vmax.f32 %v7794, %v7786
      %v7799 = vmax.f32 %v7795, %v7787
      %v7800 = vmax.f32 %v7796, %v7788
      %v7801 = vmax.f32 %v7797, %v7789
      %v7802 = vmax.f32 %v7798, %v7790
      %v7803 = vmax.f32 %v7799, %v7800
      %v7804 = vmax.f32 %v7801, %v7802
      %v7805 = vmax.f32 %v7803, %v7804
      %v7806 = vrot.slane %v7805, 4
      %v7807 = vmax.f32 %v7805, %v7806
      %v7808 = vrot.slane %v7807, 2
      %v7809 = vmax.f32 %v7807, %v7808
      %v7810 = vrot.slane %v7809, 1
      %v7811 = vmax.f32 %v7809, %v7810
      %v7812 = vmax.f32 %v4237, %v7811
    $region63: #{qnetwork2_forward.1} parent=1 // loop_footer
      %s4236 = sadd.s32 1, %s4232
    $region64: #{qnetwork2_forward.1} parent=1 // loop_footer_branch
      %4231 = sbr.rel target = $region60
    $region65: #{qnetwork2_forward.1} parent=1 // loop_exit
      _
    %v7813 = vtanh.pop %v4237
    %v7814 = vmul.f32 %v7813, 2.0
    %7815 = vst [vmem:[#allocation6 + $0x1] sm:$0x1] %v7814
    // Predicated region
    $region66: #{qnetwork2_forward.1} parent=1 // pred_check
      _
    $region67: #{qnetwork2_forward.1} parent=1 // pred_check_branch
      %7817 = sbr.rel (0) target = $region69
    $region68: #{qnetwork2_forward.1} parent=1 // pred_region
      %s7819 = ssub.s32 32, 32
      %7820 = vsyncadd [#allocation5], %s7819
      %s7822 = sshll.u32 [#allocation6], 4
      %s7823 = int_to_ptr.vmem [resolvable:$true] %s7822
      %7825 = dma.vmem_to_hbm [thread:$0]  %s7823, 32, %s8, [#allocation5]
    $region69: #{qnetwork2_forward.1} parent=1 // pred_fallthru
      _
    // Predicated region
    $region70: #{qnetwork2_forward.1} parent=1 // pred_check
      _
    $region71: #{qnetwork2_forward.1} parent=1 // pred_check_branch
      %7827 = sbr.rel (0) target = $region73
    $region72: #{qnetwork2_forward.1} parent=1 // pred_region
      %7828 = dma.done [#allocation5], 32
    $region73: #{qnetwork2_forward.1} parent=1 // pred_fallthru
      _
    %7829 = vsyncpa [#allocation4], 1
    %7830 = vsyncpa [#allocation5], 1

</llo_original>
